<compile_context>
chip_gen: v5e
topology: v5e:2x2
jax: 0.10.0
libtpu: 0.0.40
codegen_flags: <defaults>
</compile_context>

<pallas_src>
import functools
import math

import jax
import jax.numpy as jnp
from jax.experimental import pallas as pl
from jax.experimental.pallas import tpu as pltpu

_BN_EPS = 1e-5
_LANE = 128
_VMEM_LIMIT = 32 * 1024 * 1024  # explicit, safe on v5e / v6e / v7x


def _cdiv(a, b):
    return -(-a // b)


def _round_up(x, m):
    return _cdiv(x, m) * m


def _lane_pad(c):
    return _round_up(c, _LANE)


# ----------------------------- Pallas kernels -----------------------------

def _matmul_bias_act_kernel(p_ref, w_ref, b_ref, o_ref, *, apply_relu):
    # (TM, K)bf16 @ (K, Cout)bf16 on the MXU, f32 accumulate, fused bias (+ ReLU).
    acc = jnp.dot(p_ref[...], w_ref[...], preferred_element_type=jnp.float32)
    acc = acc + b_ref[...]
    if apply_relu:
        acc = jnp.maximum(acc, 0.0)
    o_ref[...] = acc.astype(o_ref.dtype)


def _tap_conv_kernel(*refs, tap_offsets, cin, tm, apply_relu, has_residual):
    """Stride-1 3x3 conv as 9 shifted (TM, C)x(C, Cout) bf16 MXU matmuls (f32 acc).

    The flattened padded-activation tile (TM rows) and its halo (TH rows, the head of
    the next tile) are concatenated into a VMEM scratch; every tap reads a statically
    shifted window of that scratch, so no im2col matrix is ever materialized in HBM.
    """
    if has_residual:
        x_ref, h_ref, w_ref, b_ref, r_ref, o_ref, xbuf = refs
    else:
        x_ref, h_ref, w_ref, b_ref, o_ref, xbuf = refs
        r_ref = None

    th = h_ref.shape[0]
    xbuf[0:tm, :] = x_ref[...]
    xbuf[tm:tm + th, :] = h_ref[...]

    acc = None
    for i, off in enumerate(tap_offsets):
        lhs = xbuf[off:off + tm, :].astype(jnp.bfloat16)       # bf16 MXU operand
        rhs = w_ref[i * cin:(i + 1) * cin, :]                  # per-tap (C, Cout) weight
        d = jnp.dot(lhs, rhs, preferred_element_type=jnp.float32)
        acc = d if acc is None else acc + d

    acc = acc + b_ref[...]
    if apply_relu:
        acc = jnp.maximum(acc, 0.0)
    if has_residual:
        # relu(downsample(x) + relu(bn(conv(y)+b))) fused in the same kernel.
        acc = jnp.maximum(acc + r_ref[...], 0.0)
    o_ref[...] = acc.astype(o_ref.dtype)


# ----------------------------- Conv wrappers -----------------------------

def _conv3x3_s1(x, w_hwio, bias, *, residual=None, apply_relu=True):
    """Stride-1 3x3 conv (+bias/ReLU, optional fused residual add + ReLU), NHWC."""
    n, h, w, cin = x.shape
    kh, kw, _, cout = w_hwio.shape
    p = (kh - 1) // 2
    hp, wp = h + 2 * p, w + 2 * p

    # Flatten the zero-padded image: output pixel (oh, ow) lives at flat row oh*wp + ow
    # (columns ow >= w are junk and sliced away afterwards).
    x_flat = jnp.pad(x, ((0, 0), (p, p), (p, p), (0, 0)))
    x_flat = x_flat.reshape(n * hp * wp, cin)

    max_off = (kh - 1) * wp + (kw - 1)
    th = _round_up(max_off, 8)                          # halo rows (sublane aligned)
    m_valid = n * hp * wp
    tm = th * max(4, _cdiv(512, th))                    # >=512-row tiles, multiple of th
    tm = min(tm, th * max(1, 4096 // th))               # VMEM cap for very wide images
    tm = min(tm, th * max(1, _cdiv(m_valid, 2 * th)))   # keep >=2 grid steps (v7x, 2 TCs)
    r = tm // th
    g = _cdiv(m_valid, tm)
    m_out = g * tm
    l_in = m_out + th                                   # last halo block stays in-bounds
    x_flat = jnp.pad(x_flat, ((0, l_in - m_valid), (0, 0)))

    w_mat = w_hwio.reshape(kh * kw * cin, cout).astype(jnp.bfloat16)
    b2 = bias.reshape(1, cout).astype(jnp.float32)
    tap_offsets = tuple(di * wp + dj for di in range(kh) for dj in range(kw))

    in_specs = [
        pl.BlockSpec((tm, cin), lambda i: (i, 0)),             # main tile
        pl.BlockSpec((th, cin), lambda i: ((i + 1) * r, 0)),   # halo = head of next tile
        pl.BlockSpec((kh * kw * cin, cout), lambda i: (0, 0)), # resident weight
        pl.BlockSpec((1, cout), lambda i: (0, 0)),             # folded bias
    ]
    args = [x_flat, x_flat, w_mat, b2]

    if residual is not None:
        # Embed the residual in the same flattened (junk-padded) row layout.
        rp = jnp.pad(residual, ((0, 0), (0, hp - h), (0, wp - w), (0, 0)))
        r_flat = rp.reshape(n * hp * wp, cout)
        r_flat = jnp.pad(r_flat, ((0, m_out - m_valid), (0, 0)))
        in_specs.append(pl.BlockSpec((tm, cout), lambda i: (i, 0)))
        args.append(r_flat)

    kernel = functools.partial(
        _tap_conv_kernel, tap_offsets=tap_offsets, cin=cin, tm=tm,
        apply_relu=apply_relu, has_residual=residual is not None)

    out = pl.pallas_call(
        kernel,
        out_shape=jax.ShapeDtypeStruct((m_out, cout), jnp.float32),
        grid=(g,),
        in_specs=in_specs,
        out_specs=pl.BlockSpec((tm, cout), lambda i: (i, 0)),
        scratch_shapes=[pltpu.VMEM((tm + th, cin), jnp.float32)],
        compiler_params=pltpu.CompilerParams(
            dimension_semantics=("parallel",),
            vmem_limit_bytes=_VMEM_LIMIT),
    )(*args)

    out = out[:m_valid].reshape(n, hp, wp, cout)[:, :h, :w, :]
    return out


def _im2col(x, kh, kw, stride, padding):
    """x: (N, H, W, C) -> patches (N*OH*OW, KH*KW*C) in (kh, kw, c) order."""
    n, h, w, c = x.shape
    xp = jnp.pad(x, ((0, 0), (padding, padding), (padding, padding), (0, 0)))
    hp, wp = h + 2 * padding, w + 2 * padding
    oh = (hp - kh) // stride + 1
    ow = (wp - kw) // stride + 1
    cols = []
    for i in range(kh):
        for j in range(kw):
            cols.append(xp[:, i:i + stride * oh:stride, j:j + stride * ow:stride, :])
    patches = jnp.concatenate(cols, axis=-1)
    return patches.reshape(n * oh * ow, kh * kw * c), (n, oh, ow)


def _conv_im2col(x, w_hwio, bias, stride, *, apply_relu, k_pad_to=None):
    """Conv via small bf16 im2col / reshape + one fused Pallas matmul.

    Used for the 7x7/2 stem, the two 3x3 stride-2 convs and all 1x1 convs (for 1x1
    there is no patch inflation at all)."""
    kh, kw, cin, cout = w_hwio.shape
    padding = (kh - 1) // 2
    if kh == 1 and kw == 1:
        xs = x[:, ::stride, ::stride, :] if stride > 1 else x
        n, oh, ow, _ = xs.shape
        patches = xs.reshape(n * oh * ow, cin).astype(jnp.bfloat16)
    else:
        patches, (n, oh, ow) = _im2col(x.astype(jnp.bfloat16), kh, kw, stride, padding)
    k = kh * kw * cin
    w_mat = w_hwio.reshape(k, cout).astype(jnp.bfloat16)
    if k_pad_to is not None and k_pad_to > k:
        # lane-friendly K (e.g. stem 7*7*3 = 147 -> 256); zero rows keep results exact
        patches = jnp.pad(patches, ((0, 0), (0, k_pad_to - k)))
        w_mat = jnp.pad(w_mat, ((0, k_pad_to - k), (0, 0)))
        k = k_pad_to
    b2 = bias.reshape(1, cout).astype(jnp.float32)

    m = patches.shape[0]
    mp = _round_up(m, 8)          # only a few rows, not a full-matrix re-pad
    if mp != m:
        patches = jnp.pad(patches, ((0, mp - m), (0, 0)))
    tm = min(512, mp)
    g = _cdiv(mp, tm)

    out = pl.pallas_call(
        functools.partial(_matmul_bias_act_kernel, apply_relu=apply_relu),
        out_shape=jax.ShapeDtypeStruct((mp, cout), jnp.float32),
        grid=(g,),
        in_specs=[pl.BlockSpec((tm, k), lambda i: (i, 0)),
                  pl.BlockSpec((k, cout), lambda i: (0, 0)),
                  pl.BlockSpec((1, cout), lambda i: (0, 0))],
        out_specs=pl.BlockSpec((tm, cout), lambda i: (i, 0)),
        compiler_params=pltpu.CompilerParams(
            dimension_semantics=("parallel",),
            vmem_limit_bytes=_VMEM_LIMIT),
    )(patches, w_mat, b2)
    return out[:m].reshape(n, oh, ow, cout)


# ----------------------------- Parameters -----------------------------

def _init_conv(key, kh, kw, cin, cout, *, cin_pad=None, cout_pad=None, bn=True):
    # kaiming_normal_(mode='fan_out', nonlinearity='relu'): std = sqrt(2 / (cout*kh*kw))
    std = math.sqrt(2.0 / (cout * kh * kw))
    w = std * jax.random.normal(key, (kh, kw, cin, cout), jnp.float32)
    b = jnp.zeros((cout,), jnp.float32)  # deterministic synthetic bias init
    if bn:
        # Fold eval-mode BN (mean=0, var=1, gamma=1, beta=0) into weight and bias.
        s = 1.0 / math.sqrt(1.0 + _BN_EPS)
        w = w * s
        b = b * s
    cin_pad = cin if cin_pad is None else cin_pad
    cout_pad = cout if cout_pad is None else cout_pad
    if cin_pad > cin or cout_pad > cout:
        # Zero rows/cols keep the lane-padded channels exactly 0 through the network.
        w = jnp.pad(w, ((0, 0), (0, 0), (0, cin_pad - cin), (0, cout_pad - cout)))
        b = jnp.pad(b, ((0, cout_pad - cout),))
    return w, b


def _init_residual_block(key, cin, cout, stride):
    k1, k2, k3 = jax.random.split(key, 3)
    cin_p, cout_p = _lane_pad(cin), _lane_pad(cout)
    p = {
        "conv1": _init_conv(k1, 3, 3, cin, cout, cin_pad=cin_p, cout_pad=cout_p),
        "conv2": _init_conv(k2, 3, 3, cout, cout, cin_pad=cout_p, cout_pad=cout_p),
        "stride": stride,
    }
    if stride != 1:  # stride==1 and not always_project -> Identity downsample
        p["down"] = _init_conv(k3, 1, 1, cin, cout, cin_pad=cin_p, cout_pad=cout_p)
    return p


def init_feature_encoder(key, in_chan=3, layers=(64, 64, 96, 128, 256),
                         strides=(2, 1, 2, 2)):
    n_blocks = 2 * (len(layers) - 2)
    keys = jax.random.split(key, 2 + n_blocks)
    params = {
        "stem": _init_conv(keys[0], 7, 7, in_chan, layers[0],
                           cout_pad=_lane_pad(layers[0])),
        "stem_stride": strides[0],
        "blocks": [],
    }
    ki = 1
    for i in range(len(layers) - 2):
        b1 = _init_residual_block(keys[ki], layers[i], layers[i + 1], strides[i + 1]); ki += 1
        b2 = _init_residual_block(keys[ki], layers[i + 1], layers[i + 1], 1); ki += 1
        params["blocks"].append((b1, b2))
    params["head"] = _init_conv(keys[ki], 1, 1, layers[-2], layers[-1],
                                cin_pad=_lane_pad(layers[-2]), bn=False)
    return params


# ----------------------------- Forward -----------------------------

def _residual_block_forward(x, p):
    w1, b1 = p["conv1"]
    stride = p["stride"]
    if stride == 1:
        y = _conv3x3_s1(x, w1, b1, apply_relu=True)             # convnormrelu1 (tap conv)
    else:
        y = _conv_im2col(x, w1, b1, stride, apply_relu=True)    # 3x3 stride-2
    if "down" in p:
        wd, bd = p["down"]
        xd = _conv_im2col(x, wd, bd, stride, apply_relu=False)  # 1x1 projection (no act)
    else:
        xd = x
    w2, b2 = p["conv2"]
    # convnormrelu2 fused with relu(downsample(x) + y) inside the Pallas kernel.
    # TODO(synk): at the smallest spatial sizes the whole block could be a single
    # multi-stage pallas_call to shave per-call latency.
    return _conv3x3_s1(y, w2, b2, residual=xd, apply_relu=True)


def feature_encoder_forward(params, x_nhwc):
    w, b = params["stem"]
    x = _conv_im2col(x_nhwc, w, b, params["stem_stride"], apply_relu=True,
                     k_pad_to=256)                               # 7x7 /2 (K 147 -> 256)
    for b1, b2 in params["blocks"]:
        x = _residual_block_forward(x, b1)
        x = _residual_block_forward(x, b2)
    wh, bh = params["head"]
    x = _conv_im2col(x, wh, bh, 1, apply_relu=False)             # plain 1x1, no norm/act
    return x


# ----------------------------- Main -----------------------------

if __name__ == "__main__":
    key = jax.random.PRNGKey(0)
    pkey, xkey = jax.random.split(key)

    params = init_feature_encoder(pkey)  # layers=(64,64,96,128,256), strides=(2,1,2,2)

    # Example input matching the PyTorch module's NCHW convention: (N=2, C=3, H=16, W=16)
    x_nchw = jax.random.normal(xkey, (2, 3, 16, 16), jnp.float32)
    x_nhwc = jnp.transpose(x_nchw, (0, 2, 3, 1))

    fwd = jax.jit(lambda inp: feature_encoder_forward(params, inp))
    out_nhwc = jax.block_until_ready(fwd(x_nhwc))
    out_nchw = jnp.transpose(out_nhwc, (0, 3, 1, 2))

    # downsample-by-8: (2, 256, 16/8, 16/8) in NCHW, matching the PyTorch module
    assert out_nchw.shape == (2, 256, 2, 2), out_nchw.shape
    assert bool(jnp.all(jnp.isfinite(out_nchw)))
    print("KERNEL_OK")
</pallas_src>

<mosaic_0001>
module attributes {stable_mosaic.version = 11 : i64} {
  func.func @_matmul_bias_act_kernel(%arg0: i32, %arg1: memref<128x256xbf16, #tpu.memory_space<vmem>>, %arg2: memref<256x128xbf16, #tpu.memory_space<vmem>>, %arg3: memref<1x128xf32, #tpu.memory_space<vmem>>, %arg4: memref<128x128xf32, #tpu.memory_space<vmem>>) attributes {dimension_semantics = [#tpu.dimension_semantics<parallel>], iteration_bounds = array<i64: 1>, scalar_prefetch = 0 : i64, scratch_operands = 0 : i64, tpu.core_type = #tpu.core_type<tc>, window_params = [{transform_indices = @transform_0, window_bounds = array<i64: 128, 256>}, {pipeline_mode = #tpu.pipeline_mode<synchronous>, transform_indices = @transform_1, window_bounds = array<i64: 256, 128>}, {pipeline_mode = #tpu.pipeline_mode<synchronous>, transform_indices = @transform_2, window_bounds = array<i64: 1, 128>}, {transform_indices = @transform_3, window_bounds = array<i64: 128, 128>}]} {
    %c0 = arith.constant 0 : index
    %c0_0 = arith.constant 0 : index
    %0 = vector.load %arg1[%c0, %c0_0] : memref<128x256xbf16, #tpu.memory_space<vmem>>, vector<128x256xbf16>
    %c0_1 = arith.constant 0 : index
    %c0_2 = arith.constant 0 : index
    %1 = vector.load %arg2[%c0_1, %c0_2] : memref<256x128xbf16, #tpu.memory_space<vmem>>, vector<256x128xbf16>
    %cst = arith.constant dense<0.000000e+00> : vector<128x128xf32>
    %2 = tpu.matmul %0, %1, %cst {dimension_numbers = #tpu.dot_dimension_numbers<[1], [0], [0], [1], [0, 0, 1, 1], [], []>} : vector<128x256xbf16>, vector<256x128xbf16>, vector<128x128xf32> -> vector<128x128xf32>
    %c0_3 = arith.constant 0 : index
    %c0_4 = arith.constant 0 : index
    %3 = vector.load %arg3[%c0_3, %c0_4] : memref<1x128xf32, #tpu.memory_space<vmem>>, vector<1x128xf32>
    %4 = vector.broadcast %3 : vector<1x128xf32> to vector<128x128xf32>
    %5 = arith.addf %2, %4 : vector<128x128xf32>
    %cst_5 = arith.constant 0.000000e+00 : f32
    %6 = vector.broadcast %cst_5 : f32 to vector<128x128xf32>
    %7 = arith.maximumf %5, %6 : vector<128x128xf32>
    %c0_6 = arith.constant 0 : index
    %c0_7 = arith.constant 0 : index
    %8 = vector.load %arg4[%c0_6, %c0_7] : memref<128x128xf32, #tpu.memory_space<vmem>>, vector<128x128xf32>
    tpu.vector_store %arg4[%c0_6, %c0_7], %7 {strides = array<i32>} : memref<128x128xf32, #tpu.memory_space<vmem>>, vector<128x128xf32>,
    return
  }
  func.func @transform_0(%arg0: i32) -> (i32, i32) {
    %c0_i32 = arith.constant 0 : i32
    %c0_i32_0 = arith.constant 0 : i32
    return %arg0, %c0_i32 : i32, i32
  }
  func.func @transform_1(%arg0: i32) -> (i32, i32) {
    %c0_i32 = arith.constant 0 : i32
    %c0_i32_0 = arith.constant 0 : i32
    %c0_i32_1 = arith.constant 0 : i32
    return %c0_i32, %c0_i32_0 : i32, i32
  }
  func.func @transform_2(%arg0: i32) -> (i32, i32) {
    %c0_i32 = arith.constant 0 : i32
    %c0_i32_0 = arith.constant 0 : i32
    %c0_i32_1 = arith.constant 0 : i32
    return %c0_i32, %c0_i32_0 : i32, i32
  }
  func.func @transform_3(%arg0: i32) -> (i32, i32) {
    %c0_i32 = arith.constant 0 : i32
    %c0_i32_0 = arith.constant 0 : i32
    return %arg0, %c0_i32 : i32, i32
  }
}

module attributes {stable_mosaic.version = 11 : i64} {
  func.func @_tap_conv_kernel(%arg0: i32, %arg1: memref<120x128xf32, #tpu.memory_space<vmem>>, %arg2: memref<24x128xf32, #tpu.memory_space<vmem>>, %arg3: memref<1152x128xbf16, #tpu.memory_space<vmem>>, %arg4: memref<1x128xf32, #tpu.memory_space<vmem>>, %arg5: memref<120x128xf32, #tpu.memory_space<vmem>>, %arg6: memref<144x128xf32, #tpu.memory_space<vmem>>) attributes {dimension_semantics = [#tpu.dimension_semantics<parallel>], iteration_bounds = array<i64: 2>, scalar_prefetch = 0 : i64, scratch_operands = 1 : i64, tpu.core_type = #tpu.core_type<tc>, window_params = [{transform_indices = @transform_0, window_bounds = array<i64: 120, 128>}, {transform_indices = @transform_1, window_bounds = array<i64: 24, 128>}, {pipeline_mode = #tpu.pipeline_mode<synchronous>, transform_indices = @transform_2, window_bounds = array<i64: 1152, 128>}, {pipeline_mode = #tpu.pipeline_mode<synchronous>, transform_indices = @transform_3, window_bounds = array<i64: 1, 128>}, {transform_indices = @transform_4, window_bounds = array<i64: 120, 128>}]} {
    %c0 = arith.constant 0 : index
    %c0_0 = arith.constant 0 : index
    %0 = vector.load %arg1[%c0, %c0_0] : memref<120x128xf32, #tpu.memory_space<vmem>>, vector<120x128xf32>
    %c0_1 = arith.constant 0 : index
    %c0_2 = arith.constant 0 : index
    %1 = vector.load %arg6[%c0_1, %c0_2] : memref<144x128xf32, #tpu.memory_space<vmem>>, vector<120x128xf32>
    tpu.vector_store %arg6[%c0_1, %c0_2], %0 {strides = array<i32>} : memref<144x128xf32, #tpu.memory_space<vmem>>, vector<120x128xf32>,
    %c0_3 = arith.constant 0 : index
    %c0_4 = arith.constant 0 : index
    %2 = vector.load %arg2[%c0_3, %c0_4] : memref<24x128xf32, #tpu.memory_space<vmem>>, vector<24x128xf32>
    %c120 = arith.constant 120 : index
    %c0_5 = arith.constant 0 : index
    %3 = vector.load %arg6[%c120, %c0_5] : memref<144x128xf32, #tpu.memory_space<vmem>>, vector<24x128xf32>
    tpu.vector_store %arg6[%c120, %c0_5], %2 {strides = array<i32>} : memref<144x128xf32, #tpu.memory_space<vmem>>, vector<24x128xf32>,
    %c0_6 = arith.constant 0 : index
    %c0_7 = arith.constant 0 : index
    %4 = vector.load %arg6[%c0_6, %c0_7] : memref<144x128xf32, #tpu.memory_space<vmem>>, vector<120x128xf32>
    %5 = arith.truncf %4 : vector<120x128xf32> to vector<120x128xbf16>
    %c0_8 = arith.constant 0 : index
    %c0_9 = arith.constant 0 : index
    %6 = vector.load %arg3[%c0_8, %c0_9] : memref<1152x128xbf16, #tpu.memory_space<vmem>>, vector<128x128xbf16>
    %cst = arith.constant dense<0.000000e+00> : vector<120x128xf32>
    %7 = tpu.matmul %5, %6, %cst {dimension_numbers = #tpu.dot_dimension_numbers<[1], [0], [0], [1], [0, 0, 1, 1], [], []>} : vector<120x128xbf16>, vector<128x128xbf16>, vector<120x128xf32> -> vector<120x128xf32>
    %c1 = arith.constant 1 : index
    %c0_10 = arith.constant 0 : index
    %8 = vector.load %arg6[%c1, %c0_10] : memref<144x128xf32, #tpu.memory_space<vmem>>, vector<120x128xf32>
    %9 = arith.truncf %8 : vector<120x128xf32> to vector<120x128xbf16>
    %c128 = arith.constant 128 : index
    %c0_11 = arith.constant 0 : index
    %10 = vector.load %arg3[%c128, %c0_11] : memref<1152x128xbf16, #tpu.memory_space<vmem>>, vector<128x128xbf16>
    %cst_12 = arith.constant dense<0.000000e+00> : vector<120x128xf32>
    %11 = tpu.matmul %9, %10, %cst_12 {dimension_numbers = #tpu.dot_dimension_numbers<[1], [0], [0], [1], [0, 0, 1, 1], [], []>} : vector<120x128xbf16>, vector<128x128xbf16>, vector<120x128xf32> -> vector<120x128xf32>
    %12 = arith.addf %7, %11 : vector<120x128xf32>
    %c2 = arith.constant 2 : index
    %c0_13 = arith.constant 0 : index
    %13 = vector.load %arg6[%c2, %c0_13] : memref<144x128xf32, #tpu.memory_space<vmem>>, vector<120x128xf32>
    %14 = arith.truncf %13 : vector<120x128xf32> to vector<120x128xbf16>
    %c256 = arith.constant 256 : index
    %c0_14 = arith.constant 0 : index
    %15 = vector.load %arg3[%c256, %c0_14] : memref<1152x128xbf16, #tpu.memory_space<vmem>>, vector<128x128xbf16>
    %cst_15 = arith.constant dense<0.000000e+00> : vector<120x128xf32>
    %16 = tpu.matmul %14, %15, %cst_15 {dimension_numbers = #tpu.dot_dimension_numbers<[1], [0], [0], [1], [0, 0, 1, 1], [], []>} : vector<120x128xbf16>, vector<128x128xbf16>, vector<120x128xf32> -> vector<120x128xf32>
    %17 = arith.addf %12, %16 : vector<120x128xf32>
    %c10 = arith.constant 10 : index
    %c0_16 = arith.constant 0 : index
    %18 = vector.load %arg6[%c10, %c0_16] : memref<144x128xf32, #tpu.memory_space<vmem>>, vector<120x128xf32>
    %19 = arith.truncf %18 : vector<120x128xf32> to vector<120x128xbf16>
    %c384 = arith.constant 384 : index
    %c0_17 = arith.constant 0 : index
    %20 = vector.load %arg3[%c384, %c0_17] : memref<1152x128xbf16, #tpu.memory_space<vmem>>, vector<128x128xbf16>
    %cst_18 = arith.constant dense<0.000000e+00> : vector<120x128xf32>
    %21 = tpu.matmul %19, %20, %cst_18 {dimension_numbers = #tpu.dot_dimension_numbers<[1], [0], [0], [1], [0, 0, 1, 1], [], []>} : vector<120x128xbf16>, vector<128x128xbf16>, vector<120x128xf32> -> vector<120x128xf32>
    %22 = arith.addf %17, %21 : vector<120x128xf32>
    %c11 = arith.constant 11 : index
    %c0_19 = arith.constant 0 : index
    %23 = vector.load %arg6[%c11, %c0_19] : memref<144x128xf32, #tpu.memory_space<vmem>>, vector<120x128xf32>
    %24 = arith.truncf %23 : vector<120x128xf32> to vector<120x128xbf16>
    %c512 = arith.constant 512 : index
    %c0_20 = arith.constant 0 : index
    %25 = vector.load %arg3[%c512, %c0_20] : memref<1152x128xbf16, #tpu.memory_space<vmem>>, vector<128x128xbf16>
    %cst_21 = arith.constant dense<0.000000e+00> : vector<120x128xf32>
    %26 = tpu.matmul %24, %25, %cst_21 {dimension_numbers = #tpu.dot_dimension_numbers<[1], [0], [0], [1], [0, 0, 1, 1], [], []>} : vector<120x128xbf16>, vector<128x128xbf16>, vector<120x128xf32> -> vector<120x128xf32>
    %27 = arith.addf %22, %26 : vector<120x128xf32>
    %c12 = arith.constant 12 : index
    %c0_22 = arith.constant 0 : index
    %28 = vector.load %arg6[%c12, %c0_22] : memref<144x128xf32, #tpu.memory_space<vmem>>, vector<120x128xf32>
    %29 = arith.truncf %28 : vector<120x128xf32> to vector<120x128xbf16>
    %c640 = arith.constant 640 : index
    %c0_23 = arith.constant 0 : index
    %30 = vector.load %arg3[%c640, %c0_23] : memref<1152x128xbf16, #tpu.memory_space<vmem>>, vector<128x128xbf16>
    %cst_24 = arith.constant dense<0.000000e+00> : vector<120x128xf32>
    %31 = tpu.matmul %29, %30, %cst_24 {dimension_numbers = #tpu.dot_dimension_numbers<[1], [0], [0], [1], [0, 0, 1, 1], [], []>} : vector<120x128xbf16>, vector<128x128xbf16>, vector<120x128xf32> -> vector<120x128xf32>
    %32 = arith.addf %27, %31 : vector<120x128xf32>
    %c20 = arith.constant 20 : index
    %c0_25 = arith.constant 0 : index
    %33 = vector.load %arg6[%c20, %c0_25] : memref<144x128xf32, #tpu.memory_space<vmem>>, vector<120x128xf32>
    %34 = arith.truncf %33 : vector<120x128xf32> to vector<120x128xbf16>
    %c768 = arith.constant 768 : index
    %c0_26 = arith.constant 0 : index
    %35 = vector.load %arg3[%c768, %c0_26] : memref<1152x128xbf16, #tpu.memory_space<vmem>>, vector<128x128xbf16>
    %cst_27 = arith.constant dense<0.000000e+00> : vector<120x128xf32>
    %36 = tpu.matmul %34, %35, %cst_27 {dimension_numbers = #tpu.dot_dimension_numbers<[1], [0], [0], [1], [0, 0, 1, 1], [], []>} : vector<120x128xbf16>, vector<128x128xbf16>, vector<120x128xf32> -> vector<120x128xf32>
    %37 = arith.addf %32, %36 : vector<120x128xf32>
    %c21 = arith.constant 21 : index
    %c0_28 = arith.constant 0 : index
    %38 = vector.load %arg6[%c21, %c0_28] : memref<144x128xf32, #tpu.memory_space<vmem>>, vector<120x128xf32>
    %39 = arith.truncf %38 : vector<120x128xf32> to vector<120x128xbf16>
    %c896 = arith.constant 896 : index
    %c0_29 = arith.constant 0 : index
    %40 = vector.load %arg3[%c896, %c0_29] : memref<1152x128xbf16, #tpu.memory_space<vmem>>, vector<128x128xbf16>
    %cst_30 = arith.constant dense<0.000000e+00> : vector<120x128xf32>
    %41 = tpu.matmul %39, %40, %cst_30 {dimension_numbers = #tpu.dot_dimension_numbers<[1], [0], [0], [1], [0, 0, 1, 1], [], []>} : vector<120x128xbf16>, vector<128x128xbf16>, vector<120x128xf32> -> vector<120x128xf32>
    %42 = arith.addf %37, %41 : vector<120x128xf32>
    %c22 = arith.constant 22 : index
    %c0_31 = arith.constant 0 : index
    %43 = vector.load %arg6[%c22, %c0_31] : memref<144x128xf32, #tpu.memory_space<vmem>>, vector<120x128xf32>
    %44 = arith.truncf %43 : vector<120x128xf32> to vector<120x128xbf16>
    %c1024 = arith.constant 1024 : index
    %c0_32 = arith.constant 0 : index
    %45 = vector.load %arg3[%c1024, %c0_32] : memref<1152x128xbf16, #tpu.memory_space<vmem>>, vector<128x128xbf16>
    %cst_33 = arith.constant dense<0.000000e+00> : vector<120x128xf32>
    %46 = tpu.matmul %44, %45, %cst_33 {dimension_numbers = #tpu.dot_dimension_numbers<[1], [0], [0], [1], [0, 0, 1, 1], [], []>} : vector<120x128xbf16>, vector<128x128xbf16>, vector<120x128xf32> -> vector<120x128xf32>
    %47 = arith.addf %42, %46 : vector<120x128xf32>
    %c0_34 = arith.constant 0 : index
    %c0_35 = arith.constant 0 : index
    %48 = vector.load %arg4[%c0_34, %c0_35] : memref<1x128xf32, #tpu.memory_space<vmem>>, vector<1x128xf32>
    %49 = vector.broadcast %48 : vector<1x128xf32> to vector<120x128xf32>
    %50 = arith.addf %47, %49 : vector<120x128xf32>
    %cst_36 = arith.constant 0.000000e+00 : f32
    %51 = vector.broadcast %cst_36 : f32 to vector<120x128xf32>
    %52 = arith.maximumf %50, %51 : vector<120x128xf32>
    %c0_37 = arith.constant 0 : index
    %c0_38 = arith.constant 0 : index
    %53 = vector.load %arg5[%c0_37, %c0_38] : memref<120x128xf32, #tpu.memory_space<vmem>>, vector<120x128xf32>
    tpu.vector_store %arg5[%c0_37, %c0_38], %52 {strides = array<i32>} : memref<120x128xf32, #tpu.memory_space<vmem>>, vector<120x128xf32>,
    return
  }
  func.func @transform_0(%arg0: i32) -> (i32, i32) {
    %c0_i32 = arith.constant 0 : i32
    %c0_i32_0 = arith.constant 0 : i32
    return %arg0, %c0_i32 : i32, i32
  }
  func.func @transform_1(%arg0: i32) -> (i32, i32) {
    %c1_i32 = arith.constant 1 : i32
    %0 = arith.addi %arg0, %c1_i32 : i32
    %c5_i32 = arith.constant 5 : i32
    %1 = arith.muli %0, %c5_i32 : i32
    %c0_i32 = arith.constant 0 : i32
    %c0_i32_0 = arith.constant 0 : i32
    return %1, %c0_i32 : i32, i32
  }
  func.func @transform_2(%arg0: i32) -> (i32, i32) {
    %c0_i32 = arith.constant 0 : i32
    %c0_i32_0 = arith.constant 0 : i32
    %c0_i32_1 = arith.constant 0 : i32
    return %c0_i32, %c0_i32_0 : i32, i32
  }
  func.func @transform_3(%arg0: i32) -> (i32, i32) {
    %c0_i32 = arith.constant 0 : i32
    %c0_i32_0 = arith.constant 0 : i32
    %c0_i32_1 = arith.constant 0 : i32
    return %c0_i32, %c0_i32_0 : i32, i32
  }
  func.func @transform_4(%arg0: i32) -> (i32, i32) {
    %c0_i32 = arith.constant 0 : i32
    %c0_i32_0 = arith.constant 0 : i32
    return %arg0, %c0_i32 : i32, i32
  }
}

module attributes {stable_mosaic.version = 11 : i64} {
  func.func @_tap_conv_kernel(%arg0: i32, %arg1: memref<120x128xf32, #tpu.memory_space<vmem>>, %arg2: memref<24x128xf32, #tpu.memory_space<vmem>>, %arg3: memref<1152x128xbf16, #tpu.memory_space<vmem>>, %arg4: memref<1x128xf32, #tpu.memory_space<vmem>>, %arg5: memref<120x128xf32, #tpu.memory_space<vmem>>, %arg6: memref<120x128xf32, #tpu.memory_space<vmem>>, %arg7: memref<144x128xf32, #tpu.memory_space<vmem>>) attributes {dimension_semantics = [#tpu.dimension_semantics<parallel>], iteration_bounds = array<i64: 2>, scalar_prefetch = 0 : i64, scratch_operands = 1 : i64, tpu.core_type = #tpu.core_type<tc>, window_params = [{transform_indices = @transform_0, window_bounds = array<i64: 120, 128>}, {transform_indices = @transform_1, window_bounds = array<i64: 24, 128>}, {pipeline_mode = #tpu.pipeline_mode<synchronous>, transform_indices = @transform_2, window_bounds = array<i64: 1152, 128>}, {pipeline_mode = #tpu.pipeline_mode<synchronous>, transform_indices = @transform_3, window_bounds = array<i64: 1, 128>}, {transform_indices = @transform_4, window_bounds = array<i64: 120, 128>}, {transform_indices = @transform_5, window_bounds = array<i64: 120, 128>}]} {
    %c0 = arith.constant 0 : index
    %c0_0 = arith.constant 0 : index
    %0 = vector.load %arg1[%c0, %c0_0] : memref<120x128xf32, #tpu.memory_space<vmem>>, vector<120x128xf32>
    %c0_1 = arith.constant 0 : index
    %c0_2 = arith.constant 0 : index
    %1 = vector.load %arg7[%c0_1, %c0_2] : memref<144x128xf32, #tpu.memory_space<vmem>>, vector<120x128xf32>
    tpu.vector_store %arg7[%c0_1, %c0_2], %0 {strides = array<i32>} : memref<144x128xf32, #tpu.memory_space<vmem>>, vector<120x128xf32>,
    %c0_3 = arith.constant 0 : index
    %c0_4 = arith.constant 0 : index
    %2 = vector.load %arg2[%c0_3, %c0_4] : memref<24x128xf32, #tpu.memory_space<vmem>>, vector<24x128xf32>
    %c120 = arith.constant 120 : index
    %c0_5 = arith.constant 0 : index
    %3 = vector.load %arg7[%c120, %c0_5] : memref<144x128xf32, #tpu.memory_space<vmem>>, vector<24x128xf32>
    tpu.vector_store %arg7[%c120, %c0_5], %2 {strides = array<i32>} : memref<144x128xf32, #tpu.memory_space<vmem>>, vector<24x128xf32>,
    %c0_6 = arith.constant 0 : index
    %c0_7 = arith.constant 0 : index
    %4 = vector.load %arg7[%c0_6, %c0_7] : memref<144x128xf32, #tpu.memory_space<vmem>>, vector<120x128xf32>
    %5 = arith.truncf %4 : vector<120x128xf32> to vector<120x128xbf16>
    %c0_8 = arith.constant 0 : index
    %c0_9 = arith.constant 0 : index
    %6 = vector.load %arg3[%c0_8, %c0_9] : memref<1152x128xbf16, #tpu.memory_space<vmem>>, vector<128x128xbf16>
    %cst = arith.constant dense<0.000000e+00> : vector<120x128xf32>
    %7 = tpu.matmul %5, %6, %cst {dimension_numbers = #tpu.dot_dimension_numbers<[1], [0], [0], [1], [0, 0, 1, 1], [], []>} : vector<120x128xbf16>, vector<128x128xbf16>, vector<120x128xf32> -> vector<120x128xf32>
    %c1 = arith.constant 1 : index
    %c0_10 = arith.constant 0 : index
    %8 = vector.load %arg7[%c1, %c0_10] : memref<144x128xf32, #tpu.memory_space<vmem>>, vector<120x128xf32>
    %9 = arith.truncf %8 : vector<120x128xf32> to vector<120x128xbf16>
    %c128 = arith.constant 128 : index
    %c0_11 = arith.constant 0 : index
    %10 = vector.load %arg3[%c128, %c0_11] : memref<1152x128xbf16, #tpu.memory_space<vmem>>, vector<128x128xbf16>
    %cst_12 = arith.constant dense<0.000000e+00> : vector<120x128xf32>
    %11 = tpu.matmul %9, %10, %cst_12 {dimension_numbers = #tpu.dot_dimension_numbers<[1], [0], [0], [1], [0, 0, 1, 1], [], []>} : vector<120x128xbf16>, vector<128x128xbf16>, vector<120x128xf32> -> vector<120x128xf32>
    %12 = arith.addf %7, %11 : vector<120x128xf32>
    %c2 = arith.constant 2 : index
    %c0_13 = arith.constant 0 : index
    %13 = vector.load %arg7[%c2, %c0_13] : memref<144x128xf32, #tpu.memory_space<vmem>>, vector<120x128xf32>
    %14 = arith.truncf %13 : vector<120x128xf32> to vector<120x128xbf16>
    %c256 = arith.constant 256 : index
    %c0_14 = arith.constant 0 : index
    %15 = vector.load %arg3[%c256, %c0_14] : memref<1152x128xbf16, #tpu.memory_space<vmem>>, vector<128x128xbf16>
    %cst_15 = arith.constant dense<0.000000e+00> : vector<120x128xf32>
    %16 = tpu.matmul %14, %15, %cst_15 {dimension_numbers = #tpu.dot_dimension_numbers<[1], [0], [0], [1], [0, 0, 1, 1], [], []>} : vector<120x128xbf16>, vector<128x128xbf16>, vector<120x128xf32> -> vector<120x128xf32>
    %17 = arith.addf %12, %16 : vector<120x128xf32>
    %c10 = arith.constant 10 : index
    %c0_16 = arith.constant 0 : index
    %18 = vector.load %arg7[%c10, %c0_16] : memref<144x128xf32, #tpu.memory_space<vmem>>, vector<120x128xf32>
    %19 = arith.truncf %18 : vector<120x128xf32> to vector<120x128xbf16>
    %c384 = arith.constant 384 : index
    %c0_17 = arith.constant 0 : index
    %20 = vector.load %arg3[%c384, %c0_17] : memref<1152x128xbf16, #tpu.memory_space<vmem>>, vector<128x128xbf16>
    %cst_18 = arith.constant dense<0.000000e+00> : vector<120x128xf32>
    %21 = tpu.matmul %19, %20, %cst_18 {dimension_numbers = #tpu.dot_dimension_numbers<[1], [0], [0], [1], [0, 0, 1, 1], [], []>} : vector<120x128xbf16>, vector<128x128xbf16>, vector<120x128xf32> -> vector<120x128xf32>
    %22 = arith.addf %17, %21 : vector<120x128xf32>
    %c11 = arith.constant 11 : index
    %c0_19 = arith.constant 0 : index
    %23 = vector.load %arg7[%c11, %c0_19] : memref<144x128xf32, #tpu.memory_space<vmem>>, vector<120x128xf32>
    %24 = arith.truncf %23 : vector<120x128xf32> to vector<120x128xbf16>
    %c512 = arith.constant 512 : index
    %c0_20 = arith.constant 0 : index
    %25 = vector.load %arg3[%c512, %c0_20] : memref<1152x128xbf16, #tpu.memory_space<vmem>>, vector<128x128xbf16>
    %cst_21 = arith.constant dense<0.000000e+00> : vector<120x128xf32>
    %26 = tpu.matmul %24, %25, %cst_21 {dimension_numbers = #tpu.dot_dimension_numbers<[1], [0], [0], [1], [0, 0, 1, 1], [], []>} : vector<120x128xbf16>, vector<128x128xbf16>, vector<120x128xf32> -> vector<120x128xf32>
    %27 = arith.addf %22, %26 : vector<120x128xf32>
    %c12 = arith.constant 12 : index
    %c0_22 = arith.constant 0 : index
    %28 = vector.load %arg7[%c12, %c0_22] : memref<144x128xf32, #tpu.memory_space<vmem>>, vector<120x128xf32>
    %29 = arith.truncf %28 : vector<120x128xf32> to vector<120x128xbf16>
    %c640 = arith.constant 640 : index
    %c0_23 = arith.constant 0 : index
    %30 = vector.load %arg3[%c640, %c0_23] : memref<1152x128xbf16, #tpu.memory_space<vmem>>, vector<128x128xbf16>
    %cst_24 = arith.constant dense<0.000000e+00> : vector<120x128xf32>
    %31 = tpu.matmul %29, %30, %cst_24 {dimension_numbers = #tpu.dot_dimension_numbers<[1], [0], [0], [1], [0, 0, 1, 1], [], []>} : vector<120x128xbf16>, vector<128x128xbf16>, vector<120x128xf32> -> vector<120x128xf32>
    %32 = arith.addf %27, %31 : vector<120x128xf32>
    %c20 = arith.constant 20 : index
    %c0_25 = arith.constant 0 : index
    %33 = vector.load %arg7[%c20, %c0_25] : memref<144x128xf32, #tpu.memory_space<vmem>>, vector<120x128xf32>
    %34 = arith.truncf %33 : vector<120x128xf32> to vector<120x128xbf16>
    %c768 = arith.constant 768 : index
    %c0_26 = arith.constant 0 : index
    %35 = vector.load %arg3[%c768, %c0_26] : memref<1152x128xbf16, #tpu.memory_space<vmem>>, vector<128x128xbf16>
    %cst_27 = arith.constant dense<0.000000e+00> : vector<120x128xf32>
    %36 = tpu.matmul %34, %35, %cst_27 {dimension_numbers = #tpu.dot_dimension_numbers<[1], [0], [0], [1], [0, 0, 1, 1], [], []>} : vector<120x128xbf16>, vector<128x128xbf16>, vector<120x128xf32> -> vector<120x128xf32>
    %37 = arith.addf %32, %36 : vector<120x128xf32>
    %c21 = arith.constant 21 : index
    %c0_28 = arith.constant 0 : index
    %38 = vector.load %arg7[%c21, %c0_28] : memref<144x128xf32, #tpu.memory_space<vmem>>, vector<120x128xf32>
    %39 = arith.truncf %38 : vector<120x128xf32> to vector<120x128xbf16>
    %c896 = arith.constant 896 : index
    %c0_29 = arith.constant 0 : index
    %40 = vector.load %arg3[%c896, %c0_29] : memref<1152x128xbf16, #tpu.memory_space<vmem>>, vector<128x128xbf16>
    %cst_30 = arith.constant dense<0.000000e+00> : vector<120x128xf32>
    %41 = tpu.matmul %39, %40, %cst_30 {dimension_numbers = #tpu.dot_dimension_numbers<[1], [0], [0], [1], [0, 0, 1, 1], [], []>} : vector<120x128xbf16>, vector<128x128xbf16>, vector<120x128xf32> -> vector<120x128xf32>
    %42 = arith.addf %37, %41 : vector<120x128xf32>
    %c22 = arith.constant 22 : index
    %c0_31 = arith.constant 0 : index
    %43 = vector.load %arg7[%c22, %c0_31] : memref<144x128xf32, #tpu.memory_space<vmem>>, vector<120x128xf32>
    %44 = arith.truncf %43 : vector<120x128xf32> to vector<120x128xbf16>
    %c1024 = arith.constant 1024 : index
    %c0_32 = arith.constant 0 : index
    %45 = vector.load %arg3[%c1024, %c0_32] : memref<1152x128xbf16, #tpu.memory_space<vmem>>, vector<128x128xbf16>
    %cst_33 = arith.constant dense<0.000000e+00> : vector<120x128xf32>
    %46 = tpu.matmul %44, %45, %cst_33 {dimension_numbers = #tpu.dot_dimension_numbers<[1], [0], [0], [1], [0, 0, 1, 1], [], []>} : vector<120x128xbf16>, vector<128x128xbf16>, vector<120x128xf32> -> vector<120x128xf32>
    %47 = arith.addf %42, %46 : vector<120x128xf32>
    %c0_34 = arith.constant 0 : index
    %c0_35 = arith.constant 0 : index
    %48 = vector.load %arg4[%c0_34, %c0_35] : memref<1x128xf32, #tpu.memory_space<vmem>>, vector<1x128xf32>
    %49 = vector.broadcast %48 : vector<1x128xf32> to vector<120x128xf32>
    %50 = arith.addf %47, %49 : vector<120x128xf32>
    %cst_36 = arith.constant 0.000000e+00 : f32
    %51 = vector.broadcast %cst_36 : f32 to vector<120x128xf32>
    %52 = arith.maximumf %50, %51 : vector<120x128xf32>
    %c0_37 = arith.constant 0 : index
    %c0_38 = arith.constant 0 : index
    %53 = vector.load %arg5[%c0_37, %c0_38] : memref<120x128xf32, #tpu.memory_space<vmem>>, vector<120x128xf32>
    %54 = arith.addf %52, %53 : vector<120x128xf32>
    %cst_39 = arith.constant 0.000000e+00 : f32
    %55 = vector.broadcast %cst_39 : f32 to vector<120x128xf32>
    %56 = arith.maximumf %54, %55 : vector<120x128xf32>
    %c0_40 = arith.constant 0 : index
    %c0_41 = arith.constant 0 : index
    %57 = vector.load %arg6[%c0_40, %c0_41] : memref<120x128xf32, #tpu.memory_space<vmem>>, vector<120x128xf32>
    tpu.vector_store %arg6[%c0_40, %c0_41], %56 {strides = array<i32>} : memref<120x128xf32, #tpu.memory_space<vmem>>, vector<120x128xf32>,
    return
  }
  func.func @transform_0(%arg0: i32) -> (i32, i32) {
    %c0_i32 = arith.constant 0 : i32
    %c0_i32_0 = arith.constant 0 : i32
    return %arg0, %c0_i32 : i32, i32
  }
  func.func @transform_1(%arg0: i32) -> (i32, i32) {
    %c1_i32 = arith.constant 1 : i32
    %0 = arith.addi %arg0, %c1_i32 : i32
    %c5_i32 = arith.constant 5 : i32
    %1 = arith.muli %0, %c5_i32 : i32
    %c0_i32 = arith.constant 0 : i32
    %c0_i32_0 = arith.constant 0 : i32
    return %1, %c0_i32 : i32, i32
  }
  func.func @transform_2(%arg0: i32) -> (i32, i32) {
    %c0_i32 = arith.constant 0 : i32
    %c0_i32_0 = arith.constant 0 : i32
    %c0_i32_1 = arith.constant 0 : i32
    return %c0_i32, %c0_i32_0 : i32, i32
  }
  func.func @transform_3(%arg0: i32) -> (i32, i32) {
    %c0_i32 = arith.constant 0 : i32
    %c0_i32_0 = arith.constant 0 : i32
    %c0_i32_1 = arith.constant 0 : i32
    return %c0_i32, %c0_i32_0 : i32, i32
  }
  func.func @transform_4(%arg0: i32) -> (i32, i32) {
    %c0_i32 = arith.constant 0 : i32
    %c0_i32_0 = arith.constant 0 : i32
    return %arg0, %c0_i32 : i32, i32
  }
  func.func @transform_5(%arg0: i32) -> (i32, i32) {
    %c0_i32 = arith.constant 0 : i32
    %c0_i32_0 = arith.constant 0 : i32
    return %arg0, %c0_i32 : i32, i32
  }
}

module attributes {stable_mosaic.version = 11 : i64} {
  func.func @_matmul_bias_act_kernel(%arg0: i32, %arg1: memref<32x128xbf16, #tpu.memory_space<vmem>>, %arg2: memref<128x128xbf16, #tpu.memory_space<vmem>>, %arg3: memref<1x128xf32, #tpu.memory_space<vmem>>, %arg4: memref<32x128xf32, #tpu.memory_space<vmem>>) attributes {dimension_semantics = [#tpu.dimension_semantics<parallel>], iteration_bounds = array<i64: 1>, scalar_prefetch = 0 : i64, scratch_operands = 0 : i64, tpu.core_type = #tpu.core_type<tc>, window_params = [{transform_indices = @transform_0, window_bounds = array<i64: 32, 128>}, {pipeline_mode = #tpu.pipeline_mode<synchronous>, transform_indices = @transform_1, window_bounds = array<i64: 128, 128>}, {pipeline_mode = #tpu.pipeline_mode<synchronous>, transform_indices = @transform_2, window_bounds = array<i64: 1, 128>}, {transform_indices = @transform_3, window_bounds = array<i64: 32, 128>}]} {
    %c0 = arith.constant 0 : index
    %c0_0 = arith.constant 0 : index
    %0 = vector.load %arg1[%c0, %c0_0] : memref<32x128xbf16, #tpu.memory_space<vmem>>, vector<32x128xbf16>
    %c0_1 = arith.constant 0 : index
    %c0_2 = arith.constant 0 : index
    %1 = vector.load %arg2[%c0_1, %c0_2] : memref<128x128xbf16, #tpu.memory_space<vmem>>, vector<128x128xbf16>
    %cst = arith.constant dense<0.000000e+00> : vector<32x128xf32>
    %2 = tpu.matmul %0, %1, %cst {dimension_numbers = #tpu.dot_dimension_numbers<[1], [0], [0], [1], [0, 0, 1, 1], [], []>} : vector<32x128xbf16>, vector<128x128xbf16>, vector<32x128xf32> -> vector<32x128xf32>
    %c0_3 = arith.constant 0 : index
    %c0_4 = arith.constant 0 : index
    %3 = vector.load %arg3[%c0_3, %c0_4] : memref<1x128xf32, #tpu.memory_space<vmem>>, vector<1x128xf32>
    %4 = vector.broadcast %3 : vector<1x128xf32> to vector<32x128xf32>
    %5 = arith.addf %2, %4 : vector<32x128xf32>
    %c0_5 = arith.constant 0 : index
    %c0_6 = arith.constant 0 : index
    %6 = vector.load %arg4[%c0_5, %c0_6] : memref<32x128xf32, #tpu.memory_space<vmem>>, vector<32x128xf32>
    tpu.vector_store %arg4[%c0_5, %c0_6], %5 {strides = array<i32>} : memref<32x128xf32, #tpu.memory_space<vmem>>, vector<32x128xf32>,
    return
  }
  func.func @transform_0(%arg0: i32) -> (i32, i32) {
    %c0_i32 = arith.constant 0 : i32
    %c0_i32_0 = arith.constant 0 : i32
    return %arg0, %c0_i32 : i32, i32
  }
  func.func @transform_1(%arg0: i32) -> (i32, i32) {
    %c0_i32 = arith.constant 0 : i32
    %c0_i32_0 = arith.constant 0 : i32
    %c0_i32_1 = arith.constant 0 : i32
    return %c0_i32, %c0_i32_0 : i32, i32
  }
  func.func @transform_2(%arg0: i32) -> (i32, i32) {
    %c0_i32 = arith.constant 0 : i32
    %c0_i32_0 = arith.constant 0 : i32
    %c0_i32_1 = arith.constant 0 : i32
    return %c0_i32, %c0_i32_0 : i32, i32
  }
  func.func @transform_3(%arg0: i32) -> (i32, i32) {
    %c0_i32 = arith.constant 0 : i32
    %c0_i32_0 = arith.constant 0 : i32
    return %arg0, %c0_i32 : i32, i32
  }
}

module attributes {stable_mosaic.version = 11 : i64} {
  func.func @_matmul_bias_act_kernel(%arg0: i32, %arg1: memref<32x1152xbf16, #tpu.memory_space<vmem>>, %arg2: memref<1152x128xbf16, #tpu.memory_space<vmem>>, %arg3: memref<1x128xf32, #tpu.memory_space<vmem>>, %arg4: memref<32x128xf32, #tpu.memory_space<vmem>>) attributes {dimension_semantics = [#tpu.dimension_semantics<parallel>], iteration_bounds = array<i64: 1>, scalar_prefetch = 0 : i64, scratch_operands = 0 : i64, tpu.core_type = #tpu.core_type<tc>, window_params = [{transform_indices = @transform_0, window_bounds = array<i64: 32, 1152>}, {pipeline_mode = #tpu.pipeline_mode<synchronous>, transform_indices = @transform_1, window_bounds = array<i64: 1152, 128>}, {pipeline_mode = #tpu.pipeline_mode<synchronous>, transform_indices = @transform_2, window_bounds = array<i64: 1, 128>}, {transform_indices = @transform_3, window_bounds = array<i64: 32, 128>}]} {
    %c0 = arith.constant 0 : index
    %c0_0 = arith.constant 0 : index
    %0 = vector.load %arg1[%c0, %c0_0] : memref<32x1152xbf16, #tpu.memory_space<vmem>>, vector<32x1152xbf16>
    %c0_1 = arith.constant 0 : index
    %c0_2 = arith.constant 0 : index
    %1 = vector.load %arg2[%c0_1, %c0_2] : memref<1152x128xbf16, #tpu.memory_space<vmem>>, vector<1152x128xbf16>
    %cst = arith.constant dense<0.000000e+00> : vector<32x128xf32>
    %2 = tpu.matmul %0, %1, %cst {dimension_numbers = #tpu.dot_dimension_numbers<[1], [0], [0], [1], [0, 0, 1, 1], [], []>} : vector<32x1152xbf16>, vector<1152x128xbf16>, vector<32x128xf32> -> vector<32x128xf32>
    %c0_3 = arith.constant 0 : index
    %c0_4 = arith.constant 0 : index
    %3 = vector.load %arg3[%c0_3, %c0_4] : memref<1x128xf32, #tpu.memory_space<vmem>>, vector<1x128xf32>
    %4 = vector.broadcast %3 : vector<1x128xf32> to vector<32x128xf32>
    %5 = arith.addf %2, %4 : vector<32x128xf32>
    %cst_5 = arith.constant 0.000000e+00 : f32
    %6 = vector.broadcast %cst_5 : f32 to vector<32x128xf32>
    %7 = arith.maximumf %5, %6 : vector<32x128xf32>
    %c0_6 = arith.constant 0 : index
    %c0_7 = arith.constant 0 : index
    %8 = vector.load %arg4[%c0_6, %c0_7] : memref<32x128xf32, #tpu.memory_space<vmem>>, vector<32x128xf32>
    tpu.vector_store %arg4[%c0_6, %c0_7], %7 {strides = array<i32>} : memref<32x128xf32, #tpu.memory_space<vmem>>, vector<32x128xf32>,
    return
  }
  func.func @transform_0(%arg0: i32) -> (i32, i32) {
    %c0_i32 = arith.constant 0 : i32
    %c0_i32_0 = arith.constant 0 : i32
    return %arg0, %c0_i32 : i32, i32
  }
  func.func @transform_1(%arg0: i32) -> (i32, i32) {
    %c0_i32 = arith.constant 0 : i32
    %c0_i32_0 = arith.constant 0 : i32
    %c0_i32_1 = arith.constant 0 : i32
    return %c0_i32, %c0_i32_0 : i32, i32
  }
  func.func @transform_2(%arg0: i32) -> (i32, i32) {
    %c0_i32 = arith.constant 0 : i32
    %c0_i32_0 = arith.constant 0 : i32
    %c0_i32_1 = arith.constant 0 : i32
    return %c0_i32, %c0_i32_0 : i32, i32
  }
  func.func @transform_3(%arg0: i32) -> (i32, i32) {
    %c0_i32 = arith.constant 0 : i32
    %c0_i32_0 = arith.constant 0 : i32
    return %arg0, %c0_i32 : i32, i32
  }
}

module attributes {stable_mosaic.version = 11 : i64} {
  func.func @_tap_conv_kernel(%arg0: i32, %arg1: memref<48x128xf32, #tpu.memory_space<vmem>>, %arg2: memref<16x128xf32, #tpu.memory_space<vmem>>, %arg3: memref<1152x128xbf16, #tpu.memory_space<vmem>>, %arg4: memref<1x128xf32, #tpu.memory_space<vmem>>, %arg5: memref<48x128xf32, #tpu.memory_space<vmem>>, %arg6: memref<48x128xf32, #tpu.memory_space<vmem>>, %arg7: memref<64x128xf32, #tpu.memory_space<vmem>>) attributes {dimension_semantics = [#tpu.dimension_semantics<parallel>], iteration_bounds = array<i64: 2>, scalar_prefetch = 0 : i64, scratch_operands = 1 : i64, tpu.core_type = #tpu.core_type<tc>, window_params = [{transform_indices = @transform_0, window_bounds = array<i64: 48, 128>}, {transform_indices = @transform_1, window_bounds = array<i64: 16, 128>}, {pipeline_mode = #tpu.pipeline_mode<synchronous>, transform_indices = @transform_2, window_bounds = array<i64: 1152, 128>}, {pipeline_mode = #tpu.pipeline_mode<synchronous>, transform_indices = @transform_3, window_bounds = array<i64: 1, 128>}, {transform_indices = @transform_4, window_bounds = array<i64: 48, 128>}, {transform_indices = @transform_5, window_bounds = array<i64: 48, 128>}]} {
    %c0 = arith.constant 0 : index
    %c0_0 = arith.constant 0 : index
    %0 = vector.load %arg1[%c0, %c0_0] : memref<48x128xf32, #tpu.memory_space<vmem>>, vector<48x128xf32>
    %c0_1 = arith.constant 0 : index
    %c0_2 = arith.constant 0 : index
    %1 = vector.load %arg7[%c0_1, %c0_2] : memref<64x128xf32, #tpu.memory_space<vmem>>, vector<48x128xf32>
    tpu.vector_store %arg7[%c0_1, %c0_2], %0 {strides = array<i32>} : memref<64x128xf32, #tpu.memory_space<vmem>>, vector<48x128xf32>,
    %c0_3 = arith.constant 0 : index
    %c0_4 = arith.constant 0 : index
    %2 = vector.load %arg2[%c0_3, %c0_4] : memref<16x128xf32, #tpu.memory_space<vmem>>, vector<16x128xf32>
    %c48 = arith.constant 48 : index
    %c0_5 = arith.constant 0 : index
    %3 = vector.load %arg7[%c48, %c0_5] : memref<64x128xf32, #tpu.memory_space<vmem>>, vector<16x128xf32>
    tpu.vector_store %arg7[%c48, %c0_5], %2 {strides = array<i32>} : memref<64x128xf32, #tpu.memory_space<vmem>>, vector<16x128xf32>,
    %c0_6 = arith.constant 0 : index
    %c0_7 = arith.constant 0 : index
    %4 = vector.load %arg7[%c0_6, %c0_7] : memref<64x128xf32, #tpu.memory_space<vmem>>, vector<48x128xf32>
    %5 = arith.truncf %4 : vector<48x128xf32> to vector<48x128xbf16>
    %c0_8 = arith.constant 0 : index
    %c0_9 = arith.constant 0 : index
    %6 = vector.load %arg3[%c0_8, %c0_9] : memref<1152x128xbf16, #tpu.memory_space<vmem>>, vector<128x128xbf16>
    %cst = arith.constant dense<0.000000e+00> : vector<48x128xf32>
    %7 = tpu.matmul %5, %6, %cst {dimension_numbers = #tpu.dot_dimension_numbers<[1], [0], [0], [1], [0, 0, 1, 1], [], []>} : vector<48x128xbf16>, vector<128x128xbf16>, vector<48x128xf32> -> vector<48x128xf32>
    %c1 = arith.constant 1 : index
    %c0_10 = arith.constant 0 : index
    %8 = vector.load %arg7[%c1, %c0_10] : memref<64x128xf32, #tpu.memory_space<vmem>>, vector<48x128xf32>
    %9 = arith.truncf %8 : vector<48x128xf32> to vector<48x128xbf16>
    %c128 = arith.constant 128 : index
    %c0_11 = arith.constant 0 : index
    %10 = vector.load %arg3[%c128, %c0_11] : memref<1152x128xbf16, #tpu.memory_space<vmem>>, vector<128x128xbf16>
    %cst_12 = arith.constant dense<0.000000e+00> : vector<48x128xf32>
    %11 = tpu.matmul %9, %10, %cst_12 {dimension_numbers = #tpu.dot_dimension_numbers<[1], [0], [0], [1], [0, 0, 1, 1], [], []>} : vector<48x128xbf16>, vector<128x128xbf16>, vector<48x128xf32> -> vector<48x128xf32>
    %12 = arith.addf %7, %11 : vector<48x128xf32>
    %c2 = arith.constant 2 : index
    %c0_13 = arith.constant 0 : index
    %13 = vector.load %arg7[%c2, %c0_13] : memref<64x128xf32, #tpu.memory_space<vmem>>, vector<48x128xf32>
    %14 = arith.truncf %13 : vector<48x128xf32> to vector<48x128xbf16>
    %c256 = arith.constant 256 : index
    %c0_14 = arith.constant 0 : index
    %15 = vector.load %arg3[%c256, %c0_14] : memref<1152x128xbf16, #tpu.memory_space<vmem>>, vector<128x128xbf16>
    %cst_15 = arith.constant dense<0.000000e+00> : vector<48x128xf32>
    %16 = tpu.matmul %14, %15, %cst_15 {dimension_numbers = #tpu.dot_dimension_numbers<[1], [0], [0], [1], [0, 0, 1, 1], [], []>} : vector<48x128xbf16>, vector<128x128xbf16>, vector<48x128xf32> -> vector<48x128xf32>
    %17 = arith.addf %12, %16 : vector<48x128xf32>
    %c6 = arith.constant 6 : index
    %c0_16 = arith.constant 0 : index
    %18 = vector.load %arg7[%c6, %c0_16] : memref<64x128xf32, #tpu.memory_space<vmem>>, vector<48x128xf32>
    %19 = arith.truncf %18 : vector<48x128xf32> to vector<48x128xbf16>
    %c384 = arith.constant 384 : index
    %c0_17 = arith.constant 0 : index
    %20 = vector.load %arg3[%c384, %c0_17] : memref<1152x128xbf16, #tpu.memory_space<vmem>>, vector<128x128xbf16>
    %cst_18 = arith.constant dense<0.000000e+00> : vector<48x128xf32>
    %21 = tpu.matmul %19, %20, %cst_18 {dimension_numbers = #tpu.dot_dimension_numbers<[1], [0], [0], [1], [0, 0, 1, 1], [], []>} : vector<48x128xbf16>, vector<128x128xbf16>, vector<48x128xf32> -> vector<48x128xf32>
    %22 = arith.addf %17, %21 : vector<48x128xf32>
    %c7 = arith.constant 7 : index
    %c0_19 = arith.constant 0 : index
    %23 = vector.load %arg7[%c7, %c0_19] : memref<64x128xf32, #tpu.memory_space<vmem>>, vector<48x128xf32>
    %24 = arith.truncf %23 : vector<48x128xf32> to vector<48x128xbf16>
    %c512 = arith.constant 512 : index
    %c0_20 = arith.constant 0 : index
    %25 = vector.load %arg3[%c512, %c0_20] : memref<1152x128xbf16, #tpu.memory_space<vmem>>, vector<128x128xbf16>
    %cst_21 = arith.constant dense<0.000000e+00> : vector<48x128xf32>
    %26 = tpu.matmul %24, %25, %cst_21 {dimension_numbers = #tpu.dot_dimension_numbers<[1], [0], [0], [1], [0, 0, 1, 1], [], []>} : vector<48x128xbf16>, vector<128x128xbf16>, vector<48x128xf32> -> vector<48x128xf32>
    %27 = arith.addf %22, %26 : vector<48x128xf32>
    %c8 = arith.constant 8 : index
    %c0_22 = arith.constant 0 : index
    %28 = vector.load %arg7[%c8, %c0_22] : memref<64x128xf32, #tpu.memory_space<vmem>>, vector<48x128xf32>
    %29 = arith.truncf %28 : vector<48x128xf32> to vector<48x128xbf16>
    %c640 = arith.constant 640 : index
    %c0_23 = arith.constant 0 : index
    %30 = vector.load %arg3[%c640, %c0_23] : memref<1152x128xbf16, #tpu.memory_space<vmem>>, vector<128x128xbf16>
    %cst_24 = arith.constant dense<0.000000e+00> : vector<48x128xf32>
    %31 = tpu.matmul %29, %30, %cst_24 {dimension_numbers = #tpu.dot_dimension_numbers<[1], [0], [0], [1], [0, 0, 1, 1], [], []>} : vector<48x128xbf16>, vector<128x128xbf16>, vector<48x128xf32> -> vector<48x128xf32>
    %32 = arith.addf %27, %31 : vector<48x128xf32>
    %c12 = arith.constant 12 : index
    %c0_25 = arith.constant 0 : index
    %33 = vector.load %arg7[%c12, %c0_25] : memref<64x128xf32, #tpu.memory_space<vmem>>, vector<48x128xf32>
    %34 = arith.truncf %33 : vector<48x128xf32> to vector<48x128xbf16>
    %c768 = arith.constant 768 : index
    %c0_26 = arith.constant 0 : index
    %35 = vector.load %arg3[%c768, %c0_26] : memref<1152x128xbf16, #tpu.memory_space<vmem>>, vector<128x128xbf16>
    %cst_27 = arith.constant dense<0.000000e+00> : vector<48x128xf32>
    %36 = tpu.matmul %34, %35, %cst_27 {dimension_numbers = #tpu.dot_dimension_numbers<[1], [0], [0], [1], [0, 0, 1, 1], [], []>} : vector<48x128xbf16>, vector<128x128xbf16>, vector<48x128xf32> -> vector<48x128xf32>
    %37 = arith.addf %32, %36 : vector<48x128xf32>
    %c13 = arith.constant 13 : index
    %c0_28 = arith.constant 0 : index
    %38 = vector.load %arg7[%c13, %c0_28] : memref<64x128xf32, #tpu.memory_space<vmem>>, vector<48x128xf32>
    %39 = arith.truncf %38 : vector<48x128xf32> to vector<48x128xbf16>
    %c896 = arith.constant 896 : index
    %c0_29 = arith.constant 0 : index
    %40 = vector.load %arg3[%c896, %c0_29] : memref<1152x128xbf16, #tpu.memory_space<vmem>>, vector<128x128xbf16>
    %cst_30 = arith.constant dense<0.000000e+00> : vector<48x128xf32>
    %41 = tpu.matmul %39, %40, %cst_30 {dimension_numbers = #tpu.dot_dimension_numbers<[1], [0], [0], [1], [0, 0, 1, 1], [], []>} : vector<48x128xbf16>, vector<128x128xbf16>, vector<48x128xf32> -> vector<48x128xf32>
    %42 = arith.addf %37, %41 : vector<48x128xf32>
    %c14 = arith.constant 14 : index
    %c0_31 = arith.constant 0 : index
    %43 = vector.load %arg7[%c14, %c0_31] : memref<64x128xf32, #tpu.memory_space<vmem>>, vector<48x128xf32>
    %44 = arith.truncf %43 : vector<48x128xf32> to vector<48x128xbf16>
    %c1024 = arith.constant 1024 : index
    %c0_32 = arith.constant 0 : index
    %45 = vector.load %arg3[%c1024, %c0_32] : memref<1152x128xbf16, #tpu.memory_space<vmem>>, vector<128x128xbf16>
    %cst_33 = arith.constant dense<0.000000e+00> : vector<48x128xf32>
    %46 = tpu.matmul %44, %45, %cst_33 {dimension_numbers = #tpu.dot_dimension_numbers<[1], [0], [0], [1], [0, 0, 1, 1], [], []>} : vector<48x128xbf16>, vector<128x128xbf16>, vector<48x128xf32> -> vector<48x128xf32>
    %47 = arith.addf %42, %46 : vector<48x128xf32>
    %c0_34 = arith.constant 0 : index
    %c0_35 = arith.constant 0 : index
    %48 = vector.load %arg4[%c0_34, %c0_35] : memref<1x128xf32, #tpu.memory_space<vmem>>, vector<1x128xf32>
    %49 = vector.broadcast %48 : vector<1x128xf32> to vector<48x128xf32>
    %50 = arith.addf %47, %49 : vector<48x128xf32>
    %cst_36 = arith.constant 0.000000e+00 : f32
    %51 = vector.broadcast %cst_36 : f32 to vector<48x128xf32>
    %52 = arith.maximumf %50, %51 : vector<48x128xf32>
    %c0_37 = arith.constant 0 : index
    %c0_38 = arith.constant 0 : index
    %53 = vector.load %arg5[%c0_37, %c0_38] : memref<48x128xf32, #tpu.memory_space<vmem>>, vector<48x128xf32>
    %54 = arith.addf %52, %53 : vector<48x128xf32>
    %cst_39 = arith.constant 0.000000e+00 : f32
    %55 = vector.broadcast %cst_39 : f32 to vector<48x128xf32>
    %56 = arith.maximumf %54, %55 : vector<48x128xf32>
    %c0_40 = arith.constant 0 : index
    %c0_41 = arith.constant 0 : index
    %57 = vector.load %arg6[%c0_40, %c0_41] : memref<48x128xf32, #tpu.memory_space<vmem>>, vector<48x128xf32>
    tpu.vector_store %arg6[%c0_40, %c0_41], %56 {strides = array<i32>} : memref<48x128xf32, #tpu.memory_space<vmem>>, vector<48x128xf32>,
    return
  }
  func.func @transform_0(%arg0: i32) -> (i32, i32) {
    %c0_i32 = arith.constant 0 : i32
    %c0_i32_0 = arith.constant 0 : i32
    return %arg0, %c0_i32 : i32, i32
  }
  func.func @transform_1(%arg0: i32) -> (i32, i32) {
    %c1_i32 = arith.constant 1 : i32
    %0 = arith.addi %arg0, %c1_i32 : i32
    %c3_i32 = arith.constant 3 : i32
    %1 = arith.muli %0, %c3_i32 : i32
    %c0_i32 = arith.constant 0 : i32
    %c0_i32_0 = arith.constant 0 : i32
    return %1, %c0_i32 : i32, i32
  }
  func.func @transform_2(%arg0: i32) -> (i32, i32) {
    %c0_i32 = arith.constant 0 : i32
    %c0_i32_0 = arith.constant 0 : i32
    %c0_i32_1 = arith.constant 0 : i32
    return %c0_i32, %c0_i32_0 : i32, i32
  }
  func.func @transform_3(%arg0: i32) -> (i32, i32) {
    %c0_i32 = arith.constant 0 : i32
    %c0_i32_0 = arith.constant 0 : i32
    %c0_i32_1 = arith.constant 0 : i32
    return %c0_i32, %c0_i32_0 : i32, i32
  }
  func.func @transform_4(%arg0: i32) -> (i32, i32) {
    %c0_i32 = arith.constant 0 : i32
    %c0_i32_0 = arith.constant 0 : i32
    return %arg0, %c0_i32 : i32, i32
  }
  func.func @transform_5(%arg0: i32) -> (i32, i32) {
    %c0_i32 = arith.constant 0 : i32
    %c0_i32_0 = arith.constant 0 : i32
    return %arg0, %c0_i32 : i32, i32
  }
}

module attributes {stable_mosaic.version = 11 : i64} {
  func.func @_tap_conv_kernel(%arg0: i32, %arg1: memref<48x128xf32, #tpu.memory_space<vmem>>, %arg2: memref<16x128xf32, #tpu.memory_space<vmem>>, %arg3: memref<1152x128xbf16, #tpu.memory_space<vmem>>, %arg4: memref<1x128xf32, #tpu.memory_space<vmem>>, %arg5: memref<48x128xf32, #tpu.memory_space<vmem>>, %arg6: memref<64x128xf32, #tpu.memory_space<vmem>>) attributes {dimension_semantics = [#tpu.dimension_semantics<parallel>], iteration_bounds = array<i64: 2>, scalar_prefetch = 0 : i64, scratch_operands = 1 : i64, tpu.core_type = #tpu.core_type<tc>, window_params = [{transform_indices = @transform_0, window_bounds = array<i64: 48, 128>}, {transform_indices = @transform_1, window_bounds = array<i64: 16, 128>}, {pipeline_mode = #tpu.pipeline_mode<synchronous>, transform_indices = @transform_2, window_bounds = array<i64: 1152, 128>}, {pipeline_mode = #tpu.pipeline_mode<synchronous>, transform_indices = @transform_3, window_bounds = array<i64: 1, 128>}, {transform_indices = @transform_4, window_bounds = array<i64: 48, 128>}]} {
    %c0 = arith.constant 0 : index
    %c0_0 = arith.constant 0 : index
    %0 = vector.load %arg1[%c0, %c0_0] : memref<48x128xf32, #tpu.memory_space<vmem>>, vector<48x128xf32>
    %c0_1 = arith.constant 0 : index
    %c0_2 = arith.constant 0 : index
    %1 = vector.load %arg6[%c0_1, %c0_2] : memref<64x128xf32, #tpu.memory_space<vmem>>, vector<48x128xf32>
    tpu.vector_store %arg6[%c0_1, %c0_2], %0 {strides = array<i32>} : memref<64x128xf32, #tpu.memory_space<vmem>>, vector<48x128xf32>,
    %c0_3 = arith.constant 0 : index
    %c0_4 = arith.constant 0 : index
    %2 = vector.load %arg2[%c0_3, %c0_4] : memref<16x128xf32, #tpu.memory_space<vmem>>, vector<16x128xf32>
    %c48 = arith.constant 48 : index
    %c0_5 = arith.constant 0 : index
    %3 = vector.load %arg6[%c48, %c0_5] : memref<64x128xf32, #tpu.memory_space<vmem>>, vector<16x128xf32>
    tpu.vector_store %arg6[%c48, %c0_5], %2 {strides = array<i32>} : memref<64x128xf32, #tpu.memory_space<vmem>>, vector<16x128xf32>,
    %c0_6 = arith.constant 0 : index
    %c0_7 = arith.constant 0 : index
    %4 = vector.load %arg6[%c0_6, %c0_7] : memref<64x128xf32, #tpu.memory_space<vmem>>, vector<48x128xf32>
    %5 = arith.truncf %4 : vector<48x128xf32> to vector<48x128xbf16>
    %c0_8 = arith.constant 0 : index
    %c0_9 = arith.constant 0 : index
    %6 = vector.load %arg3[%c0_8, %c0_9] : memref<1152x128xbf16, #tpu.memory_space<vmem>>, vector<128x128xbf16>
    %cst = arith.constant dense<0.000000e+00> : vector<48x128xf32>
    %7 = tpu.matmul %5, %6, %cst {dimension_numbers = #tpu.dot_dimension_numbers<[1], [0], [0], [1], [0, 0, 1, 1], [], []>} : vector<48x128xbf16>, vector<128x128xbf16>, vector<48x128xf32> -> vector<48x128xf32>
    %c1 = arith.constant 1 : index
    %c0_10 = arith.constant 0 : index
    %8 = vector.load %arg6[%c1, %c0_10] : memref<64x128xf32, #tpu.memory_space<vmem>>, vector<48x128xf32>
    %9 = arith.truncf %8 : vector<48x128xf32> to vector<48x128xbf16>
    %c128 = arith.constant 128 : index
    %c0_11 = arith.constant 0 : index
    %10 = vector.load %arg3[%c128, %c0_11] : memref<1152x128xbf16, #tpu.memory_space<vmem>>, vector<128x128xbf16>
    %cst_12 = arith.constant dense<0.000000e+00> : vector<48x128xf32>
    %11 = tpu.matmul %9, %10, %cst_12 {dimension_numbers = #tpu.dot_dimension_numbers<[1], [0], [0], [1], [0, 0, 1, 1], [], []>} : vector<48x128xbf16>, vector<128x128xbf16>, vector<48x128xf32> -> vector<48x128xf32>
    %12 = arith.addf %7, %11 : vector<48x128xf32>
    %c2 = arith.constant 2 : index
    %c0_13 = arith.constant 0 : index
    %13 = vector.load %arg6[%c2, %c0_13] : memref<64x128xf32, #tpu.memory_space<vmem>>, vector<48x128xf32>
    %14 = arith.truncf %13 : vector<48x128xf32> to vector<48x128xbf16>
    %c256 = arith.constant 256 : index
    %c0_14 = arith.constant 0 : index
    %15 = vector.load %arg3[%c256, %c0_14] : memref<1152x128xbf16, #tpu.memory_space<vmem>>, vector<128x128xbf16>
    %cst_15 = arith.constant dense<0.000000e+00> : vector<48x128xf32>
    %16 = tpu.matmul %14, %15, %cst_15 {dimension_numbers = #tpu.dot_dimension_numbers<[1], [0], [0], [1], [0, 0, 1, 1], [], []>} : vector<48x128xbf16>, vector<128x128xbf16>, vector<48x128xf32> -> vector<48x128xf32>
    %17 = arith.addf %12, %16 : vector<48x128xf32>
    %c6 = arith.constant 6 : index
    %c0_16 = arith.constant 0 : index
    %18 = vector.load %arg6[%c6, %c0_16] : memref<64x128xf32, #tpu.memory_space<vmem>>, vector<48x128xf32>
    %19 = arith.truncf %18 : vector<48x128xf32> to vector<48x128xbf16>
    %c384 = arith.constant 384 : index
    %c0_17 = arith.constant 0 : index
    %20 = vector.load %arg3[%c384, %c0_17] : memref<1152x128xbf16, #tpu.memory_space<vmem>>, vector<128x128xbf16>
    %cst_18 = arith.constant dense<0.000000e+00> : vector<48x128xf32>
    %21 = tpu.matmul %19, %20, %cst_18 {dimension_numbers = #tpu.dot_dimension_numbers<[1], [0], [0], [1], [0, 0, 1, 1], [], []>} : vector<48x128xbf16>, vector<128x128xbf16>, vector<48x128xf32> -> vector<48x128xf32>
    %22 = arith.addf %17, %21 : vector<48x128xf32>
    %c7 = arith.constant 7 : index
    %c0_19 = arith.constant 0 : index
    %23 = vector.load %arg6[%c7, %c0_19] : memref<64x128xf32, #tpu.memory_space<vmem>>, vector<48x128xf32>
    %24 = arith.truncf %23 : vector<48x128xf32> to vector<48x128xbf16>
    %c512 = arith.constant 512 : index
    %c0_20 = arith.constant 0 : index
    %25 = vector.load %arg3[%c512, %c0_20] : memref<1152x128xbf16, #tpu.memory_space<vmem>>, vector<128x128xbf16>
    %cst_21 = arith.constant dense<0.000000e+00> : vector<48x128xf32>
    %26 = tpu.matmul %24, %25, %cst_21 {dimension_numbers = #tpu.dot_dimension_numbers<[1], [0], [0], [1], [0, 0, 1, 1], [], []>} : vector<48x128xbf16>, vector<128x128xbf16>, vector<48x128xf32> -> vector<48x128xf32>
    %27 = arith.addf %22, %26 : vector<48x128xf32>
    %c8 = arith.constant 8 : index
    %c0_22 = arith.constant 0 : index
    %28 = vector.load %arg6[%c8, %c0_22] : memref<64x128xf32, #tpu.memory_space<vmem>>, vector<48x128xf32>
    %29 = arith.truncf %28 : vector<48x128xf32> to vector<48x128xbf16>
    %c640 = arith.constant 640 : index
    %c0_23 = arith.constant 0 : index
    %30 = vector.load %arg3[%c640, %c0_23] : memref<1152x128xbf16, #tpu.memory_space<vmem>>, vector<128x128xbf16>
    %cst_24 = arith.constant dense<0.000000e+00> : vector<48x128xf32>
    %31 = tpu.matmul %29, %30, %cst_24 {dimension_numbers = #tpu.dot_dimension_numbers<[1], [0], [0], [1], [0, 0, 1, 1], [], []>} : vector<48x128xbf16>, vector<128x128xbf16>, vector<48x128xf32> -> vector<48x128xf32>
    %32 = arith.addf %27, %31 : vector<48x128xf32>
    %c12 = arith.constant 12 : index
    %c0_25 = arith.constant 0 : index
    %33 = vector.load %arg6[%c12, %c0_25] : memref<64x128xf32, #tpu.memory_space<vmem>>, vector<48x128xf32>
    %34 = arith.truncf %33 : vector<48x128xf32> to vector<48x128xbf16>
    %c768 = arith.constant 768 : index
    %c0_26 = arith.constant 0 : index
    %35 = vector.load %arg3[%c768, %c0_26] : memref<1152x128xbf16, #tpu.memory_space<vmem>>, vector<128x128xbf16>
    %cst_27 = arith.constant dense<0.000000e+00> : vector<48x128xf32>
    %36 = tpu.matmul %34, %35, %cst_27 {dimension_numbers = #tpu.dot_dimension_numbers<[1], [0], [0], [1], [0, 0, 1, 1], [], []>} : vector<48x128xbf16>, vector<128x128xbf16>, vector<48x128xf32> -> vector<48x128xf32>
    %37 = arith.addf %32, %36 : vector<48x128xf32>
    %c13 = arith.constant 13 : index
    %c0_28 = arith.constant 0 : index
    %38 = vector.load %arg6[%c13, %c0_28] : memref<64x128xf32, #tpu.memory_space<vmem>>, vector<48x128xf32>
    %39 = arith.truncf %38 : vector<48x128xf32> to vector<48x128xbf16>
    %c896 = arith.constant 896 : index
    %c0_29 = arith.constant 0 : index
    %40 = vector.load %arg3[%c896, %c0_29] : memref<1152x128xbf16, #tpu.memory_space<vmem>>, vector<128x128xbf16>
    %cst_30 = arith.constant dense<0.000000e+00> : vector<48x128xf32>
    %41 = tpu.matmul %39, %40, %cst_30 {dimension_numbers = #tpu.dot_dimension_numbers<[1], [0], [0], [1], [0, 0, 1, 1], [], []>} : vector<48x128xbf16>, vector<128x128xbf16>, vector<48x128xf32> -> vector<48x128xf32>
    %42 = arith.addf %37, %41 : vector<48x128xf32>
    %c14 = arith.constant 14 : index
    %c0_31 = arith.constant 0 : index
    %43 = vector.load %arg6[%c14, %c0_31] : memref<64x128xf32, #tpu.memory_space<vmem>>, vector<48x128xf32>
    %44 = arith.truncf %43 : vector<48x128xf32> to vector<48x128xbf16>
    %c1024 = arith.constant 1024 : index
    %c0_32 = arith.constant 0 : index
    %45 = vector.load %arg3[%c1024, %c0_32] : memref<1152x128xbf16, #tpu.memory_space<vmem>>, vector<128x128xbf16>
    %cst_33 = arith.constant dense<0.000000e+00> : vector<48x128xf32>
    %46 = tpu.matmul %44, %45, %cst_33 {dimension_numbers = #tpu.dot_dimension_numbers<[1], [0], [0], [1], [0, 0, 1, 1], [], []>} : vector<48x128xbf16>, vector<128x128xbf16>, vector<48x128xf32> -> vector<48x128xf32>
    %47 = arith.addf %42, %46 : vector<48x128xf32>
    %c0_34 = arith.constant 0 : index
    %c0_35 = arith.constant 0 : index
    %48 = vector.load %arg4[%c0_34, %c0_35] : memref<1x128xf32, #tpu.memory_space<vmem>>, vector<1x128xf32>
    %49 = vector.broadcast %48 : vector<1x128xf32> to vector<48x128xf32>
    %50 = arith.addf %47, %49 : vector<48x128xf32>
    %cst_36 = arith.constant 0.000000e+00 : f32
    %51 = vector.broadcast %cst_36 : f32 to vector<48x128xf32>
    %52 = arith.maximumf %50, %51 : vector<48x128xf32>
    %c0_37 = arith.constant 0 : index
    %c0_38 = arith.constant 0 : index
    %53 = vector.load %arg5[%c0_37, %c0_38] : memref<48x128xf32, #tpu.memory_space<vmem>>, vector<48x128xf32>
    tpu.vector_store %arg5[%c0_37, %c0_38], %52 {strides = array<i32>} : memref<48x128xf32, #tpu.memory_space<vmem>>, vector<48x128xf32>,
    return
  }
  func.func @transform_0(%arg0: i32) -> (i32, i32) {
    %c0_i32 = arith.constant 0 : i32
    %c0_i32_0 = arith.constant 0 : i32
    return %arg0, %c0_i32 : i32, i32
  }
  func.func @transform_1(%arg0: i32) -> (i32, i32) {
    %c1_i32 = arith.constant 1 : i32
    %0 = arith.addi %arg0, %c1_i32 : i32
    %c3_i32 = arith.constant 3 : i32
    %1 = arith.muli %0, %c3_i32 : i32
    %c0_i32 = arith.constant 0 : i32
    %c0_i32_0 = arith.constant 0 : i32
    return %1, %c0_i32 : i32, i32
  }
  func.func @transform_2(%arg0: i32) -> (i32, i32) {
    %c0_i32 = arith.constant 0 : i32
    %c0_i32_0 = arith.constant 0 : i32
    %c0_i32_1 = arith.constant 0 : i32
    return %c0_i32, %c0_i32_0 : i32, i32
  }
  func.func @transform_3(%arg0: i32) -> (i32, i32) {
    %c0_i32 = arith.constant 0 : i32
    %c0_i32_0 = arith.constant 0 : i32
    %c0_i32_1 = arith.constant 0 : i32
    return %c0_i32, %c0_i32_0 : i32, i32
  }
  func.func @transform_4(%arg0: i32) -> (i32, i32) {
    %c0_i32 = arith.constant 0 : i32
    %c0_i32_0 = arith.constant 0 : i32
    return %arg0, %c0_i32 : i32, i32
  }
}

module attributes {stable_mosaic.version = 11 : i64} {
  func.func @_matmul_bias_act_kernel(%arg0: i32, %arg1: memref<8x128xbf16, #tpu.memory_space<vmem>>, %arg2: memref<128x128xbf16, #tpu.memory_space<vmem>>, %arg3: memref<1x128xf32, #tpu.memory_space<vmem>>, %arg4: memref<8x128xf32, #tpu.memory_space<vmem>>) attributes {dimension_semantics = [#tpu.dimension_semantics<parallel>], iteration_bounds = array<i64: 1>, scalar_prefetch = 0 : i64, scratch_operands = 0 : i64, tpu.core_type = #tpu.core_type<tc>, window_params = [{transform_indices = @transform_0, window_bounds = array<i64: 8, 128>}, {pipeline_mode = #tpu.pipeline_mode<synchronous>, transform_indices = @transform_1, window_bounds = array<i64: 128, 128>}, {pipeline_mode = #tpu.pipeline_mode<synchronous>, transform_indices = @transform_2, window_bounds = array<i64: 1, 128>}, {transform_indices = @transform_3, window_bounds = array<i64: 8, 128>}]} {
    %c0 = arith.constant 0 : index
    %c0_0 = arith.constant 0 : index
    %0 = vector.load %arg1[%c0, %c0_0] : memref<8x128xbf16, #tpu.memory_space<vmem>>, vector<8x128xbf16>
    %c0_1 = arith.constant 0 : index
    %c0_2 = arith.constant 0 : index
    %1 = vector.load %arg2[%c0_1, %c0_2] : memref<128x128xbf16, #tpu.memory_space<vmem>>, vector<128x128xbf16>
    %cst = arith.constant dense<0.000000e+00> : vector<8x128xf32>
    %2 = tpu.matmul %0, %1, %cst {dimension_numbers = #tpu.dot_dimension_numbers<[1], [0], [0], [1], [0, 0, 1, 1], [], []>} : vector<8x128xbf16>, vector<128x128xbf16>, vector<8x128xf32> -> vector<8x128xf32>
    %c0_3 = arith.constant 0 : index
    %c0_4 = arith.constant 0 : index
    %3 = vector.load %arg3[%c0_3, %c0_4] : memref<1x128xf32, #tpu.memory_space<vmem>>, vector<1x128xf32>
    %4 = vector.broadcast %3 : vector<1x128xf32> to vector<8x128xf32>
    %5 = arith.addf %2, %4 : vector<8x128xf32>
    %c0_5 = arith.constant 0 : index
    %c0_6 = arith.constant 0 : index
    %6 = vector.load %arg4[%c0_5, %c0_6] : memref<8x128xf32, #tpu.memory_space<vmem>>, vector<8x128xf32>
    tpu.vector_store %arg4[%c0_5, %c0_6], %5 {strides = array<i32>} : memref<8x128xf32, #tpu.memory_space<vmem>>, vector<8x128xf32>,
    return
  }
  func.func @transform_0(%arg0: i32) -> (i32, i32) {
    %c0_i32 = arith.constant 0 : i32
    %c0_i32_0 = arith.constant 0 : i32
    return %arg0, %c0_i32 : i32, i32
  }
  func.func @transform_1(%arg0: i32) -> (i32, i32) {
    %c0_i32 = arith.constant 0 : i32
    %c0_i32_0 = arith.constant 0 : i32
    %c0_i32_1 = arith.constant 0 : i32
    return %c0_i32, %c0_i32_0 : i32, i32
  }
  func.func @transform_2(%arg0: i32) -> (i32, i32) {
    %c0_i32 = arith.constant 0 : i32
    %c0_i32_0 = arith.constant 0 : i32
    %c0_i32_1 = arith.constant 0 : i32
    return %c0_i32, %c0_i32_0 : i32, i32
  }
  func.func @transform_3(%arg0: i32) -> (i32, i32) {
    %c0_i32 = arith.constant 0 : i32
    %c0_i32_0 = arith.constant 0 : i32
    return %arg0, %c0_i32 : i32, i32
  }
}

module attributes {stable_mosaic.version = 11 : i64} {
  func.func @_matmul_bias_act_kernel(%arg0: i32, %arg1: memref<8x1152xbf16, #tpu.memory_space<vmem>>, %arg2: memref<1152x128xbf16, #tpu.memory_space<vmem>>, %arg3: memref<1x128xf32, #tpu.memory_space<vmem>>, %arg4: memref<8x128xf32, #tpu.memory_space<vmem>>) attributes {dimension_semantics = [#tpu.dimension_semantics<parallel>], iteration_bounds = array<i64: 1>, scalar_prefetch = 0 : i64, scratch_operands = 0 : i64, tpu.core_type = #tpu.core_type<tc>, window_params = [{transform_indices = @transform_0, window_bounds = array<i64: 8, 1152>}, {pipeline_mode = #tpu.pipeline_mode<synchronous>, transform_indices = @transform_1, window_bounds = array<i64: 1152, 128>}, {pipeline_mode = #tpu.pipeline_mode<synchronous>, transform_indices = @transform_2, window_bounds = array<i64: 1, 128>}, {transform_indices = @transform_3, window_bounds = array<i64: 8, 128>}]} {
    %c0 = arith.constant 0 : index
    %c0_0 = arith.constant 0 : index
    %0 = vector.load %arg1[%c0, %c0_0] : memref<8x1152xbf16, #tpu.memory_space<vmem>>, vector<8x1152xbf16>
    %c0_1 = arith.constant 0 : index
    %c0_2 = arith.constant 0 : index
    %1 = vector.load %arg2[%c0_1, %c0_2] : memref<1152x128xbf16, #tpu.memory_space<vmem>>, vector<1152x128xbf16>
    %cst = arith.constant dense<0.000000e+00> : vector<8x128xf32>
    %2 = tpu.matmul %0, %1, %cst {dimension_numbers = #tpu.dot_dimension_numbers<[1], [0], [0], [1], [0, 0, 1, 1], [], []>} : vector<8x1152xbf16>, vector<1152x128xbf16>, vector<8x128xf32> -> vector<8x128xf32>
    %c0_3 = arith.constant 0 : index
    %c0_4 = arith.constant 0 : index
    %3 = vector.load %arg3[%c0_3, %c0_4] : memref<1x128xf32, #tpu.memory_space<vmem>>, vector<1x128xf32>
    %4 = vector.broadcast %3 : vector<1x128xf32> to vector<8x128xf32>
    %5 = arith.addf %2, %4 : vector<8x128xf32>
    %cst_5 = arith.constant 0.000000e+00 : f32
    %6 = vector.broadcast %cst_5 : f32 to vector<8x128xf32>
    %7 = arith.maximumf %5, %6 : vector<8x128xf32>
    %c0_6 = arith.constant 0 : index
    %c0_7 = arith.constant 0 : index
    %8 = vector.load %arg4[%c0_6, %c0_7] : memref<8x128xf32, #tpu.memory_space<vmem>>, vector<8x128xf32>
    tpu.vector_store %arg4[%c0_6, %c0_7], %7 {strides = array<i32>} : memref<8x128xf32, #tpu.memory_space<vmem>>, vector<8x128xf32>,
    return
  }
  func.func @transform_0(%arg0: i32) -> (i32, i32) {
    %c0_i32 = arith.constant 0 : i32
    %c0_i32_0 = arith.constant 0 : i32
    return %arg0, %c0_i32 : i32, i32
  }
  func.func @transform_1(%arg0: i32) -> (i32, i32) {
    %c0_i32 = arith.constant 0 : i32
    %c0_i32_0 = arith.constant 0 : i32
    %c0_i32_1 = arith.constant 0 : i32
    return %c0_i32, %c0_i32_0 : i32, i32
  }
  func.func @transform_2(%arg0: i32) -> (i32, i32) {
    %c0_i32 = arith.constant 0 : i32
    %c0_i32_0 = arith.constant 0 : i32
    %c0_i32_1 = arith.constant 0 : i32
    return %c0_i32, %c0_i32_0 : i32, i32
  }
  func.func @transform_3(%arg0: i32) -> (i32, i32) {
    %c0_i32 = arith.constant 0 : i32
    %c0_i32_0 = arith.constant 0 : i32
    return %arg0, %c0_i32 : i32, i32
  }
}

module attributes {stable_mosaic.version = 11 : i64} {
  func.func @_tap_conv_kernel(%arg0: i32, %arg1: memref<16x128xf32, #tpu.memory_space<vmem>>, %arg2: memref<16x128xf32, #tpu.memory_space<vmem>>, %arg3: memref<1152x128xbf16, #tpu.memory_space<vmem>>, %arg4: memref<1x128xf32, #tpu.memory_space<vmem>>, %arg5: memref<16x128xf32, #tpu.memory_space<vmem>>, %arg6: memref<16x128xf32, #tpu.memory_space<vmem>>, %arg7: memref<32x128xf32, #tpu.memory_space<vmem>>) attributes {dimension_semantics = [#tpu.dimension_semantics<parallel>], iteration_bounds = array<i64: 2>, scalar_prefetch = 0 : i64, scratch_operands = 1 : i64, tpu.core_type = #tpu.core_type<tc>, window_params = [{transform_indices = @transform_0, window_bounds = array<i64: 16, 128>}, {transform_indices = @transform_1, window_bounds = array<i64: 16, 128>}, {pipeline_mode = #tpu.pipeline_mode<synchronous>, transform_indices = @transform_2, window_bounds = array<i64: 1152, 128>}, {pipeline_mode = #tpu.pipeline_mode<synchronous>, transform_indices = @transform_3, window_bounds = array<i64: 1, 128>}, {transform_indices = @transform_4, window_bounds = array<i64: 16, 128>}, {transform_indices = @transform_5, window_bounds = array<i64: 16, 128>}]} {
    %c0 = arith.constant 0 : index
    %c0_0 = arith.constant 0 : index
    %0 = vector.load %arg1[%c0, %c0_0] : memref<16x128xf32, #tpu.memory_space<vmem>>, vector<16x128xf32>
    %c0_1 = arith.constant 0 : index
    %c0_2 = arith.constant 0 : index
    %1 = vector.load %arg7[%c0_1, %c0_2] : memref<32x128xf32, #tpu.memory_space<vmem>>, vector<16x128xf32>
    tpu.vector_store %arg7[%c0_1, %c0_2], %0 {strides = array<i32>} : memref<32x128xf32, #tpu.memory_space<vmem>>, vector<16x128xf32>,
    %c0_3 = arith.constant 0 : index
    %c0_4 = arith.constant 0 : index
    %2 = vector.load %arg2[%c0_3, %c0_4] : memref<16x128xf32, #tpu.memory_space<vmem>>, vector<16x128xf32>
    %c16 = arith.constant 16 : index
    %c0_5 = arith.constant 0 : index
    %3 = vector.load %arg7[%c16, %c0_5] : memref<32x128xf32, #tpu.memory_space<vmem>>, vector<16x128xf32>
    tpu.vector_store %arg7[%c16, %c0_5], %2 {strides = array<i32>} : memref<32x128xf32, #tpu.memory_space<vmem>>, vector<16x128xf32>,
    %c0_6 = arith.constant 0 : index
    %c0_7 = arith.constant 0 : index
    %4 = vector.load %arg7[%c0_6, %c0_7] : memref<32x128xf32, #tpu.memory_space<vmem>>, vector<16x128xf32>
    %5 = arith.truncf %4 : vector<16x128xf32> to vector<16x128xbf16>
    %c0_8 = arith.constant 0 : index
    %c0_9 = arith.constant 0 : index
    %6 = vector.load %arg3[%c0_8, %c0_9] : memref<1152x128xbf16, #tpu.memory_space<vmem>>, vector<128x128xbf16>
    %cst = arith.constant dense<0.000000e+00> : vector<16x128xf32>
    %7 = tpu.matmul %5, %6, %cst {dimension_numbers = #tpu.dot_dimension_numbers<[1], [0], [0], [1], [0, 0, 1, 1], [], []>} : vector<16x128xbf16>, vector<128x128xbf16>, vector<16x128xf32> -> vector<16x128xf32>
    %c1 = arith.constant 1 : index
    %c0_10 = arith.constant 0 : index
    %8 = vector.load %arg7[%c1, %c0_10] : memref<32x128xf32, #tpu.memory_space<vmem>>, vector<16x128xf32>
    %9 = arith.truncf %8 : vector<16x128xf32> to vector<16x128xbf16>
    %c128 = arith.constant 128 : index
    %c0_11 = arith.constant 0 : index
    %10 = vector.load %arg3[%c128, %c0_11] : memref<1152x128xbf16, #tpu.memory_space<vmem>>, vector<128x128xbf16>
    %cst_12 = arith.constant dense<0.000000e+00> : vector<16x128xf32>
    %11 = tpu.matmul %9, %10, %cst_12 {dimension_numbers = #tpu.dot_dimension_numbers<[1], [0], [0], [1], [0, 0, 1, 1], [], []>} : vector<16x128xbf16>, vector<128x128xbf16>, vector<16x128xf32> -> vector<16x128xf32>
    %12 = arith.addf %7, %11 : vector<16x128xf32>
    %c2 = arith.constant 2 : index
    %c0_13 = arith.constant 0 : index
    %13 = vector.load %arg7[%c2, %c0_13] : memref<32x128xf32, #tpu.memory_space<vmem>>, vector<16x128xf32>
    %14 = arith.truncf %13 : vector<16x128xf32> to vector<16x128xbf16>
    %c256 = arith.constant 256 : index
    %c0_14 = arith.constant 0 : index
    %15 = vector.load %arg3[%c256, %c0_14] : memref<1152x128xbf16, #tpu.memory_space<vmem>>, vector<128x128xbf16>
    %cst_15 = arith.constant dense<0.000000e+00> : vector<16x128xf32>
    %16 = tpu.matmul %14, %15, %cst_15 {dimension_numbers = #tpu.dot_dimension_numbers<[1], [0], [0], [1], [0, 0, 1, 1], [], []>} : vector<16x128xbf16>, vector<128x128xbf16>, vector<16x128xf32> -> vector<16x128xf32>
    %17 = arith.addf %12, %16 : vector<16x128xf32>
    %c4 = arith.constant 4 : index
    %c0_16 = arith.constant 0 : index
    %18 = vector.load %arg7[%c4, %c0_16] : memref<32x128xf32, #tpu.memory_space<vmem>>, vector<16x128xf32>
    %19 = arith.truncf %18 : vector<16x128xf32> to vector<16x128xbf16>
    %c384 = arith.constant 384 : index
    %c0_17 = arith.constant 0 : index
    %20 = vector.load %arg3[%c384, %c0_17] : memref<1152x128xbf16, #tpu.memory_space<vmem>>, vector<128x128xbf16>
    %cst_18 = arith.constant dense<0.000000e+00> : vector<16x128xf32>
    %21 = tpu.matmul %19, %20, %cst_18 {dimension_numbers = #tpu.dot_dimension_numbers<[1], [0], [0], [1], [0, 0, 1, 1], [], []>} : vector<16x128xbf16>, vector<128x128xbf16>, vector<16x128xf32> -> vector<16x128xf32>
    %22 = arith.addf %17, %21 : vector<16x128xf32>
    %c5 = arith.constant 5 : index
    %c0_19 = arith.constant 0 : index
    %23 = vector.load %arg7[%c5, %c0_19] : memref<32x128xf32, #tpu.memory_space<vmem>>, vector<16x128xf32>
    %24 = arith.truncf %23 : vector<16x128xf32> to vector<16x128xbf16>
    %c512 = arith.constant 512 : index
    %c0_20 = arith.constant 0 : index
    %25 = vector.load %arg3[%c512, %c0_20] : memref<1152x128xbf16, #tpu.memory_space<vmem>>, vector<128x128xbf16>
    %cst_21 = arith.constant dense<0.000000e+00> : vector<16x128xf32>
    %26 = tpu.matmul %24, %25, %cst_21 {dimension_numbers = #tpu.dot_dimension_numbers<[1], [0], [0], [1], [0, 0, 1, 1], [], []>} : vector<16x128xbf16>, vector<128x128xbf16>, vector<16x128xf32> -> vector<16x128xf32>
    %27 = arith.addf %22, %26 : vector<16x128xf32>
    %c6 = arith.constant 6 : index
    %c0_22 = arith.constant 0 : index
    %28 = vector.load %arg7[%c6, %c0_22] : memref<32x128xf32, #tpu.memory_space<vmem>>, vector<16x128xf32>
    %29 = arith.truncf %28 : vector<16x128xf32> to vector<16x128xbf16>
    %c640 = arith.constant 640 : index
    %c0_23 = arith.constant 0 : index
    %30 = vector.load %arg3[%c640, %c0_23] : memref<1152x128xbf16, #tpu.memory_space<vmem>>, vector<128x128xbf16>
    %cst_24 = arith.constant dense<0.000000e+00> : vector<16x128xf32>
    %31 = tpu.matmul %29, %30, %cst_24 {dimension_numbers = #tpu.dot_dimension_numbers<[1], [0], [0], [1], [0, 0, 1, 1], [], []>} : vector<16x128xbf16>, vector<128x128xbf16>, vector<16x128xf32> -> vector<16x128xf32>
    %32 = arith.addf %27, %31 : vector<16x128xf32>
    %c8 = arith.constant 8 : index
    %c0_25 = arith.constant 0 : index
    %33 = vector.load %arg7[%c8, %c0_25] : memref<32x128xf32, #tpu.memory_space<vmem>>, vector<16x128xf32>
    %34 = arith.truncf %33 : vector<16x128xf32> to vector<16x128xbf16>
    %c768 = arith.constant 768 : index
    %c0_26 = arith.constant 0 : index
    %35 = vector.load %arg3[%c768, %c0_26] : memref<1152x128xbf16, #tpu.memory_space<vmem>>, vector<128x128xbf16>
    %cst_27 = arith.constant dense<0.000000e+00> : vector<16x128xf32>
    %36 = tpu.matmul %34, %35, %cst_27 {dimension_numbers = #tpu.dot_dimension_numbers<[1], [0], [0], [1], [0, 0, 1, 1], [], []>} : vector<16x128xbf16>, vector<128x128xbf16>, vector<16x128xf32> -> vector<16x128xf32>
    %37 = arith.addf %32, %36 : vector<16x128xf32>
    %c9 = arith.constant 9 : index
    %c0_28 = arith.constant 0 : index
    %38 = vector.load %arg7[%c9, %c0_28] : memref<32x128xf32, #tpu.memory_space<vmem>>, vector<16x128xf32>
    %39 = arith.truncf %38 : vector<16x128xf32> to vector<16x128xbf16>
    %c896 = arith.constant 896 : index
    %c0_29 = arith.constant 0 : index
    %40 = vector.load %arg3[%c896, %c0_29] : memref<1152x128xbf16, #tpu.memory_space<vmem>>, vector<128x128xbf16>
    %cst_30 = arith.constant dense<0.000000e+00> : vector<16x128xf32>
    %41 = tpu.matmul %39, %40, %cst_30 {dimension_numbers = #tpu.dot_dimension_numbers<[1], [0], [0], [1], [0, 0, 1, 1], [], []>} : vector<16x128xbf16>, vector<128x128xbf16>, vector<16x128xf32> -> vector<16x128xf32>
    %42 = arith.addf %37, %41 : vector<16x128xf32>
    %c10 = arith.constant 10 : index
    %c0_31 = arith.constant 0 : index
    %43 = vector.load %arg7[%c10, %c0_31] : memref<32x128xf32, #tpu.memory_space<vmem>>, vector<16x128xf32>
    %44 = arith.truncf %43 : vector<16x128xf32> to vector<16x128xbf16>
    %c1024 = arith.constant 1024 : index
    %c0_32 = arith.constant 0 : index
    %45 = vector.load %arg3[%c1024, %c0_32] : memref<1152x128xbf16, #tpu.memory_space<vmem>>, vector<128x128xbf16>
    %cst_33 = arith.constant dense<0.000000e+00> : vector<16x128xf32>
    %46 = tpu.matmul %44, %45, %cst_33 {dimension_numbers = #tpu.dot_dimension_numbers<[1], [0], [0], [1], [0, 0, 1, 1], [], []>} : vector<16x128xbf16>, vector<128x128xbf16>, vector<16x128xf32> -> vector<16x128xf32>
    %47 = arith.addf %42, %46 : vector<16x128xf32>
    %c0_34 = arith.constant 0 : index
    %c0_35 = arith.constant 0 : index
    %48 = vector.load %arg4[%c0_34, %c0_35] : memref<1x128xf32, #tpu.memory_space<vmem>>, vector<1x128xf32>
    %49 = vector.broadcast %48 : vector<1x128xf32> to vector<16x128xf32>
    %50 = arith.addf %47, %49 : vector<16x128xf32>
    %cst_36 = arith.constant 0.000000e+00 : f32
    %51 = vector.broadcast %cst_36 : f32 to vector<16x128xf32>
    %52 = arith.maximumf %50, %51 : vector<16x128xf32>
    %c0_37 = arith.constant 0 : index
    %c0_38 = arith.constant 0 : index
    %53 = vector.load %arg5[%c0_37, %c0_38] : memref<16x128xf32, #tpu.memory_space<vmem>>, vector<16x128xf32>
    %54 = arith.addf %52, %53 : vector<16x128xf32>
    %cst_39 = arith.constant 0.000000e+00 : f32
    %55 = vector.broadcast %cst_39 : f32 to vector<16x128xf32>
    %56 = arith.maximumf %54, %55 : vector<16x128xf32>
    %c0_40 = arith.constant 0 : index
    %c0_41 = arith.constant 0 : index
    %57 = vector.load %arg6[%c0_40, %c0_41] : memref<16x128xf32, #tpu.memory_space<vmem>>, vector<16x128xf32>
    tpu.vector_store %arg6[%c0_40, %c0_41], %56 {strides = array<i32>} : memref<16x128xf32, #tpu.memory_space<vmem>>, vector<16x128xf32>,
    return
  }
  func.func @transform_0(%arg0: i32) -> (i32, i32) {
    %c0_i32 = arith.constant 0 : i32
    %c0_i32_0 = arith.constant 0 : i32
    return %arg0, %c0_i32 : i32, i32
  }
  func.func @transform_1(%arg0: i32) -> (i32, i32) {
    %c1_i32 = arith.constant 1 : i32
    %0 = arith.addi %arg0, %c1_i32 : i32
    %c1_i32_0 = arith.constant 1 : i32
    %1 = arith.muli %0, %c1_i32_0 : i32
    %c0_i32 = arith.constant 0 : i32
    %c0_i32_1 = arith.constant 0 : i32
    return %1, %c0_i32 : i32, i32
  }
  func.func @transform_2(%arg0: i32) -> (i32, i32) {
    %c0_i32 = arith.constant 0 : i32
    %c0_i32_0 = arith.constant 0 : i32
    %c0_i32_1 = arith.constant 0 : i32
    return %c0_i32, %c0_i32_0 : i32, i32
  }
  func.func @transform_3(%arg0: i32) -> (i32, i32) {
    %c0_i32 = arith.constant 0 : i32
    %c0_i32_0 = arith.constant 0 : i32
    %c0_i32_1 = arith.constant 0 : i32
    return %c0_i32, %c0_i32_0 : i32, i32
  }
  func.func @transform_4(%arg0: i32) -> (i32, i32) {
    %c0_i32 = arith.constant 0 : i32
    %c0_i32_0 = arith.constant 0 : i32
    return %arg0, %c0_i32 : i32, i32
  }
  func.func @transform_5(%arg0: i32) -> (i32, i32) {
    %c0_i32 = arith.constant 0 : i32
    %c0_i32_0 = arith.constant 0 : i32
    return %arg0, %c0_i32 : i32, i32
  }
}

module attributes {stable_mosaic.version = 11 : i64} {
  func.func @_tap_conv_kernel(%arg0: i32, %arg1: memref<16x128xf32, #tpu.memory_space<vmem>>, %arg2: memref<16x128xf32, #tpu.memory_space<vmem>>, %arg3: memref<1152x128xbf16, #tpu.memory_space<vmem>>, %arg4: memref<1x128xf32, #tpu.memory_space<vmem>>, %arg5: memref<16x128xf32, #tpu.memory_space<vmem>>, %arg6: memref<32x128xf32, #tpu.memory_space<vmem>>) attributes {dimension_semantics = [#tpu.dimension_semantics<parallel>], iteration_bounds = array<i64: 2>, scalar_prefetch = 0 : i64, scratch_operands = 1 : i64, tpu.core_type = #tpu.core_type<tc>, window_params = [{transform_indices = @transform_0, window_bounds = array<i64: 16, 128>}, {transform_indices = @transform_1, window_bounds = array<i64: 16, 128>}, {pipeline_mode = #tpu.pipeline_mode<synchronous>, transform_indices = @transform_2, window_bounds = array<i64: 1152, 128>}, {pipeline_mode = #tpu.pipeline_mode<synchronous>, transform_indices = @transform_3, window_bounds = array<i64: 1, 128>}, {transform_indices = @transform_4, window_bounds = array<i64: 16, 128>}]} {
    %c0 = arith.constant 0 : index
    %c0_0 = arith.constant 0 : index
    %0 = vector.load %arg1[%c0, %c0_0] : memref<16x128xf32, #tpu.memory_space<vmem>>, vector<16x128xf32>
    %c0_1 = arith.constant 0 : index
    %c0_2 = arith.constant 0 : index
    %1 = vector.load %arg6[%c0_1, %c0_2] : memref<32x128xf32, #tpu.memory_space<vmem>>, vector<16x128xf32>
    tpu.vector_store %arg6[%c0_1, %c0_2], %0 {strides = array<i32>} : memref<32x128xf32, #tpu.memory_space<vmem>>, vector<16x128xf32>,
    %c0_3 = arith.constant 0 : index
    %c0_4 = arith.constant 0 : index
    %2 = vector.load %arg2[%c0_3, %c0_4] : memref<16x128xf32, #tpu.memory_space<vmem>>, vector<16x128xf32>
    %c16 = arith.constant 16 : index
    %c0_5 = arith.constant 0 : index
    %3 = vector.load %arg6[%c16, %c0_5] : memref<32x128xf32, #tpu.memory_space<vmem>>, vector<16x128xf32>
    tpu.vector_store %arg6[%c16, %c0_5], %2 {strides = array<i32>} : memref<32x128xf32, #tpu.memory_space<vmem>>, vector<16x128xf32>,
    %c0_6 = arith.constant 0 : index
    %c0_7 = arith.constant 0 : index
    %4 = vector.load %arg6[%c0_6, %c0_7] : memref<32x128xf32, #tpu.memory_space<vmem>>, vector<16x128xf32>
    %5 = arith.truncf %4 : vector<16x128xf32> to vector<16x128xbf16>
    %c0_8 = arith.constant 0 : index
    %c0_9 = arith.constant 0 : index
    %6 = vector.load %arg3[%c0_8, %c0_9] : memref<1152x128xbf16, #tpu.memory_space<vmem>>, vector<128x128xbf16>
    %cst = arith.constant dense<0.000000e+00> : vector<16x128xf32>
    %7 = tpu.matmul %5, %6, %cst {dimension_numbers = #tpu.dot_dimension_numbers<[1], [0], [0], [1], [0, 0, 1, 1], [], []>} : vector<16x128xbf16>, vector<128x128xbf16>, vector<16x128xf32> -> vector<16x128xf32>
    %c1 = arith.constant 1 : index
    %c0_10 = arith.constant 0 : index
    %8 = vector.load %arg6[%c1, %c0_10] : memref<32x128xf32, #tpu.memory_space<vmem>>, vector<16x128xf32>
    %9 = arith.truncf %8 : vector<16x128xf32> to vector<16x128xbf16>
    %c128 = arith.constant 128 : index
    %c0_11 = arith.constant 0 : index
    %10 = vector.load %arg3[%c128, %c0_11] : memref<1152x128xbf16, #tpu.memory_space<vmem>>, vector<128x128xbf16>
    %cst_12 = arith.constant dense<0.000000e+00> : vector<16x128xf32>
    %11 = tpu.matmul %9, %10, %cst_12 {dimension_numbers = #tpu.dot_dimension_numbers<[1], [0], [0], [1], [0, 0, 1, 1], [], []>} : vector<16x128xbf16>, vector<128x128xbf16>, vector<16x128xf32> -> vector<16x128xf32>
    %12 = arith.addf %7, %11 : vector<16x128xf32>
    %c2 = arith.constant 2 : index
    %c0_13 = arith.constant 0 : index
    %13 = vector.load %arg6[%c2, %c0_13] : memref<32x128xf32, #tpu.memory_space<vmem>>, vector<16x128xf32>
    %14 = arith.truncf %13 : vector<16x128xf32> to vector<16x128xbf16>
    %c256 = arith.constant 256 : index
    %c0_14 = arith.constant 0 : index
    %15 = vector.load %arg3[%c256, %c0_14] : memref<1152x128xbf16, #tpu.memory_space<vmem>>, vector<128x128xbf16>
    %cst_15 = arith.constant dense<0.000000e+00> : vector<16x128xf32>
    %16 = tpu.matmul %14, %15, %cst_15 {dimension_numbers = #tpu.dot_dimension_numbers<[1], [0], [0], [1], [0, 0, 1, 1], [], []>} : vector<16x128xbf16>, vector<128x128xbf16>, vector<16x128xf32> -> vector<16x128xf32>
    %17 = arith.addf %12, %16 : vector<16x128xf32>
    %c4 = arith.constant 4 : index
    %c0_16 = arith.constant 0 : index
    %18 = vector.load %arg6[%c4, %c0_16] : memref<32x128xf32, #tpu.memory_space<vmem>>, vector<16x128xf32>
    %19 = arith.truncf %18 : vector<16x128xf32> to vector<16x128xbf16>
    %c384 = arith.constant 384 : index
    %c0_17 = arith.constant 0 : index
    %20 = vector.load %arg3[%c384, %c0_17] : memref<1152x128xbf16, #tpu.memory_space<vmem>>, vector<128x128xbf16>
    %cst_18 = arith.constant dense<0.000000e+00> : vector<16x128xf32>
    %21 = tpu.matmul %19, %20, %cst_18 {dimension_numbers = #tpu.dot_dimension_numbers<[1], [0], [0], [1], [0, 0, 1, 1], [], []>} : vector<16x128xbf16>, vector<128x128xbf16>, vector<16x128xf32> -> vector<16x128xf32>
    %22 = arith.addf %17, %21 : vector<16x128xf32>
    %c5 = arith.constant 5 : index
    %c0_19 = arith.constant 0 : index
    %23 = vector.load %arg6[%c5, %c0_19] : memref<32x128xf32, #tpu.memory_space<vmem>>, vector<16x128xf32>
    %24 = arith.truncf %23 : vector<16x128xf32> to vector<16x128xbf16>
    %c512 = arith.constant 512 : index
    %c0_20 = arith.constant 0 : index
    %25 = vector.load %arg3[%c512, %c0_20] : memref<1152x128xbf16, #tpu.memory_space<vmem>>, vector<128x128xbf16>
    %cst_21 = arith.constant dense<0.000000e+00> : vector<16x128xf32>
    %26 = tpu.matmul %24, %25, %cst_21 {dimension_numbers = #tpu.dot_dimension_numbers<[1], [0], [0], [1], [0, 0, 1, 1], [], []>} : vector<16x128xbf16>, vector<128x128xbf16>, vector<16x128xf32> -> vector<16x128xf32>
    %27 = arith.addf %22, %26 : vector<16x128xf32>
    %c6 = arith.constant 6 : index
    %c0_22 = arith.constant 0 : index
    %28 = vector.load %arg6[%c6, %c0_22] : memref<32x128xf32, #tpu.memory_space<vmem>>, vector<16x128xf32>
    %29 = arith.truncf %28 : vector<16x128xf32> to vector<16x128xbf16>
    %c640 = arith.constant 640 : index
    %c0_23 = arith.constant 0 : index
    %30 = vector.load %arg3[%c640, %c0_23] : memref<1152x128xbf16, #tpu.memory_space<vmem>>, vector<128x128xbf16>
    %cst_24 = arith.constant dense<0.000000e+00> : vector<16x128xf32>
    %31 = tpu.matmul %29, %30, %cst_24 {dimension_numbers = #tpu.dot_dimension_numbers<[1], [0], [0], [1], [0, 0, 1, 1], [], []>} : vector<16x128xbf16>, vector<128x128xbf16>, vector<16x128xf32> -> vector<16x128xf32>
    %32 = arith.addf %27, %31 : vector<16x128xf32>
    %c8 = arith.constant 8 : index
    %c0_25 = arith.constant 0 : index
    %33 = vector.load %arg6[%c8, %c0_25] : memref<32x128xf32, #tpu.memory_space<vmem>>, vector<16x128xf32>
    %34 = arith.truncf %33 : vector<16x128xf32> to vector<16x128xbf16>
    %c768 = arith.constant 768 : index
    %c0_26 = arith.constant 0 : index
    %35 = vector.load %arg3[%c768, %c0_26] : memref<1152x128xbf16, #tpu.memory_space<vmem>>, vector<128x128xbf16>
    %cst_27 = arith.constant dense<0.000000e+00> : vector<16x128xf32>
    %36 = tpu.matmul %34, %35, %cst_27 {dimension_numbers = #tpu.dot_dimension_numbers<[1], [0], [0], [1], [0, 0, 1, 1], [], []>} : vector<16x128xbf16>, vector<128x128xbf16>, vector<16x128xf32> -> vector<16x128xf32>
    %37 = arith.addf %32, %36 : vector<16x128xf32>
    %c9 = arith.constant 9 : index
    %c0_28 = arith.constant 0 : index
    %38 = vector.load %arg6[%c9, %c0_28] : memref<32x128xf32, #tpu.memory_space<vmem>>, vector<16x128xf32>
    %39 = arith.truncf %38 : vector<16x128xf32> to vector<16x128xbf16>
    %c896 = arith.constant 896 : index
    %c0_29 = arith.constant 0 : index
    %40 = vector.load %arg3[%c896, %c0_29] : memref<1152x128xbf16, #tpu.memory_space<vmem>>, vector<128x128xbf16>
    %cst_30 = arith.constant dense<0.000000e+00> : vector<16x128xf32>
    %41 = tpu.matmul %39, %40, %cst_30 {dimension_numbers = #tpu.dot_dimension_numbers<[1], [0], [0], [1], [0, 0, 1, 1], [], []>} : vector<16x128xbf16>, vector<128x128xbf16>, vector<16x128xf32> -> vector<16x128xf32>
    %42 = arith.addf %37, %41 : vector<16x128xf32>
    %c10 = arith.constant 10 : index
    %c0_31 = arith.constant 0 : index
    %43 = vector.load %arg6[%c10, %c0_31] : memref<32x128xf32, #tpu.memory_space<vmem>>, vector<16x128xf32>
    %44 = arith.truncf %43 : vector<16x128xf32> to vector<16x128xbf16>
    %c1024 = arith.constant 1024 : index
    %c0_32 = arith.constant 0 : index
    %45 = vector.load %arg3[%c1024, %c0_32] : memref<1152x128xbf16, #tpu.memory_space<vmem>>, vector<128x128xbf16>
    %cst_33 = arith.constant dense<0.000000e+00> : vector<16x128xf32>
    %46 = tpu.matmul %44, %45, %cst_33 {dimension_numbers = #tpu.dot_dimension_numbers<[1], [0], [0], [1], [0, 0, 1, 1], [], []>} : vector<16x128xbf16>, vector<128x128xbf16>, vector<16x128xf32> -> vector<16x128xf32>
    %47 = arith.addf %42, %46 : vector<16x128xf32>
    %c0_34 = arith.constant 0 : index
    %c0_35 = arith.constant 0 : index
    %48 = vector.load %arg4[%c0_34, %c0_35] : memref<1x128xf32, #tpu.memory_space<vmem>>, vector<1x128xf32>
    %49 = vector.broadcast %48 : vector<1x128xf32> to vector<16x128xf32>
    %50 = arith.addf %47, %49 : vector<16x128xf32>
    %cst_36 = arith.constant 0.000000e+00 : f32
    %51 = vector.broadcast %cst_36 : f32 to vector<16x128xf32>
    %52 = arith.maximumf %50, %51 : vector<16x128xf32>
    %c0_37 = arith.constant 0 : index
    %c0_38 = arith.constant 0 : index
    %53 = vector.load %arg5[%c0_37, %c0_38] : memref<16x128xf32, #tpu.memory_space<vmem>>, vector<16x128xf32>
    tpu.vector_store %arg5[%c0_37, %c0_38], %52 {strides = array<i32>} : memref<16x128xf32, #tpu.memory_space<vmem>>, vector<16x128xf32>,
    return
  }
  func.func @transform_0(%arg0: i32) -> (i32, i32) {
    %c0_i32 = arith.constant 0 : i32
    %c0_i32_0 = arith.constant 0 : i32
    return %arg0, %c0_i32 : i32, i32
  }
  func.func @transform_1(%arg0: i32) -> (i32, i32) {
    %c1_i32 = arith.constant 1 : i32
    %0 = arith.addi %arg0, %c1_i32 : i32
    %c1_i32_0 = arith.constant 1 : i32
    %1 = arith.muli %0, %c1_i32_0 : i32
    %c0_i32 = arith.constant 0 : i32
    %c0_i32_1 = arith.constant 0 : i32
    return %1, %c0_i32 : i32, i32
  }
  func.func @transform_2(%arg0: i32) -> (i32, i32) {
    %c0_i32 = arith.constant 0 : i32
    %c0_i32_0 = arith.constant 0 : i32
    %c0_i32_1 = arith.constant 0 : i32
    return %c0_i32, %c0_i32_0 : i32, i32
  }
  func.func @transform_3(%arg0: i32) -> (i32, i32) {
    %c0_i32 = arith.constant 0 : i32
    %c0_i32_0 = arith.constant 0 : i32
    %c0_i32_1 = arith.constant 0 : i32
    return %c0_i32, %c0_i32_0 : i32, i32
  }
  func.func @transform_4(%arg0: i32) -> (i32, i32) {
    %c0_i32 = arith.constant 0 : i32
    %c0_i32_0 = arith.constant 0 : i32
    return %arg0, %c0_i32 : i32, i32
  }
}

module attributes {stable_mosaic.version = 11 : i64} {
  func.func @_matmul_bias_act_kernel(%arg0: i32, %arg1: memref<8x128xbf16, #tpu.memory_space<vmem>>, %arg2: memref<128x256xbf16, #tpu.memory_space<vmem>>, %arg3: memref<1x256xf32, #tpu.memory_space<vmem>>, %arg4: memref<8x256xf32, #tpu.memory_space<vmem>>) attributes {dimension_semantics = [#tpu.dimension_semantics<parallel>], iteration_bounds = array<i64: 1>, scalar_prefetch = 0 : i64, scratch_operands = 0 : i64, tpu.core_type = #tpu.core_type<tc>, window_params = [{transform_indices = @transform_0, window_bounds = array<i64: 8, 128>}, {pipeline_mode = #tpu.pipeline_mode<synchronous>, transform_indices = @transform_1, window_bounds = array<i64: 128, 256>}, {pipeline_mode = #tpu.pipeline_mode<synchronous>, transform_indices = @transform_2, window_bounds = array<i64: 1, 256>}, {transform_indices = @transform_3, window_bounds = array<i64: 8, 256>}]} {
    %c0 = arith.constant 0 : index
    %c0_0 = arith.constant 0 : index
    %0 = vector.load %arg1[%c0, %c0_0] : memref<8x128xbf16, #tpu.memory_space<vmem>>, vector<8x128xbf16>
    %c0_1 = arith.constant 0 : index
    %c0_2 = arith.constant 0 : index
    %1 = vector.load %arg2[%c0_1, %c0_2] : memref<128x256xbf16, #tpu.memory_space<vmem>>, vector<128x256xbf16>
    %cst = arith.constant dense<0.000000e+00> : vector<8x256xf32>
    %2 = tpu.matmul %0, %1, %cst {dimension_numbers = #tpu.dot_dimension_numbers<[1], [0], [0], [1], [0, 0, 1, 1], [], []>} : vector<8x128xbf16>, vector<128x256xbf16>, vector<8x256xf32> -> vector<8x256xf32>
    %c0_3 = arith.constant 0 : index
    %c0_4 = arith.constant 0 : index
    %3 = vector.load %arg3[%c0_3, %c0_4] : memref<1x256xf32, #tpu.memory_space<vmem>>, vector<1x256xf32>
    %4 = vector.broadcast %3 : vector<1x256xf32> to vector<8x256xf32>
    %5 = arith.addf %2, %4 : vector<8x256xf32>
    %c0_5 = arith.constant 0 : index
    %c0_6 = arith.constant 0 : index
    %6 = vector.load %arg4[%c0_5, %c0_6] : memref<8x256xf32, #tpu.memory_space<vmem>>, vector<8x256xf32>
    tpu.vector_store %arg4[%c0_5, %c0_6], %5 {strides = array<i32>} : memref<8x256xf32, #tpu.memory_space<vmem>>, vector<8x256xf32>,
    return
  }
  func.func @transform_0(%arg0: i32) -> (i32, i32) {
    %c0_i32 = arith.constant 0 : i32
    %c0_i32_0 = arith.constant 0 : i32
    return %arg0, %c0_i32 : i32, i32
  }
  func.func @transform_1(%arg0: i32) -> (i32, i32) {
    %c0_i32 = arith.constant 0 : i32
    %c0_i32_0 = arith.constant 0 : i32
    %c0_i32_1 = arith.constant 0 : i32
    return %c0_i32, %c0_i32_0 : i32, i32
  }
  func.func @transform_2(%arg0: i32) -> (i32, i32) {
    %c0_i32 = arith.constant 0 : i32
    %c0_i32_0 = arith.constant 0 : i32
    %c0_i32_1 = arith.constant 0 : i32
    return %c0_i32, %c0_i32_0 : i32, i32
  }
  func.func @transform_3(%arg0: i32) -> (i32, i32) {
    %c0_i32 = arith.constant 0 : i32
    %c0_i32_0 = arith.constant 0 : i32
    return %arg0, %c0_i32 : i32, i32
  }
}

</mosaic_0001>

<llo_original>
// kernel: _lambda_.16
$region0: #{_lambda_.16}
  #allocation0 [shape = 'u32[]', space=smem, size = 0x4, offset = 0x4, fixed_abs, tag = 'smem constant byte address 0x4 - core index']
  #allocation1 [shape = 'u32[72,128]{1,0:T(1,128)}', space=vmem, size = 0x9000, scoped, tag = 'internal scratch']
  %s0 = inlined_call_operand.vmem [shape: bf16[128,256], index: 0, kind: input, shape index: {}]
  %s1 = inlined_call_operand.vmem [shape: bf16[256,128], index: 1, kind: input, shape index: {}]
  %s2 = inlined_call_operand.vmem [shape: f32[1,128], index: 2, kind: input, shape index: {}]
  %s3 = inlined_call_operand.vmem [shape: f32[128,128], index: 3, kind: output, shape index: {}]
  %s4 = sld [smem:[#allocation0]]
  $region22: #{_lambda_.16} parent=0
    _
  %s6 = ssub.s32 1, %s4
  %s7 = scalar_select 0, %s6, %s4
  // Predicated region
  $region2: #{_lambda_.16} parent=0 // pred_check
    _
  $region3: #{_lambda_.16} parent=0 // pred_check_branch
    %9 = sbr.rel (0) target = $region5
  $region4: #{_lambda_.16} parent=0 // pred_region
    _
  $region5: #{_lambda_.16} parent=0 // pred_fallthru
    _
  // Predicated region
  $region6: #{_lambda_.16} parent=0 // pred_check
    _
  $region7: #{_lambda_.16} parent=0 // pred_check_branch
    %11 = sbr.rel (0) target = $region9
  $region8: #{_lambda_.16} parent=0 // pred_region
    _
  $region9: #{_lambda_.16} parent=0 // pred_fallthru
    _
  // Predicated region
  $region10: #{_lambda_.16} parent=0 // pred_check
    _
  $region11: #{_lambda_.16} parent=0 // pred_check_branch
    %13 = sbr.rel (0) target = $region13
  $region12: #{_lambda_.16} parent=0 // pred_region
    _
  $region13: #{_lambda_.16} parent=0 // pred_fallthru
    _
  %v14 = vld [vmem:[%s0] sm:$0xff]
  %v15 = vld [vmem:[%s0 + $0x8] sm:$0xff]
  %v16 = vld [vmem:[%s0 + $0x10] sm:$0xff]
  %v17 = vld [vmem:[%s0 + $0x18] sm:$0xff]
  %v18 = vld [vmem:[%s0 + $0x20] sm:$0xff]
  %v19 = vld [vmem:[%s0 + $0x28] sm:$0xff]
  %v20 = vld [vmem:[%s0 + $0x30] sm:$0xff]
  %v21 = vld [vmem:[%s0 + $0x38] sm:$0xff]
  %v22 = vld [vmem:[%s0 + $0x40] sm:$0xff]
  %v23 = vld [vmem:[%s0 + $0x48] sm:$0xff]
  %v24 = vld [vmem:[%s0 + $0x50] sm:$0xff]
  %v25 = vld [vmem:[%s0 + $0x58] sm:$0xff]
  %v26 = vld [vmem:[%s0 + $0x60] sm:$0xff]
  %v27 = vld [vmem:[%s0 + $0x68] sm:$0xff]
  %v28 = vld [vmem:[%s0 + $0x70] sm:$0xff]
  %v29 = vld [vmem:[%s0 + $0x78] sm:$0xff]
  %v30 = vld [vmem:[%s1] sm:$0xf]
  %v31 = vld [vmem:[%s1 + $0x4] sm:$0xf]
  %v32 = vld [vmem:[%s1 + $0x8] sm:$0xf]
  %v33 = vld [vmem:[%s1 + $0xc] sm:$0xf]
  %v34 = vld [vmem:[%s1 + $0x10] sm:$0xf]
  %v35 = vld [vmem:[%s1 + $0x14] sm:$0xf]
  %v36 = vld [vmem:[%s1 + $0x18] sm:$0xf]
  %v37 = vld [vmem:[%s1 + $0x1c] sm:$0xf]
  %v38 = vld [vmem:[%s1 + $0x20] sm:$0xf]
  %v39 = vld [vmem:[%s1 + $0x24] sm:$0xf]
  %v40 = vld [vmem:[%s1 + $0x28] sm:$0xf]
  %v41 = vld [vmem:[%s1 + $0x2c] sm:$0xf]
  %v42 = vld [vmem:[%s1 + $0x30] sm:$0xf]
  %v43 = vld [vmem:[%s1 + $0x34] sm:$0xf]
  %v44 = vld [vmem:[%s1 + $0x38] sm:$0xf]
  %v45 = vld [vmem:[%s1 + $0x3c] sm:$0xf]
  %v46 = vld [vmem:[%s1 + $0x40] sm:$0xf]
  %v47 = vld [vmem:[%s1 + $0x44] sm:$0xf]
  %v48 = vld [vmem:[%s1 + $0x48] sm:$0xf]
  %v49 = vld [vmem:[%s1 + $0x4c] sm:$0xf]
  %v50 = vld [vmem:[%s1 + $0x50] sm:$0xf]
  %v51 = vld [vmem:[%s1 + $0x54] sm:$0xf]
  %v52 = vld [vmem:[%s1 + $0x58] sm:$0xf]
  %v53 = vld [vmem:[%s1 + $0x5c] sm:$0xf]
  %v54 = vld [vmem:[%s1 + $0x60] sm:$0xf]
  %v55 = vld [vmem:[%s1 + $0x64] sm:$0xf]
  %v56 = vld [vmem:[%s1 + $0x68] sm:$0xf]
  %v57 = vld [vmem:[%s1 + $0x6c] sm:$0xf]
  %v58 = vld [vmem:[%s1 + $0x70] sm:$0xf]
  %v59 = vld [vmem:[%s1 + $0x74] sm:$0xf]
  %v60 = vld [vmem:[%s1 + $0x78] sm:$0xf]
  %v61 = vld [vmem:[%s1 + $0x7c] sm:$0xf]
  %v62 = vld [vmem:[%s2] sm:$0x1]
  %v64 = vperm.slane %v62, 0
  %v82 = vunpack.c.l.b16 %v14
  %v83 = vunpack.c.h.b16 %v14
  %v84 = vunpack.c.l.b16 %v15
  %v85 = vunpack.c.h.b16 %v15
  %v86 = vunpack.c.l.b16 %v16
  %v87 = vunpack.c.h.b16 %v16
  %v88 = vunpack.c.l.b16 %v17
  %v89 = vunpack.c.h.b16 %v17
  %v90 = vunpack.c.l.b16 %v18
  %v91 = vunpack.c.h.b16 %v18
  %v92 = vunpack.c.l.b16 %v19
  %v93 = vunpack.c.h.b16 %v19
  %v94 = vunpack.c.l.b16 %v20
  %v95 = vunpack.c.h.b16 %v20
  %v96 = vunpack.c.l.b16 %v21
  %v97 = vunpack.c.h.b16 %v21
  %v98 = vunpack.c.l.b16 %v22
  %v99 = vunpack.c.h.b16 %v22
  %v100 = vunpack.c.l.b16 %v23
  %v101 = vunpack.c.h.b16 %v23
  %v102 = vunpack.c.l.b16 %v24
  %v103 = vunpack.c.h.b16 %v24
  %v104 = vunpack.c.l.b16 %v25
  %v105 = vunpack.c.h.b16 %v25
  %v106 = vunpack.c.l.b16 %v26
  %v107 = vunpack.c.h.b16 %v26
  %v108 = vunpack.c.l.b16 %v27
  %v109 = vunpack.c.h.b16 %v27
  %v110 = vunpack.c.l.b16 %v28
  %v111 = vunpack.c.h.b16 %v28
  %v112 = vunpack.c.l.b16 %v29
  %v113 = vunpack.c.h.b16 %v29
  %v114 = vpack.c.b16 %v84, %v82
  %v115 = vpack.c.b16 %v85, %v83
  %v116 = vpack.c.b16 %v88, %v86
  %v117 = vpack.c.b16 %v89, %v87
  %v118 = vpack.c.b16 %v92, %v90
  %v119 = vpack.c.b16 %v93, %v91
  %v120 = vpack.c.b16 %v96, %v94
  %v121 = vpack.c.b16 %v97, %v95
  %v122 = vpack.c.b16 %v100, %v98
  %v123 = vpack.c.b16 %v101, %v99
  %v124 = vpack.c.b16 %v104, %v102
  %v125 = vpack.c.b16 %v105, %v103
  %v126 = vpack.c.b16 %v108, %v106
  %v127 = vpack.c.b16 %v109, %v107
  %v128 = vpack.c.b16 %v112, %v110
  %v129 = vpack.c.b16 %v113, %v111
  %v178 = vunpack.c.l.b16 %v30
  %v179 = vunpack.c.l.b16 %v31
  %v180 = vunpack.c.l.b16 %v32
  %v181 = vunpack.c.l.b16 %v33
  %v182 = vunpack.c.l.b16 %v34
  %v183 = vunpack.c.l.b16 %v35
  %v184 = vunpack.c.l.b16 %v36
  %v185 = vunpack.c.l.b16 %v37
  %v186 = vunpack.c.l.b16 %v38
  %v187 = vunpack.c.l.b16 %v39
  %v188 = vunpack.c.l.b16 %v40
  %v189 = vunpack.c.l.b16 %v41
  %v190 = vunpack.c.l.b16 %v42
  %v191 = vunpack.c.l.b16 %v43
  %v192 = vunpack.c.l.b16 %v44
  %v193 = vunpack.c.l.b16 %v45
  %v194 = vunpack.c.l.b16 %v46
  %v195 = vunpack.c.l.b16 %v47
  %v196 = vunpack.c.l.b16 %v48
  %v197 = vunpack.c.l.b16 %v49
  %v198 = vunpack.c.l.b16 %v50
  %v199 = vunpack.c.l.b16 %v51
  %v200 = vunpack.c.l.b16 %v52
  %v201 = vunpack.c.l.b16 %v53
  %v202 = vunpack.c.l.b16 %v54
  %v203 = vunpack.c.l.b16 %v55
  %v204 = vunpack.c.l.b16 %v56
  %v205 = vunpack.c.l.b16 %v57
  %v206 = vunpack.c.l.b16 %v58
  %v207 = vunpack.c.l.b16 %v59
  %v208 = vunpack.c.l.b16 %v60
  %v209 = vunpack.c.l.b16 %v61
  %v210 = vpack.c.b16 %v179, %v178
  %v211 = vpack.c.b16 %v181, %v180
  %v212 = vpack.c.b16 %v183, %v182
  %v213 = vpack.c.b16 %v185, %v184
  %v214 = vpack.c.b16 %v187, %v186
  %v215 = vpack.c.b16 %v189, %v188
  %v216 = vpack.c.b16 %v191, %v190
  %v217 = vpack.c.b16 %v193, %v192
  %v218 = vpack.c.b16 %v195, %v194
  %v219 = vpack.c.b16 %v197, %v196
  %v220 = vpack.c.b16 %v199, %v198
  %v221 = vpack.c.b16 %v201, %v200
  %v222 = vpack.c.b16 %v203, %v202
  %v223 = vpack.c.b16 %v205, %v204
  %v224 = vpack.c.b16 %v207, %v206
  %v225 = vpack.c.b16 %v209, %v208
  %242 = vmatpush.bf16.msra.mxu0 %v217
  %243 = vmatpush.bf16.msra.mxu0 %v216
  %244 = vmatpush.bf16.msra.mxu0 %v215
  %245 = vmatpush.bf16.msra.mxu0 %v214
  %246 = vmatpush.bf16.msra.mxu0 %v213
  %247 = vmatpush.bf16.msra.mxu0 %v212
  %248 = vmatpush.bf16.msra.mxu0 %v211
  %249 = vmatpush.bf16.msra.mxu0 %v210
  %250 = vmatmul.bf16.gmra.mxu0 %v114
  %v251 = vpop.f32.mrf.mxu0
  %v252 = vadd.f32 %v64, %v251
  %v253 = vpop.f32.mrf.mxu0
  %v254 = vadd.f32 %v64, %v253
  %255 = vmatmul.bf16.gmra.mxu0 %v116
  %v256 = vpop.f32.mrf.mxu0
  %v257 = vadd.f32 %v64, %v256
  %v258 = vpop.f32.mrf.mxu0
  %v259 = vadd.f32 %v64, %v258
  %260 = vmatmul.bf16.gmra.mxu0 %v118
  %v261 = vpop.f32.mrf.mxu0
  %v262 = vadd.f32 %v64, %v261
  %v263 = vpop.f32.mrf.mxu0
  %v264 = vadd.f32 %v64, %v263
  %265 = vmatmul.bf16.gmra.mxu0 %v120
  %v266 = vpop.f32.mrf.mxu0
  %v267 = vadd.f32 %v64, %v266
  %v268 = vpop.f32.mrf.mxu0
  %v269 = vadd.f32 %v64, %v268
  %270 = vmatmul.bf16.gmra.mxu0 %v122
  %v271 = vpop.f32.mrf.mxu0
  %v272 = vadd.f32 %v64, %v271
  %v273 = vpop.f32.mrf.mxu0
  %v274 = vadd.f32 %v64, %v273
  %275 = vmatmul.bf16.gmra.mxu0 %v124
  %v276 = vpop.f32.mrf.mxu0
  %v277 = vadd.f32 %v64, %v276
  %v278 = vpop.f32.mrf.mxu0
  %v279 = vadd.f32 %v64, %v278
  %280 = vmatmul.bf16.gmra.mxu0 %v126
  %v281 = vpop.f32.mrf.mxu0
  %v282 = vadd.f32 %v64, %v281
  %v283 = vpop.f32.mrf.mxu0
  %v284 = vadd.f32 %v64, %v283
  %285 = vmatmul.bf16.gmra.mxu0 %v128
  %v286 = vpop.f32.mrf.mxu0
  %v287 = vadd.f32 %v64, %v286
  %v288 = vpop.f32.mrf.mxu0
  %v289 = vadd.f32 %v64, %v288
  %290 = vdwg.mxu0
  %291 = vmatpush.bf16.msra.mxu0 %v225
  %292 = vmatpush.bf16.msra.mxu0 %v224
  %293 = vmatpush.bf16.msra.mxu0 %v223
  %294 = vmatpush.bf16.msra.mxu0 %v222
  %295 = vmatpush.bf16.msra.mxu0 %v221
  %296 = vmatpush.bf16.msra.mxu0 %v220
  %297 = vmatpush.bf16.msra.mxu0 %v219
  %298 = vmatpush.bf16.msra.mxu0 %v218
  %299 = vmatmul.bf16.gmra.mxu0 %v115
  %v300 = vpop.f32.mrf.mxu0
  %v301 = vadd.f32 %v252, %v300
  %v302 = vpop.f32.mrf.mxu0
  %v303 = vadd.f32 %v254, %v302
  %304 = vmatmul.bf16.gmra.mxu0 %v117
  %v305 = vpop.f32.mrf.mxu0
  %v306 = vadd.f32 %v257, %v305
  %v307 = vpop.f32.mrf.mxu0
  %v308 = vadd.f32 %v259, %v307
  %309 = vmatmul.bf16.gmra.mxu0 %v119
  %v310 = vpop.f32.mrf.mxu0
  %v311 = vadd.f32 %v262, %v310
  %v312 = vpop.f32.mrf.mxu0
  %v313 = vadd.f32 %v264, %v312
  %314 = vmatmul.bf16.gmra.mxu0 %v121
  %v315 = vpop.f32.mrf.mxu0
  %v316 = vadd.f32 %v267, %v315
  %v317 = vpop.f32.mrf.mxu0
  %v318 = vadd.f32 %v269, %v317
  %319 = vmatmul.bf16.gmra.mxu0 %v123
  %v320 = vpop.f32.mrf.mxu0
  %v321 = vadd.f32 %v272, %v320
  %v322 = vpop.f32.mrf.mxu0
  %v323 = vadd.f32 %v274, %v322
  %324 = vmatmul.bf16.gmra.mxu0 %v125
  %v325 = vpop.f32.mrf.mxu0
  %v326 = vadd.f32 %v277, %v325
  %v327 = vpop.f32.mrf.mxu0
  %v328 = vadd.f32 %v279, %v327
  %329 = vmatmul.bf16.gmra.mxu0 %v127
  %v330 = vpop.f32.mrf.mxu0
  %v331 = vadd.f32 %v282, %v330
  %v332 = vpop.f32.mrf.mxu0
  %v333 = vadd.f32 %v284, %v332
  %334 = vmatmul.bf16.gmra.mxu0 %v129
  %v335 = vpop.f32.mrf.mxu0
  %v336 = vadd.f32 %v287, %v335
  %v337 = vpop.f32.mrf.mxu0
  %v338 = vadd.f32 %v289, %v337
  %339 = vdwg.mxu0
  %v340 = vmax.f32 %v301, 0.0
  %v341 = vmax.f32 %v303, 0.0
  %v342 = vmax.f32 %v306, 0.0
  %v343 = vmax.f32 %v308, 0.0
  %v344 = vmax.f32 %v311, 0.0
  %v345 = vmax.f32 %v313, 0.0
  %v346 = vmax.f32 %v316, 0.0
  %v347 = vmax.f32 %v318, 0.0
  %v348 = vmax.f32 %v321, 0.0
  %v349 = vmax.f32 %v323, 0.0
  %v350 = vmax.f32 %v326, 0.0
  %v351 = vmax.f32 %v328, 0.0
  %v352 = vmax.f32 %v331, 0.0
  %v353 = vmax.f32 %v333, 0.0
  %v354 = vmax.f32 %v336, 0.0
  %v355 = vmax.f32 %v338, 0.0
  %356 = vst [vmem:[%s3] sm:$0xff] %v340
  %357 = vst [vmem:[%s3 + $0x8] sm:$0xff] %v341
  %358 = vst [vmem:[%s3 + $0x10] sm:$0xff] %v342
  %359 = vst [vmem:[%s3 + $0x18] sm:$0xff] %v343
  %360 = vst [vmem:[%s3 + $0x20] sm:$0xff] %v344
  %361 = vst [vmem:[%s3 + $0x28] sm:$0xff] %v345
  %362 = vst [vmem:[%s3 + $0x30] sm:$0xff] %v346
  %363 = vst [vmem:[%s3 + $0x38] sm:$0xff] %v347
  %364 = vst [vmem:[%s3 + $0x40] sm:$0xff] %v348
  %365 = vst [vmem:[%s3 + $0x48] sm:$0xff] %v349
  %366 = vst [vmem:[%s3 + $0x50] sm:$0xff] %v350
  %367 = vst [vmem:[%s3 + $0x58] sm:$0xff] %v351
  %368 = vst [vmem:[%s3 + $0x60] sm:$0xff] %v352
  %369 = vst [vmem:[%s3 + $0x68] sm:$0xff] %v353
  %370 = vst [vmem:[%s3 + $0x70] sm:$0xff] %v354
  %371 = vst [vmem:[%s3 + $0x78] sm:$0xff] %v355
  // Predicated region
  $region14: #{_lambda_.16} parent=0 // pred_check
    _
  $region15: #{_lambda_.16} parent=0 // pred_check_branch
    %373 = sbr.rel (0) target = $region17
  $region16: #{_lambda_.16} parent=0 // pred_region
    _
  $region17: #{_lambda_.16} parent=0 // pred_fallthru
    _
  // Predicated region
  $region18: #{_lambda_.16} parent=0 // pred_check
    _
  $region19: #{_lambda_.16} parent=0 // pred_check_branch
    %375 = sbr.rel (0) target = $region21
  $region20: #{_lambda_.16} parent=0 // pred_region
    _
  $region21: #{_lambda_.16} parent=0 // pred_fallthru
    _

// kernel: _lambda_.17
$region0: #{_lambda_.17}
  #allocation0 [shape = 'u32[]', space=smem, size = 0x4, offset = 0x4, fixed_abs, tag = 'smem constant byte address 0x4 - core index']
  #allocation1 [shape = 'u32[72,128]{1,0:T(1,128)}', space=vmem, size = 0x9000, scoped, tag = 'internal scratch']
  #allocation2 [shape = 'f32[144,128]{1,0:T(8,128)}', space=vmem, size = 0x12000, scoped, tag = 'scratch operand']
  %s0 = inlined_call_operand.vmem [shape: f32[264,128], index: 0, kind: input, shape index: {}, may-alias: {0,1}]
  %s1 = inlined_call_operand.vmem [shape: f32[264,128], index: 1, kind: input, shape index: {}, may-alias: {0,1}]
  %s2 = inlined_call_operand.vmem [shape: bf16[1152,128], index: 2, kind: input, shape index: {}]
  %s3 = inlined_call_operand.vmem [shape: f32[1,128], index: 3, kind: input, shape index: {}]
  %s4 = inlined_call_operand.vmem [shape: f32[240,128], index: 4, kind: output, shape index: {}]
  %s5 = sld [smem:[#allocation0]]
  $region49: #{_lambda_.17} parent=0
    _
  %s7 = ssub.s32 1, %s5
  %s8 = scalar_select 0, %s7, %s5
  loop: start=0, step=1, limit=4
  $region2: #{_lambda_.17} parent=0 // loop_pre_header
    _
  $region3: #{_lambda_.17} parent=0 // loop_header
    %s10 = sphi 0, %s14
    %p11 = scmp.ge.s32.totalorder %s10, 4
    %s20 = sphi 0, %s22
    %s23 = sphi 0, %s20
    %s24 = sphi 0, %s23
    %s40 = sphi 0, %s24
    %s50 = sphi 0, %s52
    %s53 = sphi 0, %s50
    %s54 = sphi 0, %s53
    %s70 = sphi 0, %s54
    %s74 = sphi 0, %s74
    %s76 = sphi 0, %s74
    %s77 = sphi 0, %s76
    %s91 = sphi 0, %s77
    %s95 = sphi 0, %s95
    %s97 = sphi 0, %s95
    %s98 = sphi 0, %s97
    %s112 = sphi 0, %s98
    %s118 = sphi 0, %s120
    %s121 = sphi 0, %s118
    %s122 = sphi 0, %s121
    %s138 = sphi 0, %s122
  $region4: #{_lambda_.17} parent=0 // loop_header_branch
    %13 = sbr.rel (%p11) target = $region8
  $region5: #{_lambda_.17} parent=0 // loop_body
    %s15 = ssub.s32 %s10, 1
    %s16 = ssub.s32 %s10, 2
    %s17 = sadd.s32 %s10, 1
    %s18 = ssub.s32 %s10, %s17
    %p19 = scmp.eq.s32.totalorder %s18, 0
    %s21 = sadd.s32 %s20, 1
    %s22 = scalar_select %p19, %s20, %s21
    %p25 = pneg %p19
    %p26 = scmp.eq.s32.totalorder %s10, 1
    %p27 = por %p25, %p26
    %p28 = scmp.ne.s32.totalorder %s20, %s23
    %p29 = scmp.eq.s32.totalorder %s10, 0
    %p30 = por %p28, %p29
    %p31 = scmp.ne.s32.totalorder %s20, %s23
    %p32 = scmp.eq.s32.totalorder %s15, 1
    %p33 = por %p31, %p32
    %p34 = scmp.ne.s32.totalorder %s23, %s24
    %p35 = scmp.eq.s32.totalorder %s15, 0
    %p36 = por %p34, %p35
    %p37 = scmp.ne.s32.totalorder %s23, %s24
    %p38 = scmp.eq.s32.totalorder %s16, 1
    %p39 = por %p37, %p38
    %p41 = scmp.ne.s32.totalorder %s24, %s40
    %p42 = scmp.eq.s32.totalorder %s16, 0
    %p43 = por %p41, %p42
    %s44 = sadd.s32 %s10, 1
    %s45 = smul.u32 %s44, 5
    %s46 = sadd.s32 %s17, 1
    %s47 = smul.u32 %s46, 5
    %s48 = ssub.s32 %s45, %s47
    %p49 = scmp.eq.s32.totalorder %s48, 0
    %s51 = sadd.s32 %s50, 1
    %s52 = scalar_select %p49, %s50, %s51
    %p55 = pneg %p49
    %p56 = scmp.eq.s32.totalorder %s10, 1
    %p57 = por %p55, %p56
    %p58 = scmp.ne.s32.totalorder %s50, %s53
    %p59 = scmp.eq.s32.totalorder %s10, 0
    %p60 = por %p58, %p59
    %p61 = scmp.ne.s32.totalorder %s50, %s53
    %p62 = scmp.eq.s32.totalorder %s15, 1
    %p63 = por %p61, %p62
    %p64 = scmp.ne.s32.totalorder %s53, %s54
    %p65 = scmp.eq.s32.totalorder %s15, 0
    %p66 = por %p64, %p65
    %p67 = scmp.ne.s32.totalorder %s53, %s54
    %p68 = scmp.eq.s32.totalorder %s16, 1
    %p69 = por %p67, %p68
    %p71 = scmp.ne.s32.totalorder %s54, %s70
    %p72 = scmp.eq.s32.totalorder %s16, 0
    %p73 = por %p71, %p72
    %s75 = sadd.s32 %s74, 1
    %p78 = scmp.eq.s32.totalorder %s10, 1
    %p79 = scmp.ne.s32.totalorder %s74, %s76
    %p80 = scmp.eq.s32.totalorder %s10, 0
    %p81 = por %p79, %p80
    %p82 = scmp.ne.s32.totalorder %s74, %s76
    %p83 = scmp.eq.s32.totalorder %s15, 1
    %p84 = por %p82, %p83
    %p85 = scmp.ne.s32.totalorder %s76, %s77
    %p86 = scmp.eq.s32.totalorder %s15, 0
    %p87 = por %p85, %p86
    %p88 = scmp.ne.s32.totalorder %s76, %s77
    %p89 = scmp.eq.s32.totalorder %s16, 1
    %p90 = por %p88, %p89
    %p92 = scmp.ne.s32.totalorder %s77, %s91
    %p93 = scmp.eq.s32.totalorder %s16, 0
    %p94 = por %p92, %p93
    %s96 = sadd.s32 %s95, 1
    %p99 = scmp.eq.s32.totalorder %s10, 1
    %p100 = scmp.ne.s32.totalorder %s95, %s97
    %p101 = scmp.eq.s32.totalorder %s10, 0
    %p102 = por %p100, %p101
    %p103 = scmp.ne.s32.totalorder %s95, %s97
    %p104 = scmp.eq.s32.totalorder %s15, 1
    %p105 = por %p103, %p104
    %p106 = scmp.ne.s32.totalorder %s97, %s98
    %p107 = scmp.eq.s32.totalorder %s15, 0
    %p108 = por %p106, %p107
    %p109 = scmp.ne.s32.totalorder %s97, %s98
    %p110 = scmp.eq.s32.totalorder %s16, 1
    %p111 = por %p109, %p110
    %p113 = scmp.ne.s32.totalorder %s98, %s112
    %p114 = scmp.eq.s32.totalorder %s16, 0
    %p115 = por %p113, %p114
    %s116 = ssub.s32 %s10, %s17
    %p117 = scmp.eq.s32.totalorder %s116, 0
    %s119 = sadd.s32 %s118, 1
    %s120 = scalar_select %p117, %s118, %s119
    %p123 = pneg %p117
    %p124 = scmp.eq.s32.totalorder %s10, 1
    %p125 = por %p123, %p124
    %p126 = scmp.ne.s32.totalorder %s118, %s121
    %p127 = scmp.eq.s32.totalorder %s10, 0
    %p128 = por %p126, %p127
    %p129 = scmp.ne.s32.totalorder %s118, %s121
    %p130 = scmp.eq.s32.totalorder %s15, 1
    %p131 = por %p129, %p130
    %p132 = scmp.ne.s32.totalorder %s121, %s122
    %p133 = scmp.eq.s32.totalorder %s15, 0
    %p134 = por %p132, %p133
    %p135 = scmp.ne.s32.totalorder %s121, %s122
    %p136 = scmp.eq.s32.totalorder %s16, 1
    %p137 = por %p135, %p136
    %p139 = scmp.ne.s32.totalorder %s122, %s138
    %p140 = scmp.eq.s32.totalorder %s16, 0
    %p141 = por %p139, %p140
    %p142 = scmp.le.s32.totalorder 1, %s10
    %p143 = scmp.lt.s32.totalorder %s10, 3
    %p144 = pnand %p142, %p143
    %p145 = pneg %p144
    // Predicated region
    $region9: #{_lambda_.17} parent=5 // pred_check
      _
    $region10: #{_lambda_.17} parent=5 // pred_check_branch
      %147 = sbr.rel (%p144) target = $region12
    $region11: #{_lambda_.17} parent=5 // pred_region
      %s148 = ssub.s32 %s10, 1
      // Predicated region
      $region13: #{_lambda_.17} parent=11 // pred_check
        %p149 = pneg %p87
      $region14: #{_lambda_.17} parent=11 // pred_check_branch
        %151 = sbr.rel (%p149) target = $region16
      $region15: #{_lambda_.17} parent=11 // pred_region
        _
      $region16: #{_lambda_.17} parent=11 // pred_fallthru
        _
      // Predicated region
      $region17: #{_lambda_.17} parent=11 // pred_check
        %p152 = pneg %p108
      $region18: #{_lambda_.17} parent=11 // pred_check_branch
        %154 = sbr.rel (%p152) target = $region20
      $region19: #{_lambda_.17} parent=11 // pred_region
        _
      $region20: #{_lambda_.17} parent=11 // pred_fallthru
        _
    $region12: #{_lambda_.17} parent=5 // pred_fallthru
      _
    %p155 = scmp.lt.s32.totalorder %s10, 2
    // Predicated region
    $region21: #{_lambda_.17} parent=5 // pred_check
      %p156 = pneg %p155
    $region22: #{_lambda_.17} parent=5 // pred_check_branch
      %158 = sbr.rel (%p156) target = $region24
    $region23: #{_lambda_.17} parent=5 // pred_region
      // Predicated region
      $region25: #{_lambda_.17} parent=23 // pred_check
        %p159 = pneg %p30
      $region26: #{_lambda_.17} parent=23 // pred_check_branch
        %161 = sbr.rel (%p159) target = $region28
      $region27: #{_lambda_.17} parent=23 // pred_region
        %s162 = smul.u32 15, %s10
        %s163 = ssub.s32 33, %s162
        %p164 = scmp.lt.s32.totalorder %s163, 15
        %s165 = scalar_select %p164, %s163, 15
        %s166 = smul.u32 8, %s165
        %p167 = scmp.lt.s32.totalorder %s162, 32
        %s168 = scalar_select %p167, %s162, 32
        %s169 = smul.addr %s168, 8
        %s170 = scalar_lea.vmem %s0, %s169
        %s171 = smul.u32 15, %s10
        %s172 = ssub.s32 33, %s171
        %p173 = scmp.lt.s32.totalorder %s172, 15
        %s174 = scalar_select %p173, %s172, 15
        %s175 = smul.u32 8, %s174
      $region28: #{_lambda_.17} parent=23 // pred_fallthru
        _
      // Predicated region
      $region29: #{_lambda_.17} parent=23 // pred_check
        %p176 = pneg %p60
      $region30: #{_lambda_.17} parent=23 // pred_check_branch
        %178 = sbr.rel (%p176) target = $region32
      $region31: #{_lambda_.17} parent=23 // pred_region
        %s179 = sadd.s32 %s10, 1
        %s180 = smul.u32 %s179, 5
        %s181 = smul.u32 3, %s180
        %p182 = scmp.lt.s32.totalorder %s181, 32
        %s183 = scalar_select %p182, %s181, 32
        %s184 = smul.addr %s183, 8
        %s185 = scalar_lea.vmem %s1, %s184
        %s186 = sadd.s32 %s10, 1
        %s187 = smul.u32 %s186, 5
        %s188 = smul.u32 3, %s187
      $region32: #{_lambda_.17} parent=23 // pred_fallthru
        _
    $region24: #{_lambda_.17} parent=5 // pred_fallthru
      _
    %p189 = scmp.le.s32.totalorder 1, %s10
    %p190 = scmp.lt.s32.totalorder %s10, 3
    %p191 = pnand %p189, %p190
    %p192 = pneg %p191
    // Predicated region
    $region33: #{_lambda_.17} parent=5 // pred_check
      _
    $region34: #{_lambda_.17} parent=5 // pred_check_branch
      %194 = sbr.rel (%p191) target = $region36
    $region35: #{_lambda_.17} parent=5 // pred_region
      %s195 = ssub.s32 %s10, 1
      %s196 = smul.u32 15, %s15
      %s197 = ssub.s32 33, %s196
      %p198 = scmp.lt.s32.totalorder %s197, 15
      %s199 = scalar_select %p198, %s197, 15
      %s200 = smul.u32 8, %s199
      %p201 = scmp.lt.s32.totalorder %s196, 32
      %s202 = scalar_select %p201, %s196, 32
      %s203 = smul.addr %s202, 8
      %s204 = scalar_lea.vmem %s0, %s203
      %p205 = pneg %p36
      %p206 = pneg %p33
      %s207 = sadd.s32 %s15, 1
      %s208 = smul.u32 %s207, 5
      %s209 = smul.u32 3, %s208
      %p210 = scmp.lt.s32.totalorder %s209, 32
      %s211 = scalar_select %p210, %s209, 32
      %s212 = smul.addr %s211, 8
      %s213 = scalar_lea.vmem %s1, %s212
      %p214 = pneg %p66
      %p215 = pneg %p63
      %p216 = pneg %p87
      %p217 = pneg %p84
      %p218 = pneg %p108
      %p219 = pneg %p105
      %p220 = pneg %p134
      %p221 = pneg %p131
      %s222 = smul.u32 15, %s15
      %p223 = scmp.lt.s32.totalorder %s222, 29
      %s224 = scalar_select %p223, %s222, 29
      %s225 = smul.addr %s224, 8
      %s226 = scalar_lea.vmem %s4, %s225
      %s227 = smul.u32 15, %s15
      %s228 = ssub.s32 33, %s227
      %p229 = scmp.lt.s32.totalorder %s228, 15
      %s230 = scalar_select %p229, %s228, 15
      %s231 = smul.u32 8, %s230
      %p232 = scmp.lt.s32.totalorder %s227, 32
      %s233 = scalar_select %p232, %s227, 32
      %s234 = smul.addr %s233, 8
      %s235 = scalar_lea.vmem %s0, %s234
      %s236 = smul.u32 15, %s15
      %s237 = ssub.s32 33, %s236
      %p238 = scmp.lt.s32.totalorder %s237, 15
      %s239 = scalar_select %p238, %s237, 15
      %s240 = smul.u32 8, %s239
      %s241 = sadd.s32 %s15, 1
      %s242 = smul.u32 %s241, 5
      %s243 = smul.u32 3, %s242
      %p244 = scmp.lt.s32.totalorder %s243, 32
      %s245 = scalar_select %p244, %s243, 32
      %s246 = smul.addr %s245, 8
      %s247 = scalar_lea.vmem %s1, %s246
      %s248 = sadd.s32 %s15, 1
      %s249 = smul.u32 %s248, 5
      %s250 = smul.u32 3, %s249
      %s251 = smul.u32 15, %s15
      %p252 = scmp.lt.s32.totalorder %s251, 29
      %s253 = scalar_select %p252, %s251, 29
      %s254 = smul.addr %s253, 8
      %s255 = scalar_lea.vmem %s4, %s254
      %s256 = smul.u32 15, %s15
      %v257 = vld [vmem:[%s235] sm:$0xff]
      %v258 = vld [vmem:[%s235 + $0x8] sm:$0xff]
      %v259 = vld [vmem:[%s235 + $0x10] sm:$0xff]
      %v260 = vld [vmem:[%s235 + $0x18] sm:$0xff]
      %v261 = vld [vmem:[%s235 + $0x20] sm:$0xff]
      %v262 = vld [vmem:[%s235 + $0x28] sm:$0xff]
      %v263 = vld [vmem:[%s235 + $0x30] sm:$0xff]
      %v264 = vld [vmem:[%s235 + $0x38] sm:$0xff]
      %v265 = vld [vmem:[%s235 + $0x40] sm:$0xff]
      %v266 = vld [vmem:[%s235 + $0x48] sm:$0xff]
      %v267 = vld [vmem:[%s235 + $0x50] sm:$0xff]
      %v268 = vld [vmem:[%s235 + $0x58] sm:$0xff]
      %v269 = vld [vmem:[%s235 + $0x60] sm:$0xff]
      %v270 = vld [vmem:[%s235 + $0x68] sm:$0xff]
      %v271 = vld [vmem:[%s235 + $0x70] sm:$0xff]
      %272 = vst [vmem:[#allocation2] sm:$0xff] %v257
      %273 = vst [vmem:[#allocation2 + $0x8] sm:$0xff] %v258
      %274 = vst [vmem:[#allocation2 + $0x10] sm:$0xff] %v259
      %275 = vst [vmem:[#allocation2 + $0x18] sm:$0xff] %v260
      %276 = vst [vmem:[#allocation2 + $0x20] sm:$0xff] %v261
      %277 = vst [vmem:[#allocation2 + $0x28] sm:$0xff] %v262
      %278 = vst [vmem:[#allocation2 + $0x30] sm:$0xff] %v263
      %279 = vst [vmem:[#allocation2 + $0x38] sm:$0xff] %v264
      %280 = vst [vmem:[#allocation2 + $0x40] sm:$0xff] %v265
      %281 = vst [vmem:[#allocation2 + $0x48] sm:$0xff] %v266
      %282 = vst [vmem:[#allocation2 + $0x50] sm:$0xff] %v267
      %283 = vst [vmem:[#allocation2 + $0x58] sm:$0xff] %v268
      %284 = vst [vmem:[#allocation2 + $0x60] sm:$0xff] %v269
      %285 = vst [vmem:[#allocation2 + $0x68] sm:$0xff] %v270
      %286 = vst [vmem:[#allocation2 + $0x70] sm:$0xff] %v271
      %v287 = vld [vmem:[%s247] sm:$0xff]
      %v288 = vld [vmem:[%s247 + $0x8] sm:$0xff]
      %v289 = vld [vmem:[%s247 + $0x10] sm:$0xff]
      %290 = vst [vmem:[#allocation2 + $0x78] sm:$0xff] %v287
      %291 = vst [vmem:[#allocation2 + $0x80] sm:$0xff] %v288
      %292 = vst [vmem:[#allocation2 + $0x88] sm:$0xff] %v289
      %v293 = vld [vmem:[#allocation2] sm:$0xff]
      %v294 = vld [vmem:[#allocation2 + $0x8] sm:$0xff]
      %v295 = vld [vmem:[#allocation2 + $0x10] sm:$0xff]
      %v296 = vld [vmem:[#allocation2 + $0x18] sm:$0xff]
      %v297 = vld [vmem:[#allocation2 + $0x20] sm:$0xff]
      %v298 = vld [vmem:[#allocation2 + $0x28] sm:$0xff]
      %v299 = vld [vmem:[#allocation2 + $0x30] sm:$0xff]
      %v300 = vld [vmem:[#allocation2 + $0x38] sm:$0xff]
      %v301 = vld [vmem:[#allocation2 + $0x40] sm:$0xff]
      %v302 = vld [vmem:[#allocation2 + $0x48] sm:$0xff]
      %v303 = vld [vmem:[#allocation2 + $0x50] sm:$0xff]
      %v304 = vld [vmem:[#allocation2 + $0x58] sm:$0xff]
      %v305 = vld [vmem:[#allocation2 + $0x60] sm:$0xff]
      %v306 = vld [vmem:[#allocation2 + $0x68] sm:$0xff]
      %v307 = vld [vmem:[#allocation2 + $0x70] sm:$0xff]
      %v308 = vpack.c.bf16 %v294, %v293
      %v309 = vpack.c.bf16 %v296, %v295
      %v310 = vpack.c.bf16 %v298, %v297
      %v311 = vpack.c.bf16 %v300, %v299
      %v312 = vpack.c.bf16 %v302, %v301
      %v313 = vpack.c.bf16 %v304, %v303
      %v314 = vpack.c.bf16 %v306, %v305
      %v315 = vpack.c.bf16 %v307, %v307
      %v316 = vld [vmem:[%s2] sm:$0xf]
      %v317 = vld [vmem:[%s2 + $0x4] sm:$0xf]
      %v318 = vld [vmem:[%s2 + $0x8] sm:$0xf]
      %v319 = vld [vmem:[%s2 + $0xc] sm:$0xf]
      %v320 = vld [vmem:[%s2 + $0x10] sm:$0xf]
      %v321 = vld [vmem:[%s2 + $0x14] sm:$0xf]
      %v322 = vld [vmem:[%s2 + $0x18] sm:$0xf]
      %v323 = vld [vmem:[%s2 + $0x1c] sm:$0xf]
      %v324 = vld [vmem:[%s2 + $0x20] sm:$0xf]
      %v325 = vld [vmem:[%s2 + $0x24] sm:$0xf]
      %v326 = vld [vmem:[%s2 + $0x28] sm:$0xf]
      %v327 = vld [vmem:[%s2 + $0x2c] sm:$0xf]
      %v328 = vld [vmem:[%s2 + $0x30] sm:$0xf]
      %v329 = vld [vmem:[%s2 + $0x34] sm:$0xf]
      %v330 = vld [vmem:[%s2 + $0x38] sm:$0xf]
      %v331 = vld [vmem:[%s2 + $0x3c] sm:$0xf]
      %v332 = vld [vmem:[#allocation2 + $0x1] sm:$0xff]
      %v333 = vld [vmem:[#allocation2 + $0x9] sm:$0xff]
      %v334 = vld [vmem:[#allocation2 + $0x11] sm:$0xff]
      %v335 = vld [vmem:[#allocation2 + $0x19] sm:$0xff]
      %v336 = vld [vmem:[#allocation2 + $0x21] sm:$0xff]
      %v337 = vld [vmem:[#allocation2 + $0x29] sm:$0xff]
      %v338 = vld [vmem:[#allocation2 + $0x31] sm:$0xff]
      %v339 = vld [vmem:[#allocation2 + $0x39] sm:$0xff]
      %v340 = vld [vmem:[#allocation2 + $0x41] sm:$0xff]
      %v341 = vld [vmem:[#allocation2 + $0x49] sm:$0xff]
      %v342 = vld [vmem:[#allocation2 + $0x51] sm:$0xff]
      %v343 = vld [vmem:[#allocation2 + $0x59] sm:$0xff]
      %v344 = vld [vmem:[#allocation2 + $0x61] sm:$0xff]
      %v345 = vld [vmem:[#allocation2 + $0x69] sm:$0xff]
      %v346 = vld [vmem:[#allocation2 + $0x71] sm:$0xff]
      %v347 = vpack.c.bf16 %v333, %v332
      %v348 = vpack.c.bf16 %v335, %v334
      %v349 = vpack.c.bf16 %v337, %v336
      %v350 = vpack.c.bf16 %v339, %v338
      %v351 = vpack.c.bf16 %v341, %v340
      %v352 = vpack.c.bf16 %v343, %v342
      %v353 = vpack.c.bf16 %v345, %v344
      %v354 = vpack.c.bf16 %v346, %v346
      %v355 = vld [vmem:[%s2 + $0x40] sm:$0xf]
      %v356 = vld [vmem:[%s2 + $0x44] sm:$0xf]
      %v357 = vld [vmem:[%s2 + $0x48] sm:$0xf]
      %v358 = vld [vmem:[%s2 + $0x4c] sm:$0xf]
      %v359 = vld [vmem:[%s2 + $0x50] sm:$0xf]
      %v360 = vld [vmem:[%s2 + $0x54] sm:$0xf]
      %v361 = vld [vmem:[%s2 + $0x58] sm:$0xf]
      %v362 = vld [vmem:[%s2 + $0x5c] sm:$0xf]
      %v363 = vld [vmem:[%s2 + $0x60] sm:$0xf]
      %v364 = vld [vmem:[%s2 + $0x64] sm:$0xf]
      %v365 = vld [vmem:[%s2 + $0x68] sm:$0xf]
      %v366 = vld [vmem:[%s2 + $0x6c] sm:$0xf]
      %v367 = vld [vmem:[%s2 + $0x70] sm:$0xf]
      %v368 = vld [vmem:[%s2 + $0x74] sm:$0xf]
      %v369 = vld [vmem:[%s2 + $0x78] sm:$0xf]
      %v370 = vld [vmem:[%s2 + $0x7c] sm:$0xf]
      %v387 = vunpack.c.l.b16 %v355
      %v388 = vunpack.c.l.b16 %v356
      %v389 = vunpack.c.l.b16 %v357
      %v390 = vunpack.c.l.b16 %v358
      %v391 = vunpack.c.l.b16 %v359
      %v392 = vunpack.c.l.b16 %v360
      %v393 = vunpack.c.l.b16 %v361
      %v394 = vunpack.c.l.b16 %v362
      %v395 = vunpack.c.l.b16 %v363
      %v396 = vunpack.c.l.b16 %v364
      %v397 = vunpack.c.l.b16 %v365
      %v398 = vunpack.c.l.b16 %v366
      %v399 = vunpack.c.l.b16 %v367
      %v400 = vunpack.c.l.b16 %v368
      %v401 = vunpack.c.l.b16 %v369
      %v402 = vunpack.c.l.b16 %v370
      %v403 = vpack.c.b16 %v388, %v387
      %v404 = vpack.c.b16 %v390, %v389
      %v405 = vpack.c.b16 %v392, %v391
      %v406 = vpack.c.b16 %v394, %v393
      %v407 = vpack.c.b16 %v396, %v395
      %v408 = vpack.c.b16 %v398, %v397
      %v409 = vpack.c.b16 %v400, %v399
      %v410 = vpack.c.b16 %v402, %v401
      %419 = vmatpush.bf16.msra.mxu0 %v410
      %420 = vmatpush.bf16.msra.mxu0 %v409
      %421 = vmatpush.bf16.msra.mxu0 %v408
      %422 = vmatpush.bf16.msra.mxu0 %v407
      %423 = vmatpush.bf16.msra.mxu0 %v406
      %424 = vmatpush.bf16.msra.mxu0 %v405
      %425 = vmatpush.bf16.msra.mxu0 %v404
      %426 = vmatpush.bf16.msra.mxu0 %v403
      %427 = vmatmul.bf16.gmra.mxu0 %v347
      %v428 = vpop.f32.mrf.mxu0
      %v429 = vadd.f32 0.0, %v428
      %v430 = vpop.f32.mrf.mxu0
      %v431 = vadd.f32 0.0, %v430
      %432 = vmatmul.bf16.gmra.mxu0 %v348
      %v433 = vpop.f32.mrf.mxu0
      %v434 = vadd.f32 0.0, %v433
      %v435 = vpop.f32.mrf.mxu0
      %v436 = vadd.f32 0.0, %v435
      %437 = vmatmul.bf16.gmra.mxu0 %v349
      %v438 = vpop.f32.mrf.mxu0
      %v439 = vadd.f32 0.0, %v438
      %v440 = vpop.f32.mrf.mxu0
      %v441 = vadd.f32 0.0, %v440
      %442 = vmatmul.bf16.gmra.mxu0 %v350
      %v443 = vpop.f32.mrf.mxu0
      %v444 = vadd.f32 0.0, %v443
      %v445 = vpop.f32.mrf.mxu0
      %v446 = vadd.f32 0.0, %v445
      %447 = vmatmul.bf16.gmra.mxu0 %v351
      %v448 = vpop.f32.mrf.mxu0
      %v449 = vadd.f32 0.0, %v448
      %v450 = vpop.f32.mrf.mxu0
      %v451 = vadd.f32 0.0, %v450
      %452 = vmatmul.bf16.gmra.mxu0 %v352
      %v453 = vpop.f32.mrf.mxu0
      %v454 = vadd.f32 0.0, %v453
      %v455 = vpop.f32.mrf.mxu0
      %v456 = vadd.f32 0.0, %v455
      %457 = vmatmul.bf16.gmra.mxu0 %v353
      %v458 = vpop.f32.mrf.mxu0
      %v459 = vadd.f32 0.0, %v458
      %v460 = vpop.f32.mrf.mxu0
      %v461 = vadd.f32 0.0, %v460
      %462 = vmatmul.bf16.gmra.mxu0 %v354
      %v463 = vpop.f32.mrf.mxu0
      %v464 = vadd.f32 0.0, %v463
      %v465 = vpop.f32.mrf.mxu0
      %466 = vdwg.mxu0
      %v483 = vunpack.c.l.b16 %v316
      %v484 = vunpack.c.l.b16 %v317
      %v485 = vunpack.c.l.b16 %v318
      %v486 = vunpack.c.l.b16 %v319
      %v487 = vunpack.c.l.b16 %v320
      %v488 = vunpack.c.l.b16 %v321
      %v489 = vunpack.c.l.b16 %v322
      %v490 = vunpack.c.l.b16 %v323
      %v491 = vunpack.c.l.b16 %v324
      %v492 = vunpack.c.l.b16 %v325
      %v493 = vunpack.c.l.b16 %v326
      %v494 = vunpack.c.l.b16 %v327
      %v495 = vunpack.c.l.b16 %v328
      %v496 = vunpack.c.l.b16 %v329
      %v497 = vunpack.c.l.b16 %v330
      %v498 = vunpack.c.l.b16 %v331
      %v499 = vpack.c.b16 %v484, %v483
      %v500 = vpack.c.b16 %v486, %v485
      %v501 = vpack.c.b16 %v488, %v487
      %v502 = vpack.c.b16 %v490, %v489
      %v503 = vpack.c.b16 %v492, %v491
      %v504 = vpack.c.b16 %v494, %v493
      %v505 = vpack.c.b16 %v496, %v495
      %v506 = vpack.c.b16 %v498, %v497
      %515 = vmatpush.bf16.msra.mxu0 %v506
      %516 = vmatpush.bf16.msra.mxu0 %v505
      %517 = vmatpush.bf16.msra.mxu0 %v504
      %518 = vmatpush.bf16.msra.mxu0 %v503
      %519 = vmatpush.bf16.msra.mxu0 %v502
      %520 = vmatpush.bf16.msra.mxu0 %v501
      %521 = vmatpush.bf16.msra.mxu0 %v500
      %522 = vmatpush.bf16.msra.mxu0 %v499
      %523 = vmatmul.bf16.gmra.mxu0 %v308
      %v524 = vpop.f32.mrf.mxu0
      %v525 = vadd.f32 %v429, %v524
      %v526 = vpop.f32.mrf.mxu0
      %v527 = vadd.f32 %v431, %v526
      %528 = vmatmul.bf16.gmra.mxu0 %v309
      %v529 = vpop.f32.mrf.mxu0
      %v530 = vadd.f32 %v434, %v529
      %v531 = vpop.f32.mrf.mxu0
      %v532 = vadd.f32 %v436, %v531
      %533 = vmatmul.bf16.gmra.mxu0 %v310
      %v534 = vpop.f32.mrf.mxu0
      %v535 = vadd.f32 %v439, %v534
      %v536 = vpop.f32.mrf.mxu0
      %v537 = vadd.f32 %v441, %v536
      %538 = vmatmul.bf16.gmra.mxu0 %v311
      %v539 = vpop.f32.mrf.mxu0
      %v540 = vadd.f32 %v444, %v539
      %v541 = vpop.f32.mrf.mxu0
      %v542 = vadd.f32 %v446, %v541
      %543 = vmatmul.bf16.gmra.mxu0 %v312
      %v544 = vpop.f32.mrf.mxu0
      %v545 = vadd.f32 %v449, %v544
      %v546 = vpop.f32.mrf.mxu0
      %v547 = vadd.f32 %v451, %v546
      %548 = vmatmul.bf16.gmra.mxu0 %v313
      %v549 = vpop.f32.mrf.mxu0
      %v550 = vadd.f32 %v454, %v549
      %v551 = vpop.f32.mrf.mxu0
      %v552 = vadd.f32 %v456, %v551
      %553 = vmatmul.bf16.gmra.mxu0 %v314
      %v554 = vpop.f32.mrf.mxu0
      %v555 = vadd.f32 %v459, %v554
      %v556 = vpop.f32.mrf.mxu0
      %v557 = vadd.f32 %v461, %v556
      %558 = vmatmul.bf16.gmra.mxu0 %v315
      %v559 = vpop.f32.mrf.mxu0
      %v560 = vadd.f32 %v464, %v559
      %v561 = vpop.f32.mrf.mxu0
      %562 = vdwg.mxu0
      %v563 = vld [vmem:[#allocation2 + $0x2] sm:$0xff]
      %v564 = vld [vmem:[#allocation2 + $0xa] sm:$0xff]
      %v565 = vld [vmem:[#allocation2 + $0x12] sm:$0xff]
      %v566 = vld [vmem:[#allocation2 + $0x1a] sm:$0xff]
      %v567 = vld [vmem:[#allocation2 + $0x22] sm:$0xff]
      %v568 = vld [vmem:[#allocation2 + $0x2a] sm:$0xff]
      %v569 = vld [vmem:[#allocation2 + $0x32] sm:$0xff]
      %v570 = vld [vmem:[#allocation2 + $0x3a] sm:$0xff]
      %v571 = vld [vmem:[#allocation2 + $0x42] sm:$0xff]
      %v572 = vld [vmem:[#allocation2 + $0x4a] sm:$0xff]
      %v573 = vld [vmem:[#allocation2 + $0x52] sm:$0xff]
      %v574 = vld [vmem:[#allocation2 + $0x5a] sm:$0xff]
      %v575 = vld [vmem:[#allocation2 + $0x62] sm:$0xff]
      %v576 = vld [vmem:[#allocation2 + $0x6a] sm:$0xff]
      %v577 = vld [vmem:[#allocation2 + $0x72] sm:$0xff]
      %v578 = vpack.c.bf16 %v564, %v563
      %v579 = vpack.c.bf16 %v566, %v565
      %v580 = vpack.c.bf16 %v568, %v567
      %v581 = vpack.c.bf16 %v570, %v569
      %v582 = vpack.c.bf16 %v572, %v571
      %v583 = vpack.c.bf16 %v574, %v573
      %v584 = vpack.c.bf16 %v576, %v575
      %v585 = vpack.c.bf16 %v577, %v577
      %v586 = vld [vmem:[%s2 + $0x80] sm:$0xf]
      %v587 = vld [vmem:[%s2 + $0x84] sm:$0xf]
      %v588 = vld [vmem:[%s2 + $0x88] sm:$0xf]
      %v589 = vld [vmem:[%s2 + $0x8c] sm:$0xf]
      %v590 = vld [vmem:[%s2 + $0x90] sm:$0xf]
      %v591 = vld [vmem:[%s2 + $0x94] sm:$0xf]
      %v592 = vld [vmem:[%s2 + $0x98] sm:$0xf]
      %v593 = vld [vmem:[%s2 + $0x9c] sm:$0xf]
      %v594 = vld [vmem:[%s2 + $0xa0] sm:$0xf]
      %v595 = vld [vmem:[%s2 + $0xa4] sm:$0xf]
      %v596 = vld [vmem:[%s2 + $0xa8] sm:$0xf]
      %v597 = vld [vmem:[%s2 + $0xac] sm:$0xf]
      %v598 = vld [vmem:[%s2 + $0xb0] sm:$0xf]
      %v599 = vld [vmem:[%s2 + $0xb4] sm:$0xf]
      %v600 = vld [vmem:[%s2 + $0xb8] sm:$0xf]
      %v601 = vld [vmem:[%s2 + $0xbc] sm:$0xf]
      %v618 = vunpack.c.l.b16 %v586
      %v619 = vunpack.c.l.b16 %v587
      %v620 = vunpack.c.l.b16 %v588
      %v621 = vunpack.c.l.b16 %v589
      %v622 = vunpack.c.l.b16 %v590
      %v623 = vunpack.c.l.b16 %v591
      %v624 = vunpack.c.l.b16 %v592
      %v625 = vunpack.c.l.b16 %v593
      %v626 = vunpack.c.l.b16 %v594
      %v627 = vunpack.c.l.b16 %v595
      %v628 = vunpack.c.l.b16 %v596
      %v629 = vunpack.c.l.b16 %v597
      %v630 = vunpack.c.l.b16 %v598
      %v631 = vunpack.c.l.b16 %v599
      %v632 = vunpack.c.l.b16 %v600
      %v633 = vunpack.c.l.b16 %v601
      %v634 = vpack.c.b16 %v619, %v618
      %v635 = vpack.c.b16 %v621, %v620
      %v636 = vpack.c.b16 %v623, %v622
      %v637 = vpack.c.b16 %v625, %v624
      %v638 = vpack.c.b16 %v627, %v626
      %v639 = vpack.c.b16 %v629, %v628
      %v640 = vpack.c.b16 %v631, %v630
      %v641 = vpack.c.b16 %v633, %v632
      %650 = vmatpush.bf16.msra.mxu0 %v641
      %651 = vmatpush.bf16.msra.mxu0 %v640
      %652 = vmatpush.bf16.msra.mxu0 %v639
      %653 = vmatpush.bf16.msra.mxu0 %v638
      %654 = vmatpush.bf16.msra.mxu0 %v637
      %655 = vmatpush.bf16.msra.mxu0 %v636
      %656 = vmatpush.bf16.msra.mxu0 %v635
      %657 = vmatpush.bf16.msra.mxu0 %v634
      %658 = vmatmul.bf16.gmra.mxu0 %v578
      %v659 = vpop.f32.mrf.mxu0
      %v660 = vadd.f32 0.0, %v659
      %v661 = vpop.f32.mrf.mxu0
      %v662 = vadd.f32 0.0, %v661
      %663 = vmatmul.bf16.gmra.mxu0 %v579
      %v664 = vpop.f32.mrf.mxu0
      %v665 = vadd.f32 0.0, %v664
      %v666 = vpop.f32.mrf.mxu0
      %v667 = vadd.f32 0.0, %v666
      %668 = vmatmul.bf16.gmra.mxu0 %v580
      %v669 = vpop.f32.mrf.mxu0
      %v670 = vadd.f32 0.0, %v669
      %v671 = vpop.f32.mrf.mxu0
      %v672 = vadd.f32 0.0, %v671
      %673 = vmatmul.bf16.gmra.mxu0 %v581
      %v674 = vpop.f32.mrf.mxu0
      %v675 = vadd.f32 0.0, %v674
      %v676 = vpop.f32.mrf.mxu0
      %v677 = vadd.f32 0.0, %v676
      %678 = vmatmul.bf16.gmra.mxu0 %v582
      %v679 = vpop.f32.mrf.mxu0
      %v680 = vadd.f32 0.0, %v679
      %v681 = vpop.f32.mrf.mxu0
      %v682 = vadd.f32 0.0, %v681
      %683 = vmatmul.bf16.gmra.mxu0 %v583
      %v684 = vpop.f32.mrf.mxu0
      %v685 = vadd.f32 0.0, %v684
      %v686 = vpop.f32.mrf.mxu0
      %v687 = vadd.f32 0.0, %v686
      %688 = vmatmul.bf16.gmra.mxu0 %v584
      %v689 = vpop.f32.mrf.mxu0
      %v690 = vadd.f32 0.0, %v689
      %v691 = vpop.f32.mrf.mxu0
      %v692 = vadd.f32 0.0, %v691
      %693 = vmatmul.bf16.gmra.mxu0 %v585
      %v694 = vpop.f32.mrf.mxu0
      %v695 = vadd.f32 0.0, %v694
      %v696 = vpop.f32.mrf.mxu0
      %697 = vdwg.mxu0
      %v698 = vadd.f32 %v525, %v660
      %v699 = vadd.f32 %v527, %v662
      %v700 = vadd.f32 %v530, %v665
      %v701 = vadd.f32 %v532, %v667
      %v702 = vadd.f32 %v535, %v670
      %v703 = vadd.f32 %v537, %v672
      %v704 = vadd.f32 %v540, %v675
      %v705 = vadd.f32 %v542, %v677
      %v706 = vadd.f32 %v545, %v680
      %v707 = vadd.f32 %v547, %v682
      %v708 = vadd.f32 %v550, %v685
      %v709 = vadd.f32 %v552, %v687
      %v710 = vadd.f32 %v555, %v690
      %v711 = vadd.f32 %v557, %v692
      %v712 = vadd.f32 %v560, %v695
      %v713 = vld [vmem:[#allocation2 + $0xa] sm:$0xff]
      %v714 = vld [vmem:[#allocation2 + $0x12] sm:$0xff]
      %v715 = vld [vmem:[#allocation2 + $0x1a] sm:$0xff]
      %v716 = vld [vmem:[#allocation2 + $0x22] sm:$0xff]
      %v717 = vld [vmem:[#allocation2 + $0x2a] sm:$0xff]
      %v718 = vld [vmem:[#allocation2 + $0x32] sm:$0xff]
      %v719 = vld [vmem:[#allocation2 + $0x3a] sm:$0xff]
      %v720 = vld [vmem:[#allocation2 + $0x42] sm:$0xff]
      %v721 = vld [vmem:[#allocation2 + $0x4a] sm:$0xff]
      %v722 = vld [vmem:[#allocation2 + $0x52] sm:$0xff]
      %v723 = vld [vmem:[#allocation2 + $0x5a] sm:$0xff]
      %v724 = vld [vmem:[#allocation2 + $0x62] sm:$0xff]
      %v725 = vld [vmem:[#allocation2 + $0x6a] sm:$0xff]
      %v726 = vld [vmem:[#allocation2 + $0x72] sm:$0xff]
      %v727 = vld [vmem:[#allocation2 + $0x7a] sm:$0xff]
      %v728 = vpack.c.bf16 %v714, %v713
      %v729 = vpack.c.bf16 %v716, %v715
      %v730 = vpack.c.bf16 %v718, %v717
      %v731 = vpack.c.bf16 %v720, %v719
      %v732 = vpack.c.bf16 %v722, %v721
      %v733 = vpack.c.bf16 %v724, %v723
      %v734 = vpack.c.bf16 %v726, %v725
      %v735 = vpack.c.bf16 %v727, %v727
      %v736 = vld [vmem:[%s2 + $0xc0] sm:$0xf]
      %v737 = vld [vmem:[%s2 + $0xc4] sm:$0xf]
      %v738 = vld [vmem:[%s2 + $0xc8] sm:$0xf]
      %v739 = vld [vmem:[%s2 + $0xcc] sm:$0xf]
      %v740 = vld [vmem:[%s2 + $0xd0] sm:$0xf]
      %v741 = vld [vmem:[%s2 + $0xd4] sm:$0xf]
      %v742 = vld [vmem:[%s2 + $0xd8] sm:$0xf]
      %v743 = vld [vmem:[%s2 + $0xdc] sm:$0xf]
      %v744 = vld [vmem:[%s2 + $0xe0] sm:$0xf]
      %v745 = vld [vmem:[%s2 + $0xe4] sm:$0xf]
      %v746 = vld [vmem:[%s2 + $0xe8] sm:$0xf]
      %v747 = vld [vmem:[%s2 + $0xec] sm:$0xf]
      %v748 = vld [vmem:[%s2 + $0xf0] sm:$0xf]
      %v749 = vld [vmem:[%s2 + $0xf4] sm:$0xf]
      %v750 = vld [vmem:[%s2 + $0xf8] sm:$0xf]
      %v751 = vld [vmem:[%s2 + $0xfc] sm:$0xf]
      %v768 = vunpack.c.l.b16 %v736
      %v769 = vunpack.c.l.b16 %v737
      %v770 = vunpack.c.l.b16 %v738
      %v771 = vunpack.c.l.b16 %v739
      %v772 = vunpack.c.l.b16 %v740
      %v773 = vunpack.c.l.b16 %v741
      %v774 = vunpack.c.l.b16 %v742
      %v775 = vunpack.c.l.b16 %v743
      %v776 = vunpack.c.l.b16 %v744
      %v777 = vunpack.c.l.b16 %v745
      %v778 = vunpack.c.l.b16 %v746
      %v779 = vunpack.c.l.b16 %v747
      %v780 = vunpack.c.l.b16 %v748
      %v781 = vunpack.c.l.b16 %v749
      %v782 = vunpack.c.l.b16 %v750
      %v783 = vunpack.c.l.b16 %v751
      %v784 = vpack.c.b16 %v769, %v768
      %v785 = vpack.c.b16 %v771, %v770
      %v786 = vpack.c.b16 %v773, %v772
      %v787 = vpack.c.b16 %v775, %v774
      %v788 = vpack.c.b16 %v777, %v776
      %v789 = vpack.c.b16 %v779, %v778
      %v790 = vpack.c.b16 %v781, %v780
      %v791 = vpack.c.b16 %v783, %v782
      %800 = vmatpush.bf16.msra.mxu0 %v791
      %801 = vmatpush.bf16.msra.mxu0 %v790
      %802 = vmatpush.bf16.msra.mxu0 %v789
      %803 = vmatpush.bf16.msra.mxu0 %v788
      %804 = vmatpush.bf16.msra.mxu0 %v787
      %805 = vmatpush.bf16.msra.mxu0 %v786
      %806 = vmatpush.bf16.msra.mxu0 %v785
      %807 = vmatpush.bf16.msra.mxu0 %v784
      %808 = vmatmul.bf16.gmra.mxu0 %v728
      %v809 = vpop.f32.mrf.mxu0
      %v810 = vadd.f32 0.0, %v809
      %v811 = vpop.f32.mrf.mxu0
      %v812 = vadd.f32 0.0, %v811
      %813 = vmatmul.bf16.gmra.mxu0 %v729
      %v814 = vpop.f32.mrf.mxu0
      %v815 = vadd.f32 0.0, %v814
      %v816 = vpop.f32.mrf.mxu0
      %v817 = vadd.f32 0.0, %v816
      %818 = vmatmul.bf16.gmra.mxu0 %v730
      %v819 = vpop.f32.mrf.mxu0
      %v820 = vadd.f32 0.0, %v819
      %v821 = vpop.f32.mrf.mxu0
      %v822 = vadd.f32 0.0, %v821
      %823 = vmatmul.bf16.gmra.mxu0 %v731
      %v824 = vpop.f32.mrf.mxu0
      %v825 = vadd.f32 0.0, %v824
      %v826 = vpop.f32.mrf.mxu0
      %v827 = vadd.f32 0.0, %v826
      %828 = vmatmul.bf16.gmra.mxu0 %v732
      %v829 = vpop.f32.mrf.mxu0
      %v830 = vadd.f32 0.0, %v829
      %v831 = vpop.f32.mrf.mxu0
      %v832 = vadd.f32 0.0, %v831
      %833 = vmatmul.bf16.gmra.mxu0 %v733
      %v834 = vpop.f32.mrf.mxu0
      %v835 = vadd.f32 0.0, %v834
      %v836 = vpop.f32.mrf.mxu0
      %v837 = vadd.f32 0.0, %v836
      %838 = vmatmul.bf16.gmra.mxu0 %v734
      %v839 = vpop.f32.mrf.mxu0
      %v840 = vadd.f32 0.0, %v839
      %v841 = vpop.f32.mrf.mxu0
      %v842 = vadd.f32 0.0, %v841
      %843 = vmatmul.bf16.gmra.mxu0 %v735
      %v844 = vpop.f32.mrf.mxu0
      %v845 = vadd.f32 0.0, %v844
      %v846 = vpop.f32.mrf.mxu0
      %847 = vdwg.mxu0
      %v848 = vadd.f32 %v698, %v810
      %v849 = vadd.f32 %v699, %v812
      %v850 = vadd.f32 %v700, %v815
      %v851 = vadd.f32 %v701, %v817
      %v852 = vadd.f32 %v702, %v820
      %v853 = vadd.f32 %v703, %v822
      %v854 = vadd.f32 %v704, %v825
      %v855 = vadd.f32 %v705, %v827
      %v856 = vadd.f32 %v706, %v830
      %v857 = vadd.f32 %v707, %v832
      %v858 = vadd.f32 %v708, %v835
      %v859 = vadd.f32 %v709, %v837
      %v860 = vadd.f32 %v710, %v840
      %v861 = vadd.f32 %v711, %v842
      %v862 = vadd.f32 %v712, %v845
      %v863 = vld [vmem:[#allocation2 + $0xb] sm:$0xff]
      %v864 = vld [vmem:[#allocation2 + $0x13] sm:$0xff]
      %v865 = vld [vmem:[#allocation2 + $0x1b] sm:$0xff]
      %v866 = vld [vmem:[#allocation2 + $0x23] sm:$0xff]
      %v867 = vld [vmem:[#allocation2 + $0x2b] sm:$0xff]
      %v868 = vld [vmem:[#allocation2 + $0x33] sm:$0xff]
      %v869 = vld [vmem:[#allocation2 + $0x3b] sm:$0xff]
      %v870 = vld [vmem:[#allocation2 + $0x43] sm:$0xff]
      %v871 = vld [vmem:[#allocation2 + $0x4b] sm:$0xff]
      %v872 = vld [vmem:[#allocation2 + $0x53] sm:$0xff]
      %v873 = vld [vmem:[#allocation2 + $0x5b] sm:$0xff]
      %v874 = vld [vmem:[#allocation2 + $0x63] sm:$0xff]
      %v875 = vld [vmem:[#allocation2 + $0x6b] sm:$0xff]
      %v876 = vld [vmem:[#allocation2 + $0x73] sm:$0xff]
      %v877 = vld [vmem:[#allocation2 + $0x7b] sm:$0xff]
      %v878 = vpack.c.bf16 %v864, %v863
      %v879 = vpack.c.bf16 %v866, %v865
      %v880 = vpack.c.bf16 %v868, %v867
      %v881 = vpack.c.bf16 %v870, %v869
      %v882 = vpack.c.bf16 %v872, %v871
      %v883 = vpack.c.bf16 %v874, %v873
      %v884 = vpack.c.bf16 %v876, %v875
      %v885 = vpack.c.bf16 %v877, %v877
      %v886 = vld [vmem:[%s2 + $0x100] sm:$0xf]
      %v887 = vld [vmem:[%s2 + $0x104] sm:$0xf]
      %v888 = vld [vmem:[%s2 + $0x108] sm:$0xf]
      %v889 = vld [vmem:[%s2 + $0x10c] sm:$0xf]
      %v890 = vld [vmem:[%s2 + $0x110] sm:$0xf]
      %v891 = vld [vmem:[%s2 + $0x114] sm:$0xf]
      %v892 = vld [vmem:[%s2 + $0x118] sm:$0xf]
      %v893 = vld [vmem:[%s2 + $0x11c] sm:$0xf]
      %v894 = vld [vmem:[%s2 + $0x120] sm:$0xf]
      %v895 = vld [vmem:[%s2 + $0x124] sm:$0xf]
      %v896 = vld [vmem:[%s2 + $0x128] sm:$0xf]
      %v897 = vld [vmem:[%s2 + $0x12c] sm:$0xf]
      %v898 = vld [vmem:[%s2 + $0x130] sm:$0xf]
      %v899 = vld [vmem:[%s2 + $0x134] sm:$0xf]
      %v900 = vld [vmem:[%s2 + $0x138] sm:$0xf]
      %v901 = vld [vmem:[%s2 + $0x13c] sm:$0xf]
      %v918 = vunpack.c.l.b16 %v886
      %v919 = vunpack.c.l.b16 %v887
      %v920 = vunpack.c.l.b16 %v888
      %v921 = vunpack.c.l.b16 %v889
      %v922 = vunpack.c.l.b16 %v890
      %v923 = vunpack.c.l.b16 %v891
      %v924 = vunpack.c.l.b16 %v892
      %v925 = vunpack.c.l.b16 %v893
      %v926 = vunpack.c.l.b16 %v894
      %v927 = vunpack.c.l.b16 %v895
      %v928 = vunpack.c.l.b16 %v896
      %v929 = vunpack.c.l.b16 %v897
      %v930 = vunpack.c.l.b16 %v898
      %v931 = vunpack.c.l.b16 %v899
      %v932 = vunpack.c.l.b16 %v900
      %v933 = vunpack.c.l.b16 %v901
      %v934 = vpack.c.b16 %v919, %v918
      %v935 = vpack.c.b16 %v921, %v920
      %v936 = vpack.c.b16 %v923, %v922
      %v937 = vpack.c.b16 %v925, %v924
      %v938 = vpack.c.b16 %v927, %v926
      %v939 = vpack.c.b16 %v929, %v928
      %v940 = vpack.c.b16 %v931, %v930
      %v941 = vpack.c.b16 %v933, %v932
      %950 = vmatpush.bf16.msra.mxu0 %v941
      %951 = vmatpush.bf16.msra.mxu0 %v940
      %952 = vmatpush.bf16.msra.mxu0 %v939
      %953 = vmatpush.bf16.msra.mxu0 %v938
      %954 = vmatpush.bf16.msra.mxu0 %v937
      %955 = vmatpush.bf16.msra.mxu0 %v936
      %956 = vmatpush.bf16.msra.mxu0 %v935
      %957 = vmatpush.bf16.msra.mxu0 %v934
      %958 = vmatmul.bf16.gmra.mxu0 %v878
      %v959 = vpop.f32.mrf.mxu0
      %v960 = vadd.f32 0.0, %v959
      %v961 = vpop.f32.mrf.mxu0
      %v962 = vadd.f32 0.0, %v961
      %963 = vmatmul.bf16.gmra.mxu0 %v879
      %v964 = vpop.f32.mrf.mxu0
      %v965 = vadd.f32 0.0, %v964
      %v966 = vpop.f32.mrf.mxu0
      %v967 = vadd.f32 0.0, %v966
      %968 = vmatmul.bf16.gmra.mxu0 %v880
      %v969 = vpop.f32.mrf.mxu0
      %v970 = vadd.f32 0.0, %v969
      %v971 = vpop.f32.mrf.mxu0
      %v972 = vadd.f32 0.0, %v971
      %973 = vmatmul.bf16.gmra.mxu0 %v881
      %v974 = vpop.f32.mrf.mxu0
      %v975 = vadd.f32 0.0, %v974
      %v976 = vpop.f32.mrf.mxu0
      %v977 = vadd.f32 0.0, %v976
      %978 = vmatmul.bf16.gmra.mxu0 %v882
      %v979 = vpop.f32.mrf.mxu0
      %v980 = vadd.f32 0.0, %v979
      %v981 = vpop.f32.mrf.mxu0
      %v982 = vadd.f32 0.0, %v981
      %983 = vmatmul.bf16.gmra.mxu0 %v883
      %v984 = vpop.f32.mrf.mxu0
      %v985 = vadd.f32 0.0, %v984
      %v986 = vpop.f32.mrf.mxu0
      %v987 = vadd.f32 0.0, %v986
      %988 = vmatmul.bf16.gmra.mxu0 %v884
      %v989 = vpop.f32.mrf.mxu0
      %v990 = vadd.f32 0.0, %v989
      %v991 = vpop.f32.mrf.mxu0
      %v992 = vadd.f32 0.0, %v991
      %993 = vmatmul.bf16.gmra.mxu0 %v885
      %v994 = vpop.f32.mrf.mxu0
      %v995 = vadd.f32 0.0, %v994
      %v996 = vpop.f32.mrf.mxu0
      %997 = vdwg.mxu0
      %v998 = vadd.f32 %v848, %v960
      %v999 = vadd.f32 %v849, %v962
      %v1000 = vadd.f32 %v850, %v965
      %v1001 = vadd.f32 %v851, %v967
      %v1002 = vadd.f32 %v852, %v970
      %v1003 = vadd.f32 %v853, %v972
      %v1004 = vadd.f32 %v854, %v975
      %v1005 = vadd.f32 %v855, %v977
      %v1006 = vadd.f32 %v856, %v980
      %v1007 = vadd.f32 %v857, %v982
      %v1008 = vadd.f32 %v858, %v985
      %v1009 = vadd.f32 %v859, %v987
      %v1010 = vadd.f32 %v860, %v990
      %v1011 = vadd.f32 %v861, %v992
      %v1012 = vadd.f32 %v862, %v995
      %v1013 = vld [vmem:[#allocation2 + $0xc] sm:$0xff]
      %v1014 = vld [vmem:[#allocation2 + $0x14] sm:$0xff]
      %v1015 = vld [vmem:[#allocation2 + $0x1c] sm:$0xff]
      %v1016 = vld [vmem:[#allocation2 + $0x24] sm:$0xff]
      %v1017 = vld [vmem:[#allocation2 + $0x2c] sm:$0xff]
      %v1018 = vld [vmem:[#allocation2 + $0x34] sm:$0xff]
      %v1019 = vld [vmem:[#allocation2 + $0x3c] sm:$0xff]
      %v1020 = vld [vmem:[#allocation2 + $0x44] sm:$0xff]
      %v1021 = vld [vmem:[#allocation2 + $0x4c] sm:$0xff]
      %v1022 = vld [vmem:[#allocation2 + $0x54] sm:$0xff]
      %v1023 = vld [vmem:[#allocation2 + $0x5c] sm:$0xff]
      %v1024 = vld [vmem:[#allocation2 + $0x64] sm:$0xff]
      %v1025 = vld [vmem:[#allocation2 + $0x6c] sm:$0xff]
      %v1026 = vld [vmem:[#allocation2 + $0x74] sm:$0xff]
      %v1027 = vld [vmem:[#allocation2 + $0x7c] sm:$0xff]
      %v1028 = vpack.c.bf16 %v1014, %v1013
      %v1029 = vpack.c.bf16 %v1016, %v1015
      %v1030 = vpack.c.bf16 %v1018, %v1017
      %v1031 = vpack.c.bf16 %v1020, %v1019
      %v1032 = vpack.c.bf16 %v1022, %v1021
      %v1033 = vpack.c.bf16 %v1024, %v1023
      %v1034 = vpack.c.bf16 %v1026, %v1025
      %v1035 = vpack.c.bf16 %v1027, %v1027
      %v1036 = vld [vmem:[%s2 + $0x140] sm:$0xf]
      %v1037 = vld [vmem:[%s2 + $0x144] sm:$0xf]
      %v1038 = vld [vmem:[%s2 + $0x148] sm:$0xf]
      %v1039 = vld [vmem:[%s2 + $0x14c] sm:$0xf]
      %v1040 = vld [vmem:[%s2 + $0x150] sm:$0xf]
      %v1041 = vld [vmem:[%s2 + $0x154] sm:$0xf]
      %v1042 = vld [vmem:[%s2 + $0x158] sm:$0xf]
      %v1043 = vld [vmem:[%s2 + $0x15c] sm:$0xf]
      %v1044 = vld [vmem:[%s2 + $0x160] sm:$0xf]
      %v1045 = vld [vmem:[%s2 + $0x164] sm:$0xf]
      %v1046 = vld [vmem:[%s2 + $0x168] sm:$0xf]
      %v1047 = vld [vmem:[%s2 + $0x16c] sm:$0xf]
      %v1048 = vld [vmem:[%s2 + $0x170] sm:$0xf]
      %v1049 = vld [vmem:[%s2 + $0x174] sm:$0xf]
      %v1050 = vld [vmem:[%s2 + $0x178] sm:$0xf]
      %v1051 = vld [vmem:[%s2 + $0x17c] sm:$0xf]
      %v1068 = vunpack.c.l.b16 %v1036
      %v1069 = vunpack.c.l.b16 %v1037
      %v1070 = vunpack.c.l.b16 %v1038
      %v1071 = vunpack.c.l.b16 %v1039
      %v1072 = vunpack.c.l.b16 %v1040
      %v1073 = vunpack.c.l.b16 %v1041
      %v1074 = vunpack.c.l.b16 %v1042
      %v1075 = vunpack.c.l.b16 %v1043
      %v1076 = vunpack.c.l.b16 %v1044
      %v1077 = vunpack.c.l.b16 %v1045
      %v1078 = vunpack.c.l.b16 %v1046
      %v1079 = vunpack.c.l.b16 %v1047
      %v1080 = vunpack.c.l.b16 %v1048
      %v1081 = vunpack.c.l.b16 %v1049
      %v1082 = vunpack.c.l.b16 %v1050
      %v1083 = vunpack.c.l.b16 %v1051
      %v1084 = vpack.c.b16 %v1069, %v1068
      %v1085 = vpack.c.b16 %v1071, %v1070
      %v1086 = vpack.c.b16 %v1073, %v1072
      %v1087 = vpack.c.b16 %v1075, %v1074
      %v1088 = vpack.c.b16 %v1077, %v1076
      %v1089 = vpack.c.b16 %v1079, %v1078
      %v1090 = vpack.c.b16 %v1081, %v1080
      %v1091 = vpack.c.b16 %v1083, %v1082
      %1100 = vmatpush.bf16.msra.mxu0 %v1091
      %1101 = vmatpush.bf16.msra.mxu0 %v1090
      %1102 = vmatpush.bf16.msra.mxu0 %v1089
      %1103 = vmatpush.bf16.msra.mxu0 %v1088
      %1104 = vmatpush.bf16.msra.mxu0 %v1087
      %1105 = vmatpush.bf16.msra.mxu0 %v1086
      %1106 = vmatpush.bf16.msra.mxu0 %v1085
      %1107 = vmatpush.bf16.msra.mxu0 %v1084
      %1108 = vmatmul.bf16.gmra.mxu0 %v1028
      %v1109 = vpop.f32.mrf.mxu0
      %v1110 = vadd.f32 0.0, %v1109
      %v1111 = vpop.f32.mrf.mxu0
      %v1112 = vadd.f32 0.0, %v1111
      %1113 = vmatmul.bf16.gmra.mxu0 %v1029
      %v1114 = vpop.f32.mrf.mxu0
      %v1115 = vadd.f32 0.0, %v1114
      %v1116 = vpop.f32.mrf.mxu0
      %v1117 = vadd.f32 0.0, %v1116
      %1118 = vmatmul.bf16.gmra.mxu0 %v1030
      %v1119 = vpop.f32.mrf.mxu0
      %v1120 = vadd.f32 0.0, %v1119
      %v1121 = vpop.f32.mrf.mxu0
      %v1122 = vadd.f32 0.0, %v1121
      %1123 = vmatmul.bf16.gmra.mxu0 %v1031
      %v1124 = vpop.f32.mrf.mxu0
      %v1125 = vadd.f32 0.0, %v1124
      %v1126 = vpop.f32.mrf.mxu0
      %v1127 = vadd.f32 0.0, %v1126
      %1128 = vmatmul.bf16.gmra.mxu0 %v1032
      %v1129 = vpop.f32.mrf.mxu0
      %v1130 = vadd.f32 0.0, %v1129
      %v1131 = vpop.f32.mrf.mxu0
      %v1132 = vadd.f32 0.0, %v1131
      %1133 = vmatmul.bf16.gmra.mxu0 %v1033
      %v1134 = vpop.f32.mrf.mxu0
      %v1135 = vadd.f32 0.0, %v1134
      %v1136 = vpop.f32.mrf.mxu0
      %v1137 = vadd.f32 0.0, %v1136
      %1138 = vmatmul.bf16.gmra.mxu0 %v1034
      %v1139 = vpop.f32.mrf.mxu0
      %v1140 = vadd.f32 0.0, %v1139
      %v1141 = vpop.f32.mrf.mxu0
      %v1142 = vadd.f32 0.0, %v1141
      %1143 = vmatmul.bf16.gmra.mxu0 %v1035
      %v1144 = vpop.f32.mrf.mxu0
      %v1145 = vadd.f32 0.0, %v1144
      %v1146 = vpop.f32.mrf.mxu0
      %1147 = vdwg.mxu0
      %v1148 = vadd.f32 %v998, %v1110
      %v1149 = vadd.f32 %v999, %v1112
      %v1150 = vadd.f32 %v1000, %v1115
      %v1151 = vadd.f32 %v1001, %v1117
      %v1152 = vadd.f32 %v1002, %v1120
      %v1153 = vadd.f32 %v1003, %v1122
      %v1154 = vadd.f32 %v1004, %v1125
      %v1155 = vadd.f32 %v1005, %v1127
      %v1156 = vadd.f32 %v1006, %v1130
      %v1157 = vadd.f32 %v1007, %v1132
      %v1158 = vadd.f32 %v1008, %v1135
      %v1159 = vadd.f32 %v1009, %v1137
      %v1160 = vadd.f32 %v1010, %v1140
      %v1161 = vadd.f32 %v1011, %v1142
      %v1162 = vadd.f32 %v1012, %v1145
      %v1163 = vld [vmem:[#allocation2 + $0x14] sm:$0xff]
      %v1164 = vld [vmem:[#allocation2 + $0x1c] sm:$0xff]
      %v1165 = vld [vmem:[#allocation2 + $0x24] sm:$0xff]
      %v1166 = vld [vmem:[#allocation2 + $0x2c] sm:$0xff]
      %v1167 = vld [vmem:[#allocation2 + $0x34] sm:$0xff]
      %v1168 = vld [vmem:[#allocation2 + $0x3c] sm:$0xff]
      %v1169 = vld [vmem:[#allocation2 + $0x44] sm:$0xff]
      %v1170 = vld [vmem:[#allocation2 + $0x4c] sm:$0xff]
      %v1171 = vld [vmem:[#allocation2 + $0x54] sm:$0xff]
      %v1172 = vld [vmem:[#allocation2 + $0x5c] sm:$0xff]
      %v1173 = vld [vmem:[#allocation2 + $0x64] sm:$0xff]
      %v1174 = vld [vmem:[#allocation2 + $0x6c] sm:$0xff]
      %v1175 = vld [vmem:[#allocation2 + $0x74] sm:$0xff]
      %v1176 = vld [vmem:[#allocation2 + $0x7c] sm:$0xff]
      %v1177 = vld [vmem:[#allocation2 + $0x84] sm:$0xff]
      %v1178 = vpack.c.bf16 %v1164, %v1163
      %v1179 = vpack.c.bf16 %v1166, %v1165
      %v1180 = vpack.c.bf16 %v1168, %v1167
      %v1181 = vpack.c.bf16 %v1170, %v1169
      %v1182 = vpack.c.bf16 %v1172, %v1171
      %v1183 = vpack.c.bf16 %v1174, %v1173
      %v1184 = vpack.c.bf16 %v1176, %v1175
      %v1185 = vpack.c.bf16 %v1177, %v1177
      %v1186 = vld [vmem:[%s2 + $0x180] sm:$0xf]
      %v1187 = vld [vmem:[%s2 + $0x184] sm:$0xf]
      %v1188 = vld [vmem:[%s2 + $0x188] sm:$0xf]
      %v1189 = vld [vmem:[%s2 + $0x18c] sm:$0xf]
      %v1190 = vld [vmem:[%s2 + $0x190] sm:$0xf]
      %v1191 = vld [vmem:[%s2 + $0x194] sm:$0xf]
      %v1192 = vld [vmem:[%s2 + $0x198] sm:$0xf]
      %v1193 = vld [vmem:[%s2 + $0x19c] sm:$0xf]
      %v1194 = vld [vmem:[%s2 + $0x1a0] sm:$0xf]
      %v1195 = vld [vmem:[%s2 + $0x1a4] sm:$0xf]
      %v1196 = vld [vmem:[%s2 + $0x1a8] sm:$0xf]
      %v1197 = vld [vmem:[%s2 + $0x1ac] sm:$0xf]
      %v1198 = vld [vmem:[%s2 + $0x1b0] sm:$0xf]
      %v1199 = vld [vmem:[%s2 + $0x1b4] sm:$0xf]
      %v1200 = vld [vmem:[%s2 + $0x1b8] sm:$0xf]
      %v1201 = vld [vmem:[%s2 + $0x1bc] sm:$0xf]
      %v1218 = vunpack.c.l.b16 %v1186
      %v1219 = vunpack.c.l.b16 %v1187
      %v1220 = vunpack.c.l.b16 %v1188
      %v1221 = vunpack.c.l.b16 %v1189
      %v1222 = vunpack.c.l.b16 %v1190
      %v1223 = vunpack.c.l.b16 %v1191
      %v1224 = vunpack.c.l.b16 %v1192
      %v1225 = vunpack.c.l.b16 %v1193
      %v1226 = vunpack.c.l.b16 %v1194
      %v1227 = vunpack.c.l.b16 %v1195
      %v1228 = vunpack.c.l.b16 %v1196
      %v1229 = vunpack.c.l.b16 %v1197
      %v1230 = vunpack.c.l.b16 %v1198
      %v1231 = vunpack.c.l.b16 %v1199
      %v1232 = vunpack.c.l.b16 %v1200
      %v1233 = vunpack.c.l.b16 %v1201
      %v1234 = vpack.c.b16 %v1219, %v1218
      %v1235 = vpack.c.b16 %v1221, %v1220
      %v1236 = vpack.c.b16 %v1223, %v1222
      %v1237 = vpack.c.b16 %v1225, %v1224
      %v1238 = vpack.c.b16 %v1227, %v1226
      %v1239 = vpack.c.b16 %v1229, %v1228
      %v1240 = vpack.c.b16 %v1231, %v1230
      %v1241 = vpack.c.b16 %v1233, %v1232
      %1250 = vmatpush.bf16.msra.mxu0 %v1241
      %1251 = vmatpush.bf16.msra.mxu0 %v1240
      %1252 = vmatpush.bf16.msra.mxu0 %v1239
      %1253 = vmatpush.bf16.msra.mxu0 %v1238
      %1254 = vmatpush.bf16.msra.mxu0 %v1237
      %1255 = vmatpush.bf16.msra.mxu0 %v1236
      %1256 = vmatpush.bf16.msra.mxu0 %v1235
      %1257 = vmatpush.bf16.msra.mxu0 %v1234
      %1258 = vmatmul.bf16.gmra.mxu0 %v1178
      %v1259 = vpop.f32.mrf.mxu0
      %v1260 = vadd.f32 0.0, %v1259
      %v1261 = vpop.f32.mrf.mxu0
      %v1262 = vadd.f32 0.0, %v1261
      %1263 = vmatmul.bf16.gmra.mxu0 %v1179
      %v1264 = vpop.f32.mrf.mxu0
      %v1265 = vadd.f32 0.0, %v1264
      %v1266 = vpop.f32.mrf.mxu0
      %v1267 = vadd.f32 0.0, %v1266
      %1268 = vmatmul.bf16.gmra.mxu0 %v1180
      %v1269 = vpop.f32.mrf.mxu0
      %v1270 = vadd.f32 0.0, %v1269
      %v1271 = vpop.f32.mrf.mxu0
      %v1272 = vadd.f32 0.0, %v1271
      %1273 = vmatmul.bf16.gmra.mxu0 %v1181
      %v1274 = vpop.f32.mrf.mxu0
      %v1275 = vadd.f32 0.0, %v1274
      %v1276 = vpop.f32.mrf.mxu0
      %v1277 = vadd.f32 0.0, %v1276
      %1278 = vmatmul.bf16.gmra.mxu0 %v1182
      %v1279 = vpop.f32.mrf.mxu0
      %v1280 = vadd.f32 0.0, %v1279
      %v1281 = vpop.f32.mrf.mxu0
      %v1282 = vadd.f32 0.0, %v1281
      %1283 = vmatmul.bf16.gmra.mxu0 %v1183
      %v1284 = vpop.f32.mrf.mxu0
      %v1285 = vadd.f32 0.0, %v1284
      %v1286 = vpop.f32.mrf.mxu0
      %v1287 = vadd.f32 0.0, %v1286
      %1288 = vmatmul.bf16.gmra.mxu0 %v1184
      %v1289 = vpop.f32.mrf.mxu0
      %v1290 = vadd.f32 0.0, %v1289
      %v1291 = vpop.f32.mrf.mxu0
      %v1292 = vadd.f32 0.0, %v1291
      %1293 = vmatmul.bf16.gmra.mxu0 %v1185
      %v1294 = vpop.f32.mrf.mxu0
      %v1295 = vadd.f32 0.0, %v1294
      %v1296 = vpop.f32.mrf.mxu0
      %1297 = vdwg.mxu0
      %v1298 = vadd.f32 %v1148, %v1260
      %v1299 = vadd.f32 %v1149, %v1262
      %v1300 = vadd.f32 %v1150, %v1265
      %v1301 = vadd.f32 %v1151, %v1267
      %v1302 = vadd.f32 %v1152, %v1270
      %v1303 = vadd.f32 %v1153, %v1272
      %v1304 = vadd.f32 %v1154, %v1275
      %v1305 = vadd.f32 %v1155, %v1277
      %v1306 = vadd.f32 %v1156, %v1280
      %v1307 = vadd.f32 %v1157, %v1282
      %v1308 = vadd.f32 %v1158, %v1285
      %v1309 = vadd.f32 %v1159, %v1287
      %v1310 = vadd.f32 %v1160, %v1290
      %v1311 = vadd.f32 %v1161, %v1292
      %v1312 = vadd.f32 %v1162, %v1295
      %v1313 = vld [vmem:[#allocation2 + $0x15] sm:$0xff]
      %v1314 = vld [vmem:[#allocation2 + $0x1d] sm:$0xff]
      %v1315 = vld [vmem:[#allocation2 + $0x25] sm:$0xff]
      %v1316 = vld [vmem:[#allocation2 + $0x2d] sm:$0xff]
      %v1317 = vld [vmem:[#allocation2 + $0x35] sm:$0xff]
      %v1318 = vld [vmem:[#allocation2 + $0x3d] sm:$0xff]
      %v1319 = vld [vmem:[#allocation2 + $0x45] sm:$0xff]
      %v1320 = vld [vmem:[#allocation2 + $0x4d] sm:$0xff]
      %v1321 = vld [vmem:[#allocation2 + $0x55] sm:$0xff]
      %v1322 = vld [vmem:[#allocation2 + $0x5d] sm:$0xff]
      %v1323 = vld [vmem:[#allocation2 + $0x65] sm:$0xff]
      %v1324 = vld [vmem:[#allocation2 + $0x6d] sm:$0xff]
      %v1325 = vld [vmem:[#allocation2 + $0x75] sm:$0xff]
      %v1326 = vld [vmem:[#allocation2 + $0x7d] sm:$0xff]
      %v1327 = vld [vmem:[#allocation2 + $0x85] sm:$0xff]
      %v1328 = vpack.c.bf16 %v1314, %v1313
      %v1329 = vpack.c.bf16 %v1316, %v1315
      %v1330 = vpack.c.bf16 %v1318, %v1317
      %v1331 = vpack.c.bf16 %v1320, %v1319
      %v1332 = vpack.c.bf16 %v1322, %v1321
      %v1333 = vpack.c.bf16 %v1324, %v1323
      %v1334 = vpack.c.bf16 %v1326, %v1325
      %v1335 = vpack.c.bf16 %v1327, %v1327
      %v1336 = vld [vmem:[%s2 + $0x1c0] sm:$0xf]
      %v1337 = vld [vmem:[%s2 + $0x1c4] sm:$0xf]
      %v1338 = vld [vmem:[%s2 + $0x1c8] sm:$0xf]
      %v1339 = vld [vmem:[%s2 + $0x1cc] sm:$0xf]
      %v1340 = vld [vmem:[%s2 + $0x1d0] sm:$0xf]
      %v1341 = vld [vmem:[%s2 + $0x1d4] sm:$0xf]
      %v1342 = vld [vmem:[%s2 + $0x1d8] sm:$0xf]
      %v1343 = vld [vmem:[%s2 + $0x1dc] sm:$0xf]
      %v1344 = vld [vmem:[%s2 + $0x1e0] sm:$0xf]
      %v1345 = vld [vmem:[%s2 + $0x1e4] sm:$0xf]
      %v1346 = vld [vmem:[%s2 + $0x1e8] sm:$0xf]
      %v1347 = vld [vmem:[%s2 + $0x1ec] sm:$0xf]
      %v1348 = vld [vmem:[%s2 + $0x1f0] sm:$0xf]
      %v1349 = vld [vmem:[%s2 + $0x1f4] sm:$0xf]
      %v1350 = vld [vmem:[%s2 + $0x1f8] sm:$0xf]
      %v1351 = vld [vmem:[%s2 + $0x1fc] sm:$0xf]
      %v1368 = vunpack.c.l.b16 %v1336
      %v1369 = vunpack.c.l.b16 %v1337
      %v1370 = vunpack.c.l.b16 %v1338
      %v1371 = vunpack.c.l.b16 %v1339
      %v1372 = vunpack.c.l.b16 %v1340
      %v1373 = vunpack.c.l.b16 %v1341
      %v1374 = vunpack.c.l.b16 %v1342
      %v1375 = vunpack.c.l.b16 %v1343
      %v1376 = vunpack.c.l.b16 %v1344
      %v1377 = vunpack.c.l.b16 %v1345
      %v1378 = vunpack.c.l.b16 %v1346
      %v1379 = vunpack.c.l.b16 %v1347
      %v1380 = vunpack.c.l.b16 %v1348
      %v1381 = vunpack.c.l.b16 %v1349
      %v1382 = vunpack.c.l.b16 %v1350
      %v1383 = vunpack.c.l.b16 %v1351
      %v1384 = vpack.c.b16 %v1369, %v1368
      %v1385 = vpack.c.b16 %v1371, %v1370
      %v1386 = vpack.c.b16 %v1373, %v1372
      %v1387 = vpack.c.b16 %v1375, %v1374
      %v1388 = vpack.c.b16 %v1377, %v1376
      %v1389 = vpack.c.b16 %v1379, %v1378
      %v1390 = vpack.c.b16 %v1381, %v1380
      %v1391 = vpack.c.b16 %v1383, %v1382
      %1400 = vmatpush.bf16.msra.mxu0 %v1391
      %1401 = vmatpush.bf16.msra.mxu0 %v1390
      %1402 = vmatpush.bf16.msra.mxu0 %v1389
      %1403 = vmatpush.bf16.msra.mxu0 %v1388
      %1404 = vmatpush.bf16.msra.mxu0 %v1387
      %1405 = vmatpush.bf16.msra.mxu0 %v1386
      %1406 = vmatpush.bf16.msra.mxu0 %v1385
      %1407 = vmatpush.bf16.msra.mxu0 %v1384
      %1408 = vmatmul.bf16.gmra.mxu0 %v1328
      %v1409 = vpop.f32.mrf.mxu0
      %v1410 = vadd.f32 0.0, %v1409
      %v1411 = vpop.f32.mrf.mxu0
      %v1412 = vadd.f32 0.0, %v1411
      %1413 = vmatmul.bf16.gmra.mxu0 %v1329
      %v1414 = vpop.f32.mrf.mxu0
      %v1415 = vadd.f32 0.0, %v1414
      %v1416 = vpop.f32.mrf.mxu0
      %v1417 = vadd.f32 0.0, %v1416
      %1418 = vmatmul.bf16.gmra.mxu0 %v1330
      %v1419 = vpop.f32.mrf.mxu0
      %v1420 = vadd.f32 0.0, %v1419
      %v1421 = vpop.f32.mrf.mxu0
      %v1422 = vadd.f32 0.0, %v1421
      %1423 = vmatmul.bf16.gmra.mxu0 %v1331
      %v1424 = vpop.f32.mrf.mxu0
      %v1425 = vadd.f32 0.0, %v1424
      %v1426 = vpop.f32.mrf.mxu0
      %v1427 = vadd.f32 0.0, %v1426
      %1428 = vmatmul.bf16.gmra.mxu0 %v1332
      %v1429 = vpop.f32.mrf.mxu0
      %v1430 = vadd.f32 0.0, %v1429
      %v1431 = vpop.f32.mrf.mxu0
      %v1432 = vadd.f32 0.0, %v1431
      %1433 = vmatmul.bf16.gmra.mxu0 %v1333
      %v1434 = vpop.f32.mrf.mxu0
      %v1435 = vadd.f32 0.0, %v1434
      %v1436 = vpop.f32.mrf.mxu0
      %v1437 = vadd.f32 0.0, %v1436
      %1438 = vmatmul.bf16.gmra.mxu0 %v1334
      %v1439 = vpop.f32.mrf.mxu0
      %v1440 = vadd.f32 0.0, %v1439
      %v1441 = vpop.f32.mrf.mxu0
      %v1442 = vadd.f32 0.0, %v1441
      %1443 = vmatmul.bf16.gmra.mxu0 %v1335
      %v1444 = vpop.f32.mrf.mxu0
      %v1445 = vadd.f32 0.0, %v1444
      %v1446 = vpop.f32.mrf.mxu0
      %1447 = vdwg.mxu0
      %v1448 = vadd.f32 %v1298, %v1410
      %v1449 = vadd.f32 %v1299, %v1412
      %v1450 = vadd.f32 %v1300, %v1415
      %v1451 = vadd.f32 %v1301, %v1417
      %v1452 = vadd.f32 %v1302, %v1420
      %v1453 = vadd.f32 %v1303, %v1422
      %v1454 = vadd.f32 %v1304, %v1425
      %v1455 = vadd.f32 %v1305, %v1427
      %v1456 = vadd.f32 %v1306, %v1430
      %v1457 = vadd.f32 %v1307, %v1432
      %v1458 = vadd.f32 %v1308, %v1435
      %v1459 = vadd.f32 %v1309, %v1437
      %v1460 = vadd.f32 %v1310, %v1440
      %v1461 = vadd.f32 %v1311, %v1442
      %v1462 = vadd.f32 %v1312, %v1445
      %v1463 = vld [vmem:[#allocation2 + $0x16] sm:$0xff]
      %v1464 = vld [vmem:[#allocation2 + $0x1e] sm:$0xff]
      %v1465 = vld [vmem:[#allocation2 + $0x26] sm:$0xff]
      %v1466 = vld [vmem:[#allocation2 + $0x2e] sm:$0xff]
      %v1467 = vld [vmem:[#allocation2 + $0x36] sm:$0xff]
      %v1468 = vld [vmem:[#allocation2 + $0x3e] sm:$0xff]
      %v1469 = vld [vmem:[#allocation2 + $0x46] sm:$0xff]
      %v1470 = vld [vmem:[#allocation2 + $0x4e] sm:$0xff]
      %v1471 = vld [vmem:[#allocation2 + $0x56] sm:$0xff]
      %v1472 = vld [vmem:[#allocation2 + $0x5e] sm:$0xff]
      %v1473 = vld [vmem:[#allocation2 + $0x66] sm:$0xff]
      %v1474 = vld [vmem:[#allocation2 + $0x6e] sm:$0xff]
      %v1475 = vld [vmem:[#allocation2 + $0x76] sm:$0xff]
      %v1476 = vld [vmem:[#allocation2 + $0x7e] sm:$0xff]
      %v1477 = vld [vmem:[#allocation2 + $0x86] sm:$0xff]
      %v1478 = vpack.c.bf16 %v1464, %v1463
      %v1479 = vpack.c.bf16 %v1466, %v1465
      %v1480 = vpack.c.bf16 %v1468, %v1467
      %v1481 = vpack.c.bf16 %v1470, %v1469
      %v1482 = vpack.c.bf16 %v1472, %v1471
      %v1483 = vpack.c.bf16 %v1474, %v1473
      %v1484 = vpack.c.bf16 %v1476, %v1475
      %v1485 = vpack.c.bf16 %v1477, %v1477
      %v1486 = vld [vmem:[%s2 + $0x200] sm:$0xf]
      %v1487 = vld [vmem:[%s2 + $0x204] sm:$0xf]
      %v1488 = vld [vmem:[%s2 + $0x208] sm:$0xf]
      %v1489 = vld [vmem:[%s2 + $0x20c] sm:$0xf]
      %v1490 = vld [vmem:[%s2 + $0x210] sm:$0xf]
      %v1491 = vld [vmem:[%s2 + $0x214] sm:$0xf]
      %v1492 = vld [vmem:[%s2 + $0x218] sm:$0xf]
      %v1493 = vld [vmem:[%s2 + $0x21c] sm:$0xf]
      %v1494 = vld [vmem:[%s2 + $0x220] sm:$0xf]
      %v1495 = vld [vmem:[%s2 + $0x224] sm:$0xf]
      %v1496 = vld [vmem:[%s2 + $0x228] sm:$0xf]
      %v1497 = vld [vmem:[%s2 + $0x22c] sm:$0xf]
      %v1498 = vld [vmem:[%s2 + $0x230] sm:$0xf]
      %v1499 = vld [vmem:[%s2 + $0x234] sm:$0xf]
      %v1500 = vld [vmem:[%s2 + $0x238] sm:$0xf]
      %v1501 = vld [vmem:[%s2 + $0x23c] sm:$0xf]
      %v1518 = vunpack.c.l.b16 %v1486
      %v1519 = vunpack.c.l.b16 %v1487
      %v1520 = vunpack.c.l.b16 %v1488
      %v1521 = vunpack.c.l.b16 %v1489
      %v1522 = vunpack.c.l.b16 %v1490
      %v1523 = vunpack.c.l.b16 %v1491
      %v1524 = vunpack.c.l.b16 %v1492
      %v1525 = vunpack.c.l.b16 %v1493
      %v1526 = vunpack.c.l.b16 %v1494
      %v1527 = vunpack.c.l.b16 %v1495
      %v1528 = vunpack.c.l.b16 %v1496
      %v1529 = vunpack.c.l.b16 %v1497
      %v1530 = vunpack.c.l.b16 %v1498
      %v1531 = vunpack.c.l.b16 %v1499
      %v1532 = vunpack.c.l.b16 %v1500
      %v1533 = vunpack.c.l.b16 %v1501
      %v1534 = vpack.c.b16 %v1519, %v1518
      %v1535 = vpack.c.b16 %v1521, %v1520
      %v1536 = vpack.c.b16 %v1523, %v1522
      %v1537 = vpack.c.b16 %v1525, %v1524
      %v1538 = vpack.c.b16 %v1527, %v1526
      %v1539 = vpack.c.b16 %v1529, %v1528
      %v1540 = vpack.c.b16 %v1531, %v1530
      %v1541 = vpack.c.b16 %v1533, %v1532
      %1550 = vmatpush.bf16.msra.mxu0 %v1541
      %1551 = vmatpush.bf16.msra.mxu0 %v1540
      %1552 = vmatpush.bf16.msra.mxu0 %v1539
      %1553 = vmatpush.bf16.msra.mxu0 %v1538
      %1554 = vmatpush.bf16.msra.mxu0 %v1537
      %1555 = vmatpush.bf16.msra.mxu0 %v1536
      %1556 = vmatpush.bf16.msra.mxu0 %v1535
      %1557 = vmatpush.bf16.msra.mxu0 %v1534
      %1558 = vmatmul.bf16.gmra.mxu0 %v1478
      %v1559 = vpop.f32.mrf.mxu0
      %v1560 = vadd.f32 0.0, %v1559
      %v1561 = vpop.f32.mrf.mxu0
      %v1562 = vadd.f32 0.0, %v1561
      %1563 = vmatmul.bf16.gmra.mxu0 %v1479
      %v1564 = vpop.f32.mrf.mxu0
      %v1565 = vadd.f32 0.0, %v1564
      %v1566 = vpop.f32.mrf.mxu0
      %v1567 = vadd.f32 0.0, %v1566
      %1568 = vmatmul.bf16.gmra.mxu0 %v1480
      %v1569 = vpop.f32.mrf.mxu0
      %v1570 = vadd.f32 0.0, %v1569
      %v1571 = vpop.f32.mrf.mxu0
      %v1572 = vadd.f32 0.0, %v1571
      %1573 = vmatmul.bf16.gmra.mxu0 %v1481
      %v1574 = vpop.f32.mrf.mxu0
      %v1575 = vadd.f32 0.0, %v1574
      %v1576 = vpop.f32.mrf.mxu0
      %v1577 = vadd.f32 0.0, %v1576
      %1578 = vmatmul.bf16.gmra.mxu0 %v1482
      %v1579 = vpop.f32.mrf.mxu0
      %v1580 = vadd.f32 0.0, %v1579
      %v1581 = vpop.f32.mrf.mxu0
      %v1582 = vadd.f32 0.0, %v1581
      %1583 = vmatmul.bf16.gmra.mxu0 %v1483
      %v1584 = vpop.f32.mrf.mxu0
      %v1585 = vadd.f32 0.0, %v1584
      %v1586 = vpop.f32.mrf.mxu0
      %v1587 = vadd.f32 0.0, %v1586
      %1588 = vmatmul.bf16.gmra.mxu0 %v1484
      %v1589 = vpop.f32.mrf.mxu0
      %v1590 = vadd.f32 0.0, %v1589
      %v1591 = vpop.f32.mrf.mxu0
      %v1592 = vadd.f32 0.0, %v1591
      %1593 = vmatmul.bf16.gmra.mxu0 %v1485
      %v1594 = vpop.f32.mrf.mxu0
      %v1595 = vadd.f32 0.0, %v1594
      %v1596 = vpop.f32.mrf.mxu0
      %1597 = vdwg.mxu0
      %v1598 = vadd.f32 %v1448, %v1560
      %v1599 = vadd.f32 %v1449, %v1562
      %v1600 = vadd.f32 %v1450, %v1565
      %v1601 = vadd.f32 %v1451, %v1567
      %v1602 = vadd.f32 %v1452, %v1570
      %v1603 = vadd.f32 %v1453, %v1572
      %v1604 = vadd.f32 %v1454, %v1575
      %v1605 = vadd.f32 %v1455, %v1577
      %v1606 = vadd.f32 %v1456, %v1580
      %v1607 = vadd.f32 %v1457, %v1582
      %v1608 = vadd.f32 %v1458, %v1585
      %v1609 = vadd.f32 %v1459, %v1587
      %v1610 = vadd.f32 %v1460, %v1590
      %v1611 = vadd.f32 %v1461, %v1592
      %v1612 = vadd.f32 %v1462, %v1595
      %v1613 = vld [vmem:[%s3] sm:$0x1]
      %v1615 = vperm.slane %v1613, 0
      %v1617 = vadd.f32 %v1598, %v1615
      %v1618 = vadd.f32 %v1599, %v1615
      %v1619 = vadd.f32 %v1600, %v1615
      %v1620 = vadd.f32 %v1601, %v1615
      %v1621 = vadd.f32 %v1602, %v1615
      %v1622 = vadd.f32 %v1603, %v1615
      %v1623 = vadd.f32 %v1604, %v1615
      %v1624 = vadd.f32 %v1605, %v1615
      %v1625 = vadd.f32 %v1606, %v1615
      %v1626 = vadd.f32 %v1607, %v1615
      %v1627 = vadd.f32 %v1608, %v1615
      %v1628 = vadd.f32 %v1609, %v1615
      %v1629 = vadd.f32 %v1610, %v1615
      %v1630 = vadd.f32 %v1611, %v1615
      %v1631 = vadd.f32 %v1612, %v1615
      %v1632 = vmax.f32 %v1617, 0.0
      %v1633 = vmax.f32 %v1618, 0.0
      %v1634 = vmax.f32 %v1619, 0.0
      %v1635 = vmax.f32 %v1620, 0.0
      %v1636 = vmax.f32 %v1621, 0.0
      %v1637 = vmax.f32 %v1622, 0.0
      %v1638 = vmax.f32 %v1623, 0.0
      %v1639 = vmax.f32 %v1624, 0.0
      %v1640 = vmax.f32 %v1625, 0.0
      %v1641 = vmax.f32 %v1626, 0.0
      %v1642 = vmax.f32 %v1627, 0.0
      %v1643 = vmax.f32 %v1628, 0.0
      %v1644 = vmax.f32 %v1629, 0.0
      %v1645 = vmax.f32 %v1630, 0.0
      %v1646 = vmax.f32 %v1631, 0.0
      %1647 = vst [vmem:[%s255] sm:$0xff] %v1632
      %1648 = vst [vmem:[%s255 + $0x8] sm:$0xff] %v1633
      %1649 = vst [vmem:[%s255 + $0x10] sm:$0xff] %v1634
      %1650 = vst [vmem:[%s255 + $0x18] sm:$0xff] %v1635
      %1651 = vst [vmem:[%s255 + $0x20] sm:$0xff] %v1636
      %1652 = vst [vmem:[%s255 + $0x28] sm:$0xff] %v1637
      %1653 = vst [vmem:[%s255 + $0x30] sm:$0xff] %v1638
      %1654 = vst [vmem:[%s255 + $0x38] sm:$0xff] %v1639
      %1655 = vst [vmem:[%s255 + $0x40] sm:$0xff] %v1640
      %1656 = vst [vmem:[%s255 + $0x48] sm:$0xff] %v1641
      %1657 = vst [vmem:[%s255 + $0x50] sm:$0xff] %v1642
      %1658 = vst [vmem:[%s255 + $0x58] sm:$0xff] %v1643
      %1659 = vst [vmem:[%s255 + $0x60] sm:$0xff] %v1644
      %1660 = vst [vmem:[%s255 + $0x68] sm:$0xff] %v1645
      %1661 = vst [vmem:[%s255 + $0x70] sm:$0xff] %v1646
      %s1662 = smul.u32 15, %s15
      %p1663 = scmp.lt.s32.totalorder %s1662, 29
      %s1664 = scalar_select %p1663, %s1662, 29
      %s1665 = smul.addr %s1664, 8
      %s1666 = scalar_lea.vmem %s4, %s1665
      // Predicated region
      $region37: #{_lambda_.17} parent=35 // pred_check
        %p1667 = pneg %p131
      $region38: #{_lambda_.17} parent=35 // pred_check_branch
        %1669 = sbr.rel (%p1667) target = $region40
      $region39: #{_lambda_.17} parent=35 // pred_region
        %s1670 = smul.u32 15, %s15
      $region40: #{_lambda_.17} parent=35 // pred_fallthru
        _
    $region36: #{_lambda_.17} parent=5 // pred_fallthru
      _
    %p1671 = scmp.le.s32.totalorder 2, %s10
    // Predicated region
    $region41: #{_lambda_.17} parent=5 // pred_check
      %p1672 = pneg %p1671
    $region42: #{_lambda_.17} parent=5 // pred_check_branch
      %1674 = sbr.rel (%p1672) target = $region44
    $region43: #{_lambda_.17} parent=5 // pred_region
      %s1675 = ssub.s32 %s10, 2
      // Predicated region
      $region45: #{_lambda_.17} parent=43 // pred_check
        %p1676 = pneg %p137
      $region46: #{_lambda_.17} parent=43 // pred_check_branch
        %1678 = sbr.rel (%p1676) target = $region48
      $region47: #{_lambda_.17} parent=43 // pred_region
        %s1679 = smul.u32 15, %s16
        %p1680 = scmp.lt.s32.totalorder %s1679, 29
        %s1681 = scalar_select %p1680, %s1679, 29
        %s1682 = smul.addr %s1681, 8
        %s1683 = scalar_lea.vmem %s4, %s1682
      $region48: #{_lambda_.17} parent=43 // pred_fallthru
        _
    $region44: #{_lambda_.17} parent=5 // pred_fallthru
      _
  $region6: #{_lambda_.17} parent=0 // loop_footer
    %s14 = sadd.s32 1, %s10
  $region7: #{_lambda_.17} parent=0 // loop_footer_branch
    %9 = sbr.rel target = $region3
  $region8: #{_lambda_.17} parent=0 // loop_exit
    _

// kernel: _lambda_.18
$region0: #{_lambda_.18}
  #allocation0 [shape = 'u32[]', space=smem, size = 0x4, offset = 0x4, fixed_abs, tag = 'smem constant byte address 0x4 - core index']
  #allocation1 [shape = 'u32[72,128]{1,0:T(1,128)}', space=vmem, size = 0x9000, scoped, tag = 'internal scratch']
  #allocation2 [shape = 'f32[144,128]{1,0:T(8,128)}', space=vmem, size = 0x12000, scoped, tag = 'scratch operand']
  %s0 = inlined_call_operand.vmem [shape: f32[264,128], index: 0, kind: input, shape index: {}, may-alias: {0,1}]
  %s1 = inlined_call_operand.vmem [shape: f32[264,128], index: 1, kind: input, shape index: {}, may-alias: {0,1}]
  %s2 = inlined_call_operand.vmem [shape: bf16[1152,128], index: 2, kind: input, shape index: {}]
  %s3 = inlined_call_operand.vmem [shape: f32[1,128], index: 3, kind: input, shape index: {}]
  %s4 = inlined_call_operand.vmem [shape: f32[240,128], index: 4, kind: input, shape index: {}]
  %s5 = inlined_call_operand.vmem [shape: f32[240,128], index: 5, kind: output, shape index: {}]
  %s6 = sld [smem:[#allocation0]]
  $region53: #{_lambda_.18} parent=0
    _
  %s8 = ssub.s32 1, %s6
  %s9 = scalar_select 0, %s8, %s6
  loop: start=0, step=1, limit=4
  $region2: #{_lambda_.18} parent=0 // loop_pre_header
    _
  $region3: #{_lambda_.18} parent=0 // loop_header
    %s11 = sphi 0, %s15
    %p12 = scmp.ge.s32.totalorder %s11, 4
    %s21 = sphi 0, %s23
    %s24 = sphi 0, %s21
    %s25 = sphi 0, %s24
    %s41 = sphi 0, %s25
    %s51 = sphi 0, %s53
    %s54 = sphi 0, %s51
    %s55 = sphi 0, %s54
    %s71 = sphi 0, %s55
    %s75 = sphi 0, %s75
    %s77 = sphi 0, %s75
    %s78 = sphi 0, %s77
    %s92 = sphi 0, %s78
    %s96 = sphi 0, %s96
    %s98 = sphi 0, %s96
    %s99 = sphi 0, %s98
    %s113 = sphi 0, %s99
    %s119 = sphi 0, %s121
    %s122 = sphi 0, %s119
    %s123 = sphi 0, %s122
    %s139 = sphi 0, %s123
    %s145 = sphi 0, %s147
    %s148 = sphi 0, %s145
    %s149 = sphi 0, %s148
    %s165 = sphi 0, %s149
  $region4: #{_lambda_.18} parent=0 // loop_header_branch
    %14 = sbr.rel (%p12) target = $region8
  $region5: #{_lambda_.18} parent=0 // loop_body
    %s16 = ssub.s32 %s11, 1
    %s17 = ssub.s32 %s11, 2
    %s18 = sadd.s32 %s11, 1
    %s19 = ssub.s32 %s11, %s18
    %p20 = scmp.eq.s32.totalorder %s19, 0
    %s22 = sadd.s32 %s21, 1
    %s23 = scalar_select %p20, %s21, %s22
    %p26 = pneg %p20
    %p27 = scmp.eq.s32.totalorder %s11, 1
    %p28 = por %p26, %p27
    %p29 = scmp.ne.s32.totalorder %s21, %s24
    %p30 = scmp.eq.s32.totalorder %s11, 0
    %p31 = por %p29, %p30
    %p32 = scmp.ne.s32.totalorder %s21, %s24
    %p33 = scmp.eq.s32.totalorder %s16, 1
    %p34 = por %p32, %p33
    %p35 = scmp.ne.s32.totalorder %s24, %s25
    %p36 = scmp.eq.s32.totalorder %s16, 0
    %p37 = por %p35, %p36
    %p38 = scmp.ne.s32.totalorder %s24, %s25
    %p39 = scmp.eq.s32.totalorder %s17, 1
    %p40 = por %p38, %p39
    %p42 = scmp.ne.s32.totalorder %s25, %s41
    %p43 = scmp.eq.s32.totalorder %s17, 0
    %p44 = por %p42, %p43
    %s45 = sadd.s32 %s11, 1
    %s46 = smul.u32 %s45, 5
    %s47 = sadd.s32 %s18, 1
    %s48 = smul.u32 %s47, 5
    %s49 = ssub.s32 %s46, %s48
    %p50 = scmp.eq.s32.totalorder %s49, 0
    %s52 = sadd.s32 %s51, 1
    %s53 = scalar_select %p50, %s51, %s52
    %p56 = pneg %p50
    %p57 = scmp.eq.s32.totalorder %s11, 1
    %p58 = por %p56, %p57
    %p59 = scmp.ne.s32.totalorder %s51, %s54
    %p60 = scmp.eq.s32.totalorder %s11, 0
    %p61 = por %p59, %p60
    %p62 = scmp.ne.s32.totalorder %s51, %s54
    %p63 = scmp.eq.s32.totalorder %s16, 1
    %p64 = por %p62, %p63
    %p65 = scmp.ne.s32.totalorder %s54, %s55
    %p66 = scmp.eq.s32.totalorder %s16, 0
    %p67 = por %p65, %p66
    %p68 = scmp.ne.s32.totalorder %s54, %s55
    %p69 = scmp.eq.s32.totalorder %s17, 1
    %p70 = por %p68, %p69
    %p72 = scmp.ne.s32.totalorder %s55, %s71
    %p73 = scmp.eq.s32.totalorder %s17, 0
    %p74 = por %p72, %p73
    %s76 = sadd.s32 %s75, 1
    %p79 = scmp.eq.s32.totalorder %s11, 1
    %p80 = scmp.ne.s32.totalorder %s75, %s77
    %p81 = scmp.eq.s32.totalorder %s11, 0
    %p82 = por %p80, %p81
    %p83 = scmp.ne.s32.totalorder %s75, %s77
    %p84 = scmp.eq.s32.totalorder %s16, 1
    %p85 = por %p83, %p84
    %p86 = scmp.ne.s32.totalorder %s77, %s78
    %p87 = scmp.eq.s32.totalorder %s16, 0
    %p88 = por %p86, %p87
    %p89 = scmp.ne.s32.totalorder %s77, %s78
    %p90 = scmp.eq.s32.totalorder %s17, 1
    %p91 = por %p89, %p90
    %p93 = scmp.ne.s32.totalorder %s78, %s92
    %p94 = scmp.eq.s32.totalorder %s17, 0
    %p95 = por %p93, %p94
    %s97 = sadd.s32 %s96, 1
    %p100 = scmp.eq.s32.totalorder %s11, 1
    %p101 = scmp.ne.s32.totalorder %s96, %s98
    %p102 = scmp.eq.s32.totalorder %s11, 0
    %p103 = por %p101, %p102
    %p104 = scmp.ne.s32.totalorder %s96, %s98
    %p105 = scmp.eq.s32.totalorder %s16, 1
    %p106 = por %p104, %p105
    %p107 = scmp.ne.s32.totalorder %s98, %s99
    %p108 = scmp.eq.s32.totalorder %s16, 0
    %p109 = por %p107, %p108
    %p110 = scmp.ne.s32.totalorder %s98, %s99
    %p111 = scmp.eq.s32.totalorder %s17, 1
    %p112 = por %p110, %p111
    %p114 = scmp.ne.s32.totalorder %s99, %s113
    %p115 = scmp.eq.s32.totalorder %s17, 0
    %p116 = por %p114, %p115
    %s117 = ssub.s32 %s11, %s18
    %p118 = scmp.eq.s32.totalorder %s117, 0
    %s120 = sadd.s32 %s119, 1
    %s121 = scalar_select %p118, %s119, %s120
    %p124 = pneg %p118
    %p125 = scmp.eq.s32.totalorder %s11, 1
    %p126 = por %p124, %p125
    %p127 = scmp.ne.s32.totalorder %s119, %s122
    %p128 = scmp.eq.s32.totalorder %s11, 0
    %p129 = por %p127, %p128
    %p130 = scmp.ne.s32.totalorder %s119, %s122
    %p131 = scmp.eq.s32.totalorder %s16, 1
    %p132 = por %p130, %p131
    %p133 = scmp.ne.s32.totalorder %s122, %s123
    %p134 = scmp.eq.s32.totalorder %s16, 0
    %p135 = por %p133, %p134
    %p136 = scmp.ne.s32.totalorder %s122, %s123
    %p137 = scmp.eq.s32.totalorder %s17, 1
    %p138 = por %p136, %p137
    %p140 = scmp.ne.s32.totalorder %s123, %s139
    %p141 = scmp.eq.s32.totalorder %s17, 0
    %p142 = por %p140, %p141
    %s143 = ssub.s32 %s11, %s18
    %p144 = scmp.eq.s32.totalorder %s143, 0
    %s146 = sadd.s32 %s145, 1
    %s147 = scalar_select %p144, %s145, %s146
    %p150 = pneg %p144
    %p151 = scmp.eq.s32.totalorder %s11, 1
    %p152 = por %p150, %p151
    %p153 = scmp.ne.s32.totalorder %s145, %s148
    %p154 = scmp.eq.s32.totalorder %s11, 0
    %p155 = por %p153, %p154
    %p156 = scmp.ne.s32.totalorder %s145, %s148
    %p157 = scmp.eq.s32.totalorder %s16, 1
    %p158 = por %p156, %p157
    %p159 = scmp.ne.s32.totalorder %s148, %s149
    %p160 = scmp.eq.s32.totalorder %s16, 0
    %p161 = por %p159, %p160
    %p162 = scmp.ne.s32.totalorder %s148, %s149
    %p163 = scmp.eq.s32.totalorder %s17, 1
    %p164 = por %p162, %p163
    %p166 = scmp.ne.s32.totalorder %s149, %s165
    %p167 = scmp.eq.s32.totalorder %s17, 0
    %p168 = por %p166, %p167
    %p169 = scmp.le.s32.totalorder 1, %s11
    %p170 = scmp.lt.s32.totalorder %s11, 3
    %p171 = pnand %p169, %p170
    %p172 = pneg %p171
    // Predicated region
    $region9: #{_lambda_.18} parent=5 // pred_check
      _
    $region10: #{_lambda_.18} parent=5 // pred_check_branch
      %174 = sbr.rel (%p171) target = $region12
    $region11: #{_lambda_.18} parent=5 // pred_region
      %s175 = ssub.s32 %s11, 1
      // Predicated region
      $region13: #{_lambda_.18} parent=11 // pred_check
        %p176 = pneg %p88
      $region14: #{_lambda_.18} parent=11 // pred_check_branch
        %178 = sbr.rel (%p176) target = $region16
      $region15: #{_lambda_.18} parent=11 // pred_region
        _
      $region16: #{_lambda_.18} parent=11 // pred_fallthru
        _
      // Predicated region
      $region17: #{_lambda_.18} parent=11 // pred_check
        %p179 = pneg %p109
      $region18: #{_lambda_.18} parent=11 // pred_check_branch
        %181 = sbr.rel (%p179) target = $region20
      $region19: #{_lambda_.18} parent=11 // pred_region
        _
      $region20: #{_lambda_.18} parent=11 // pred_fallthru
        _
    $region12: #{_lambda_.18} parent=5 // pred_fallthru
      _
    %p182 = scmp.lt.s32.totalorder %s11, 2
    // Predicated region
    $region21: #{_lambda_.18} parent=5 // pred_check
      %p183 = pneg %p182
    $region22: #{_lambda_.18} parent=5 // pred_check_branch
      %185 = sbr.rel (%p183) target = $region24
    $region23: #{_lambda_.18} parent=5 // pred_region
      // Predicated region
      $region25: #{_lambda_.18} parent=23 // pred_check
        %p186 = pneg %p31
      $region26: #{_lambda_.18} parent=23 // pred_check_branch
        %188 = sbr.rel (%p186) target = $region28
      $region27: #{_lambda_.18} parent=23 // pred_region
        %s189 = smul.u32 15, %s11
        %s190 = ssub.s32 33, %s189
        %p191 = scmp.lt.s32.totalorder %s190, 15
        %s192 = scalar_select %p191, %s190, 15
        %s193 = smul.u32 8, %s192
        %p194 = scmp.lt.s32.totalorder %s189, 32
        %s195 = scalar_select %p194, %s189, 32
        %s196 = smul.addr %s195, 8
        %s197 = scalar_lea.vmem %s0, %s196
        %s198 = smul.u32 15, %s11
        %s199 = ssub.s32 33, %s198
        %p200 = scmp.lt.s32.totalorder %s199, 15
        %s201 = scalar_select %p200, %s199, 15
        %s202 = smul.u32 8, %s201
      $region28: #{_lambda_.18} parent=23 // pred_fallthru
        _
      // Predicated region
      $region29: #{_lambda_.18} parent=23 // pred_check
        %p203 = pneg %p61
      $region30: #{_lambda_.18} parent=23 // pred_check_branch
        %205 = sbr.rel (%p203) target = $region32
      $region31: #{_lambda_.18} parent=23 // pred_region
        %s206 = sadd.s32 %s11, 1
        %s207 = smul.u32 %s206, 5
        %s208 = smul.u32 3, %s207
        %p209 = scmp.lt.s32.totalorder %s208, 32
        %s210 = scalar_select %p209, %s208, 32
        %s211 = smul.addr %s210, 8
        %s212 = scalar_lea.vmem %s1, %s211
        %s213 = sadd.s32 %s11, 1
        %s214 = smul.u32 %s213, 5
        %s215 = smul.u32 3, %s214
      $region32: #{_lambda_.18} parent=23 // pred_fallthru
        _
      // Predicated region
      $region33: #{_lambda_.18} parent=23 // pred_check
        %p216 = pneg %p129
      $region34: #{_lambda_.18} parent=23 // pred_check_branch
        %218 = sbr.rel (%p216) target = $region36
      $region35: #{_lambda_.18} parent=23 // pred_region
        %s219 = smul.u32 15, %s11
        %p220 = scmp.lt.s32.totalorder %s219, 29
        %s221 = scalar_select %p220, %s219, 29
        %s222 = smul.addr %s221, 8
        %s223 = scalar_lea.vmem %s4, %s222
        %s224 = smul.u32 15, %s11
      $region36: #{_lambda_.18} parent=23 // pred_fallthru
        _
    $region24: #{_lambda_.18} parent=5 // pred_fallthru
      _
    %p225 = scmp.le.s32.totalorder 1, %s11
    %p226 = scmp.lt.s32.totalorder %s11, 3
    %p227 = pnand %p225, %p226
    %p228 = pneg %p227
    // Predicated region
    $region37: #{_lambda_.18} parent=5 // pred_check
      _
    $region38: #{_lambda_.18} parent=5 // pred_check_branch
      %230 = sbr.rel (%p227) target = $region40
    $region39: #{_lambda_.18} parent=5 // pred_region
      %s231 = ssub.s32 %s11, 1
      %s232 = smul.u32 15, %s16
      %s233 = ssub.s32 33, %s232
      %p234 = scmp.lt.s32.totalorder %s233, 15
      %s235 = scalar_select %p234, %s233, 15
      %s236 = smul.u32 8, %s235
      %p237 = scmp.lt.s32.totalorder %s232, 32
      %s238 = scalar_select %p237, %s232, 32
      %s239 = smul.addr %s238, 8
      %s240 = scalar_lea.vmem %s0, %s239
      %p241 = pneg %p37
      %p242 = pneg %p34
      %s243 = sadd.s32 %s16, 1
      %s244 = smul.u32 %s243, 5
      %s245 = smul.u32 3, %s244
      %p246 = scmp.lt.s32.totalorder %s245, 32
      %s247 = scalar_select %p246, %s245, 32
      %s248 = smul.addr %s247, 8
      %s249 = scalar_lea.vmem %s1, %s248
      %p250 = pneg %p67
      %p251 = pneg %p64
      %p252 = pneg %p88
      %p253 = pneg %p85
      %p254 = pneg %p109
      %p255 = pneg %p106
      %s256 = smul.u32 15, %s16
      %p257 = scmp.lt.s32.totalorder %s256, 29
      %s258 = scalar_select %p257, %s256, 29
      %s259 = smul.addr %s258, 8
      %s260 = scalar_lea.vmem %s4, %s259
      %p261 = pneg %p135
      %p262 = pneg %p132
      %p263 = pneg %p161
      %p264 = pneg %p158
      %s265 = smul.u32 15, %s16
      %p266 = scmp.lt.s32.totalorder %s265, 29
      %s267 = scalar_select %p266, %s265, 29
      %s268 = smul.addr %s267, 8
      %s269 = scalar_lea.vmem %s5, %s268
      %s270 = smul.u32 15, %s16
      %s271 = ssub.s32 33, %s270
      %p272 = scmp.lt.s32.totalorder %s271, 15
      %s273 = scalar_select %p272, %s271, 15
      %s274 = smul.u32 8, %s273
      %p275 = scmp.lt.s32.totalorder %s270, 32
      %s276 = scalar_select %p275, %s270, 32
      %s277 = smul.addr %s276, 8
      %s278 = scalar_lea.vmem %s0, %s277
      %s279 = smul.u32 15, %s16
      %s280 = ssub.s32 33, %s279
      %p281 = scmp.lt.s32.totalorder %s280, 15
      %s282 = scalar_select %p281, %s280, 15
      %s283 = smul.u32 8, %s282
      %s284 = sadd.s32 %s16, 1
      %s285 = smul.u32 %s284, 5
      %s286 = smul.u32 3, %s285
      %p287 = scmp.lt.s32.totalorder %s286, 32
      %s288 = scalar_select %p287, %s286, 32
      %s289 = smul.addr %s288, 8
      %s290 = scalar_lea.vmem %s1, %s289
      %s291 = sadd.s32 %s16, 1
      %s292 = smul.u32 %s291, 5
      %s293 = smul.u32 3, %s292
      %s294 = smul.u32 15, %s16
      %p295 = scmp.lt.s32.totalorder %s294, 29
      %s296 = scalar_select %p295, %s294, 29
      %s297 = smul.addr %s296, 8
      %s298 = scalar_lea.vmem %s4, %s297
      %s299 = smul.u32 15, %s16
      %s300 = smul.u32 15, %s16
      %p301 = scmp.lt.s32.totalorder %s300, 29
      %s302 = scalar_select %p301, %s300, 29
      %s303 = smul.addr %s302, 8
      %s304 = scalar_lea.vmem %s5, %s303
      %s305 = smul.u32 15, %s16
      %v306 = vld [vmem:[%s278] sm:$0xff]
      %v307 = vld [vmem:[%s278 + $0x8] sm:$0xff]
      %v308 = vld [vmem:[%s278 + $0x10] sm:$0xff]
      %v309 = vld [vmem:[%s278 + $0x18] sm:$0xff]
      %v310 = vld [vmem:[%s278 + $0x20] sm:$0xff]
      %v311 = vld [vmem:[%s278 + $0x28] sm:$0xff]
      %v312 = vld [vmem:[%s278 + $0x30] sm:$0xff]
      %v313 = vld [vmem:[%s278 + $0x38] sm:$0xff]
      %v314 = vld [vmem:[%s278 + $0x40] sm:$0xff]
      %v315 = vld [vmem:[%s278 + $0x48] sm:$0xff]
      %v316 = vld [vmem:[%s278 + $0x50] sm:$0xff]
      %v317 = vld [vmem:[%s278 + $0x58] sm:$0xff]
      %v318 = vld [vmem:[%s278 + $0x60] sm:$0xff]
      %v319 = vld [vmem:[%s278 + $0x68] sm:$0xff]
      %v320 = vld [vmem:[%s278 + $0x70] sm:$0xff]
      %321 = vst [vmem:[#allocation2] sm:$0xff] %v306
      %322 = vst [vmem:[#allocation2 + $0x8] sm:$0xff] %v307
      %323 = vst [vmem:[#allocation2 + $0x10] sm:$0xff] %v308
      %324 = vst [vmem:[#allocation2 + $0x18] sm:$0xff] %v309
      %325 = vst [vmem:[#allocation2 + $0x20] sm:$0xff] %v310
      %326 = vst [vmem:[#allocation2 + $0x28] sm:$0xff] %v311
      %327 = vst [vmem:[#allocation2 + $0x30] sm:$0xff] %v312
      %328 = vst [vmem:[#allocation2 + $0x38] sm:$0xff] %v313
      %329 = vst [vmem:[#allocation2 + $0x40] sm:$0xff] %v314
      %330 = vst [vmem:[#allocation2 + $0x48] sm:$0xff] %v315
      %331 = vst [vmem:[#allocation2 + $0x50] sm:$0xff] %v316
      %332 = vst [vmem:[#allocation2 + $0x58] sm:$0xff] %v317
      %333 = vst [vmem:[#allocation2 + $0x60] sm:$0xff] %v318
      %334 = vst [vmem:[#allocation2 + $0x68] sm:$0xff] %v319
      %335 = vst [vmem:[#allocation2 + $0x70] sm:$0xff] %v320
      %v336 = vld [vmem:[%s290] sm:$0xff]
      %v337 = vld [vmem:[%s290 + $0x8] sm:$0xff]
      %v338 = vld [vmem:[%s290 + $0x10] sm:$0xff]
      %339 = vst [vmem:[#allocation2 + $0x78] sm:$0xff] %v336
      %340 = vst [vmem:[#allocation2 + $0x80] sm:$0xff] %v337
      %341 = vst [vmem:[#allocation2 + $0x88] sm:$0xff] %v338
      %v342 = vld [vmem:[#allocation2] sm:$0xff]
      %v343 = vld [vmem:[#allocation2 + $0x8] sm:$0xff]
      %v344 = vld [vmem:[#allocation2 + $0x10] sm:$0xff]
      %v345 = vld [vmem:[#allocation2 + $0x18] sm:$0xff]
      %v346 = vld [vmem:[#allocation2 + $0x20] sm:$0xff]
      %v347 = vld [vmem:[#allocation2 + $0x28] sm:$0xff]
      %v348 = vld [vmem:[#allocation2 + $0x30] sm:$0xff]
      %v349 = vld [vmem:[#allocation2 + $0x38] sm:$0xff]
      %v350 = vld [vmem:[#allocation2 + $0x40] sm:$0xff]
      %v351 = vld [vmem:[#allocation2 + $0x48] sm:$0xff]
      %v352 = vld [vmem:[#allocation2 + $0x50] sm:$0xff]
      %v353 = vld [vmem:[#allocation2 + $0x58] sm:$0xff]
      %v354 = vld [vmem:[#allocation2 + $0x60] sm:$0xff]
      %v355 = vld [vmem:[#allocation2 + $0x68] sm:$0xff]
      %v356 = vld [vmem:[#allocation2 + $0x70] sm:$0xff]
      %v357 = vpack.c.bf16 %v343, %v342
      %v358 = vpack.c.bf16 %v345, %v344
      %v359 = vpack.c.bf16 %v347, %v346
      %v360 = vpack.c.bf16 %v349, %v348
      %v361 = vpack.c.bf16 %v351, %v350
      %v362 = vpack.c.bf16 %v353, %v352
      %v363 = vpack.c.bf16 %v355, %v354
      %v364 = vpack.c.bf16 %v356, %v356
      %v365 = vld [vmem:[%s2] sm:$0xf]
      %v366 = vld [vmem:[%s2 + $0x4] sm:$0xf]
      %v367 = vld [vmem:[%s2 + $0x8] sm:$0xf]
      %v368 = vld [vmem:[%s2 + $0xc] sm:$0xf]
      %v369 = vld [vmem:[%s2 + $0x10] sm:$0xf]
      %v370 = vld [vmem:[%s2 + $0x14] sm:$0xf]
      %v371 = vld [vmem:[%s2 + $0x18] sm:$0xf]
      %v372 = vld [vmem:[%s2 + $0x1c] sm:$0xf]
      %v373 = vld [vmem:[%s2 + $0x20] sm:$0xf]
      %v374 = vld [vmem:[%s2 + $0x24] sm:$0xf]
      %v375 = vld [vmem:[%s2 + $0x28] sm:$0xf]
      %v376 = vld [vmem:[%s2 + $0x2c] sm:$0xf]
      %v377 = vld [vmem:[%s2 + $0x30] sm:$0xf]
      %v378 = vld [vmem:[%s2 + $0x34] sm:$0xf]
      %v379 = vld [vmem:[%s2 + $0x38] sm:$0xf]
      %v380 = vld [vmem:[%s2 + $0x3c] sm:$0xf]
      %v381 = vld [vmem:[#allocation2 + $0x1] sm:$0xff]
      %v382 = vld [vmem:[#allocation2 + $0x9] sm:$0xff]
      %v383 = vld [vmem:[#allocation2 + $0x11] sm:$0xff]
      %v384 = vld [vmem:[#allocation2 + $0x19] sm:$0xff]
      %v385 = vld [vmem:[#allocation2 + $0x21] sm:$0xff]
      %v386 = vld [vmem:[#allocation2 + $0x29] sm:$0xff]
      %v387 = vld [vmem:[#allocation2 + $0x31] sm:$0xff]
      %v388 = vld [vmem:[#allocation2 + $0x39] sm:$0xff]
      %v389 = vld [vmem:[#allocation2 + $0x41] sm:$0xff]
      %v390 = vld [vmem:[#allocation2 + $0x49] sm:$0xff]
      %v391 = vld [vmem:[#allocation2 + $0x51] sm:$0xff]
      %v392 = vld [vmem:[#allocation2 + $0x59] sm:$0xff]
      %v393 = vld [vmem:[#allocation2 + $0x61] sm:$0xff]
      %v394 = vld [vmem:[#allocation2 + $0x69] sm:$0xff]
      %v395 = vld [vmem:[#allocation2 + $0x71] sm:$0xff]
      %v396 = vpack.c.bf16 %v382, %v381
      %v397 = vpack.c.bf16 %v384, %v383
      %v398 = vpack.c.bf16 %v386, %v385
      %v399 = vpack.c.bf16 %v388, %v387
      %v400 = vpack.c.bf16 %v390, %v389
      %v401 = vpack.c.bf16 %v392, %v391
      %v402 = vpack.c.bf16 %v394, %v393
      %v403 = vpack.c.bf16 %v395, %v395
      %v404 = vld [vmem:[%s2 + $0x40] sm:$0xf]
      %v405 = vld [vmem:[%s2 + $0x44] sm:$0xf]
      %v406 = vld [vmem:[%s2 + $0x48] sm:$0xf]
      %v407 = vld [vmem:[%s2 + $0x4c] sm:$0xf]
      %v408 = vld [vmem:[%s2 + $0x50] sm:$0xf]
      %v409 = vld [vmem:[%s2 + $0x54] sm:$0xf]
      %v410 = vld [vmem:[%s2 + $0x58] sm:$0xf]
      %v411 = vld [vmem:[%s2 + $0x5c] sm:$0xf]
      %v412 = vld [vmem:[%s2 + $0x60] sm:$0xf]
      %v413 = vld [vmem:[%s2 + $0x64] sm:$0xf]
      %v414 = vld [vmem:[%s2 + $0x68] sm:$0xf]
      %v415 = vld [vmem:[%s2 + $0x6c] sm:$0xf]
      %v416 = vld [vmem:[%s2 + $0x70] sm:$0xf]
      %v417 = vld [vmem:[%s2 + $0x74] sm:$0xf]
      %v418 = vld [vmem:[%s2 + $0x78] sm:$0xf]
      %v419 = vld [vmem:[%s2 + $0x7c] sm:$0xf]
      %v436 = vunpack.c.l.b16 %v404
      %v437 = vunpack.c.l.b16 %v405
      %v438 = vunpack.c.l.b16 %v406
      %v439 = vunpack.c.l.b16 %v407
      %v440 = vunpack.c.l.b16 %v408
      %v441 = vunpack.c.l.b16 %v409
      %v442 = vunpack.c.l.b16 %v410
      %v443 = vunpack.c.l.b16 %v411
      %v444 = vunpack.c.l.b16 %v412
      %v445 = vunpack.c.l.b16 %v413
      %v446 = vunpack.c.l.b16 %v414
      %v447 = vunpack.c.l.b16 %v415
      %v448 = vunpack.c.l.b16 %v416
      %v449 = vunpack.c.l.b16 %v417
      %v450 = vunpack.c.l.b16 %v418
      %v451 = vunpack.c.l.b16 %v419
      %v452 = vpack.c.b16 %v437, %v436
      %v453 = vpack.c.b16 %v439, %v438
      %v454 = vpack.c.b16 %v441, %v440
      %v455 = vpack.c.b16 %v443, %v442
      %v456 = vpack.c.b16 %v445, %v444
      %v457 = vpack.c.b16 %v447, %v446
      %v458 = vpack.c.b16 %v449, %v448
      %v459 = vpack.c.b16 %v451, %v450
      %468 = vmatpush.bf16.msra.mxu0 %v459
      %469 = vmatpush.bf16.msra.mxu0 %v458
      %470 = vmatpush.bf16.msra.mxu0 %v457
      %471 = vmatpush.bf16.msra.mxu0 %v456
      %472 = vmatpush.bf16.msra.mxu0 %v455
      %473 = vmatpush.bf16.msra.mxu0 %v454
      %474 = vmatpush.bf16.msra.mxu0 %v453
      %475 = vmatpush.bf16.msra.mxu0 %v452
      %476 = vmatmul.bf16.gmra.mxu0 %v396
      %v477 = vpop.f32.mrf.mxu0
      %v478 = vadd.f32 0.0, %v477
      %v479 = vpop.f32.mrf.mxu0
      %v480 = vadd.f32 0.0, %v479
      %481 = vmatmul.bf16.gmra.mxu0 %v397
      %v482 = vpop.f32.mrf.mxu0
      %v483 = vadd.f32 0.0, %v482
      %v484 = vpop.f32.mrf.mxu0
      %v485 = vadd.f32 0.0, %v484
      %486 = vmatmul.bf16.gmra.mxu0 %v398
      %v487 = vpop.f32.mrf.mxu0
      %v488 = vadd.f32 0.0, %v487
      %v489 = vpop.f32.mrf.mxu0
      %v490 = vadd.f32 0.0, %v489
      %491 = vmatmul.bf16.gmra.mxu0 %v399
      %v492 = vpop.f32.mrf.mxu0
      %v493 = vadd.f32 0.0, %v492
      %v494 = vpop.f32.mrf.mxu0
      %v495 = vadd.f32 0.0, %v494
      %496 = vmatmul.bf16.gmra.mxu0 %v400
      %v497 = vpop.f32.mrf.mxu0
      %v498 = vadd.f32 0.0, %v497
      %v499 = vpop.f32.mrf.mxu0
      %v500 = vadd.f32 0.0, %v499
      %501 = vmatmul.bf16.gmra.mxu0 %v401
      %v502 = vpop.f32.mrf.mxu0
      %v503 = vadd.f32 0.0, %v502
      %v504 = vpop.f32.mrf.mxu0
      %v505 = vadd.f32 0.0, %v504
      %506 = vmatmul.bf16.gmra.mxu0 %v402
      %v507 = vpop.f32.mrf.mxu0
      %v508 = vadd.f32 0.0, %v507
      %v509 = vpop.f32.mrf.mxu0
      %v510 = vadd.f32 0.0, %v509
      %511 = vmatmul.bf16.gmra.mxu0 %v403
      %v512 = vpop.f32.mrf.mxu0
      %v513 = vadd.f32 0.0, %v512
      %v514 = vpop.f32.mrf.mxu0
      %515 = vdwg.mxu0
      %v532 = vunpack.c.l.b16 %v365
      %v533 = vunpack.c.l.b16 %v366
      %v534 = vunpack.c.l.b16 %v367
      %v535 = vunpack.c.l.b16 %v368
      %v536 = vunpack.c.l.b16 %v369
      %v537 = vunpack.c.l.b16 %v370
      %v538 = vunpack.c.l.b16 %v371
      %v539 = vunpack.c.l.b16 %v372
      %v540 = vunpack.c.l.b16 %v373
      %v541 = vunpack.c.l.b16 %v374
      %v542 = vunpack.c.l.b16 %v375
      %v543 = vunpack.c.l.b16 %v376
      %v544 = vunpack.c.l.b16 %v377
      %v545 = vunpack.c.l.b16 %v378
      %v546 = vunpack.c.l.b16 %v379
      %v547 = vunpack.c.l.b16 %v380
      %v548 = vpack.c.b16 %v533, %v532
      %v549 = vpack.c.b16 %v535, %v534
      %v550 = vpack.c.b16 %v537, %v536
      %v551 = vpack.c.b16 %v539, %v538
      %v552 = vpack.c.b16 %v541, %v540
      %v553 = vpack.c.b16 %v543, %v542
      %v554 = vpack.c.b16 %v545, %v544
      %v555 = vpack.c.b16 %v547, %v546
      %564 = vmatpush.bf16.msra.mxu0 %v555
      %565 = vmatpush.bf16.msra.mxu0 %v554
      %566 = vmatpush.bf16.msra.mxu0 %v553
      %567 = vmatpush.bf16.msra.mxu0 %v552
      %568 = vmatpush.bf16.msra.mxu0 %v551
      %569 = vmatpush.bf16.msra.mxu0 %v550
      %570 = vmatpush.bf16.msra.mxu0 %v549
      %571 = vmatpush.bf16.msra.mxu0 %v548
      %572 = vmatmul.bf16.gmra.mxu0 %v357
      %v573 = vpop.f32.mrf.mxu0
      %v574 = vadd.f32 %v478, %v573
      %v575 = vpop.f32.mrf.mxu0
      %v576 = vadd.f32 %v480, %v575
      %577 = vmatmul.bf16.gmra.mxu0 %v358
      %v578 = vpop.f32.mrf.mxu0
      %v579 = vadd.f32 %v483, %v578
      %v580 = vpop.f32.mrf.mxu0
      %v581 = vadd.f32 %v485, %v580
      %582 = vmatmul.bf16.gmra.mxu0 %v359
      %v583 = vpop.f32.mrf.mxu0
      %v584 = vadd.f32 %v488, %v583
      %v585 = vpop.f32.mrf.mxu0
      %v586 = vadd.f32 %v490, %v585
      %587 = vmatmul.bf16.gmra.mxu0 %v360
      %v588 = vpop.f32.mrf.mxu0
      %v589 = vadd.f32 %v493, %v588
      %v590 = vpop.f32.mrf.mxu0
      %v591 = vadd.f32 %v495, %v590
      %592 = vmatmul.bf16.gmra.mxu0 %v361
      %v593 = vpop.f32.mrf.mxu0
      %v594 = vadd.f32 %v498, %v593
      %v595 = vpop.f32.mrf.mxu0
      %v596 = vadd.f32 %v500, %v595
      %597 = vmatmul.bf16.gmra.mxu0 %v362
      %v598 = vpop.f32.mrf.mxu0
      %v599 = vadd.f32 %v503, %v598
      %v600 = vpop.f32.mrf.mxu0
      %v601 = vadd.f32 %v505, %v600
      %602 = vmatmul.bf16.gmra.mxu0 %v363
      %v603 = vpop.f32.mrf.mxu0
      %v604 = vadd.f32 %v508, %v603
      %v605 = vpop.f32.mrf.mxu0
      %v606 = vadd.f32 %v510, %v605
      %607 = vmatmul.bf16.gmra.mxu0 %v364
      %v608 = vpop.f32.mrf.mxu0
      %v609 = vadd.f32 %v513, %v608
      %v610 = vpop.f32.mrf.mxu0
      %611 = vdwg.mxu0
      %v612 = vld [vmem:[#allocation2 + $0x2] sm:$0xff]
      %v613 = vld [vmem:[#allocation2 + $0xa] sm:$0xff]
      %v614 = vld [vmem:[#allocation2 + $0x12] sm:$0xff]
      %v615 = vld [vmem:[#allocation2 + $0x1a] sm:$0xff]
      %v616 = vld [vmem:[#allocation2 + $0x22] sm:$0xff]
      %v617 = vld [vmem:[#allocation2 + $0x2a] sm:$0xff]
      %v618 = vld [vmem:[#allocation2 + $0x32] sm:$0xff]
      %v619 = vld [vmem:[#allocation2 + $0x3a] sm:$0xff]
      %v620 = vld [vmem:[#allocation2 + $0x42] sm:$0xff]
      %v621 = vld [vmem:[#allocation2 + $0x4a] sm:$0xff]
      %v622 = vld [vmem:[#allocation2 + $0x52] sm:$0xff]
      %v623 = vld [vmem:[#allocation2 + $0x5a] sm:$0xff]
      %v624 = vld [vmem:[#allocation2 + $0x62] sm:$0xff]
      %v625 = vld [vmem:[#allocation2 + $0x6a] sm:$0xff]
      %v626 = vld [vmem:[#allocation2 + $0x72] sm:$0xff]
      %v627 = vpack.c.bf16 %v613, %v612
      %v628 = vpack.c.bf16 %v615, %v614
      %v629 = vpack.c.bf16 %v617, %v616
      %v630 = vpack.c.bf16 %v619, %v618
      %v631 = vpack.c.bf16 %v621, %v620
      %v632 = vpack.c.bf16 %v623, %v622
      %v633 = vpack.c.bf16 %v625, %v624
      %v634 = vpack.c.bf16 %v626, %v626
      %v635 = vld [vmem:[%s2 + $0x80] sm:$0xf]
      %v636 = vld [vmem:[%s2 + $0x84] sm:$0xf]
      %v637 = vld [vmem:[%s2 + $0x88] sm:$0xf]
      %v638 = vld [vmem:[%s2 + $0x8c] sm:$0xf]
      %v639 = vld [vmem:[%s2 + $0x90] sm:$0xf]
      %v640 = vld [vmem:[%s2 + $0x94] sm:$0xf]
      %v641 = vld [vmem:[%s2 + $0x98] sm:$0xf]
      %v642 = vld [vmem:[%s2 + $0x9c] sm:$0xf]
      %v643 = vld [vmem:[%s2 + $0xa0] sm:$0xf]
      %v644 = vld [vmem:[%s2 + $0xa4] sm:$0xf]
      %v645 = vld [vmem:[%s2 + $0xa8] sm:$0xf]
      %v646 = vld [vmem:[%s2 + $0xac] sm:$0xf]
      %v647 = vld [vmem:[%s2 + $0xb0] sm:$0xf]
      %v648 = vld [vmem:[%s2 + $0xb4] sm:$0xf]
      %v649 = vld [vmem:[%s2 + $0xb8] sm:$0xf]
      %v650 = vld [vmem:[%s2 + $0xbc] sm:$0xf]
      %v667 = vunpack.c.l.b16 %v635
      %v668 = vunpack.c.l.b16 %v636
      %v669 = vunpack.c.l.b16 %v637
      %v670 = vunpack.c.l.b16 %v638
      %v671 = vunpack.c.l.b16 %v639
      %v672 = vunpack.c.l.b16 %v640
      %v673 = vunpack.c.l.b16 %v641
      %v674 = vunpack.c.l.b16 %v642
      %v675 = vunpack.c.l.b16 %v643
      %v676 = vunpack.c.l.b16 %v644
      %v677 = vunpack.c.l.b16 %v645
      %v678 = vunpack.c.l.b16 %v646
      %v679 = vunpack.c.l.b16 %v647
      %v680 = vunpack.c.l.b16 %v648
      %v681 = vunpack.c.l.b16 %v649
      %v682 = vunpack.c.l.b16 %v650
      %v683 = vpack.c.b16 %v668, %v667
      %v684 = vpack.c.b16 %v670, %v669
      %v685 = vpack.c.b16 %v672, %v671
      %v686 = vpack.c.b16 %v674, %v673
      %v687 = vpack.c.b16 %v676, %v675
      %v688 = vpack.c.b16 %v678, %v677
      %v689 = vpack.c.b16 %v680, %v679
      %v690 = vpack.c.b16 %v682, %v681
      %699 = vmatpush.bf16.msra.mxu0 %v690
      %700 = vmatpush.bf16.msra.mxu0 %v689
      %701 = vmatpush.bf16.msra.mxu0 %v688
      %702 = vmatpush.bf16.msra.mxu0 %v687
      %703 = vmatpush.bf16.msra.mxu0 %v686
      %704 = vmatpush.bf16.msra.mxu0 %v685
      %705 = vmatpush.bf16.msra.mxu0 %v684
      %706 = vmatpush.bf16.msra.mxu0 %v683
      %707 = vmatmul.bf16.gmra.mxu0 %v627
      %v708 = vpop.f32.mrf.mxu0
      %v709 = vadd.f32 0.0, %v708
      %v710 = vpop.f32.mrf.mxu0
      %v711 = vadd.f32 0.0, %v710
      %712 = vmatmul.bf16.gmra.mxu0 %v628
      %v713 = vpop.f32.mrf.mxu0
      %v714 = vadd.f32 0.0, %v713
      %v715 = vpop.f32.mrf.mxu0
      %v716 = vadd.f32 0.0, %v715
      %717 = vmatmul.bf16.gmra.mxu0 %v629
      %v718 = vpop.f32.mrf.mxu0
      %v719 = vadd.f32 0.0, %v718
      %v720 = vpop.f32.mrf.mxu0
      %v721 = vadd.f32 0.0, %v720
      %722 = vmatmul.bf16.gmra.mxu0 %v630
      %v723 = vpop.f32.mrf.mxu0
      %v724 = vadd.f32 0.0, %v723
      %v725 = vpop.f32.mrf.mxu0
      %v726 = vadd.f32 0.0, %v725
      %727 = vmatmul.bf16.gmra.mxu0 %v631
      %v728 = vpop.f32.mrf.mxu0
      %v729 = vadd.f32 0.0, %v728
      %v730 = vpop.f32.mrf.mxu0
      %v731 = vadd.f32 0.0, %v730
      %732 = vmatmul.bf16.gmra.mxu0 %v632
      %v733 = vpop.f32.mrf.mxu0
      %v734 = vadd.f32 0.0, %v733
      %v735 = vpop.f32.mrf.mxu0
      %v736 = vadd.f32 0.0, %v735
      %737 = vmatmul.bf16.gmra.mxu0 %v633
      %v738 = vpop.f32.mrf.mxu0
      %v739 = vadd.f32 0.0, %v738
      %v740 = vpop.f32.mrf.mxu0
      %v741 = vadd.f32 0.0, %v740
      %742 = vmatmul.bf16.gmra.mxu0 %v634
      %v743 = vpop.f32.mrf.mxu0
      %v744 = vadd.f32 0.0, %v743
      %v745 = vpop.f32.mrf.mxu0
      %746 = vdwg.mxu0
      %v747 = vadd.f32 %v574, %v709
      %v748 = vadd.f32 %v576, %v711
      %v749 = vadd.f32 %v579, %v714
      %v750 = vadd.f32 %v581, %v716
      %v751 = vadd.f32 %v584, %v719
      %v752 = vadd.f32 %v586, %v721
      %v753 = vadd.f32 %v589, %v724
      %v754 = vadd.f32 %v591, %v726
      %v755 = vadd.f32 %v594, %v729
      %v756 = vadd.f32 %v596, %v731
      %v757 = vadd.f32 %v599, %v734
      %v758 = vadd.f32 %v601, %v736
      %v759 = vadd.f32 %v604, %v739
      %v760 = vadd.f32 %v606, %v741
      %v761 = vadd.f32 %v609, %v744
      %v762 = vld [vmem:[#allocation2 + $0xa] sm:$0xff]
      %v763 = vld [vmem:[#allocation2 + $0x12] sm:$0xff]
      %v764 = vld [vmem:[#allocation2 + $0x1a] sm:$0xff]
      %v765 = vld [vmem:[#allocation2 + $0x22] sm:$0xff]
      %v766 = vld [vmem:[#allocation2 + $0x2a] sm:$0xff]
      %v767 = vld [vmem:[#allocation2 + $0x32] sm:$0xff]
      %v768 = vld [vmem:[#allocation2 + $0x3a] sm:$0xff]
      %v769 = vld [vmem:[#allocation2 + $0x42] sm:$0xff]
      %v770 = vld [vmem:[#allocation2 + $0x4a] sm:$0xff]
      %v771 = vld [vmem:[#allocation2 + $0x52] sm:$0xff]
      %v772 = vld [vmem:[#allocation2 + $0x5a] sm:$0xff]
      %v773 = vld [vmem:[#allocation2 + $0x62] sm:$0xff]
      %v774 = vld [vmem:[#allocation2 + $0x6a] sm:$0xff]
      %v775 = vld [vmem:[#allocation2 + $0x72] sm:$0xff]
      %v776 = vld [vmem:[#allocation2 + $0x7a] sm:$0xff]
      %v777 = vpack.c.bf16 %v763, %v762
      %v778 = vpack.c.bf16 %v765, %v764
      %v779 = vpack.c.bf16 %v767, %v766
      %v780 = vpack.c.bf16 %v769, %v768
      %v781 = vpack.c.bf16 %v771, %v770
      %v782 = vpack.c.bf16 %v773, %v772
      %v783 = vpack.c.bf16 %v775, %v774
      %v784 = vpack.c.bf16 %v776, %v776
      %v785 = vld [vmem:[%s2 + $0xc0] sm:$0xf]
      %v786 = vld [vmem:[%s2 + $0xc4] sm:$0xf]
      %v787 = vld [vmem:[%s2 + $0xc8] sm:$0xf]
      %v788 = vld [vmem:[%s2 + $0xcc] sm:$0xf]
      %v789 = vld [vmem:[%s2 + $0xd0] sm:$0xf]
      %v790 = vld [vmem:[%s2 + $0xd4] sm:$0xf]
      %v791 = vld [vmem:[%s2 + $0xd8] sm:$0xf]
      %v792 = vld [vmem:[%s2 + $0xdc] sm:$0xf]
      %v793 = vld [vmem:[%s2 + $0xe0] sm:$0xf]
      %v794 = vld [vmem:[%s2 + $0xe4] sm:$0xf]
      %v795 = vld [vmem:[%s2 + $0xe8] sm:$0xf]
      %v796 = vld [vmem:[%s2 + $0xec] sm:$0xf]
      %v797 = vld [vmem:[%s2 + $0xf0] sm:$0xf]
      %v798 = vld [vmem:[%s2 + $0xf4] sm:$0xf]
      %v799 = vld [vmem:[%s2 + $0xf8] sm:$0xf]
      %v800 = vld [vmem:[%s2 + $0xfc] sm:$0xf]
      %v817 = vunpack.c.l.b16 %v785
      %v818 = vunpack.c.l.b16 %v786
      %v819 = vunpack.c.l.b16 %v787
      %v820 = vunpack.c.l.b16 %v788
      %v821 = vunpack.c.l.b16 %v789
      %v822 = vunpack.c.l.b16 %v790
      %v823 = vunpack.c.l.b16 %v791
      %v824 = vunpack.c.l.b16 %v792
      %v825 = vunpack.c.l.b16 %v793
      %v826 = vunpack.c.l.b16 %v794
      %v827 = vunpack.c.l.b16 %v795
      %v828 = vunpack.c.l.b16 %v796
      %v829 = vunpack.c.l.b16 %v797
      %v830 = vunpack.c.l.b16 %v798
      %v831 = vunpack.c.l.b16 %v799
      %v832 = vunpack.c.l.b16 %v800
      %v833 = vpack.c.b16 %v818, %v817
      %v834 = vpack.c.b16 %v820, %v819
      %v835 = vpack.c.b16 %v822, %v821
      %v836 = vpack.c.b16 %v824, %v823
      %v837 = vpack.c.b16 %v826, %v825
      %v838 = vpack.c.b16 %v828, %v827
      %v839 = vpack.c.b16 %v830, %v829
      %v840 = vpack.c.b16 %v832, %v831
      %849 = vmatpush.bf16.msra.mxu0 %v840
      %850 = vmatpush.bf16.msra.mxu0 %v839
      %851 = vmatpush.bf16.msra.mxu0 %v838
      %852 = vmatpush.bf16.msra.mxu0 %v837
      %853 = vmatpush.bf16.msra.mxu0 %v836
      %854 = vmatpush.bf16.msra.mxu0 %v835
      %855 = vmatpush.bf16.msra.mxu0 %v834
      %856 = vmatpush.bf16.msra.mxu0 %v833
      %857 = vmatmul.bf16.gmra.mxu0 %v777
      %v858 = vpop.f32.mrf.mxu0
      %v859 = vadd.f32 0.0, %v858
      %v860 = vpop.f32.mrf.mxu0
      %v861 = vadd.f32 0.0, %v860
      %862 = vmatmul.bf16.gmra.mxu0 %v778
      %v863 = vpop.f32.mrf.mxu0
      %v864 = vadd.f32 0.0, %v863
      %v865 = vpop.f32.mrf.mxu0
      %v866 = vadd.f32 0.0, %v865
      %867 = vmatmul.bf16.gmra.mxu0 %v779
      %v868 = vpop.f32.mrf.mxu0
      %v869 = vadd.f32 0.0, %v868
      %v870 = vpop.f32.mrf.mxu0
      %v871 = vadd.f32 0.0, %v870
      %872 = vmatmul.bf16.gmra.mxu0 %v780
      %v873 = vpop.f32.mrf.mxu0
      %v874 = vadd.f32 0.0, %v873
      %v875 = vpop.f32.mrf.mxu0
      %v876 = vadd.f32 0.0, %v875
      %877 = vmatmul.bf16.gmra.mxu0 %v781
      %v878 = vpop.f32.mrf.mxu0
      %v879 = vadd.f32 0.0, %v878
      %v880 = vpop.f32.mrf.mxu0
      %v881 = vadd.f32 0.0, %v880
      %882 = vmatmul.bf16.gmra.mxu0 %v782
      %v883 = vpop.f32.mrf.mxu0
      %v884 = vadd.f32 0.0, %v883
      %v885 = vpop.f32.mrf.mxu0
      %v886 = vadd.f32 0.0, %v885
      %887 = vmatmul.bf16.gmra.mxu0 %v783
      %v888 = vpop.f32.mrf.mxu0
      %v889 = vadd.f32 0.0, %v888
      %v890 = vpop.f32.mrf.mxu0
      %v891 = vadd.f32 0.0, %v890
      %892 = vmatmul.bf16.gmra.mxu0 %v784
      %v893 = vpop.f32.mrf.mxu0
      %v894 = vadd.f32 0.0, %v893
      %v895 = vpop.f32.mrf.mxu0
      %896 = vdwg.mxu0
      %v897 = vadd.f32 %v747, %v859
      %v898 = vadd.f32 %v748, %v861
      %v899 = vadd.f32 %v749, %v864
      %v900 = vadd.f32 %v750, %v866
      %v901 = vadd.f32 %v751, %v869
      %v902 = vadd.f32 %v752, %v871
      %v903 = vadd.f32 %v753, %v874
      %v904 = vadd.f32 %v754, %v876
      %v905 = vadd.f32 %v755, %v879
      %v906 = vadd.f32 %v756, %v881
      %v907 = vadd.f32 %v757, %v884
      %v908 = vadd.f32 %v758, %v886
      %v909 = vadd.f32 %v759, %v889
      %v910 = vadd.f32 %v760, %v891
      %v911 = vadd.f32 %v761, %v894
      %v912 = vld [vmem:[#allocation2 + $0xb] sm:$0xff]
      %v913 = vld [vmem:[#allocation2 + $0x13] sm:$0xff]
      %v914 = vld [vmem:[#allocation2 + $0x1b] sm:$0xff]
      %v915 = vld [vmem:[#allocation2 + $0x23] sm:$0xff]
      %v916 = vld [vmem:[#allocation2 + $0x2b] sm:$0xff]
      %v917 = vld [vmem:[#allocation2 + $0x33] sm:$0xff]
      %v918 = vld [vmem:[#allocation2 + $0x3b] sm:$0xff]
      %v919 = vld [vmem:[#allocation2 + $0x43] sm:$0xff]
      %v920 = vld [vmem:[#allocation2 + $0x4b] sm:$0xff]
      %v921 = vld [vmem:[#allocation2 + $0x53] sm:$0xff]
      %v922 = vld [vmem:[#allocation2 + $0x5b] sm:$0xff]
      %v923 = vld [vmem:[#allocation2 + $0x63] sm:$0xff]
      %v924 = vld [vmem:[#allocation2 + $0x6b] sm:$0xff]
      %v925 = vld [vmem:[#allocation2 + $0x73] sm:$0xff]
      %v926 = vld [vmem:[#allocation2 + $0x7b] sm:$0xff]
      %v927 = vpack.c.bf16 %v913, %v912
      %v928 = vpack.c.bf16 %v915, %v914
      %v929 = vpack.c.bf16 %v917, %v916
      %v930 = vpack.c.bf16 %v919, %v918
      %v931 = vpack.c.bf16 %v921, %v920
      %v932 = vpack.c.bf16 %v923, %v922
      %v933 = vpack.c.bf16 %v925, %v924
      %v934 = vpack.c.bf16 %v926, %v926
      %v935 = vld [vmem:[%s2 + $0x100] sm:$0xf]
      %v936 = vld [vmem:[%s2 + $0x104] sm:$0xf]
      %v937 = vld [vmem:[%s2 + $0x108] sm:$0xf]
      %v938 = vld [vmem:[%s2 + $0x10c] sm:$0xf]
      %v939 = vld [vmem:[%s2 + $0x110] sm:$0xf]
      %v940 = vld [vmem:[%s2 + $0x114] sm:$0xf]
      %v941 = vld [vmem:[%s2 + $0x118] sm:$0xf]
      %v942 = vld [vmem:[%s2 + $0x11c] sm:$0xf]
      %v943 = vld [vmem:[%s2 + $0x120] sm:$0xf]
      %v944 = vld [vmem:[%s2 + $0x124] sm:$0xf]
      %v945 = vld [vmem:[%s2 + $0x128] sm:$0xf]
      %v946 = vld [vmem:[%s2 + $0x12c] sm:$0xf]
      %v947 = vld [vmem:[%s2 + $0x130] sm:$0xf]
      %v948 = vld [vmem:[%s2 + $0x134] sm:$0xf]
      %v949 = vld [vmem:[%s2 + $0x138] sm:$0xf]
      %v950 = vld [vmem:[%s2 + $0x13c] sm:$0xf]
      %v967 = vunpack.c.l.b16 %v935
      %v968 = vunpack.c.l.b16 %v936
      %v969 = vunpack.c.l.b16 %v937
      %v970 = vunpack.c.l.b16 %v938
      %v971 = vunpack.c.l.b16 %v939
      %v972 = vunpack.c.l.b16 %v940
      %v973 = vunpack.c.l.b16 %v941
      %v974 = vunpack.c.l.b16 %v942
      %v975 = vunpack.c.l.b16 %v943
      %v976 = vunpack.c.l.b16 %v944
      %v977 = vunpack.c.l.b16 %v945
      %v978 = vunpack.c.l.b16 %v946
      %v979 = vunpack.c.l.b16 %v947
      %v980 = vunpack.c.l.b16 %v948
      %v981 = vunpack.c.l.b16 %v949
      %v982 = vunpack.c.l.b16 %v950
      %v983 = vpack.c.b16 %v968, %v967
      %v984 = vpack.c.b16 %v970, %v969
      %v985 = vpack.c.b16 %v972, %v971
      %v986 = vpack.c.b16 %v974, %v973
      %v987 = vpack.c.b16 %v976, %v975
      %v988 = vpack.c.b16 %v978, %v977
      %v989 = vpack.c.b16 %v980, %v979
      %v990 = vpack.c.b16 %v982, %v981
      %999 = vmatpush.bf16.msra.mxu0 %v990
      %1000 = vmatpush.bf16.msra.mxu0 %v989
      %1001 = vmatpush.bf16.msra.mxu0 %v988
      %1002 = vmatpush.bf16.msra.mxu0 %v987
      %1003 = vmatpush.bf16.msra.mxu0 %v986
      %1004 = vmatpush.bf16.msra.mxu0 %v985
      %1005 = vmatpush.bf16.msra.mxu0 %v984
      %1006 = vmatpush.bf16.msra.mxu0 %v983
      %1007 = vmatmul.bf16.gmra.mxu0 %v927
      %v1008 = vpop.f32.mrf.mxu0
      %v1009 = vadd.f32 0.0, %v1008
      %v1010 = vpop.f32.mrf.mxu0
      %v1011 = vadd.f32 0.0, %v1010
      %1012 = vmatmul.bf16.gmra.mxu0 %v928
      %v1013 = vpop.f32.mrf.mxu0
      %v1014 = vadd.f32 0.0, %v1013
      %v1015 = vpop.f32.mrf.mxu0
      %v1016 = vadd.f32 0.0, %v1015
      %1017 = vmatmul.bf16.gmra.mxu0 %v929
      %v1018 = vpop.f32.mrf.mxu0
      %v1019 = vadd.f32 0.0, %v1018
      %v1020 = vpop.f32.mrf.mxu0
      %v1021 = vadd.f32 0.0, %v1020
      %1022 = vmatmul.bf16.gmra.mxu0 %v930
      %v1023 = vpop.f32.mrf.mxu0
      %v1024 = vadd.f32 0.0, %v1023
      %v1025 = vpop.f32.mrf.mxu0
      %v1026 = vadd.f32 0.0, %v1025
      %1027 = vmatmul.bf16.gmra.mxu0 %v931
      %v1028 = vpop.f32.mrf.mxu0
      %v1029 = vadd.f32 0.0, %v1028
      %v1030 = vpop.f32.mrf.mxu0
      %v1031 = vadd.f32 0.0, %v1030
      %1032 = vmatmul.bf16.gmra.mxu0 %v932
      %v1033 = vpop.f32.mrf.mxu0
      %v1034 = vadd.f32 0.0, %v1033
      %v1035 = vpop.f32.mrf.mxu0
      %v1036 = vadd.f32 0.0, %v1035
      %1037 = vmatmul.bf16.gmra.mxu0 %v933
      %v1038 = vpop.f32.mrf.mxu0
      %v1039 = vadd.f32 0.0, %v1038
      %v1040 = vpop.f32.mrf.mxu0
      %v1041 = vadd.f32 0.0, %v1040
      %1042 = vmatmul.bf16.gmra.mxu0 %v934
      %v1043 = vpop.f32.mrf.mxu0
      %v1044 = vadd.f32 0.0, %v1043
      %v1045 = vpop.f32.mrf.mxu0
      %1046 = vdwg.mxu0
      %v1047 = vadd.f32 %v897, %v1009
      %v1048 = vadd.f32 %v898, %v1011
      %v1049 = vadd.f32 %v899, %v1014
      %v1050 = vadd.f32 %v900, %v1016
      %v1051 = vadd.f32 %v901, %v1019
      %v1052 = vadd.f32 %v902, %v1021
      %v1053 = vadd.f32 %v903, %v1024
      %v1054 = vadd.f32 %v904, %v1026
      %v1055 = vadd.f32 %v905, %v1029
      %v1056 = vadd.f32 %v906, %v1031
      %v1057 = vadd.f32 %v907, %v1034
      %v1058 = vadd.f32 %v908, %v1036
      %v1059 = vadd.f32 %v909, %v1039
      %v1060 = vadd.f32 %v910, %v1041
      %v1061 = vadd.f32 %v911, %v1044
      %v1062 = vld [vmem:[#allocation2 + $0xc] sm:$0xff]
      %v1063 = vld [vmem:[#allocation2 + $0x14] sm:$0xff]
      %v1064 = vld [vmem:[#allocation2 + $0x1c] sm:$0xff]
      %v1065 = vld [vmem:[#allocation2 + $0x24] sm:$0xff]
      %v1066 = vld [vmem:[#allocation2 + $0x2c] sm:$0xff]
      %v1067 = vld [vmem:[#allocation2 + $0x34] sm:$0xff]
      %v1068 = vld [vmem:[#allocation2 + $0x3c] sm:$0xff]
      %v1069 = vld [vmem:[#allocation2 + $0x44] sm:$0xff]
      %v1070 = vld [vmem:[#allocation2 + $0x4c] sm:$0xff]
      %v1071 = vld [vmem:[#allocation2 + $0x54] sm:$0xff]
      %v1072 = vld [vmem:[#allocation2 + $0x5c] sm:$0xff]
      %v1073 = vld [vmem:[#allocation2 + $0x64] sm:$0xff]
      %v1074 = vld [vmem:[#allocation2 + $0x6c] sm:$0xff]
      %v1075 = vld [vmem:[#allocation2 + $0x74] sm:$0xff]
      %v1076 = vld [vmem:[#allocation2 + $0x7c] sm:$0xff]
      %v1077 = vpack.c.bf16 %v1063, %v1062
      %v1078 = vpack.c.bf16 %v1065, %v1064
      %v1079 = vpack.c.bf16 %v1067, %v1066
      %v1080 = vpack.c.bf16 %v1069, %v1068
      %v1081 = vpack.c.bf16 %v1071, %v1070
      %v1082 = vpack.c.bf16 %v1073, %v1072
      %v1083 = vpack.c.bf16 %v1075, %v1074
      %v1084 = vpack.c.bf16 %v1076, %v1076
      %v1085 = vld [vmem:[%s2 + $0x140] sm:$0xf]
      %v1086 = vld [vmem:[%s2 + $0x144] sm:$0xf]
      %v1087 = vld [vmem:[%s2 + $0x148] sm:$0xf]
      %v1088 = vld [vmem:[%s2 + $0x14c] sm:$0xf]
      %v1089 = vld [vmem:[%s2 + $0x150] sm:$0xf]
      %v1090 = vld [vmem:[%s2 + $0x154] sm:$0xf]
      %v1091 = vld [vmem:[%s2 + $0x158] sm:$0xf]
      %v1092 = vld [vmem:[%s2 + $0x15c] sm:$0xf]
      %v1093 = vld [vmem:[%s2 + $0x160] sm:$0xf]
      %v1094 = vld [vmem:[%s2 + $0x164] sm:$0xf]
      %v1095 = vld [vmem:[%s2 + $0x168] sm:$0xf]
      %v1096 = vld [vmem:[%s2 + $0x16c] sm:$0xf]
      %v1097 = vld [vmem:[%s2 + $0x170] sm:$0xf]
      %v1098 = vld [vmem:[%s2 + $0x174] sm:$0xf]
      %v1099 = vld [vmem:[%s2 + $0x178] sm:$0xf]
      %v1100 = vld [vmem:[%s2 + $0x17c] sm:$0xf]
      %v1117 = vunpack.c.l.b16 %v1085
      %v1118 = vunpack.c.l.b16 %v1086
      %v1119 = vunpack.c.l.b16 %v1087
      %v1120 = vunpack.c.l.b16 %v1088
      %v1121 = vunpack.c.l.b16 %v1089
      %v1122 = vunpack.c.l.b16 %v1090
      %v1123 = vunpack.c.l.b16 %v1091
      %v1124 = vunpack.c.l.b16 %v1092
      %v1125 = vunpack.c.l.b16 %v1093
      %v1126 = vunpack.c.l.b16 %v1094
      %v1127 = vunpack.c.l.b16 %v1095
      %v1128 = vunpack.c.l.b16 %v1096
      %v1129 = vunpack.c.l.b16 %v1097
      %v1130 = vunpack.c.l.b16 %v1098
      %v1131 = vunpack.c.l.b16 %v1099
      %v1132 = vunpack.c.l.b16 %v1100
      %v1133 = vpack.c.b16 %v1118, %v1117
      %v1134 = vpack.c.b16 %v1120, %v1119
      %v1135 = vpack.c.b16 %v1122, %v1121
      %v1136 = vpack.c.b16 %v1124, %v1123
      %v1137 = vpack.c.b16 %v1126, %v1125
      %v1138 = vpack.c.b16 %v1128, %v1127
      %v1139 = vpack.c.b16 %v1130, %v1129
      %v1140 = vpack.c.b16 %v1132, %v1131
      %1149 = vmatpush.bf16.msra.mxu0 %v1140
      %1150 = vmatpush.bf16.msra.mxu0 %v1139
      %1151 = vmatpush.bf16.msra.mxu0 %v1138
      %1152 = vmatpush.bf16.msra.mxu0 %v1137
      %1153 = vmatpush.bf16.msra.mxu0 %v1136
      %1154 = vmatpush.bf16.msra.mxu0 %v1135
      %1155 = vmatpush.bf16.msra.mxu0 %v1134
      %1156 = vmatpush.bf16.msra.mxu0 %v1133
      %1157 = vmatmul.bf16.gmra.mxu0 %v1077
      %v1158 = vpop.f32.mrf.mxu0
      %v1159 = vadd.f32 0.0, %v1158
      %v1160 = vpop.f32.mrf.mxu0
      %v1161 = vadd.f32 0.0, %v1160
      %1162 = vmatmul.bf16.gmra.mxu0 %v1078
      %v1163 = vpop.f32.mrf.mxu0
      %v1164 = vadd.f32 0.0, %v1163
      %v1165 = vpop.f32.mrf.mxu0
      %v1166 = vadd.f32 0.0, %v1165
      %1167 = vmatmul.bf16.gmra.mxu0 %v1079
      %v1168 = vpop.f32.mrf.mxu0
      %v1169 = vadd.f32 0.0, %v1168
      %v1170 = vpop.f32.mrf.mxu0
      %v1171 = vadd.f32 0.0, %v1170
      %1172 = vmatmul.bf16.gmra.mxu0 %v1080
      %v1173 = vpop.f32.mrf.mxu0
      %v1174 = vadd.f32 0.0, %v1173
      %v1175 = vpop.f32.mrf.mxu0
      %v1176 = vadd.f32 0.0, %v1175
      %1177 = vmatmul.bf16.gmra.mxu0 %v1081
      %v1178 = vpop.f32.mrf.mxu0
      %v1179 = vadd.f32 0.0, %v1178
      %v1180 = vpop.f32.mrf.mxu0
      %v1181 = vadd.f32 0.0, %v1180
      %1182 = vmatmul.bf16.gmra.mxu0 %v1082
      %v1183 = vpop.f32.mrf.mxu0
      %v1184 = vadd.f32 0.0, %v1183
      %v1185 = vpop.f32.mrf.mxu0
      %v1186 = vadd.f32 0.0, %v1185
      %1187 = vmatmul.bf16.gmra.mxu0 %v1083
      %v1188 = vpop.f32.mrf.mxu0
      %v1189 = vadd.f32 0.0, %v1188
      %v1190 = vpop.f32.mrf.mxu0
      %v1191 = vadd.f32 0.0, %v1190
      %1192 = vmatmul.bf16.gmra.mxu0 %v1084
      %v1193 = vpop.f32.mrf.mxu0
      %v1194 = vadd.f32 0.0, %v1193
      %v1195 = vpop.f32.mrf.mxu0
      %1196 = vdwg.mxu0
      %v1197 = vadd.f32 %v1047, %v1159
      %v1198 = vadd.f32 %v1048, %v1161
      %v1199 = vadd.f32 %v1049, %v1164
      %v1200 = vadd.f32 %v1050, %v1166
      %v1201 = vadd.f32 %v1051, %v1169
      %v1202 = vadd.f32 %v1052, %v1171
      %v1203 = vadd.f32 %v1053, %v1174
      %v1204 = vadd.f32 %v1054, %v1176
      %v1205 = vadd.f32 %v1055, %v1179
      %v1206 = vadd.f32 %v1056, %v1181
      %v1207 = vadd.f32 %v1057, %v1184
      %v1208 = vadd.f32 %v1058, %v1186
      %v1209 = vadd.f32 %v1059, %v1189
      %v1210 = vadd.f32 %v1060, %v1191
      %v1211 = vadd.f32 %v1061, %v1194
      %v1212 = vld [vmem:[#allocation2 + $0x14] sm:$0xff]
      %v1213 = vld [vmem:[#allocation2 + $0x1c] sm:$0xff]
      %v1214 = vld [vmem:[#allocation2 + $0x24] sm:$0xff]
      %v1215 = vld [vmem:[#allocation2 + $0x2c] sm:$0xff]
      %v1216 = vld [vmem:[#allocation2 + $0x34] sm:$0xff]
      %v1217 = vld [vmem:[#allocation2 + $0x3c] sm:$0xff]
      %v1218 = vld [vmem:[#allocation2 + $0x44] sm:$0xff]
      %v1219 = vld [vmem:[#allocation2 + $0x4c] sm:$0xff]
      %v1220 = vld [vmem:[#allocation2 + $0x54] sm:$0xff]
      %v1221 = vld [vmem:[#allocation2 + $0x5c] sm:$0xff]
      %v1222 = vld [vmem:[#allocation2 + $0x64] sm:$0xff]
      %v1223 = vld [vmem:[#allocation2 + $0x6c] sm:$0xff]
      %v1224 = vld [vmem:[#allocation2 + $0x74] sm:$0xff]
      %v1225 = vld [vmem:[#allocation2 + $0x7c] sm:$0xff]
      %v1226 = vld [vmem:[#allocation2 + $0x84] sm:$0xff]
      %v1227 = vpack.c.bf16 %v1213, %v1212
      %v1228 = vpack.c.bf16 %v1215, %v1214
      %v1229 = vpack.c.bf16 %v1217, %v1216
      %v1230 = vpack.c.bf16 %v1219, %v1218
      %v1231 = vpack.c.bf16 %v1221, %v1220
      %v1232 = vpack.c.bf16 %v1223, %v1222
      %v1233 = vpack.c.bf16 %v1225, %v1224
      %v1234 = vpack.c.bf16 %v1226, %v1226
      %v1235 = vld [vmem:[%s2 + $0x180] sm:$0xf]
      %v1236 = vld [vmem:[%s2 + $0x184] sm:$0xf]
      %v1237 = vld [vmem:[%s2 + $0x188] sm:$0xf]
      %v1238 = vld [vmem:[%s2 + $0x18c] sm:$0xf]
      %v1239 = vld [vmem:[%s2 + $0x190] sm:$0xf]
      %v1240 = vld [vmem:[%s2 + $0x194] sm:$0xf]
      %v1241 = vld [vmem:[%s2 + $0x198] sm:$0xf]
      %v1242 = vld [vmem:[%s2 + $0x19c] sm:$0xf]
      %v1243 = vld [vmem:[%s2 + $0x1a0] sm:$0xf]
      %v1244 = vld [vmem:[%s2 + $0x1a4] sm:$0xf]
      %v1245 = vld [vmem:[%s2 + $0x1a8] sm:$0xf]
      %v1246 = vld [vmem:[%s2 + $0x1ac] sm:$0xf]
      %v1247 = vld [vmem:[%s2 + $0x1b0] sm:$0xf]
      %v1248 = vld [vmem:[%s2 + $0x1b4] sm:$0xf]
      %v1249 = vld [vmem:[%s2 + $0x1b8] sm:$0xf]
      %v1250 = vld [vmem:[%s2 + $0x1bc] sm:$0xf]
      %v1267 = vunpack.c.l.b16 %v1235
      %v1268 = vunpack.c.l.b16 %v1236
      %v1269 = vunpack.c.l.b16 %v1237
      %v1270 = vunpack.c.l.b16 %v1238
      %v1271 = vunpack.c.l.b16 %v1239
      %v1272 = vunpack.c.l.b16 %v1240
      %v1273 = vunpack.c.l.b16 %v1241
      %v1274 = vunpack.c.l.b16 %v1242
      %v1275 = vunpack.c.l.b16 %v1243
      %v1276 = vunpack.c.l.b16 %v1244
      %v1277 = vunpack.c.l.b16 %v1245
      %v1278 = vunpack.c.l.b16 %v1246
      %v1279 = vunpack.c.l.b16 %v1247
      %v1280 = vunpack.c.l.b16 %v1248
      %v1281 = vunpack.c.l.b16 %v1249
      %v1282 = vunpack.c.l.b16 %v1250
      %v1283 = vpack.c.b16 %v1268, %v1267
      %v1284 = vpack.c.b16 %v1270, %v1269
      %v1285 = vpack.c.b16 %v1272, %v1271
      %v1286 = vpack.c.b16 %v1274, %v1273
      %v1287 = vpack.c.b16 %v1276, %v1275
      %v1288 = vpack.c.b16 %v1278, %v1277
      %v1289 = vpack.c.b16 %v1280, %v1279
      %v1290 = vpack.c.b16 %v1282, %v1281
      %1299 = vmatpush.bf16.msra.mxu0 %v1290
      %1300 = vmatpush.bf16.msra.mxu0 %v1289
      %1301 = vmatpush.bf16.msra.mxu0 %v1288
      %1302 = vmatpush.bf16.msra.mxu0 %v1287
      %1303 = vmatpush.bf16.msra.mxu0 %v1286
      %1304 = vmatpush.bf16.msra.mxu0 %v1285
      %1305 = vmatpush.bf16.msra.mxu0 %v1284
      %1306 = vmatpush.bf16.msra.mxu0 %v1283
      %1307 = vmatmul.bf16.gmra.mxu0 %v1227
      %v1308 = vpop.f32.mrf.mxu0
      %v1309 = vadd.f32 0.0, %v1308
      %v1310 = vpop.f32.mrf.mxu0
      %v1311 = vadd.f32 0.0, %v1310
      %1312 = vmatmul.bf16.gmra.mxu0 %v1228
      %v1313 = vpop.f32.mrf.mxu0
      %v1314 = vadd.f32 0.0, %v1313
      %v1315 = vpop.f32.mrf.mxu0
      %v1316 = vadd.f32 0.0, %v1315
      %1317 = vmatmul.bf16.gmra.mxu0 %v1229
      %v1318 = vpop.f32.mrf.mxu0
      %v1319 = vadd.f32 0.0, %v1318
      %v1320 = vpop.f32.mrf.mxu0
      %v1321 = vadd.f32 0.0, %v1320
      %1322 = vmatmul.bf16.gmra.mxu0 %v1230
      %v1323 = vpop.f32.mrf.mxu0
      %v1324 = vadd.f32 0.0, %v1323
      %v1325 = vpop.f32.mrf.mxu0
      %v1326 = vadd.f32 0.0, %v1325
      %1327 = vmatmul.bf16.gmra.mxu0 %v1231
      %v1328 = vpop.f32.mrf.mxu0
      %v1329 = vadd.f32 0.0, %v1328
      %v1330 = vpop.f32.mrf.mxu0
      %v1331 = vadd.f32 0.0, %v1330
      %1332 = vmatmul.bf16.gmra.mxu0 %v1232
      %v1333 = vpop.f32.mrf.mxu0
      %v1334 = vadd.f32 0.0, %v1333
      %v1335 = vpop.f32.mrf.mxu0
      %v1336 = vadd.f32 0.0, %v1335
      %1337 = vmatmul.bf16.gmra.mxu0 %v1233
      %v1338 = vpop.f32.mrf.mxu0
      %v1339 = vadd.f32 0.0, %v1338
      %v1340 = vpop.f32.mrf.mxu0
      %v1341 = vadd.f32 0.0, %v1340
      %1342 = vmatmul.bf16.gmra.mxu0 %v1234
      %v1343 = vpop.f32.mrf.mxu0
      %v1344 = vadd.f32 0.0, %v1343
      %v1345 = vpop.f32.mrf.mxu0
      %1346 = vdwg.mxu0
      %v1347 = vadd.f32 %v1197, %v1309
      %v1348 = vadd.f32 %v1198, %v1311
      %v1349 = vadd.f32 %v1199, %v1314
      %v1350 = vadd.f32 %v1200, %v1316
      %v1351 = vadd.f32 %v1201, %v1319
      %v1352 = vadd.f32 %v1202, %v1321
      %v1353 = vadd.f32 %v1203, %v1324
      %v1354 = vadd.f32 %v1204, %v1326
      %v1355 = vadd.f32 %v1205, %v1329
      %v1356 = vadd.f32 %v1206, %v1331
      %v1357 = vadd.f32 %v1207, %v1334
      %v1358 = vadd.f32 %v1208, %v1336
      %v1359 = vadd.f32 %v1209, %v1339
      %v1360 = vadd.f32 %v1210, %v1341
      %v1361 = vadd.f32 %v1211, %v1344
      %v1362 = vld [vmem:[#allocation2 + $0x15] sm:$0xff]
      %v1363 = vld [vmem:[#allocation2 + $0x1d] sm:$0xff]
      %v1364 = vld [vmem:[#allocation2 + $0x25] sm:$0xff]
      %v1365 = vld [vmem:[#allocation2 + $0x2d] sm:$0xff]
      %v1366 = vld [vmem:[#allocation2 + $0x35] sm:$0xff]
      %v1367 = vld [vmem:[#allocation2 + $0x3d] sm:$0xff]
      %v1368 = vld [vmem:[#allocation2 + $0x45] sm:$0xff]
      %v1369 = vld [vmem:[#allocation2 + $0x4d] sm:$0xff]
      %v1370 = vld [vmem:[#allocation2 + $0x55] sm:$0xff]
      %v1371 = vld [vmem:[#allocation2 + $0x5d] sm:$0xff]
      %v1372 = vld [vmem:[#allocation2 + $0x65] sm:$0xff]
      %v1373 = vld [vmem:[#allocation2 + $0x6d] sm:$0xff]
      %v1374 = vld [vmem:[#allocation2 + $0x75] sm:$0xff]
      %v1375 = vld [vmem:[#allocation2 + $0x7d] sm:$0xff]
      %v1376 = vld [vmem:[#allocation2 + $0x85] sm:$0xff]
      %v1377 = vpack.c.bf16 %v1363, %v1362
      %v1378 = vpack.c.bf16 %v1365, %v1364
      %v1379 = vpack.c.bf16 %v1367, %v1366
      %v1380 = vpack.c.bf16 %v1369, %v1368
      %v1381 = vpack.c.bf16 %v1371, %v1370
      %v1382 = vpack.c.bf16 %v1373, %v1372
      %v1383 = vpack.c.bf16 %v1375, %v1374
      %v1384 = vpack.c.bf16 %v1376, %v1376
      %v1385 = vld [vmem:[%s2 + $0x1c0] sm:$0xf]
      %v1386 = vld [vmem:[%s2 + $0x1c4] sm:$0xf]
      %v1387 = vld [vmem:[%s2 + $0x1c8] sm:$0xf]
      %v1388 = vld [vmem:[%s2 + $0x1cc] sm:$0xf]
      %v1389 = vld [vmem:[%s2 + $0x1d0] sm:$0xf]
      %v1390 = vld [vmem:[%s2 + $0x1d4] sm:$0xf]
      %v1391 = vld [vmem:[%s2 + $0x1d8] sm:$0xf]
      %v1392 = vld [vmem:[%s2 + $0x1dc] sm:$0xf]
      %v1393 = vld [vmem:[%s2 + $0x1e0] sm:$0xf]
      %v1394 = vld [vmem:[%s2 + $0x1e4] sm:$0xf]
      %v1395 = vld [vmem:[%s2 + $0x1e8] sm:$0xf]
      %v1396 = vld [vmem:[%s2 + $0x1ec] sm:$0xf]
      %v1397 = vld [vmem:[%s2 + $0x1f0] sm:$0xf]
      %v1398 = vld [vmem:[%s2 + $0x1f4] sm:$0xf]
      %v1399 = vld [vmem:[%s2 + $0x1f8] sm:$0xf]
      %v1400 = vld [vmem:[%s2 + $0x1fc] sm:$0xf]
      %v1417 = vunpack.c.l.b16 %v1385
      %v1418 = vunpack.c.l.b16 %v1386
      %v1419 = vunpack.c.l.b16 %v1387
      %v1420 = vunpack.c.l.b16 %v1388
      %v1421 = vunpack.c.l.b16 %v1389
      %v1422 = vunpack.c.l.b16 %v1390
      %v1423 = vunpack.c.l.b16 %v1391
      %v1424 = vunpack.c.l.b16 %v1392
      %v1425 = vunpack.c.l.b16 %v1393
      %v1426 = vunpack.c.l.b16 %v1394
      %v1427 = vunpack.c.l.b16 %v1395
      %v1428 = vunpack.c.l.b16 %v1396
      %v1429 = vunpack.c.l.b16 %v1397
      %v1430 = vunpack.c.l.b16 %v1398
      %v1431 = vunpack.c.l.b16 %v1399
      %v1432 = vunpack.c.l.b16 %v1400
      %v1433 = vpack.c.b16 %v1418, %v1417
      %v1434 = vpack.c.b16 %v1420, %v1419
      %v1435 = vpack.c.b16 %v1422, %v1421
      %v1436 = vpack.c.b16 %v1424, %v1423
      %v1437 = vpack.c.b16 %v1426, %v1425
      %v1438 = vpack.c.b16 %v1428, %v1427
      %v1439 = vpack.c.b16 %v1430, %v1429
      %v1440 = vpack.c.b16 %v1432, %v1431
      %1449 = vmatpush.bf16.msra.mxu0 %v1440
      %1450 = vmatpush.bf16.msra.mxu0 %v1439
      %1451 = vmatpush.bf16.msra.mxu0 %v1438
      %1452 = vmatpush.bf16.msra.mxu0 %v1437
      %1453 = vmatpush.bf16.msra.mxu0 %v1436
      %1454 = vmatpush.bf16.msra.mxu0 %v1435
      %1455 = vmatpush.bf16.msra.mxu0 %v1434
      %1456 = vmatpush.bf16.msra.mxu0 %v1433
      %1457 = vmatmul.bf16.gmra.mxu0 %v1377
      %v1458 = vpop.f32.mrf.mxu0
      %v1459 = vadd.f32 0.0, %v1458
      %v1460 = vpop.f32.mrf.mxu0
      %v1461 = vadd.f32 0.0, %v1460
      %1462 = vmatmul.bf16.gmra.mxu0 %v1378
      %v1463 = vpop.f32.mrf.mxu0
      %v1464 = vadd.f32 0.0, %v1463
      %v1465 = vpop.f32.mrf.mxu0
      %v1466 = vadd.f32 0.0, %v1465
      %1467 = vmatmul.bf16.gmra.mxu0 %v1379
      %v1468 = vpop.f32.mrf.mxu0
      %v1469 = vadd.f32 0.0, %v1468
      %v1470 = vpop.f32.mrf.mxu0
      %v1471 = vadd.f32 0.0, %v1470
      %1472 = vmatmul.bf16.gmra.mxu0 %v1380
      %v1473 = vpop.f32.mrf.mxu0
      %v1474 = vadd.f32 0.0, %v1473
      %v1475 = vpop.f32.mrf.mxu0
      %v1476 = vadd.f32 0.0, %v1475
      %1477 = vmatmul.bf16.gmra.mxu0 %v1381
      %v1478 = vpop.f32.mrf.mxu0
      %v1479 = vadd.f32 0.0, %v1478
      %v1480 = vpop.f32.mrf.mxu0
      %v1481 = vadd.f32 0.0, %v1480
      %1482 = vmatmul.bf16.gmra.mxu0 %v1382
      %v1483 = vpop.f32.mrf.mxu0
      %v1484 = vadd.f32 0.0, %v1483
      %v1485 = vpop.f32.mrf.mxu0
      %v1486 = vadd.f32 0.0, %v1485
      %1487 = vmatmul.bf16.gmra.mxu0 %v1383
      %v1488 = vpop.f32.mrf.mxu0
      %v1489 = vadd.f32 0.0, %v1488
      %v1490 = vpop.f32.mrf.mxu0
      %v1491 = vadd.f32 0.0, %v1490
      %1492 = vmatmul.bf16.gmra.mxu0 %v1384
      %v1493 = vpop.f32.mrf.mxu0
      %v1494 = vadd.f32 0.0, %v1493
      %v1495 = vpop.f32.mrf.mxu0
      %1496 = vdwg.mxu0
      %v1497 = vadd.f32 %v1347, %v1459
      %v1498 = vadd.f32 %v1348, %v1461
      %v1499 = vadd.f32 %v1349, %v1464
      %v1500 = vadd.f32 %v1350, %v1466
      %v1501 = vadd.f32 %v1351, %v1469
      %v1502 = vadd.f32 %v1352, %v1471
      %v1503 = vadd.f32 %v1353, %v1474
      %v1504 = vadd.f32 %v1354, %v1476
      %v1505 = vadd.f32 %v1355, %v1479
      %v1506 = vadd.f32 %v1356, %v1481
      %v1507 = vadd.f32 %v1357, %v1484
      %v1508 = vadd.f32 %v1358, %v1486
      %v1509 = vadd.f32 %v1359, %v1489
      %v1510 = vadd.f32 %v1360, %v1491
      %v1511 = vadd.f32 %v1361, %v1494
      %v1512 = vld [vmem:[#allocation2 + $0x16] sm:$0xff]
      %v1513 = vld [vmem:[#allocation2 + $0x1e] sm:$0xff]
      %v1514 = vld [vmem:[#allocation2 + $0x26] sm:$0xff]
      %v1515 = vld [vmem:[#allocation2 + $0x2e] sm:$0xff]
      %v1516 = vld [vmem:[#allocation2 + $0x36] sm:$0xff]
      %v1517 = vld [vmem:[#allocation2 + $0x3e] sm:$0xff]
      %v1518 = vld [vmem:[#allocation2 + $0x46] sm:$0xff]
      %v1519 = vld [vmem:[#allocation2 + $0x4e] sm:$0xff]
      %v1520 = vld [vmem:[#allocation2 + $0x56] sm:$0xff]
      %v1521 = vld [vmem:[#allocation2 + $0x5e] sm:$0xff]
      %v1522 = vld [vmem:[#allocation2 + $0x66] sm:$0xff]
      %v1523 = vld [vmem:[#allocation2 + $0x6e] sm:$0xff]
      %v1524 = vld [vmem:[#allocation2 + $0x76] sm:$0xff]
      %v1525 = vld [vmem:[#allocation2 + $0x7e] sm:$0xff]
      %v1526 = vld [vmem:[#allocation2 + $0x86] sm:$0xff]
      %v1527 = vpack.c.bf16 %v1513, %v1512
      %v1528 = vpack.c.bf16 %v1515, %v1514
      %v1529 = vpack.c.bf16 %v1517, %v1516
      %v1530 = vpack.c.bf16 %v1519, %v1518
      %v1531 = vpack.c.bf16 %v1521, %v1520
      %v1532 = vpack.c.bf16 %v1523, %v1522
      %v1533 = vpack.c.bf16 %v1525, %v1524
      %v1534 = vpack.c.bf16 %v1526, %v1526
      %v1535 = vld [vmem:[%s2 + $0x200] sm:$0xf]
      %v1536 = vld [vmem:[%s2 + $0x204] sm:$0xf]
      %v1537 = vld [vmem:[%s2 + $0x208] sm:$0xf]
      %v1538 = vld [vmem:[%s2 + $0x20c] sm:$0xf]
      %v1539 = vld [vmem:[%s2 + $0x210] sm:$0xf]
      %v1540 = vld [vmem:[%s2 + $0x214] sm:$0xf]
      %v1541 = vld [vmem:[%s2 + $0x218] sm:$0xf]
      %v1542 = vld [vmem:[%s2 + $0x21c] sm:$0xf]
      %v1543 = vld [vmem:[%s2 + $0x220] sm:$0xf]
      %v1544 = vld [vmem:[%s2 + $0x224] sm:$0xf]
      %v1545 = vld [vmem:[%s2 + $0x228] sm:$0xf]
      %v1546 = vld [vmem:[%s2 + $0x22c] sm:$0xf]
      %v1547 = vld [vmem:[%s2 + $0x230] sm:$0xf]
      %v1548 = vld [vmem:[%s2 + $0x234] sm:$0xf]
      %v1549 = vld [vmem:[%s2 + $0x238] sm:$0xf]
      %v1550 = vld [vmem:[%s2 + $0x23c] sm:$0xf]
      %v1567 = vunpack.c.l.b16 %v1535
      %v1568 = vunpack.c.l.b16 %v1536
      %v1569 = vunpack.c.l.b16 %v1537
      %v1570 = vunpack.c.l.b16 %v1538
      %v1571 = vunpack.c.l.b16 %v1539
      %v1572 = vunpack.c.l.b16 %v1540
      %v1573 = vunpack.c.l.b16 %v1541
      %v1574 = vunpack.c.l.b16 %v1542
      %v1575 = vunpack.c.l.b16 %v1543
      %v1576 = vunpack.c.l.b16 %v1544
      %v1577 = vunpack.c.l.b16 %v1545
      %v1578 = vunpack.c.l.b16 %v1546
      %v1579 = vunpack.c.l.b16 %v1547
      %v1580 = vunpack.c.l.b16 %v1548
      %v1581 = vunpack.c.l.b16 %v1549
      %v1582 = vunpack.c.l.b16 %v1550
      %v1583 = vpack.c.b16 %v1568, %v1567
      %v1584 = vpack.c.b16 %v1570, %v1569
      %v1585 = vpack.c.b16 %v1572, %v1571
      %v1586 = vpack.c.b16 %v1574, %v1573
      %v1587 = vpack.c.b16 %v1576, %v1575
      %v1588 = vpack.c.b16 %v1578, %v1577
      %v1589 = vpack.c.b16 %v1580, %v1579
      %v1590 = vpack.c.b16 %v1582, %v1581
      %1599 = vmatpush.bf16.msra.mxu0 %v1590
      %1600 = vmatpush.bf16.msra.mxu0 %v1589
      %1601 = vmatpush.bf16.msra.mxu0 %v1588
      %1602 = vmatpush.bf16.msra.mxu0 %v1587
      %1603 = vmatpush.bf16.msra.mxu0 %v1586
      %1604 = vmatpush.bf16.msra.mxu0 %v1585
      %1605 = vmatpush.bf16.msra.mxu0 %v1584
      %1606 = vmatpush.bf16.msra.mxu0 %v1583
      %1607 = vmatmul.bf16.gmra.mxu0 %v1527
      %v1608 = vpop.f32.mrf.mxu0
      %v1609 = vadd.f32 0.0, %v1608
      %v1610 = vpop.f32.mrf.mxu0
      %v1611 = vadd.f32 0.0, %v1610
      %1612 = vmatmul.bf16.gmra.mxu0 %v1528
      %v1613 = vpop.f32.mrf.mxu0
      %v1614 = vadd.f32 0.0, %v1613
      %v1615 = vpop.f32.mrf.mxu0
      %v1616 = vadd.f32 0.0, %v1615
      %1617 = vmatmul.bf16.gmra.mxu0 %v1529
      %v1618 = vpop.f32.mrf.mxu0
      %v1619 = vadd.f32 0.0, %v1618
      %v1620 = vpop.f32.mrf.mxu0
      %v1621 = vadd.f32 0.0, %v1620
      %1622 = vmatmul.bf16.gmra.mxu0 %v1530
      %v1623 = vpop.f32.mrf.mxu0
      %v1624 = vadd.f32 0.0, %v1623
      %v1625 = vpop.f32.mrf.mxu0
      %v1626 = vadd.f32 0.0, %v1625
      %1627 = vmatmul.bf16.gmra.mxu0 %v1531
      %v1628 = vpop.f32.mrf.mxu0
      %v1629 = vadd.f32 0.0, %v1628
      %v1630 = vpop.f32.mrf.mxu0
      %v1631 = vadd.f32 0.0, %v1630
      %1632 = vmatmul.bf16.gmra.mxu0 %v1532
      %v1633 = vpop.f32.mrf.mxu0
      %v1634 = vadd.f32 0.0, %v1633
      %v1635 = vpop.f32.mrf.mxu0
      %v1636 = vadd.f32 0.0, %v1635
      %1637 = vmatmul.bf16.gmra.mxu0 %v1533
      %v1638 = vpop.f32.mrf.mxu0
      %v1639 = vadd.f32 0.0, %v1638
      %v1640 = vpop.f32.mrf.mxu0
      %v1641 = vadd.f32 0.0, %v1640
      %1642 = vmatmul.bf16.gmra.mxu0 %v1534
      %v1643 = vpop.f32.mrf.mxu0
      %v1644 = vadd.f32 0.0, %v1643
      %v1645 = vpop.f32.mrf.mxu0
      %1646 = vdwg.mxu0
      %v1647 = vadd.f32 %v1497, %v1609
      %v1648 = vadd.f32 %v1498, %v1611
      %v1649 = vadd.f32 %v1499, %v1614
      %v1650 = vadd.f32 %v1500, %v1616
      %v1651 = vadd.f32 %v1501, %v1619
      %v1652 = vadd.f32 %v1502, %v1621
      %v1653 = vadd.f32 %v1503, %v1624
      %v1654 = vadd.f32 %v1504, %v1626
      %v1655 = vadd.f32 %v1505, %v1629
      %v1656 = vadd.f32 %v1506, %v1631
      %v1657 = vadd.f32 %v1507, %v1634
      %v1658 = vadd.f32 %v1508, %v1636
      %v1659 = vadd.f32 %v1509, %v1639
      %v1660 = vadd.f32 %v1510, %v1641
      %v1661 = vadd.f32 %v1511, %v1644
      %v1662 = vld [vmem:[%s3] sm:$0x1]
      %v1664 = vperm.slane %v1662, 0
      %v1666 = vadd.f32 %v1647, %v1664
      %v1667 = vadd.f32 %v1648, %v1664
      %v1668 = vadd.f32 %v1649, %v1664
      %v1669 = vadd.f32 %v1650, %v1664
      %v1670 = vadd.f32 %v1651, %v1664
      %v1671 = vadd.f32 %v1652, %v1664
      %v1672 = vadd.f32 %v1653, %v1664
      %v1673 = vadd.f32 %v1654, %v1664
      %v1674 = vadd.f32 %v1655, %v1664
      %v1675 = vadd.f32 %v1656, %v1664
      %v1676 = vadd.f32 %v1657, %v1664
      %v1677 = vadd.f32 %v1658, %v1664
      %v1678 = vadd.f32 %v1659, %v1664
      %v1679 = vadd.f32 %v1660, %v1664
      %v1680 = vadd.f32 %v1661, %v1664
      %v1681 = vmax.f32 %v1666, 0.0
      %v1682 = vmax.f32 %v1667, 0.0
      %v1683 = vmax.f32 %v1668, 0.0
      %v1684 = vmax.f32 %v1669, 0.0
      %v1685 = vmax.f32 %v1670, 0.0
      %v1686 = vmax.f32 %v1671, 0.0
      %v1687 = vmax.f32 %v1672, 0.0
      %v1688 = vmax.f32 %v1673, 0.0
      %v1689 = vmax.f32 %v1674, 0.0
      %v1690 = vmax.f32 %v1675, 0.0
      %v1691 = vmax.f32 %v1676, 0.0
      %v1692 = vmax.f32 %v1677, 0.0
      %v1693 = vmax.f32 %v1678, 0.0
      %v1694 = vmax.f32 %v1679, 0.0
      %v1695 = vmax.f32 %v1680, 0.0
      %v1696 = vld [vmem:[%s298] sm:$0xff]
      %v1697 = vld [vmem:[%s298 + $0x8] sm:$0xff]
      %v1698 = vld [vmem:[%s298 + $0x10] sm:$0xff]
      %v1699 = vld [vmem:[%s298 + $0x18] sm:$0xff]
      %v1700 = vld [vmem:[%s298 + $0x20] sm:$0xff]
      %v1701 = vld [vmem:[%s298 + $0x28] sm:$0xff]
      %v1702 = vld [vmem:[%s298 + $0x30] sm:$0xff]
      %v1703 = vld [vmem:[%s298 + $0x38] sm:$0xff]
      %v1704 = vld [vmem:[%s298 + $0x40] sm:$0xff]
      %v1705 = vld [vmem:[%s298 + $0x48] sm:$0xff]
      %v1706 = vld [vmem:[%s298 + $0x50] sm:$0xff]
      %v1707 = vld [vmem:[%s298 + $0x58] sm:$0xff]
      %v1708 = vld [vmem:[%s298 + $0x60] sm:$0xff]
      %v1709 = vld [vmem:[%s298 + $0x68] sm:$0xff]
      %v1710 = vld [vmem:[%s298 + $0x70] sm:$0xff]
      %v1711 = vadd.f32 %v1681, %v1696
      %v1712 = vadd.f32 %v1682, %v1697
      %v1713 = vadd.f32 %v1683, %v1698
      %v1714 = vadd.f32 %v1684, %v1699
      %v1715 = vadd.f32 %v1685, %v1700
      %v1716 = vadd.f32 %v1686, %v1701
      %v1717 = vadd.f32 %v1687, %v1702
      %v1718 = vadd.f32 %v1688, %v1703
      %v1719 = vadd.f32 %v1689, %v1704
      %v1720 = vadd.f32 %v1690, %v1705
      %v1721 = vadd.f32 %v1691, %v1706
      %v1722 = vadd.f32 %v1692, %v1707
      %v1723 = vadd.f32 %v1693, %v1708
      %v1724 = vadd.f32 %v1694, %v1709
      %v1725 = vadd.f32 %v1695, %v1710
      %v1726 = vmax.f32 %v1711, 0.0
      %v1727 = vmax.f32 %v1712, 0.0
      %v1728 = vmax.f32 %v1713, 0.0
      %v1729 = vmax.f32 %v1714, 0.0
      %v1730 = vmax.f32 %v1715, 0.0
      %v1731 = vmax.f32 %v1716, 0.0
      %v1732 = vmax.f32 %v1717, 0.0
      %v1733 = vmax.f32 %v1718, 0.0
      %v1734 = vmax.f32 %v1719, 0.0
      %v1735 = vmax.f32 %v1720, 0.0
      %v1736 = vmax.f32 %v1721, 0.0
      %v1737 = vmax.f32 %v1722, 0.0
      %v1738 = vmax.f32 %v1723, 0.0
      %v1739 = vmax.f32 %v1724, 0.0
      %v1740 = vmax.f32 %v1725, 0.0
      %1741 = vst [vmem:[%s304] sm:$0xff] %v1726
      %1742 = vst [vmem:[%s304 + $0x8] sm:$0xff] %v1727
      %1743 = vst [vmem:[%s304 + $0x10] sm:$0xff] %v1728
      %1744 = vst [vmem:[%s304 + $0x18] sm:$0xff] %v1729
      %1745 = vst [vmem:[%s304 + $0x20] sm:$0xff] %v1730
      %1746 = vst [vmem:[%s304 + $0x28] sm:$0xff] %v1731
      %1747 = vst [vmem:[%s304 + $0x30] sm:$0xff] %v1732
      %1748 = vst [vmem:[%s304 + $0x38] sm:$0xff] %v1733
      %1749 = vst [vmem:[%s304 + $0x40] sm:$0xff] %v1734
      %1750 = vst [vmem:[%s304 + $0x48] sm:$0xff] %v1735
      %1751 = vst [vmem:[%s304 + $0x50] sm:$0xff] %v1736
      %1752 = vst [vmem:[%s304 + $0x58] sm:$0xff] %v1737
      %1753 = vst [vmem:[%s304 + $0x60] sm:$0xff] %v1738
      %1754 = vst [vmem:[%s304 + $0x68] sm:$0xff] %v1739
      %1755 = vst [vmem:[%s304 + $0x70] sm:$0xff] %v1740
      %s1756 = smul.u32 15, %s16
      %p1757 = scmp.lt.s32.totalorder %s1756, 29
      %s1758 = scalar_select %p1757, %s1756, 29
      %s1759 = smul.addr %s1758, 8
      %s1760 = scalar_lea.vmem %s5, %s1759
      // Predicated region
      $region41: #{_lambda_.18} parent=39 // pred_check
        %p1761 = pneg %p158
      $region42: #{_lambda_.18} parent=39 // pred_check_branch
        %1763 = sbr.rel (%p1761) target = $region44
      $region43: #{_lambda_.18} parent=39 // pred_region
        %s1764 = smul.u32 15, %s16
      $region44: #{_lambda_.18} parent=39 // pred_fallthru
        _
    $region40: #{_lambda_.18} parent=5 // pred_fallthru
      _
    %p1765 = scmp.le.s32.totalorder 2, %s11
    // Predicated region
    $region45: #{_lambda_.18} parent=5 // pred_check
      %p1766 = pneg %p1765
    $region46: #{_lambda_.18} parent=5 // pred_check_branch
      %1768 = sbr.rel (%p1766) target = $region48
    $region47: #{_lambda_.18} parent=5 // pred_region
      %s1769 = ssub.s32 %s11, 2
      // Predicated region
      $region49: #{_lambda_.18} parent=47 // pred_check
        %p1770 = pneg %p164
      $region50: #{_lambda_.18} parent=47 // pred_check_branch
        %1772 = sbr.rel (%p1770) target = $region52
      $region51: #{_lambda_.18} parent=47 // pred_region
        %s1773 = smul.u32 15, %s17
        %p1774 = scmp.lt.s32.totalorder %s1773, 29
        %s1775 = scalar_select %p1774, %s1773, 29
        %s1776 = smul.addr %s1775, 8
        %s1777 = scalar_lea.vmem %s5, %s1776
      $region52: #{_lambda_.18} parent=47 // pred_fallthru
        _
    $region48: #{_lambda_.18} parent=5 // pred_fallthru
      _
  $region6: #{_lambda_.18} parent=0 // loop_footer
    %s15 = sadd.s32 1, %s11
  $region7: #{_lambda_.18} parent=0 // loop_footer_branch
    %10 = sbr.rel target = $region3
  $region8: #{_lambda_.18} parent=0 // loop_exit
    _

// kernel: _lambda_.22
$region0: #{_lambda_.22}
  #allocation0 [shape = 'u32[]', space=smem, size = 0x4, offset = 0x4, fixed_abs, tag = 'smem constant byte address 0x4 - core index']
  #allocation1 [shape = 'u32[72,128]{1,0:T(1,128)}', space=vmem, size = 0x9000, scoped, tag = 'internal scratch']
  %s0 = inlined_call_operand.vmem [shape: bf16[32,128], index: 0, kind: input, shape index: {}]
  %s1 = inlined_call_operand.vmem [shape: bf16[128,128], index: 1, kind: input, shape index: {}]
  %s2 = inlined_call_operand.vmem [shape: f32[1,128], index: 2, kind: input, shape index: {}]
  %s3 = inlined_call_operand.vmem [shape: f32[32,128], index: 3, kind: output, shape index: {}]
  %s4 = sld [smem:[#allocation0]]
  $region22: #{_lambda_.22} parent=0
    _
  %s6 = ssub.s32 1, %s4
  %s7 = scalar_select 0, %s6, %s4
  // Predicated region
  $region2: #{_lambda_.22} parent=0 // pred_check
    _
  $region3: #{_lambda_.22} parent=0 // pred_check_branch
    %9 = sbr.rel (0) target = $region5
  $region4: #{_lambda_.22} parent=0 // pred_region
    _
  $region5: #{_lambda_.22} parent=0 // pred_fallthru
    _
  // Predicated region
  $region6: #{_lambda_.22} parent=0 // pred_check
    _
  $region7: #{_lambda_.22} parent=0 // pred_check_branch
    %11 = sbr.rel (0) target = $region9
  $region8: #{_lambda_.22} parent=0 // pred_region
    _
  $region9: #{_lambda_.22} parent=0 // pred_fallthru
    _
  // Predicated region
  $region10: #{_lambda_.22} parent=0 // pred_check
    _
  $region11: #{_lambda_.22} parent=0 // pred_check_branch
    %13 = sbr.rel (0) target = $region13
  $region12: #{_lambda_.22} parent=0 // pred_region
    _
  $region13: #{_lambda_.22} parent=0 // pred_fallthru
    _
  %v14 = vld [vmem:[%s0] sm:$0xf]
  %v15 = vld [vmem:[%s0 + $0x4] sm:$0xf]
  %v16 = vld [vmem:[%s0 + $0x8] sm:$0xf]
  %v17 = vld [vmem:[%s0 + $0xc] sm:$0xf]
  %v18 = vld [vmem:[%s1] sm:$0xf]
  %v19 = vld [vmem:[%s1 + $0x4] sm:$0xf]
  %v20 = vld [vmem:[%s1 + $0x8] sm:$0xf]
  %v21 = vld [vmem:[%s1 + $0xc] sm:$0xf]
  %v22 = vld [vmem:[%s1 + $0x10] sm:$0xf]
  %v23 = vld [vmem:[%s1 + $0x14] sm:$0xf]
  %v24 = vld [vmem:[%s1 + $0x18] sm:$0xf]
  %v25 = vld [vmem:[%s1 + $0x1c] sm:$0xf]
  %v26 = vld [vmem:[%s1 + $0x20] sm:$0xf]
  %v27 = vld [vmem:[%s1 + $0x24] sm:$0xf]
  %v28 = vld [vmem:[%s1 + $0x28] sm:$0xf]
  %v29 = vld [vmem:[%s1 + $0x2c] sm:$0xf]
  %v30 = vld [vmem:[%s1 + $0x30] sm:$0xf]
  %v31 = vld [vmem:[%s1 + $0x34] sm:$0xf]
  %v32 = vld [vmem:[%s1 + $0x38] sm:$0xf]
  %v33 = vld [vmem:[%s1 + $0x3c] sm:$0xf]
  %v34 = vld [vmem:[%s2] sm:$0x1]
  %v36 = vperm.slane %v34, 0
  %v42 = vunpack.c.l.b16 %v14
  %v43 = vunpack.c.l.b16 %v15
  %v44 = vunpack.c.l.b16 %v16
  %v45 = vunpack.c.l.b16 %v17
  %v46 = vpack.c.b16 %v43, %v42
  %v47 = vpack.c.b16 %v45, %v44
  %v66 = vunpack.c.l.b16 %v18
  %v67 = vunpack.c.l.b16 %v19
  %v68 = vunpack.c.l.b16 %v20
  %v69 = vunpack.c.l.b16 %v21
  %v70 = vunpack.c.l.b16 %v22
  %v71 = vunpack.c.l.b16 %v23
  %v72 = vunpack.c.l.b16 %v24
  %v73 = vunpack.c.l.b16 %v25
  %v74 = vunpack.c.l.b16 %v26
  %v75 = vunpack.c.l.b16 %v27
  %v76 = vunpack.c.l.b16 %v28
  %v77 = vunpack.c.l.b16 %v29
  %v78 = vunpack.c.l.b16 %v30
  %v79 = vunpack.c.l.b16 %v31
  %v80 = vunpack.c.l.b16 %v32
  %v81 = vunpack.c.l.b16 %v33
  %v82 = vpack.c.b16 %v67, %v66
  %v83 = vpack.c.b16 %v69, %v68
  %v84 = vpack.c.b16 %v71, %v70
  %v85 = vpack.c.b16 %v73, %v72
  %v86 = vpack.c.b16 %v75, %v74
  %v87 = vpack.c.b16 %v77, %v76
  %v88 = vpack.c.b16 %v79, %v78
  %v89 = vpack.c.b16 %v81, %v80
  %98 = vmatpush.bf16.msra.mxu0 %v89
  %99 = vmatpush.bf16.msra.mxu0 %v88
  %100 = vmatpush.bf16.msra.mxu0 %v87
  %101 = vmatpush.bf16.msra.mxu0 %v86
  %102 = vmatpush.bf16.msra.mxu0 %v85
  %103 = vmatpush.bf16.msra.mxu0 %v84
  %104 = vmatpush.bf16.msra.mxu0 %v83
  %105 = vmatpush.bf16.msra.mxu0 %v82
  %106 = vmatmul.bf16.gmra.mxu0 %v46
  %v107 = vpop.f32.mrf.mxu0
  %v108 = vadd.f32 %v36, %v107
  %v109 = vpop.f32.mrf.mxu0
  %v110 = vadd.f32 %v36, %v109
  %111 = vmatmul.bf16.gmra.mxu0 %v47
  %v112 = vpop.f32.mrf.mxu0
  %v113 = vadd.f32 %v36, %v112
  %v114 = vpop.f32.mrf.mxu0
  %v115 = vadd.f32 %v36, %v114
  %116 = vdwg.mxu0
  %117 = vst [vmem:[%s3] sm:$0xff] %v108
  %118 = vst [vmem:[%s3 + $0x8] sm:$0xff] %v110
  %119 = vst [vmem:[%s3 + $0x10] sm:$0xff] %v113
  %120 = vst [vmem:[%s3 + $0x18] sm:$0xff] %v115
  // Predicated region
  $region14: #{_lambda_.22} parent=0 // pred_check
    _
  $region15: #{_lambda_.22} parent=0 // pred_check_branch
    %122 = sbr.rel (0) target = $region17
  $region16: #{_lambda_.22} parent=0 // pred_region
    _
  $region17: #{_lambda_.22} parent=0 // pred_fallthru
    _
  // Predicated region
  $region18: #{_lambda_.22} parent=0 // pred_check
    _
  $region19: #{_lambda_.22} parent=0 // pred_check_branch
    %124 = sbr.rel (0) target = $region21
  $region20: #{_lambda_.22} parent=0 // pred_region
    _
  $region21: #{_lambda_.22} parent=0 // pred_fallthru
    _

// kernel: _lambda_.21
$region0: #{_lambda_.21}
  #allocation0 [shape = 'u32[]', space=smem, size = 0x4, offset = 0x4, fixed_abs, tag = 'smem constant byte address 0x4 - core index']
  #allocation1 [shape = 'u32[72,128]{1,0:T(1,128)}', space=vmem, size = 0x9000, scoped, tag = 'internal scratch']
  %s0 = inlined_call_operand.vmem [shape: bf16[32,1152], index: 0, kind: input, shape index: {}]
  %s1 = inlined_call_operand.vmem [shape: bf16[1152,128], index: 1, kind: input, shape index: {}]
  %s2 = inlined_call_operand.vmem [shape: f32[1,128], index: 2, kind: input, shape index: {}]
  %s3 = inlined_call_operand.vmem [shape: f32[32,128], index: 3, kind: output, shape index: {}]
  %s4 = sld [smem:[#allocation0]]
  $region22: #{_lambda_.21} parent=0
    _
  %s6 = ssub.s32 1, %s4
  %s7 = scalar_select 0, %s6, %s4
  // Predicated region
  $region2: #{_lambda_.21} parent=0 // pred_check
    _
  $region3: #{_lambda_.21} parent=0 // pred_check_branch
    %9 = sbr.rel (0) target = $region5
  $region4: #{_lambda_.21} parent=0 // pred_region
    _
  $region5: #{_lambda_.21} parent=0 // pred_fallthru
    _
  // Predicated region
  $region6: #{_lambda_.21} parent=0 // pred_check
    _
  $region7: #{_lambda_.21} parent=0 // pred_check_branch
    %11 = sbr.rel (0) target = $region9
  $region8: #{_lambda_.21} parent=0 // pred_region
    _
  $region9: #{_lambda_.21} parent=0 // pred_fallthru
    _
  // Predicated region
  $region10: #{_lambda_.21} parent=0 // pred_check
    _
  $region11: #{_lambda_.21} parent=0 // pred_check_branch
    %13 = sbr.rel (0) target = $region13
  $region12: #{_lambda_.21} parent=0 // pred_region
    _
  $region13: #{_lambda_.21} parent=0 // pred_fallthru
    _
  %v14 = vld [vmem:[%s0] sm:$0xff]
  %v15 = vld [vmem:[%s0 + $0x8] sm:$0xff]
  %v16 = vld [vmem:[%s0 + $0x10] sm:$0xff]
  %v17 = vld [vmem:[%s0 + $0x18] sm:$0xff]
  %v18 = vld [vmem:[%s0 + $0x20] sm:$0xf]
  %v19 = vld [vmem:[%s0 + $0x24] sm:$0xff]
  %v20 = vld [vmem:[%s0 + $0x2c] sm:$0xff]
  %v21 = vld [vmem:[%s0 + $0x34] sm:$0xff]
  %v22 = vld [vmem:[%s0 + $0x3c] sm:$0xff]
  %v23 = vld [vmem:[%s0 + $0x44] sm:$0xf]
  %v24 = vld [vmem:[%s0 + $0x48] sm:$0xff]
  %v25 = vld [vmem:[%s0 + $0x50] sm:$0xff]
  %v26 = vld [vmem:[%s0 + $0x58] sm:$0xff]
  %v27 = vld [vmem:[%s0 + $0x60] sm:$0xff]
  %v28 = vld [vmem:[%s0 + $0x68] sm:$0xf]
  %v29 = vld [vmem:[%s0 + $0x6c] sm:$0xff]
  %v30 = vld [vmem:[%s0 + $0x74] sm:$0xff]
  %v31 = vld [vmem:[%s0 + $0x7c] sm:$0xff]
  %v32 = vld [vmem:[%s0 + $0x84] sm:$0xff]
  %v33 = vld [vmem:[%s0 + $0x8c] sm:$0xf]
  %v34 = vld [vmem:[%s1] sm:$0xf]
  %v35 = vld [vmem:[%s1 + $0x4] sm:$0xf]
  %v36 = vld [vmem:[%s1 + $0x8] sm:$0xf]
  %v37 = vld [vmem:[%s1 + $0xc] sm:$0xf]
  %v38 = vld [vmem:[%s1 + $0x10] sm:$0xf]
  %v39 = vld [vmem:[%s1 + $0x14] sm:$0xf]
  %v40 = vld [vmem:[%s1 + $0x18] sm:$0xf]
  %v41 = vld [vmem:[%s1 + $0x1c] sm:$0xf]
  %v42 = vld [vmem:[%s1 + $0x20] sm:$0xf]
  %v43 = vld [vmem:[%s1 + $0x24] sm:$0xf]
  %v44 = vld [vmem:[%s1 + $0x28] sm:$0xf]
  %v45 = vld [vmem:[%s1 + $0x2c] sm:$0xf]
  %v46 = vld [vmem:[%s1 + $0x30] sm:$0xf]
  %v47 = vld [vmem:[%s1 + $0x34] sm:$0xf]
  %v48 = vld [vmem:[%s1 + $0x38] sm:$0xf]
  %v49 = vld [vmem:[%s1 + $0x3c] sm:$0xf]
  %v50 = vld [vmem:[%s1 + $0x40] sm:$0xf]
  %v51 = vld [vmem:[%s1 + $0x44] sm:$0xf]
  %v52 = vld [vmem:[%s1 + $0x48] sm:$0xf]
  %v53 = vld [vmem:[%s1 + $0x4c] sm:$0xf]
  %v54 = vld [vmem:[%s1 + $0x50] sm:$0xf]
  %v55 = vld [vmem:[%s1 + $0x54] sm:$0xf]
  %v56 = vld [vmem:[%s1 + $0x58] sm:$0xf]
  %v57 = vld [vmem:[%s1 + $0x5c] sm:$0xf]
  %v58 = vld [vmem:[%s1 + $0x60] sm:$0xf]
  %v59 = vld [vmem:[%s1 + $0x64] sm:$0xf]
  %v60 = vld [vmem:[%s1 + $0x68] sm:$0xf]
  %v61 = vld [vmem:[%s1 + $0x6c] sm:$0xf]
  %v62 = vld [vmem:[%s1 + $0x70] sm:$0xf]
  %v63 = vld [vmem:[%s1 + $0x74] sm:$0xf]
  %v64 = vld [vmem:[%s1 + $0x78] sm:$0xf]
  %v65 = vld [vmem:[%s1 + $0x7c] sm:$0xf]
  %v66 = vld [vmem:[%s1 + $0x80] sm:$0xf]
  %v67 = vld [vmem:[%s1 + $0x84] sm:$0xf]
  %v68 = vld [vmem:[%s1 + $0x88] sm:$0xf]
  %v69 = vld [vmem:[%s1 + $0x8c] sm:$0xf]
  %v70 = vld [vmem:[%s1 + $0x90] sm:$0xf]
  %v71 = vld [vmem:[%s1 + $0x94] sm:$0xf]
  %v72 = vld [vmem:[%s1 + $0x98] sm:$0xf]
  %v73 = vld [vmem:[%s1 + $0x9c] sm:$0xf]
  %v74 = vld [vmem:[%s1 + $0xa0] sm:$0xf]
  %v75 = vld [vmem:[%s1 + $0xa4] sm:$0xf]
  %v76 = vld [vmem:[%s1 + $0xa8] sm:$0xf]
  %v77 = vld [vmem:[%s1 + $0xac] sm:$0xf]
  %v78 = vld [vmem:[%s1 + $0xb0] sm:$0xf]
  %v79 = vld [vmem:[%s1 + $0xb4] sm:$0xf]
  %v80 = vld [vmem:[%s1 + $0xb8] sm:$0xf]
  %v81 = vld [vmem:[%s1 + $0xbc] sm:$0xf]
  %v82 = vld [vmem:[%s1 + $0xc0] sm:$0xf]
  %v83 = vld [vmem:[%s1 + $0xc4] sm:$0xf]
  %v84 = vld [vmem:[%s1 + $0xc8] sm:$0xf]
  %v85 = vld [vmem:[%s1 + $0xcc] sm:$0xf]
  %v86 = vld [vmem:[%s1 + $0xd0] sm:$0xf]
  %v87 = vld [vmem:[%s1 + $0xd4] sm:$0xf]
  %v88 = vld [vmem:[%s1 + $0xd8] sm:$0xf]
  %v89 = vld [vmem:[%s1 + $0xdc] sm:$0xf]
  %v90 = vld [vmem:[%s1 + $0xe0] sm:$0xf]
  %v91 = vld [vmem:[%s1 + $0xe4] sm:$0xf]
  %v92 = vld [vmem:[%s1 + $0xe8] sm:$0xf]
  %v93 = vld [vmem:[%s1 + $0xec] sm:$0xf]
  %v94 = vld [vmem:[%s1 + $0xf0] sm:$0xf]
  %v95 = vld [vmem:[%s1 + $0xf4] sm:$0xf]
  %v96 = vld [vmem:[%s1 + $0xf8] sm:$0xf]
  %v97 = vld [vmem:[%s1 + $0xfc] sm:$0xf]
  %v98 = vld [vmem:[%s1 + $0x100] sm:$0xf]
  %v99 = vld [vmem:[%s1 + $0x104] sm:$0xf]
  %v100 = vld [vmem:[%s1 + $0x108] sm:$0xf]
  %v101 = vld [vmem:[%s1 + $0x10c] sm:$0xf]
  %v102 = vld [vmem:[%s1 + $0x110] sm:$0xf]
  %v103 = vld [vmem:[%s1 + $0x114] sm:$0xf]
  %v104 = vld [vmem:[%s1 + $0x118] sm:$0xf]
  %v105 = vld [vmem:[%s1 + $0x11c] sm:$0xf]
  %v106 = vld [vmem:[%s1 + $0x120] sm:$0xf]
  %v107 = vld [vmem:[%s1 + $0x124] sm:$0xf]
  %v108 = vld [vmem:[%s1 + $0x128] sm:$0xf]
  %v109 = vld [vmem:[%s1 + $0x12c] sm:$0xf]
  %v110 = vld [vmem:[%s1 + $0x130] sm:$0xf]
  %v111 = vld [vmem:[%s1 + $0x134] sm:$0xf]
  %v112 = vld [vmem:[%s1 + $0x138] sm:$0xf]
  %v113 = vld [vmem:[%s1 + $0x13c] sm:$0xf]
  %v114 = vld [vmem:[%s1 + $0x140] sm:$0xf]
  %v115 = vld [vmem:[%s1 + $0x144] sm:$0xf]
  %v116 = vld [vmem:[%s1 + $0x148] sm:$0xf]
  %v117 = vld [vmem:[%s1 + $0x14c] sm:$0xf]
  %v118 = vld [vmem:[%s1 + $0x150] sm:$0xf]
  %v119 = vld [vmem:[%s1 + $0x154] sm:$0xf]
  %v120 = vld [vmem:[%s1 + $0x158] sm:$0xf]
  %v121 = vld [vmem:[%s1 + $0x15c] sm:$0xf]
  %v122 = vld [vmem:[%s1 + $0x160] sm:$0xf]
  %v123 = vld [vmem:[%s1 + $0x164] sm:$0xf]
  %v124 = vld [vmem:[%s1 + $0x168] sm:$0xf]
  %v125 = vld [vmem:[%s1 + $0x16c] sm:$0xf]
  %v126 = vld [vmem:[%s1 + $0x170] sm:$0xf]
  %v127 = vld [vmem:[%s1 + $0x174] sm:$0xf]
  %v128 = vld [vmem:[%s1 + $0x178] sm:$0xf]
  %v129 = vld [vmem:[%s1 + $0x17c] sm:$0xf]
  %v130 = vld [vmem:[%s1 + $0x180] sm:$0xf]
  %v131 = vld [vmem:[%s1 + $0x184] sm:$0xf]
  %v132 = vld [vmem:[%s1 + $0x188] sm:$0xf]
  %v133 = vld [vmem:[%s1 + $0x18c] sm:$0xf]
  %v134 = vld [vmem:[%s1 + $0x190] sm:$0xf]
  %v135 = vld [vmem:[%s1 + $0x194] sm:$0xf]
  %v136 = vld [vmem:[%s1 + $0x198] sm:$0xf]
  %v137 = vld [vmem:[%s1 + $0x19c] sm:$0xf]
  %v138 = vld [vmem:[%s1 + $0x1a0] sm:$0xf]
  %v139 = vld [vmem:[%s1 + $0x1a4] sm:$0xf]
  %v140 = vld [vmem:[%s1 + $0x1a8] sm:$0xf]
  %v141 = vld [vmem:[%s1 + $0x1ac] sm:$0xf]
  %v142 = vld [vmem:[%s1 + $0x1b0] sm:$0xf]
  %v143 = vld [vmem:[%s1 + $0x1b4] sm:$0xf]
  %v144 = vld [vmem:[%s1 + $0x1b8] sm:$0xf]
  %v145 = vld [vmem:[%s1 + $0x1bc] sm:$0xf]
  %v146 = vld [vmem:[%s1 + $0x1c0] sm:$0xf]
  %v147 = vld [vmem:[%s1 + $0x1c4] sm:$0xf]
  %v148 = vld [vmem:[%s1 + $0x1c8] sm:$0xf]
  %v149 = vld [vmem:[%s1 + $0x1cc] sm:$0xf]
  %v150 = vld [vmem:[%s1 + $0x1d0] sm:$0xf]
  %v151 = vld [vmem:[%s1 + $0x1d4] sm:$0xf]
  %v152 = vld [vmem:[%s1 + $0x1d8] sm:$0xf]
  %v153 = vld [vmem:[%s1 + $0x1dc] sm:$0xf]
  %v154 = vld [vmem:[%s1 + $0x1e0] sm:$0xf]
  %v155 = vld [vmem:[%s1 + $0x1e4] sm:$0xf]
  %v156 = vld [vmem:[%s1 + $0x1e8] sm:$0xf]
  %v157 = vld [vmem:[%s1 + $0x1ec] sm:$0xf]
  %v158 = vld [vmem:[%s1 + $0x1f0] sm:$0xf]
  %v159 = vld [vmem:[%s1 + $0x1f4] sm:$0xf]
  %v160 = vld [vmem:[%s1 + $0x1f8] sm:$0xf]
  %v161 = vld [vmem:[%s1 + $0x1fc] sm:$0xf]
  %v162 = vld [vmem:[%s1 + $0x200] sm:$0xf]
  %v163 = vld [vmem:[%s1 + $0x204] sm:$0xf]
  %v164 = vld [vmem:[%s1 + $0x208] sm:$0xf]
  %v165 = vld [vmem:[%s1 + $0x20c] sm:$0xf]
  %v166 = vld [vmem:[%s1 + $0x210] sm:$0xf]
  %v167 = vld [vmem:[%s1 + $0x214] sm:$0xf]
  %v168 = vld [vmem:[%s1 + $0x218] sm:$0xf]
  %v169 = vld [vmem:[%s1 + $0x21c] sm:$0xf]
  %v170 = vld [vmem:[%s1 + $0x220] sm:$0xf]
  %v171 = vld [vmem:[%s1 + $0x224] sm:$0xf]
  %v172 = vld [vmem:[%s1 + $0x228] sm:$0xf]
  %v173 = vld [vmem:[%s1 + $0x22c] sm:$0xf]
  %v174 = vld [vmem:[%s1 + $0x230] sm:$0xf]
  %v175 = vld [vmem:[%s1 + $0x234] sm:$0xf]
  %v176 = vld [vmem:[%s1 + $0x238] sm:$0xf]
  %v177 = vld [vmem:[%s1 + $0x23c] sm:$0xf]
  %v178 = vld [vmem:[%s2] sm:$0x1]
  %v180 = vperm.slane %v178, 0
  %v202 = vunpack.c.l.b16 %v14
  %v203 = vunpack.c.h.b16 %v14
  %v204 = vunpack.c.l.b16 %v15
  %v205 = vunpack.c.h.b16 %v15
  %v206 = vunpack.c.l.b16 %v16
  %v207 = vunpack.c.h.b16 %v16
  %v208 = vunpack.c.l.b16 %v17
  %v209 = vunpack.c.h.b16 %v17
  %v210 = vunpack.c.l.b16 %v18
  %v211 = vunpack.c.l.b16 %v19
  %v212 = vunpack.c.h.b16 %v19
  %v213 = vunpack.c.l.b16 %v20
  %v214 = vunpack.c.h.b16 %v20
  %v215 = vunpack.c.l.b16 %v21
  %v216 = vunpack.c.h.b16 %v21
  %v217 = vunpack.c.l.b16 %v22
  %v218 = vunpack.c.h.b16 %v22
  %v219 = vunpack.c.l.b16 %v23
  %v220 = vunpack.c.l.b16 %v24
  %v221 = vunpack.c.h.b16 %v24
  %v222 = vunpack.c.l.b16 %v25
  %v223 = vunpack.c.h.b16 %v25
  %v224 = vunpack.c.l.b16 %v26
  %v225 = vunpack.c.h.b16 %v26
  %v226 = vunpack.c.l.b16 %v27
  %v227 = vunpack.c.h.b16 %v27
  %v228 = vunpack.c.l.b16 %v28
  %v229 = vunpack.c.l.b16 %v29
  %v230 = vunpack.c.h.b16 %v29
  %v231 = vunpack.c.l.b16 %v30
  %v232 = vunpack.c.h.b16 %v30
  %v233 = vunpack.c.l.b16 %v31
  %v234 = vunpack.c.h.b16 %v31
  %v235 = vunpack.c.l.b16 %v32
  %v236 = vunpack.c.h.b16 %v32
  %v237 = vunpack.c.l.b16 %v33
  %v238 = vpack.c.b16 %v211, %v202
  %v239 = vpack.c.b16 %v212, %v203
  %v240 = vpack.c.b16 %v213, %v204
  %v241 = vpack.c.b16 %v214, %v205
  %v242 = vpack.c.b16 %v215, %v206
  %v243 = vpack.c.b16 %v216, %v207
  %v244 = vpack.c.b16 %v217, %v208
  %v245 = vpack.c.b16 %v218, %v209
  %v246 = vpack.c.b16 %v219, %v210
  %v247 = vpack.c.b16 %v229, %v220
  %v248 = vpack.c.b16 %v230, %v221
  %v249 = vpack.c.b16 %v231, %v222
  %v250 = vpack.c.b16 %v232, %v223
  %v251 = vpack.c.b16 %v233, %v224
  %v252 = vpack.c.b16 %v234, %v225
  %v253 = vpack.c.b16 %v235, %v226
  %v254 = vpack.c.b16 %v236, %v227
  %v255 = vpack.c.b16 %v237, %v228
  %v418 = vunpack.c.l.b16 %v34
  %v419 = vunpack.c.l.b16 %v35
  %v420 = vunpack.c.l.b16 %v36
  %v421 = vunpack.c.l.b16 %v37
  %v422 = vunpack.c.l.b16 %v38
  %v423 = vunpack.c.l.b16 %v39
  %v424 = vunpack.c.l.b16 %v40
  %v425 = vunpack.c.l.b16 %v41
  %v426 = vunpack.c.l.b16 %v42
  %v427 = vunpack.c.l.b16 %v43
  %v428 = vunpack.c.l.b16 %v44
  %v429 = vunpack.c.l.b16 %v45
  %v430 = vunpack.c.l.b16 %v46
  %v431 = vunpack.c.l.b16 %v47
  %v432 = vunpack.c.l.b16 %v48
  %v433 = vunpack.c.l.b16 %v49
  %v434 = vunpack.c.l.b16 %v50
  %v435 = vunpack.c.l.b16 %v51
  %v436 = vunpack.c.l.b16 %v52
  %v437 = vunpack.c.l.b16 %v53
  %v438 = vunpack.c.l.b16 %v54
  %v439 = vunpack.c.l.b16 %v55
  %v440 = vunpack.c.l.b16 %v56
  %v441 = vunpack.c.l.b16 %v57
  %v442 = vunpack.c.l.b16 %v58
  %v443 = vunpack.c.l.b16 %v59
  %v444 = vunpack.c.l.b16 %v60
  %v445 = vunpack.c.l.b16 %v61
  %v446 = vunpack.c.l.b16 %v62
  %v447 = vunpack.c.l.b16 %v63
  %v448 = vunpack.c.l.b16 %v64
  %v449 = vunpack.c.l.b16 %v65
  %v450 = vunpack.c.l.b16 %v66
  %v451 = vunpack.c.l.b16 %v67
  %v452 = vunpack.c.l.b16 %v68
  %v453 = vunpack.c.l.b16 %v69
  %v454 = vunpack.c.l.b16 %v70
  %v455 = vunpack.c.l.b16 %v71
  %v456 = vunpack.c.l.b16 %v72
  %v457 = vunpack.c.l.b16 %v73
  %v458 = vunpack.c.l.b16 %v74
  %v459 = vunpack.c.l.b16 %v75
  %v460 = vunpack.c.l.b16 %v76
  %v461 = vunpack.c.l.b16 %v77
  %v462 = vunpack.c.l.b16 %v78
  %v463 = vunpack.c.l.b16 %v79
  %v464 = vunpack.c.l.b16 %v80
  %v465 = vunpack.c.l.b16 %v81
  %v466 = vunpack.c.l.b16 %v82
  %v467 = vunpack.c.l.b16 %v83
  %v468 = vunpack.c.l.b16 %v84
  %v469 = vunpack.c.l.b16 %v85
  %v470 = vunpack.c.l.b16 %v86
  %v471 = vunpack.c.l.b16 %v87
  %v472 = vunpack.c.l.b16 %v88
  %v473 = vunpack.c.l.b16 %v89
  %v474 = vunpack.c.l.b16 %v90
  %v475 = vunpack.c.l.b16 %v91
  %v476 = vunpack.c.l.b16 %v92
  %v477 = vunpack.c.l.b16 %v93
  %v478 = vunpack.c.l.b16 %v94
  %v479 = vunpack.c.l.b16 %v95
  %v480 = vunpack.c.l.b16 %v96
  %v481 = vunpack.c.l.b16 %v97
  %v482 = vunpack.c.l.b16 %v98
  %v483 = vunpack.c.l.b16 %v99
  %v484 = vunpack.c.l.b16 %v100
  %v485 = vunpack.c.l.b16 %v101
  %v486 = vunpack.c.l.b16 %v102
  %v487 = vunpack.c.l.b16 %v103
  %v488 = vunpack.c.l.b16 %v104
  %v489 = vunpack.c.l.b16 %v105
  %v490 = vunpack.c.l.b16 %v106
  %v491 = vunpack.c.l.b16 %v107
  %v492 = vunpack.c.l.b16 %v108
  %v493 = vunpack.c.l.b16 %v109
  %v494 = vunpack.c.l.b16 %v110
  %v495 = vunpack.c.l.b16 %v111
  %v496 = vunpack.c.l.b16 %v112
  %v497 = vunpack.c.l.b16 %v113
  %v498 = vunpack.c.l.b16 %v114
  %v499 = vunpack.c.l.b16 %v115
  %v500 = vunpack.c.l.b16 %v116
  %v501 = vunpack.c.l.b16 %v117
  %v502 = vunpack.c.l.b16 %v118
  %v503 = vunpack.c.l.b16 %v119
  %v504 = vunpack.c.l.b16 %v120
  %v505 = vunpack.c.l.b16 %v121
  %v506 = vunpack.c.l.b16 %v122
  %v507 = vunpack.c.l.b16 %v123
  %v508 = vunpack.c.l.b16 %v124
  %v509 = vunpack.c.l.b16 %v125
  %v510 = vunpack.c.l.b16 %v126
  %v511 = vunpack.c.l.b16 %v127
  %v512 = vunpack.c.l.b16 %v128
  %v513 = vunpack.c.l.b16 %v129
  %v514 = vunpack.c.l.b16 %v130
  %v515 = vunpack.c.l.b16 %v131
  %v516 = vunpack.c.l.b16 %v132
  %v517 = vunpack.c.l.b16 %v133
  %v518 = vunpack.c.l.b16 %v134
  %v519 = vunpack.c.l.b16 %v135
  %v520 = vunpack.c.l.b16 %v136
  %v521 = vunpack.c.l.b16 %v137
  %v522 = vunpack.c.l.b16 %v138
  %v523 = vunpack.c.l.b16 %v139
  %v524 = vunpack.c.l.b16 %v140
  %v525 = vunpack.c.l.b16 %v141
  %v526 = vunpack.c.l.b16 %v142
  %v527 = vunpack.c.l.b16 %v143
  %v528 = vunpack.c.l.b16 %v144
  %v529 = vunpack.c.l.b16 %v145
  %v530 = vunpack.c.l.b16 %v146
  %v531 = vunpack.c.l.b16 %v147
  %v532 = vunpack.c.l.b16 %v148
  %v533 = vunpack.c.l.b16 %v149
  %v534 = vunpack.c.l.b16 %v150
  %v535 = vunpack.c.l.b16 %v151
  %v536 = vunpack.c.l.b16 %v152
  %v537 = vunpack.c.l.b16 %v153
  %v538 = vunpack.c.l.b16 %v154
  %v539 = vunpack.c.l.b16 %v155
  %v540 = vunpack.c.l.b16 %v156
  %v541 = vunpack.c.l.b16 %v157
  %v542 = vunpack.c.l.b16 %v158
  %v543 = vunpack.c.l.b16 %v159
  %v544 = vunpack.c.l.b16 %v160
  %v545 = vunpack.c.l.b16 %v161
  %v546 = vunpack.c.l.b16 %v162
  %v547 = vunpack.c.l.b16 %v163
  %v548 = vunpack.c.l.b16 %v164
  %v549 = vunpack.c.l.b16 %v165
  %v550 = vunpack.c.l.b16 %v166
  %v551 = vunpack.c.l.b16 %v167
  %v552 = vunpack.c.l.b16 %v168
  %v553 = vunpack.c.l.b16 %v169
  %v554 = vunpack.c.l.b16 %v170
  %v555 = vunpack.c.l.b16 %v171
  %v556 = vunpack.c.l.b16 %v172
  %v557 = vunpack.c.l.b16 %v173
  %v558 = vunpack.c.l.b16 %v174
  %v559 = vunpack.c.l.b16 %v175
  %v560 = vunpack.c.l.b16 %v176
  %v561 = vunpack.c.l.b16 %v177
  %v562 = vpack.c.b16 %v419, %v418
  %v563 = vpack.c.b16 %v421, %v420
  %v564 = vpack.c.b16 %v423, %v422
  %v565 = vpack.c.b16 %v425, %v424
  %v566 = vpack.c.b16 %v427, %v426
  %v567 = vpack.c.b16 %v429, %v428
  %v568 = vpack.c.b16 %v431, %v430
  %v569 = vpack.c.b16 %v433, %v432
  %v570 = vpack.c.b16 %v435, %v434
  %v571 = vpack.c.b16 %v437, %v436
  %v572 = vpack.c.b16 %v439, %v438
  %v573 = vpack.c.b16 %v441, %v440
  %v574 = vpack.c.b16 %v443, %v442
  %v575 = vpack.c.b16 %v445, %v444
  %v576 = vpack.c.b16 %v447, %v446
  %v577 = vpack.c.b16 %v449, %v448
  %v578 = vpack.c.b16 %v451, %v450
  %v579 = vpack.c.b16 %v453, %v452
  %v580 = vpack.c.b16 %v455, %v454
  %v581 = vpack.c.b16 %v457, %v456
  %v582 = vpack.c.b16 %v459, %v458
  %v583 = vpack.c.b16 %v461, %v460
  %v584 = vpack.c.b16 %v463, %v462
  %v585 = vpack.c.b16 %v465, %v464
  %v586 = vpack.c.b16 %v467, %v466
  %v587 = vpack.c.b16 %v469, %v468
  %v588 = vpack.c.b16 %v471, %v470
  %v589 = vpack.c.b16 %v473, %v472
  %v590 = vpack.c.b16 %v475, %v474
  %v591 = vpack.c.b16 %v477, %v476
  %v592 = vpack.c.b16 %v479, %v478
  %v593 = vpack.c.b16 %v481, %v480
  %v594 = vpack.c.b16 %v483, %v482
  %v595 = vpack.c.b16 %v485, %v484
  %v596 = vpack.c.b16 %v487, %v486
  %v597 = vpack.c.b16 %v489, %v488
  %v598 = vpack.c.b16 %v491, %v490
  %v599 = vpack.c.b16 %v493, %v492
  %v600 = vpack.c.b16 %v495, %v494
  %v601 = vpack.c.b16 %v497, %v496
  %v602 = vpack.c.b16 %v499, %v498
  %v603 = vpack.c.b16 %v501, %v500
  %v604 = vpack.c.b16 %v503, %v502
  %v605 = vpack.c.b16 %v505, %v504
  %v606 = vpack.c.b16 %v507, %v506
  %v607 = vpack.c.b16 %v509, %v508
  %v608 = vpack.c.b16 %v511, %v510
  %v609 = vpack.c.b16 %v513, %v512
  %v610 = vpack.c.b16 %v515, %v514
  %v611 = vpack.c.b16 %v517, %v516
  %v612 = vpack.c.b16 %v519, %v518
  %v613 = vpack.c.b16 %v521, %v520
  %v614 = vpack.c.b16 %v523, %v522
  %v615 = vpack.c.b16 %v525, %v524
  %v616 = vpack.c.b16 %v527, %v526
  %v617 = vpack.c.b16 %v529, %v528
  %v618 = vpack.c.b16 %v531, %v530
  %v619 = vpack.c.b16 %v533, %v532
  %v620 = vpack.c.b16 %v535, %v534
  %v621 = vpack.c.b16 %v537, %v536
  %v622 = vpack.c.b16 %v539, %v538
  %v623 = vpack.c.b16 %v541, %v540
  %v624 = vpack.c.b16 %v543, %v542
  %v625 = vpack.c.b16 %v545, %v544
  %v626 = vpack.c.b16 %v547, %v546
  %v627 = vpack.c.b16 %v549, %v548
  %v628 = vpack.c.b16 %v551, %v550
  %v629 = vpack.c.b16 %v553, %v552
  %v630 = vpack.c.b16 %v555, %v554
  %v631 = vpack.c.b16 %v557, %v556
  %v632 = vpack.c.b16 %v559, %v558
  %v633 = vpack.c.b16 %v561, %v560
  %706 = vmatpush.bf16.msra.mxu0 %v569
  %707 = vmatpush.bf16.msra.mxu0 %v568
  %708 = vmatpush.bf16.msra.mxu0 %v567
  %709 = vmatpush.bf16.msra.mxu0 %v566
  %710 = vmatpush.bf16.msra.mxu0 %v565
  %711 = vmatpush.bf16.msra.mxu0 %v564
  %712 = vmatpush.bf16.msra.mxu0 %v563
  %713 = vmatpush.bf16.msra.mxu0 %v562
  %714 = vmatmul.bf16.gmra.mxu0 %v238
  %v715 = vpop.f32.mrf.mxu0
  %v716 = vadd.f32 %v180, %v715
  %v717 = vpop.f32.mrf.mxu0
  %v718 = vadd.f32 %v180, %v717
  %719 = vmatmul.bf16.gmra.mxu0 %v247
  %v720 = vpop.f32.mrf.mxu0
  %v721 = vadd.f32 %v180, %v720
  %v722 = vpop.f32.mrf.mxu0
  %v723 = vadd.f32 %v180, %v722
  %724 = vdwg.mxu0
  %725 = vmatpush.bf16.msra.mxu0 %v577
  %726 = vmatpush.bf16.msra.mxu0 %v576
  %727 = vmatpush.bf16.msra.mxu0 %v575
  %728 = vmatpush.bf16.msra.mxu0 %v574
  %729 = vmatpush.bf16.msra.mxu0 %v573
  %730 = vmatpush.bf16.msra.mxu0 %v572
  %731 = vmatpush.bf16.msra.mxu0 %v571
  %732 = vmatpush.bf16.msra.mxu0 %v570
  %733 = vmatmul.bf16.gmra.mxu0 %v239
  %v734 = vpop.f32.mrf.mxu0
  %v735 = vadd.f32 %v716, %v734
  %v736 = vpop.f32.mrf.mxu0
  %v737 = vadd.f32 %v718, %v736
  %738 = vmatmul.bf16.gmra.mxu0 %v248
  %v739 = vpop.f32.mrf.mxu0
  %v740 = vadd.f32 %v721, %v739
  %v741 = vpop.f32.mrf.mxu0
  %v742 = vadd.f32 %v723, %v741
  %743 = vdwg.mxu0
  %744 = vmatpush.bf16.msra.mxu0 %v585
  %745 = vmatpush.bf16.msra.mxu0 %v584
  %746 = vmatpush.bf16.msra.mxu0 %v583
  %747 = vmatpush.bf16.msra.mxu0 %v582
  %748 = vmatpush.bf16.msra.mxu0 %v581
  %749 = vmatpush.bf16.msra.mxu0 %v580
  %750 = vmatpush.bf16.msra.mxu0 %v579
  %751 = vmatpush.bf16.msra.mxu0 %v578
  %752 = vmatmul.bf16.gmra.mxu0 %v240
  %v753 = vpop.f32.mrf.mxu0
  %v754 = vadd.f32 %v735, %v753
  %v755 = vpop.f32.mrf.mxu0
  %v756 = vadd.f32 %v737, %v755
  %757 = vmatmul.bf16.gmra.mxu0 %v249
  %v758 = vpop.f32.mrf.mxu0
  %v759 = vadd.f32 %v740, %v758
  %v760 = vpop.f32.mrf.mxu0
  %v761 = vadd.f32 %v742, %v760
  %762 = vdwg.mxu0
  %763 = vmatpush.bf16.msra.mxu0 %v593
  %764 = vmatpush.bf16.msra.mxu0 %v592
  %765 = vmatpush.bf16.msra.mxu0 %v591
  %766 = vmatpush.bf16.msra.mxu0 %v590
  %767 = vmatpush.bf16.msra.mxu0 %v589
  %768 = vmatpush.bf16.msra.mxu0 %v588
  %769 = vmatpush.bf16.msra.mxu0 %v587
  %770 = vmatpush.bf16.msra.mxu0 %v586
  %771 = vmatmul.bf16.gmra.mxu0 %v241
  %v772 = vpop.f32.mrf.mxu0
  %v773 = vadd.f32 %v754, %v772
  %v774 = vpop.f32.mrf.mxu0
  %v775 = vadd.f32 %v756, %v774
  %776 = vmatmul.bf16.gmra.mxu0 %v250
  %v777 = vpop.f32.mrf.mxu0
  %v778 = vadd.f32 %v759, %v777
  %v779 = vpop.f32.mrf.mxu0
  %v780 = vadd.f32 %v761, %v779
  %781 = vdwg.mxu0
  %782 = vmatpush.bf16.msra.mxu0 %v601
  %783 = vmatpush.bf16.msra.mxu0 %v600
  %784 = vmatpush.bf16.msra.mxu0 %v599
  %785 = vmatpush.bf16.msra.mxu0 %v598
  %786 = vmatpush.bf16.msra.mxu0 %v597
  %787 = vmatpush.bf16.msra.mxu0 %v596
  %788 = vmatpush.bf16.msra.mxu0 %v595
  %789 = vmatpush.bf16.msra.mxu0 %v594
  %790 = vmatmul.bf16.gmra.mxu0 %v242
  %v791 = vpop.f32.mrf.mxu0
  %v792 = vadd.f32 %v773, %v791
  %v793 = vpop.f32.mrf.mxu0
  %v794 = vadd.f32 %v775, %v793
  %795 = vmatmul.bf16.gmra.mxu0 %v251
  %v796 = vpop.f32.mrf.mxu0
  %v797 = vadd.f32 %v778, %v796
  %v798 = vpop.f32.mrf.mxu0
  %v799 = vadd.f32 %v780, %v798
  %800 = vdwg.mxu0
  %801 = vmatpush.bf16.msra.mxu0 %v609
  %802 = vmatpush.bf16.msra.mxu0 %v608
  %803 = vmatpush.bf16.msra.mxu0 %v607
  %804 = vmatpush.bf16.msra.mxu0 %v606
  %805 = vmatpush.bf16.msra.mxu0 %v605
  %806 = vmatpush.bf16.msra.mxu0 %v604
  %807 = vmatpush.bf16.msra.mxu0 %v603
  %808 = vmatpush.bf16.msra.mxu0 %v602
  %809 = vmatmul.bf16.gmra.mxu0 %v243
  %v810 = vpop.f32.mrf.mxu0
  %v811 = vadd.f32 %v792, %v810
  %v812 = vpop.f32.mrf.mxu0
  %v813 = vadd.f32 %v794, %v812
  %814 = vmatmul.bf16.gmra.mxu0 %v252
  %v815 = vpop.f32.mrf.mxu0
  %v816 = vadd.f32 %v797, %v815
  %v817 = vpop.f32.mrf.mxu0
  %v818 = vadd.f32 %v799, %v817
  %819 = vdwg.mxu0
  %820 = vmatpush.bf16.msra.mxu0 %v617
  %821 = vmatpush.bf16.msra.mxu0 %v616
  %822 = vmatpush.bf16.msra.mxu0 %v615
  %823 = vmatpush.bf16.msra.mxu0 %v614
  %824 = vmatpush.bf16.msra.mxu0 %v613
  %825 = vmatpush.bf16.msra.mxu0 %v612
  %826 = vmatpush.bf16.msra.mxu0 %v611
  %827 = vmatpush.bf16.msra.mxu0 %v610
  %828 = vmatmul.bf16.gmra.mxu0 %v244
  %v829 = vpop.f32.mrf.mxu0
  %v830 = vadd.f32 %v811, %v829
  %v831 = vpop.f32.mrf.mxu0
  %v832 = vadd.f32 %v813, %v831
  %833 = vmatmul.bf16.gmra.mxu0 %v253
  %v834 = vpop.f32.mrf.mxu0
  %v835 = vadd.f32 %v816, %v834
  %v836 = vpop.f32.mrf.mxu0
  %v837 = vadd.f32 %v818, %v836
  %838 = vdwg.mxu0
  %839 = vmatpush.bf16.msra.mxu0 %v625
  %840 = vmatpush.bf16.msra.mxu0 %v624
  %841 = vmatpush.bf16.msra.mxu0 %v623
  %842 = vmatpush.bf16.msra.mxu0 %v622
  %843 = vmatpush.bf16.msra.mxu0 %v621
  %844 = vmatpush.bf16.msra.mxu0 %v620
  %845 = vmatpush.bf16.msra.mxu0 %v619
  %846 = vmatpush.bf16.msra.mxu0 %v618
  %847 = vmatmul.bf16.gmra.mxu0 %v245
  %v848 = vpop.f32.mrf.mxu0
  %v849 = vadd.f32 %v830, %v848
  %v850 = vpop.f32.mrf.mxu0
  %v851 = vadd.f32 %v832, %v850
  %852 = vmatmul.bf16.gmra.mxu0 %v254
  %v853 = vpop.f32.mrf.mxu0
  %v854 = vadd.f32 %v835, %v853
  %v855 = vpop.f32.mrf.mxu0
  %v856 = vadd.f32 %v837, %v855
  %857 = vdwg.mxu0
  %858 = vmatpush.bf16.msra.mxu0 %v633
  %859 = vmatpush.bf16.msra.mxu0 %v632
  %860 = vmatpush.bf16.msra.mxu0 %v631
  %861 = vmatpush.bf16.msra.mxu0 %v630
  %862 = vmatpush.bf16.msra.mxu0 %v629
  %863 = vmatpush.bf16.msra.mxu0 %v628
  %864 = vmatpush.bf16.msra.mxu0 %v627
  %865 = vmatpush.bf16.msra.mxu0 %v626
  %866 = vmatmul.bf16.gmra.mxu0 %v246
  %v867 = vpop.f32.mrf.mxu0
  %v868 = vadd.f32 %v849, %v867
  %v869 = vpop.f32.mrf.mxu0
  %v870 = vadd.f32 %v851, %v869
  %871 = vmatmul.bf16.gmra.mxu0 %v255
  %v872 = vpop.f32.mrf.mxu0
  %v873 = vadd.f32 %v854, %v872
  %v874 = vpop.f32.mrf.mxu0
  %v875 = vadd.f32 %v856, %v874
  %876 = vdwg.mxu0
  %v877 = vmax.f32 %v868, 0.0
  %v878 = vmax.f32 %v870, 0.0
  %v879 = vmax.f32 %v873, 0.0
  %v880 = vmax.f32 %v875, 0.0
  %881 = vst [vmem:[%s3] sm:$0xff] %v877
  %882 = vst [vmem:[%s3 + $0x8] sm:$0xff] %v878
  %883 = vst [vmem:[%s3 + $0x10] sm:$0xff] %v879
  %884 = vst [vmem:[%s3 + $0x18] sm:$0xff] %v880
  // Predicated region
  $region14: #{_lambda_.21} parent=0 // pred_check
    _
  $region15: #{_lambda_.21} parent=0 // pred_check_branch
    %886 = sbr.rel (0) target = $region17
  $region16: #{_lambda_.21} parent=0 // pred_region
    _
  $region17: #{_lambda_.21} parent=0 // pred_fallthru
    _
  // Predicated region
  $region18: #{_lambda_.21} parent=0 // pred_check
    _
  $region19: #{_lambda_.21} parent=0 // pred_check_branch
    %888 = sbr.rel (0) target = $region21
  $region20: #{_lambda_.21} parent=0 // pred_region
    _
  $region21: #{_lambda_.21} parent=0 // pred_fallthru
    _

// kernel: _lambda_.23
$region0: #{_lambda_.23}
  #allocation0 [shape = 'u32[]', space=smem, size = 0x4, offset = 0x4, fixed_abs, tag = 'smem constant byte address 0x4 - core index']
  #allocation1 [shape = 'u32[72,128]{1,0:T(1,128)}', space=vmem, size = 0x9000, scoped, tag = 'internal scratch']
  #allocation2 [shape = 'f32[64,128]{1,0:T(8,128)}', space=vmem, size = 0x8000, scoped, tag = 'scratch operand']
  %s0 = inlined_call_operand.vmem [shape: f32[112,128], index: 0, kind: input, shape index: {}, may-alias: {0,1}]
  %s1 = inlined_call_operand.vmem [shape: f32[112,128], index: 1, kind: input, shape index: {}, may-alias: {0,1}]
  %s2 = inlined_call_operand.vmem [shape: bf16[1152,128], index: 2, kind: input, shape index: {}]
  %s3 = inlined_call_operand.vmem [shape: f32[1,128], index: 3, kind: input, shape index: {}]
  %s4 = inlined_call_operand.vmem [shape: f32[96,128], index: 4, kind: input, shape index: {}]
  %s5 = inlined_call_operand.vmem [shape: f32[96,128], index: 5, kind: output, shape index: {}]
  %s6 = sld [smem:[#allocation0]]
  $region53: #{_lambda_.23} parent=0
    _
  %s8 = ssub.s32 1, %s6
  %s9 = scalar_select 0, %s8, %s6
  loop: start=0, step=1, limit=4
  $region2: #{_lambda_.23} parent=0 // loop_pre_header
    _
  $region3: #{_lambda_.23} parent=0 // loop_header
    %s11 = sphi 0, %s15
    %p12 = scmp.ge.s32.totalorder %s11, 4
    %s21 = sphi 0, %s23
    %s24 = sphi 0, %s21
    %s25 = sphi 0, %s24
    %s41 = sphi 0, %s25
    %s51 = sphi 0, %s53
    %s54 = sphi 0, %s51
    %s55 = sphi 0, %s54
    %s71 = sphi 0, %s55
    %s75 = sphi 0, %s75
    %s77 = sphi 0, %s75
    %s78 = sphi 0, %s77
    %s92 = sphi 0, %s78
    %s96 = sphi 0, %s96
    %s98 = sphi 0, %s96
    %s99 = sphi 0, %s98
    %s113 = sphi 0, %s99
    %s119 = sphi 0, %s121
    %s122 = sphi 0, %s119
    %s123 = sphi 0, %s122
    %s139 = sphi 0, %s123
    %s145 = sphi 0, %s147
    %s148 = sphi 0, %s145
    %s149 = sphi 0, %s148
    %s165 = sphi 0, %s149
  $region4: #{_lambda_.23} parent=0 // loop_header_branch
    %14 = sbr.rel (%p12) target = $region8
  $region5: #{_lambda_.23} parent=0 // loop_body
    %s16 = ssub.s32 %s11, 1
    %s17 = ssub.s32 %s11, 2
    %s18 = sadd.s32 %s11, 1
    %s19 = ssub.s32 %s11, %s18
    %p20 = scmp.eq.s32.totalorder %s19, 0
    %s22 = sadd.s32 %s21, 1
    %s23 = scalar_select %p20, %s21, %s22
    %p26 = pneg %p20
    %p27 = scmp.eq.s32.totalorder %s11, 1
    %p28 = por %p26, %p27
    %p29 = scmp.ne.s32.totalorder %s21, %s24
    %p30 = scmp.eq.s32.totalorder %s11, 0
    %p31 = por %p29, %p30
    %p32 = scmp.ne.s32.totalorder %s21, %s24
    %p33 = scmp.eq.s32.totalorder %s16, 1
    %p34 = por %p32, %p33
    %p35 = scmp.ne.s32.totalorder %s24, %s25
    %p36 = scmp.eq.s32.totalorder %s16, 0
    %p37 = por %p35, %p36
    %p38 = scmp.ne.s32.totalorder %s24, %s25
    %p39 = scmp.eq.s32.totalorder %s17, 1
    %p40 = por %p38, %p39
    %p42 = scmp.ne.s32.totalorder %s25, %s41
    %p43 = scmp.eq.s32.totalorder %s17, 0
    %p44 = por %p42, %p43
    %s45 = sadd.s32 %s11, 1
    %s46 = smul.u32 %s45, 3
    %s47 = sadd.s32 %s18, 1
    %s48 = smul.u32 %s47, 3
    %s49 = ssub.s32 %s46, %s48
    %p50 = scmp.eq.s32.totalorder %s49, 0
    %s52 = sadd.s32 %s51, 1
    %s53 = scalar_select %p50, %s51, %s52
    %p56 = pneg %p50
    %p57 = scmp.eq.s32.totalorder %s11, 1
    %p58 = por %p56, %p57
    %p59 = scmp.ne.s32.totalorder %s51, %s54
    %p60 = scmp.eq.s32.totalorder %s11, 0
    %p61 = por %p59, %p60
    %p62 = scmp.ne.s32.totalorder %s51, %s54
    %p63 = scmp.eq.s32.totalorder %s16, 1
    %p64 = por %p62, %p63
    %p65 = scmp.ne.s32.totalorder %s54, %s55
    %p66 = scmp.eq.s32.totalorder %s16, 0
    %p67 = por %p65, %p66
    %p68 = scmp.ne.s32.totalorder %s54, %s55
    %p69 = scmp.eq.s32.totalorder %s17, 1
    %p70 = por %p68, %p69
    %p72 = scmp.ne.s32.totalorder %s55, %s71
    %p73 = scmp.eq.s32.totalorder %s17, 0
    %p74 = por %p72, %p73
    %s76 = sadd.s32 %s75, 1
    %p79 = scmp.eq.s32.totalorder %s11, 1
    %p80 = scmp.ne.s32.totalorder %s75, %s77
    %p81 = scmp.eq.s32.totalorder %s11, 0
    %p82 = por %p80, %p81
    %p83 = scmp.ne.s32.totalorder %s75, %s77
    %p84 = scmp.eq.s32.totalorder %s16, 1
    %p85 = por %p83, %p84
    %p86 = scmp.ne.s32.totalorder %s77, %s78
    %p87 = scmp.eq.s32.totalorder %s16, 0
    %p88 = por %p86, %p87
    %p89 = scmp.ne.s32.totalorder %s77, %s78
    %p90 = scmp.eq.s32.totalorder %s17, 1
    %p91 = por %p89, %p90
    %p93 = scmp.ne.s32.totalorder %s78, %s92
    %p94 = scmp.eq.s32.totalorder %s17, 0
    %p95 = por %p93, %p94
    %s97 = sadd.s32 %s96, 1
    %p100 = scmp.eq.s32.totalorder %s11, 1
    %p101 = scmp.ne.s32.totalorder %s96, %s98
    %p102 = scmp.eq.s32.totalorder %s11, 0
    %p103 = por %p101, %p102
    %p104 = scmp.ne.s32.totalorder %s96, %s98
    %p105 = scmp.eq.s32.totalorder %s16, 1
    %p106 = por %p104, %p105
    %p107 = scmp.ne.s32.totalorder %s98, %s99
    %p108 = scmp.eq.s32.totalorder %s16, 0
    %p109 = por %p107, %p108
    %p110 = scmp.ne.s32.totalorder %s98, %s99
    %p111 = scmp.eq.s32.totalorder %s17, 1
    %p112 = por %p110, %p111
    %p114 = scmp.ne.s32.totalorder %s99, %s113
    %p115 = scmp.eq.s32.totalorder %s17, 0
    %p116 = por %p114, %p115
    %s117 = ssub.s32 %s11, %s18
    %p118 = scmp.eq.s32.totalorder %s117, 0
    %s120 = sadd.s32 %s119, 1
    %s121 = scalar_select %p118, %s119, %s120
    %p124 = pneg %p118
    %p125 = scmp.eq.s32.totalorder %s11, 1
    %p126 = por %p124, %p125
    %p127 = scmp.ne.s32.totalorder %s119, %s122
    %p128 = scmp.eq.s32.totalorder %s11, 0
    %p129 = por %p127, %p128
    %p130 = scmp.ne.s32.totalorder %s119, %s122
    %p131 = scmp.eq.s32.totalorder %s16, 1
    %p132 = por %p130, %p131
    %p133 = scmp.ne.s32.totalorder %s122, %s123
    %p134 = scmp.eq.s32.totalorder %s16, 0
    %p135 = por %p133, %p134
    %p136 = scmp.ne.s32.totalorder %s122, %s123
    %p137 = scmp.eq.s32.totalorder %s17, 1
    %p138 = por %p136, %p137
    %p140 = scmp.ne.s32.totalorder %s123, %s139
    %p141 = scmp.eq.s32.totalorder %s17, 0
    %p142 = por %p140, %p141
    %s143 = ssub.s32 %s11, %s18
    %p144 = scmp.eq.s32.totalorder %s143, 0
    %s146 = sadd.s32 %s145, 1
    %s147 = scalar_select %p144, %s145, %s146
    %p150 = pneg %p144
    %p151 = scmp.eq.s32.totalorder %s11, 1
    %p152 = por %p150, %p151
    %p153 = scmp.ne.s32.totalorder %s145, %s148
    %p154 = scmp.eq.s32.totalorder %s11, 0
    %p155 = por %p153, %p154
    %p156 = scmp.ne.s32.totalorder %s145, %s148
    %p157 = scmp.eq.s32.totalorder %s16, 1
    %p158 = por %p156, %p157
    %p159 = scmp.ne.s32.totalorder %s148, %s149
    %p160 = scmp.eq.s32.totalorder %s16, 0
    %p161 = por %p159, %p160
    %p162 = scmp.ne.s32.totalorder %s148, %s149
    %p163 = scmp.eq.s32.totalorder %s17, 1
    %p164 = por %p162, %p163
    %p166 = scmp.ne.s32.totalorder %s149, %s165
    %p167 = scmp.eq.s32.totalorder %s17, 0
    %p168 = por %p166, %p167
    %p169 = scmp.le.s32.totalorder 1, %s11
    %p170 = scmp.lt.s32.totalorder %s11, 3
    %p171 = pnand %p169, %p170
    %p172 = pneg %p171
    // Predicated region
    $region9: #{_lambda_.23} parent=5 // pred_check
      _
    $region10: #{_lambda_.23} parent=5 // pred_check_branch
      %174 = sbr.rel (%p171) target = $region12
    $region11: #{_lambda_.23} parent=5 // pred_region
      %s175 = ssub.s32 %s11, 1
      // Predicated region
      $region13: #{_lambda_.23} parent=11 // pred_check
        %p176 = pneg %p88
      $region14: #{_lambda_.23} parent=11 // pred_check_branch
        %178 = sbr.rel (%p176) target = $region16
      $region15: #{_lambda_.23} parent=11 // pred_region
        _
      $region16: #{_lambda_.23} parent=11 // pred_fallthru
        _
      // Predicated region
      $region17: #{_lambda_.23} parent=11 // pred_check
        %p179 = pneg %p109
      $region18: #{_lambda_.23} parent=11 // pred_check_branch
        %181 = sbr.rel (%p179) target = $region20
      $region19: #{_lambda_.23} parent=11 // pred_region
        _
      $region20: #{_lambda_.23} parent=11 // pred_fallthru
        _
    $region12: #{_lambda_.23} parent=5 // pred_fallthru
      _
    %p182 = scmp.lt.s32.totalorder %s11, 2
    // Predicated region
    $region21: #{_lambda_.23} parent=5 // pred_check
      %p183 = pneg %p182
    $region22: #{_lambda_.23} parent=5 // pred_check_branch
      %185 = sbr.rel (%p183) target = $region24
    $region23: #{_lambda_.23} parent=5 // pred_region
      // Predicated region
      $region25: #{_lambda_.23} parent=23 // pred_check
        %p186 = pneg %p31
      $region26: #{_lambda_.23} parent=23 // pred_check_branch
        %188 = sbr.rel (%p186) target = $region28
      $region27: #{_lambda_.23} parent=23 // pred_region
        %s189 = smul.u32 6, %s11
        %s190 = ssub.s32 14, %s189
        %p191 = scmp.lt.s32.totalorder %s190, 6
        %s192 = scalar_select %p191, %s190, 6
        %s193 = smul.u32 8, %s192
        %p194 = scmp.lt.s32.totalorder %s189, 13
        %s195 = scalar_select %p194, %s189, 13
        %s196 = smul.addr %s195, 8
        %s197 = scalar_lea.vmem %s0, %s196
        %s198 = smul.u32 6, %s11
        %s199 = ssub.s32 14, %s198
        %p200 = scmp.lt.s32.totalorder %s199, 6
        %s201 = scalar_select %p200, %s199, 6
        %s202 = smul.u32 8, %s201
      $region28: #{_lambda_.23} parent=23 // pred_fallthru
        _
      // Predicated region
      $region29: #{_lambda_.23} parent=23 // pred_check
        %p203 = pneg %p61
      $region30: #{_lambda_.23} parent=23 // pred_check_branch
        %205 = sbr.rel (%p203) target = $region32
      $region31: #{_lambda_.23} parent=23 // pred_region
        %s206 = sadd.s32 %s11, 1
        %s207 = smul.u32 %s206, 3
        %s208 = smul.u32 2, %s207
        %p209 = scmp.lt.s32.totalorder %s208, 13
        %s210 = scalar_select %p209, %s208, 13
        %s211 = smul.addr %s210, 8
        %s212 = scalar_lea.vmem %s1, %s211
        %s213 = sadd.s32 %s11, 1
        %s214 = smul.u32 %s213, 3
        %s215 = smul.u32 2, %s214
      $region32: #{_lambda_.23} parent=23 // pred_fallthru
        _
      // Predicated region
      $region33: #{_lambda_.23} parent=23 // pred_check
        %p216 = pneg %p129
      $region34: #{_lambda_.23} parent=23 // pred_check_branch
        %218 = sbr.rel (%p216) target = $region36
      $region35: #{_lambda_.23} parent=23 // pred_region
        %s219 = smul.u32 6, %s11
        %p220 = scmp.lt.s32.totalorder %s219, 11
        %s221 = scalar_select %p220, %s219, 11
        %s222 = smul.addr %s221, 8
        %s223 = scalar_lea.vmem %s4, %s222
        %s224 = smul.u32 6, %s11
      $region36: #{_lambda_.23} parent=23 // pred_fallthru
        _
    $region24: #{_lambda_.23} parent=5 // pred_fallthru
      _
    %p225 = scmp.le.s32.totalorder 1, %s11
    %p226 = scmp.lt.s32.totalorder %s11, 3
    %p227 = pnand %p225, %p226
    %p228 = pneg %p227
    // Predicated region
    $region37: #{_lambda_.23} parent=5 // pred_check
      _
    $region38: #{_lambda_.23} parent=5 // pred_check_branch
      %230 = sbr.rel (%p227) target = $region40
    $region39: #{_lambda_.23} parent=5 // pred_region
      %s231 = ssub.s32 %s11, 1
      %s232 = smul.u32 6, %s16
      %s233 = ssub.s32 14, %s232
      %p234 = scmp.lt.s32.totalorder %s233, 6
      %s235 = scalar_select %p234, %s233, 6
      %s236 = smul.u32 8, %s235
      %p237 = scmp.lt.s32.totalorder %s232, 13
      %s238 = scalar_select %p237, %s232, 13
      %s239 = smul.addr %s238, 8
      %s240 = scalar_lea.vmem %s0, %s239
      %p241 = pneg %p37
      %p242 = pneg %p34
      %s243 = sadd.s32 %s16, 1
      %s244 = smul.u32 %s243, 3
      %s245 = smul.u32 2, %s244
      %p246 = scmp.lt.s32.totalorder %s245, 13
      %s247 = scalar_select %p246, %s245, 13
      %s248 = smul.addr %s247, 8
      %s249 = scalar_lea.vmem %s1, %s248
      %p250 = pneg %p67
      %p251 = pneg %p64
      %p252 = pneg %p88
      %p253 = pneg %p85
      %p254 = pneg %p109
      %p255 = pneg %p106
      %s256 = smul.u32 6, %s16
      %p257 = scmp.lt.s32.totalorder %s256, 11
      %s258 = scalar_select %p257, %s256, 11
      %s259 = smul.addr %s258, 8
      %s260 = scalar_lea.vmem %s4, %s259
      %p261 = pneg %p135
      %p262 = pneg %p132
      %p263 = pneg %p161
      %p264 = pneg %p158
      %s265 = smul.u32 6, %s16
      %p266 = scmp.lt.s32.totalorder %s265, 11
      %s267 = scalar_select %p266, %s265, 11
      %s268 = smul.addr %s267, 8
      %s269 = scalar_lea.vmem %s5, %s268
      %s270 = smul.u32 6, %s16
      %s271 = ssub.s32 14, %s270
      %p272 = scmp.lt.s32.totalorder %s271, 6
      %s273 = scalar_select %p272, %s271, 6
      %s274 = smul.u32 8, %s273
      %p275 = scmp.lt.s32.totalorder %s270, 13
      %s276 = scalar_select %p275, %s270, 13
      %s277 = smul.addr %s276, 8
      %s278 = scalar_lea.vmem %s0, %s277
      %s279 = smul.u32 6, %s16
      %s280 = ssub.s32 14, %s279
      %p281 = scmp.lt.s32.totalorder %s280, 6
      %s282 = scalar_select %p281, %s280, 6
      %s283 = smul.u32 8, %s282
      %s284 = sadd.s32 %s16, 1
      %s285 = smul.u32 %s284, 3
      %s286 = smul.u32 2, %s285
      %p287 = scmp.lt.s32.totalorder %s286, 13
      %s288 = scalar_select %p287, %s286, 13
      %s289 = smul.addr %s288, 8
      %s290 = scalar_lea.vmem %s1, %s289
      %s291 = sadd.s32 %s16, 1
      %s292 = smul.u32 %s291, 3
      %s293 = smul.u32 2, %s292
      %s294 = smul.u32 6, %s16
      %p295 = scmp.lt.s32.totalorder %s294, 11
      %s296 = scalar_select %p295, %s294, 11
      %s297 = smul.addr %s296, 8
      %s298 = scalar_lea.vmem %s4, %s297
      %s299 = smul.u32 6, %s16
      %s300 = smul.u32 6, %s16
      %p301 = scmp.lt.s32.totalorder %s300, 11
      %s302 = scalar_select %p301, %s300, 11
      %s303 = smul.addr %s302, 8
      %s304 = scalar_lea.vmem %s5, %s303
      %s305 = smul.u32 6, %s16
      %v306 = vld [vmem:[%s278] sm:$0xff]
      %v307 = vld [vmem:[%s278 + $0x8] sm:$0xff]
      %v308 = vld [vmem:[%s278 + $0x10] sm:$0xff]
      %v309 = vld [vmem:[%s278 + $0x18] sm:$0xff]
      %v310 = vld [vmem:[%s278 + $0x20] sm:$0xff]
      %v311 = vld [vmem:[%s278 + $0x28] sm:$0xff]
      %312 = vst [vmem:[#allocation2] sm:$0xff] %v306
      %313 = vst [vmem:[#allocation2 + $0x8] sm:$0xff] %v307
      %314 = vst [vmem:[#allocation2 + $0x10] sm:$0xff] %v308
      %315 = vst [vmem:[#allocation2 + $0x18] sm:$0xff] %v309
      %316 = vst [vmem:[#allocation2 + $0x20] sm:$0xff] %v310
      %317 = vst [vmem:[#allocation2 + $0x28] sm:$0xff] %v311
      %v318 = vld [vmem:[%s290] sm:$0xff]
      %v319 = vld [vmem:[%s290 + $0x8] sm:$0xff]
      %320 = vst [vmem:[#allocation2 + $0x30] sm:$0xff] %v318
      %321 = vst [vmem:[#allocation2 + $0x38] sm:$0xff] %v319
      %v322 = vld [vmem:[#allocation2] sm:$0xff]
      %v323 = vld [vmem:[#allocation2 + $0x8] sm:$0xff]
      %v324 = vld [vmem:[#allocation2 + $0x10] sm:$0xff]
      %v325 = vld [vmem:[#allocation2 + $0x18] sm:$0xff]
      %v326 = vld [vmem:[#allocation2 + $0x20] sm:$0xff]
      %v327 = vld [vmem:[#allocation2 + $0x28] sm:$0xff]
      %v328 = vpack.c.bf16 %v323, %v322
      %v329 = vpack.c.bf16 %v325, %v324
      %v330 = vpack.c.bf16 %v327, %v326
      %v331 = vld [vmem:[%s2] sm:$0xf]
      %v332 = vld [vmem:[%s2 + $0x4] sm:$0xf]
      %v333 = vld [vmem:[%s2 + $0x8] sm:$0xf]
      %v334 = vld [vmem:[%s2 + $0xc] sm:$0xf]
      %v335 = vld [vmem:[%s2 + $0x10] sm:$0xf]
      %v336 = vld [vmem:[%s2 + $0x14] sm:$0xf]
      %v337 = vld [vmem:[%s2 + $0x18] sm:$0xf]
      %v338 = vld [vmem:[%s2 + $0x1c] sm:$0xf]
      %v339 = vld [vmem:[%s2 + $0x20] sm:$0xf]
      %v340 = vld [vmem:[%s2 + $0x24] sm:$0xf]
      %v341 = vld [vmem:[%s2 + $0x28] sm:$0xf]
      %v342 = vld [vmem:[%s2 + $0x2c] sm:$0xf]
      %v343 = vld [vmem:[%s2 + $0x30] sm:$0xf]
      %v344 = vld [vmem:[%s2 + $0x34] sm:$0xf]
      %v345 = vld [vmem:[%s2 + $0x38] sm:$0xf]
      %v346 = vld [vmem:[%s2 + $0x3c] sm:$0xf]
      %v347 = vld [vmem:[#allocation2 + $0x1] sm:$0xff]
      %v348 = vld [vmem:[#allocation2 + $0x9] sm:$0xff]
      %v349 = vld [vmem:[#allocation2 + $0x11] sm:$0xff]
      %v350 = vld [vmem:[#allocation2 + $0x19] sm:$0xff]
      %v351 = vld [vmem:[#allocation2 + $0x21] sm:$0xff]
      %v352 = vld [vmem:[#allocation2 + $0x29] sm:$0xff]
      %v353 = vpack.c.bf16 %v348, %v347
      %v354 = vpack.c.bf16 %v350, %v349
      %v355 = vpack.c.bf16 %v352, %v351
      %v356 = vld [vmem:[%s2 + $0x40] sm:$0xf]
      %v357 = vld [vmem:[%s2 + $0x44] sm:$0xf]
      %v358 = vld [vmem:[%s2 + $0x48] sm:$0xf]
      %v359 = vld [vmem:[%s2 + $0x4c] sm:$0xf]
      %v360 = vld [vmem:[%s2 + $0x50] sm:$0xf]
      %v361 = vld [vmem:[%s2 + $0x54] sm:$0xf]
      %v362 = vld [vmem:[%s2 + $0x58] sm:$0xf]
      %v363 = vld [vmem:[%s2 + $0x5c] sm:$0xf]
      %v364 = vld [vmem:[%s2 + $0x60] sm:$0xf]
      %v365 = vld [vmem:[%s2 + $0x64] sm:$0xf]
      %v366 = vld [vmem:[%s2 + $0x68] sm:$0xf]
      %v367 = vld [vmem:[%s2 + $0x6c] sm:$0xf]
      %v368 = vld [vmem:[%s2 + $0x70] sm:$0xf]
      %v369 = vld [vmem:[%s2 + $0x74] sm:$0xf]
      %v370 = vld [vmem:[%s2 + $0x78] sm:$0xf]
      %v371 = vld [vmem:[%s2 + $0x7c] sm:$0xf]
      %v388 = vunpack.c.l.b16 %v356
      %v389 = vunpack.c.l.b16 %v357
      %v390 = vunpack.c.l.b16 %v358
      %v391 = vunpack.c.l.b16 %v359
      %v392 = vunpack.c.l.b16 %v360
      %v393 = vunpack.c.l.b16 %v361
      %v394 = vunpack.c.l.b16 %v362
      %v395 = vunpack.c.l.b16 %v363
      %v396 = vunpack.c.l.b16 %v364
      %v397 = vunpack.c.l.b16 %v365
      %v398 = vunpack.c.l.b16 %v366
      %v399 = vunpack.c.l.b16 %v367
      %v400 = vunpack.c.l.b16 %v368
      %v401 = vunpack.c.l.b16 %v369
      %v402 = vunpack.c.l.b16 %v370
      %v403 = vunpack.c.l.b16 %v371
      %v404 = vpack.c.b16 %v389, %v388
      %v405 = vpack.c.b16 %v391, %v390
      %v406 = vpack.c.b16 %v393, %v392
      %v407 = vpack.c.b16 %v395, %v394
      %v408 = vpack.c.b16 %v397, %v396
      %v409 = vpack.c.b16 %v399, %v398
      %v410 = vpack.c.b16 %v401, %v400
      %v411 = vpack.c.b16 %v403, %v402
      %420 = vmatpush.bf16.msra.mxu0 %v411
      %421 = vmatpush.bf16.msra.mxu0 %v410
      %422 = vmatpush.bf16.msra.mxu0 %v409
      %423 = vmatpush.bf16.msra.mxu0 %v408
      %424 = vmatpush.bf16.msra.mxu0 %v407
      %425 = vmatpush.bf16.msra.mxu0 %v406
      %426 = vmatpush.bf16.msra.mxu0 %v405
      %427 = vmatpush.bf16.msra.mxu0 %v404
      %428 = vmatmul.bf16.gmra.mxu0 %v353
      %v429 = vpop.f32.mrf.mxu0
      %v430 = vadd.f32 0.0, %v429
      %v431 = vpop.f32.mrf.mxu0
      %v432 = vadd.f32 0.0, %v431
      %433 = vmatmul.bf16.gmra.mxu0 %v354
      %v434 = vpop.f32.mrf.mxu0
      %v435 = vadd.f32 0.0, %v434
      %v436 = vpop.f32.mrf.mxu0
      %v437 = vadd.f32 0.0, %v436
      %438 = vmatmul.bf16.gmra.mxu0 %v355
      %v439 = vpop.f32.mrf.mxu0
      %v440 = vadd.f32 0.0, %v439
      %v441 = vpop.f32.mrf.mxu0
      %v442 = vadd.f32 0.0, %v441
      %443 = vdwg.mxu0
      %v460 = vunpack.c.l.b16 %v331
      %v461 = vunpack.c.l.b16 %v332
      %v462 = vunpack.c.l.b16 %v333
      %v463 = vunpack.c.l.b16 %v334
      %v464 = vunpack.c.l.b16 %v335
      %v465 = vunpack.c.l.b16 %v336
      %v466 = vunpack.c.l.b16 %v337
      %v467 = vunpack.c.l.b16 %v338
      %v468 = vunpack.c.l.b16 %v339
      %v469 = vunpack.c.l.b16 %v340
      %v470 = vunpack.c.l.b16 %v341
      %v471 = vunpack.c.l.b16 %v342
      %v472 = vunpack.c.l.b16 %v343
      %v473 = vunpack.c.l.b16 %v344
      %v474 = vunpack.c.l.b16 %v345
      %v475 = vunpack.c.l.b16 %v346
      %v476 = vpack.c.b16 %v461, %v460
      %v477 = vpack.c.b16 %v463, %v462
      %v478 = vpack.c.b16 %v465, %v464
      %v479 = vpack.c.b16 %v467, %v466
      %v480 = vpack.c.b16 %v469, %v468
      %v481 = vpack.c.b16 %v471, %v470
      %v482 = vpack.c.b16 %v473, %v472
      %v483 = vpack.c.b16 %v475, %v474
      %492 = vmatpush.bf16.msra.mxu0 %v483
      %493 = vmatpush.bf16.msra.mxu0 %v482
      %494 = vmatpush.bf16.msra.mxu0 %v481
      %495 = vmatpush.bf16.msra.mxu0 %v480
      %496 = vmatpush.bf16.msra.mxu0 %v479
      %497 = vmatpush.bf16.msra.mxu0 %v478
      %498 = vmatpush.bf16.msra.mxu0 %v477
      %499 = vmatpush.bf16.msra.mxu0 %v476
      %500 = vmatmul.bf16.gmra.mxu0 %v328
      %v501 = vpop.f32.mrf.mxu0
      %v502 = vadd.f32 %v430, %v501
      %v503 = vpop.f32.mrf.mxu0
      %v504 = vadd.f32 %v432, %v503
      %505 = vmatmul.bf16.gmra.mxu0 %v329
      %v506 = vpop.f32.mrf.mxu0
      %v507 = vadd.f32 %v435, %v506
      %v508 = vpop.f32.mrf.mxu0
      %v509 = vadd.f32 %v437, %v508
      %510 = vmatmul.bf16.gmra.mxu0 %v330
      %v511 = vpop.f32.mrf.mxu0
      %v512 = vadd.f32 %v440, %v511
      %v513 = vpop.f32.mrf.mxu0
      %v514 = vadd.f32 %v442, %v513
      %515 = vdwg.mxu0
      %v516 = vld [vmem:[#allocation2 + $0x2] sm:$0xff]
      %v517 = vld [vmem:[#allocation2 + $0xa] sm:$0xff]
      %v518 = vld [vmem:[#allocation2 + $0x12] sm:$0xff]
      %v519 = vld [vmem:[#allocation2 + $0x1a] sm:$0xff]
      %v520 = vld [vmem:[#allocation2 + $0x22] sm:$0xff]
      %v521 = vld [vmem:[#allocation2 + $0x2a] sm:$0xff]
      %v522 = vpack.c.bf16 %v517, %v516
      %v523 = vpack.c.bf16 %v519, %v518
      %v524 = vpack.c.bf16 %v521, %v520
      %v525 = vld [vmem:[%s2 + $0x80] sm:$0xf]
      %v526 = vld [vmem:[%s2 + $0x84] sm:$0xf]
      %v527 = vld [vmem:[%s2 + $0x88] sm:$0xf]
      %v528 = vld [vmem:[%s2 + $0x8c] sm:$0xf]
      %v529 = vld [vmem:[%s2 + $0x90] sm:$0xf]
      %v530 = vld [vmem:[%s2 + $0x94] sm:$0xf]
      %v531 = vld [vmem:[%s2 + $0x98] sm:$0xf]
      %v532 = vld [vmem:[%s2 + $0x9c] sm:$0xf]
      %v533 = vld [vmem:[%s2 + $0xa0] sm:$0xf]
      %v534 = vld [vmem:[%s2 + $0xa4] sm:$0xf]
      %v535 = vld [vmem:[%s2 + $0xa8] sm:$0xf]
      %v536 = vld [vmem:[%s2 + $0xac] sm:$0xf]
      %v537 = vld [vmem:[%s2 + $0xb0] sm:$0xf]
      %v538 = vld [vmem:[%s2 + $0xb4] sm:$0xf]
      %v539 = vld [vmem:[%s2 + $0xb8] sm:$0xf]
      %v540 = vld [vmem:[%s2 + $0xbc] sm:$0xf]
      %v557 = vunpack.c.l.b16 %v525
      %v558 = vunpack.c.l.b16 %v526
      %v559 = vunpack.c.l.b16 %v527
      %v560 = vunpack.c.l.b16 %v528
      %v561 = vunpack.c.l.b16 %v529
      %v562 = vunpack.c.l.b16 %v530
      %v563 = vunpack.c.l.b16 %v531
      %v564 = vunpack.c.l.b16 %v532
      %v565 = vunpack.c.l.b16 %v533
      %v566 = vunpack.c.l.b16 %v534
      %v567 = vunpack.c.l.b16 %v535
      %v568 = vunpack.c.l.b16 %v536
      %v569 = vunpack.c.l.b16 %v537
      %v570 = vunpack.c.l.b16 %v538
      %v571 = vunpack.c.l.b16 %v539
      %v572 = vunpack.c.l.b16 %v540
      %v573 = vpack.c.b16 %v558, %v557
      %v574 = vpack.c.b16 %v560, %v559
      %v575 = vpack.c.b16 %v562, %v561
      %v576 = vpack.c.b16 %v564, %v563
      %v577 = vpack.c.b16 %v566, %v565
      %v578 = vpack.c.b16 %v568, %v567
      %v579 = vpack.c.b16 %v570, %v569
      %v580 = vpack.c.b16 %v572, %v571
      %589 = vmatpush.bf16.msra.mxu0 %v580
      %590 = vmatpush.bf16.msra.mxu0 %v579
      %591 = vmatpush.bf16.msra.mxu0 %v578
      %592 = vmatpush.bf16.msra.mxu0 %v577
      %593 = vmatpush.bf16.msra.mxu0 %v576
      %594 = vmatpush.bf16.msra.mxu0 %v575
      %595 = vmatpush.bf16.msra.mxu0 %v574
      %596 = vmatpush.bf16.msra.mxu0 %v573
      %597 = vmatmul.bf16.gmra.mxu0 %v522
      %v598 = vpop.f32.mrf.mxu0
      %v599 = vadd.f32 0.0, %v598
      %v600 = vpop.f32.mrf.mxu0
      %v601 = vadd.f32 0.0, %v600
      %602 = vmatmul.bf16.gmra.mxu0 %v523
      %v603 = vpop.f32.mrf.mxu0
      %v604 = vadd.f32 0.0, %v603
      %v605 = vpop.f32.mrf.mxu0
      %v606 = vadd.f32 0.0, %v605
      %607 = vmatmul.bf16.gmra.mxu0 %v524
      %v608 = vpop.f32.mrf.mxu0
      %v609 = vadd.f32 0.0, %v608
      %v610 = vpop.f32.mrf.mxu0
      %v611 = vadd.f32 0.0, %v610
      %612 = vdwg.mxu0
      %v613 = vadd.f32 %v502, %v599
      %v614 = vadd.f32 %v504, %v601
      %v615 = vadd.f32 %v507, %v604
      %v616 = vadd.f32 %v509, %v606
      %v617 = vadd.f32 %v512, %v609
      %v618 = vadd.f32 %v514, %v611
      %v619 = vld [vmem:[#allocation2 + $0x6] sm:$0xff]
      %v620 = vld [vmem:[#allocation2 + $0xe] sm:$0xff]
      %v621 = vld [vmem:[#allocation2 + $0x16] sm:$0xff]
      %v622 = vld [vmem:[#allocation2 + $0x1e] sm:$0xff]
      %v623 = vld [vmem:[#allocation2 + $0x26] sm:$0xff]
      %v624 = vld [vmem:[#allocation2 + $0x2e] sm:$0xff]
      %v625 = vpack.c.bf16 %v620, %v619
      %v626 = vpack.c.bf16 %v622, %v621
      %v627 = vpack.c.bf16 %v624, %v623
      %v628 = vld [vmem:[%s2 + $0xc0] sm:$0xf]
      %v629 = vld [vmem:[%s2 + $0xc4] sm:$0xf]
      %v630 = vld [vmem:[%s2 + $0xc8] sm:$0xf]
      %v631 = vld [vmem:[%s2 + $0xcc] sm:$0xf]
      %v632 = vld [vmem:[%s2 + $0xd0] sm:$0xf]
      %v633 = vld [vmem:[%s2 + $0xd4] sm:$0xf]
      %v634 = vld [vmem:[%s2 + $0xd8] sm:$0xf]
      %v635 = vld [vmem:[%s2 + $0xdc] sm:$0xf]
      %v636 = vld [vmem:[%s2 + $0xe0] sm:$0xf]
      %v637 = vld [vmem:[%s2 + $0xe4] sm:$0xf]
      %v638 = vld [vmem:[%s2 + $0xe8] sm:$0xf]
      %v639 = vld [vmem:[%s2 + $0xec] sm:$0xf]
      %v640 = vld [vmem:[%s2 + $0xf0] sm:$0xf]
      %v641 = vld [vmem:[%s2 + $0xf4] sm:$0xf]
      %v642 = vld [vmem:[%s2 + $0xf8] sm:$0xf]
      %v643 = vld [vmem:[%s2 + $0xfc] sm:$0xf]
      %v660 = vunpack.c.l.b16 %v628
      %v661 = vunpack.c.l.b16 %v629
      %v662 = vunpack.c.l.b16 %v630
      %v663 = vunpack.c.l.b16 %v631
      %v664 = vunpack.c.l.b16 %v632
      %v665 = vunpack.c.l.b16 %v633
      %v666 = vunpack.c.l.b16 %v634
      %v667 = vunpack.c.l.b16 %v635
      %v668 = vunpack.c.l.b16 %v636
      %v669 = vunpack.c.l.b16 %v637
      %v670 = vunpack.c.l.b16 %v638
      %v671 = vunpack.c.l.b16 %v639
      %v672 = vunpack.c.l.b16 %v640
      %v673 = vunpack.c.l.b16 %v641
      %v674 = vunpack.c.l.b16 %v642
      %v675 = vunpack.c.l.b16 %v643
      %v676 = vpack.c.b16 %v661, %v660
      %v677 = vpack.c.b16 %v663, %v662
      %v678 = vpack.c.b16 %v665, %v664
      %v679 = vpack.c.b16 %v667, %v666
      %v680 = vpack.c.b16 %v669, %v668
      %v681 = vpack.c.b16 %v671, %v670
      %v682 = vpack.c.b16 %v673, %v672
      %v683 = vpack.c.b16 %v675, %v674
      %692 = vmatpush.bf16.msra.mxu0 %v683
      %693 = vmatpush.bf16.msra.mxu0 %v682
      %694 = vmatpush.bf16.msra.mxu0 %v681
      %695 = vmatpush.bf16.msra.mxu0 %v680
      %696 = vmatpush.bf16.msra.mxu0 %v679
      %697 = vmatpush.bf16.msra.mxu0 %v678
      %698 = vmatpush.bf16.msra.mxu0 %v677
      %699 = vmatpush.bf16.msra.mxu0 %v676
      %700 = vmatmul.bf16.gmra.mxu0 %v625
      %v701 = vpop.f32.mrf.mxu0
      %v702 = vadd.f32 0.0, %v701
      %v703 = vpop.f32.mrf.mxu0
      %v704 = vadd.f32 0.0, %v703
      %705 = vmatmul.bf16.gmra.mxu0 %v626
      %v706 = vpop.f32.mrf.mxu0
      %v707 = vadd.f32 0.0, %v706
      %v708 = vpop.f32.mrf.mxu0
      %v709 = vadd.f32 0.0, %v708
      %710 = vmatmul.bf16.gmra.mxu0 %v627
      %v711 = vpop.f32.mrf.mxu0
      %v712 = vadd.f32 0.0, %v711
      %v713 = vpop.f32.mrf.mxu0
      %v714 = vadd.f32 0.0, %v713
      %715 = vdwg.mxu0
      %v716 = vadd.f32 %v613, %v702
      %v717 = vadd.f32 %v614, %v704
      %v718 = vadd.f32 %v615, %v707
      %v719 = vadd.f32 %v616, %v709
      %v720 = vadd.f32 %v617, %v712
      %v721 = vadd.f32 %v618, %v714
      %v722 = vld [vmem:[#allocation2 + $0x7] sm:$0xff]
      %v723 = vld [vmem:[#allocation2 + $0xf] sm:$0xff]
      %v724 = vld [vmem:[#allocation2 + $0x17] sm:$0xff]
      %v725 = vld [vmem:[#allocation2 + $0x1f] sm:$0xff]
      %v726 = vld [vmem:[#allocation2 + $0x27] sm:$0xff]
      %v727 = vld [vmem:[#allocation2 + $0x2f] sm:$0xff]
      %v728 = vpack.c.bf16 %v723, %v722
      %v729 = vpack.c.bf16 %v725, %v724
      %v730 = vpack.c.bf16 %v727, %v726
      %v731 = vld [vmem:[%s2 + $0x100] sm:$0xf]
      %v732 = vld [vmem:[%s2 + $0x104] sm:$0xf]
      %v733 = vld [vmem:[%s2 + $0x108] sm:$0xf]
      %v734 = vld [vmem:[%s2 + $0x10c] sm:$0xf]
      %v735 = vld [vmem:[%s2 + $0x110] sm:$0xf]
      %v736 = vld [vmem:[%s2 + $0x114] sm:$0xf]
      %v737 = vld [vmem:[%s2 + $0x118] sm:$0xf]
      %v738 = vld [vmem:[%s2 + $0x11c] sm:$0xf]
      %v739 = vld [vmem:[%s2 + $0x120] sm:$0xf]
      %v740 = vld [vmem:[%s2 + $0x124] sm:$0xf]
      %v741 = vld [vmem:[%s2 + $0x128] sm:$0xf]
      %v742 = vld [vmem:[%s2 + $0x12c] sm:$0xf]
      %v743 = vld [vmem:[%s2 + $0x130] sm:$0xf]
      %v744 = vld [vmem:[%s2 + $0x134] sm:$0xf]
      %v745 = vld [vmem:[%s2 + $0x138] sm:$0xf]
      %v746 = vld [vmem:[%s2 + $0x13c] sm:$0xf]
      %v763 = vunpack.c.l.b16 %v731
      %v764 = vunpack.c.l.b16 %v732
      %v765 = vunpack.c.l.b16 %v733
      %v766 = vunpack.c.l.b16 %v734
      %v767 = vunpack.c.l.b16 %v735
      %v768 = vunpack.c.l.b16 %v736
      %v769 = vunpack.c.l.b16 %v737
      %v770 = vunpack.c.l.b16 %v738
      %v771 = vunpack.c.l.b16 %v739
      %v772 = vunpack.c.l.b16 %v740
      %v773 = vunpack.c.l.b16 %v741
      %v774 = vunpack.c.l.b16 %v742
      %v775 = vunpack.c.l.b16 %v743
      %v776 = vunpack.c.l.b16 %v744
      %v777 = vunpack.c.l.b16 %v745
      %v778 = vunpack.c.l.b16 %v746
      %v779 = vpack.c.b16 %v764, %v763
      %v780 = vpack.c.b16 %v766, %v765
      %v781 = vpack.c.b16 %v768, %v767
      %v782 = vpack.c.b16 %v770, %v769
      %v783 = vpack.c.b16 %v772, %v771
      %v784 = vpack.c.b16 %v774, %v773
      %v785 = vpack.c.b16 %v776, %v775
      %v786 = vpack.c.b16 %v778, %v777
      %795 = vmatpush.bf16.msra.mxu0 %v786
      %796 = vmatpush.bf16.msra.mxu0 %v785
      %797 = vmatpush.bf16.msra.mxu0 %v784
      %798 = vmatpush.bf16.msra.mxu0 %v783
      %799 = vmatpush.bf16.msra.mxu0 %v782
      %800 = vmatpush.bf16.msra.mxu0 %v781
      %801 = vmatpush.bf16.msra.mxu0 %v780
      %802 = vmatpush.bf16.msra.mxu0 %v779
      %803 = vmatmul.bf16.gmra.mxu0 %v728
      %v804 = vpop.f32.mrf.mxu0
      %v805 = vadd.f32 0.0, %v804
      %v806 = vpop.f32.mrf.mxu0
      %v807 = vadd.f32 0.0, %v806
      %808 = vmatmul.bf16.gmra.mxu0 %v729
      %v809 = vpop.f32.mrf.mxu0
      %v810 = vadd.f32 0.0, %v809
      %v811 = vpop.f32.mrf.mxu0
      %v812 = vadd.f32 0.0, %v811
      %813 = vmatmul.bf16.gmra.mxu0 %v730
      %v814 = vpop.f32.mrf.mxu0
      %v815 = vadd.f32 0.0, %v814
      %v816 = vpop.f32.mrf.mxu0
      %v817 = vadd.f32 0.0, %v816
      %818 = vdwg.mxu0
      %v819 = vadd.f32 %v716, %v805
      %v820 = vadd.f32 %v717, %v807
      %v821 = vadd.f32 %v718, %v810
      %v822 = vadd.f32 %v719, %v812
      %v823 = vadd.f32 %v720, %v815
      %v824 = vadd.f32 %v721, %v817
      %v825 = vld [vmem:[#allocation2 + $0x8] sm:$0xff]
      %v826 = vld [vmem:[#allocation2 + $0x10] sm:$0xff]
      %v827 = vld [vmem:[#allocation2 + $0x18] sm:$0xff]
      %v828 = vld [vmem:[#allocation2 + $0x20] sm:$0xff]
      %v829 = vld [vmem:[#allocation2 + $0x28] sm:$0xff]
      %v830 = vld [vmem:[#allocation2 + $0x30] sm:$0xff]
      %v831 = vpack.c.bf16 %v826, %v825
      %v832 = vpack.c.bf16 %v828, %v827
      %v833 = vpack.c.bf16 %v830, %v829
      %v834 = vld [vmem:[%s2 + $0x140] sm:$0xf]
      %v835 = vld [vmem:[%s2 + $0x144] sm:$0xf]
      %v836 = vld [vmem:[%s2 + $0x148] sm:$0xf]
      %v837 = vld [vmem:[%s2 + $0x14c] sm:$0xf]
      %v838 = vld [vmem:[%s2 + $0x150] sm:$0xf]
      %v839 = vld [vmem:[%s2 + $0x154] sm:$0xf]
      %v840 = vld [vmem:[%s2 + $0x158] sm:$0xf]
      %v841 = vld [vmem:[%s2 + $0x15c] sm:$0xf]
      %v842 = vld [vmem:[%s2 + $0x160] sm:$0xf]
      %v843 = vld [vmem:[%s2 + $0x164] sm:$0xf]
      %v844 = vld [vmem:[%s2 + $0x168] sm:$0xf]
      %v845 = vld [vmem:[%s2 + $0x16c] sm:$0xf]
      %v846 = vld [vmem:[%s2 + $0x170] sm:$0xf]
      %v847 = vld [vmem:[%s2 + $0x174] sm:$0xf]
      %v848 = vld [vmem:[%s2 + $0x178] sm:$0xf]
      %v849 = vld [vmem:[%s2 + $0x17c] sm:$0xf]
      %v866 = vunpack.c.l.b16 %v834
      %v867 = vunpack.c.l.b16 %v835
      %v868 = vunpack.c.l.b16 %v836
      %v869 = vunpack.c.l.b16 %v837
      %v870 = vunpack.c.l.b16 %v838
      %v871 = vunpack.c.l.b16 %v839
      %v872 = vunpack.c.l.b16 %v840
      %v873 = vunpack.c.l.b16 %v841
      %v874 = vunpack.c.l.b16 %v842
      %v875 = vunpack.c.l.b16 %v843
      %v876 = vunpack.c.l.b16 %v844
      %v877 = vunpack.c.l.b16 %v845
      %v878 = vunpack.c.l.b16 %v846
      %v879 = vunpack.c.l.b16 %v847
      %v880 = vunpack.c.l.b16 %v848
      %v881 = vunpack.c.l.b16 %v849
      %v882 = vpack.c.b16 %v867, %v866
      %v883 = vpack.c.b16 %v869, %v868
      %v884 = vpack.c.b16 %v871, %v870
      %v885 = vpack.c.b16 %v873, %v872
      %v886 = vpack.c.b16 %v875, %v874
      %v887 = vpack.c.b16 %v877, %v876
      %v888 = vpack.c.b16 %v879, %v878
      %v889 = vpack.c.b16 %v881, %v880
      %898 = vmatpush.bf16.msra.mxu0 %v889
      %899 = vmatpush.bf16.msra.mxu0 %v888
      %900 = vmatpush.bf16.msra.mxu0 %v887
      %901 = vmatpush.bf16.msra.mxu0 %v886
      %902 = vmatpush.bf16.msra.mxu0 %v885
      %903 = vmatpush.bf16.msra.mxu0 %v884
      %904 = vmatpush.bf16.msra.mxu0 %v883
      %905 = vmatpush.bf16.msra.mxu0 %v882
      %906 = vmatmul.bf16.gmra.mxu0 %v831
      %v907 = vpop.f32.mrf.mxu0
      %v908 = vadd.f32 0.0, %v907
      %v909 = vpop.f32.mrf.mxu0
      %v910 = vadd.f32 0.0, %v909
      %911 = vmatmul.bf16.gmra.mxu0 %v832
      %v912 = vpop.f32.mrf.mxu0
      %v913 = vadd.f32 0.0, %v912
      %v914 = vpop.f32.mrf.mxu0
      %v915 = vadd.f32 0.0, %v914
      %916 = vmatmul.bf16.gmra.mxu0 %v833
      %v917 = vpop.f32.mrf.mxu0
      %v918 = vadd.f32 0.0, %v917
      %v919 = vpop.f32.mrf.mxu0
      %v920 = vadd.f32 0.0, %v919
      %921 = vdwg.mxu0
      %v922 = vadd.f32 %v819, %v908
      %v923 = vadd.f32 %v820, %v910
      %v924 = vadd.f32 %v821, %v913
      %v925 = vadd.f32 %v822, %v915
      %v926 = vadd.f32 %v823, %v918
      %v927 = vadd.f32 %v824, %v920
      %v928 = vld [vmem:[#allocation2 + $0xc] sm:$0xff]
      %v929 = vld [vmem:[#allocation2 + $0x14] sm:$0xff]
      %v930 = vld [vmem:[#allocation2 + $0x1c] sm:$0xff]
      %v931 = vld [vmem:[#allocation2 + $0x24] sm:$0xff]
      %v932 = vld [vmem:[#allocation2 + $0x2c] sm:$0xff]
      %v933 = vld [vmem:[#allocation2 + $0x34] sm:$0xff]
      %v934 = vpack.c.bf16 %v929, %v928
      %v935 = vpack.c.bf16 %v931, %v930
      %v936 = vpack.c.bf16 %v933, %v932
      %v937 = vld [vmem:[%s2 + $0x180] sm:$0xf]
      %v938 = vld [vmem:[%s2 + $0x184] sm:$0xf]
      %v939 = vld [vmem:[%s2 + $0x188] sm:$0xf]
      %v940 = vld [vmem:[%s2 + $0x18c] sm:$0xf]
      %v941 = vld [vmem:[%s2 + $0x190] sm:$0xf]
      %v942 = vld [vmem:[%s2 + $0x194] sm:$0xf]
      %v943 = vld [vmem:[%s2 + $0x198] sm:$0xf]
      %v944 = vld [vmem:[%s2 + $0x19c] sm:$0xf]
      %v945 = vld [vmem:[%s2 + $0x1a0] sm:$0xf]
      %v946 = vld [vmem:[%s2 + $0x1a4] sm:$0xf]
      %v947 = vld [vmem:[%s2 + $0x1a8] sm:$0xf]
      %v948 = vld [vmem:[%s2 + $0x1ac] sm:$0xf]
      %v949 = vld [vmem:[%s2 + $0x1b0] sm:$0xf]
      %v950 = vld [vmem:[%s2 + $0x1b4] sm:$0xf]
      %v951 = vld [vmem:[%s2 + $0x1b8] sm:$0xf]
      %v952 = vld [vmem:[%s2 + $0x1bc] sm:$0xf]
      %v969 = vunpack.c.l.b16 %v937
      %v970 = vunpack.c.l.b16 %v938
      %v971 = vunpack.c.l.b16 %v939
      %v972 = vunpack.c.l.b16 %v940
      %v973 = vunpack.c.l.b16 %v941
      %v974 = vunpack.c.l.b16 %v942
      %v975 = vunpack.c.l.b16 %v943
      %v976 = vunpack.c.l.b16 %v944
      %v977 = vunpack.c.l.b16 %v945
      %v978 = vunpack.c.l.b16 %v946
      %v979 = vunpack.c.l.b16 %v947
      %v980 = vunpack.c.l.b16 %v948
      %v981 = vunpack.c.l.b16 %v949
      %v982 = vunpack.c.l.b16 %v950
      %v983 = vunpack.c.l.b16 %v951
      %v984 = vunpack.c.l.b16 %v952
      %v985 = vpack.c.b16 %v970, %v969
      %v986 = vpack.c.b16 %v972, %v971
      %v987 = vpack.c.b16 %v974, %v973
      %v988 = vpack.c.b16 %v976, %v975
      %v989 = vpack.c.b16 %v978, %v977
      %v990 = vpack.c.b16 %v980, %v979
      %v991 = vpack.c.b16 %v982, %v981
      %v992 = vpack.c.b16 %v984, %v983
      %1001 = vmatpush.bf16.msra.mxu0 %v992
      %1002 = vmatpush.bf16.msra.mxu0 %v991
      %1003 = vmatpush.bf16.msra.mxu0 %v990
      %1004 = vmatpush.bf16.msra.mxu0 %v989
      %1005 = vmatpush.bf16.msra.mxu0 %v988
      %1006 = vmatpush.bf16.msra.mxu0 %v987
      %1007 = vmatpush.bf16.msra.mxu0 %v986
      %1008 = vmatpush.bf16.msra.mxu0 %v985
      %1009 = vmatmul.bf16.gmra.mxu0 %v934
      %v1010 = vpop.f32.mrf.mxu0
      %v1011 = vadd.f32 0.0, %v1010
      %v1012 = vpop.f32.mrf.mxu0
      %v1013 = vadd.f32 0.0, %v1012
      %1014 = vmatmul.bf16.gmra.mxu0 %v935
      %v1015 = vpop.f32.mrf.mxu0
      %v1016 = vadd.f32 0.0, %v1015
      %v1017 = vpop.f32.mrf.mxu0
      %v1018 = vadd.f32 0.0, %v1017
      %1019 = vmatmul.bf16.gmra.mxu0 %v936
      %v1020 = vpop.f32.mrf.mxu0
      %v1021 = vadd.f32 0.0, %v1020
      %v1022 = vpop.f32.mrf.mxu0
      %v1023 = vadd.f32 0.0, %v1022
      %1024 = vdwg.mxu0
      %v1025 = vadd.f32 %v922, %v1011
      %v1026 = vadd.f32 %v923, %v1013
      %v1027 = vadd.f32 %v924, %v1016
      %v1028 = vadd.f32 %v925, %v1018
      %v1029 = vadd.f32 %v926, %v1021
      %v1030 = vadd.f32 %v927, %v1023
      %v1031 = vld [vmem:[#allocation2 + $0xd] sm:$0xff]
      %v1032 = vld [vmem:[#allocation2 + $0x15] sm:$0xff]
      %v1033 = vld [vmem:[#allocation2 + $0x1d] sm:$0xff]
      %v1034 = vld [vmem:[#allocation2 + $0x25] sm:$0xff]
      %v1035 = vld [vmem:[#allocation2 + $0x2d] sm:$0xff]
      %v1036 = vld [vmem:[#allocation2 + $0x35] sm:$0xff]
      %v1037 = vpack.c.bf16 %v1032, %v1031
      %v1038 = vpack.c.bf16 %v1034, %v1033
      %v1039 = vpack.c.bf16 %v1036, %v1035
      %v1040 = vld [vmem:[%s2 + $0x1c0] sm:$0xf]
      %v1041 = vld [vmem:[%s2 + $0x1c4] sm:$0xf]
      %v1042 = vld [vmem:[%s2 + $0x1c8] sm:$0xf]
      %v1043 = vld [vmem:[%s2 + $0x1cc] sm:$0xf]
      %v1044 = vld [vmem:[%s2 + $0x1d0] sm:$0xf]
      %v1045 = vld [vmem:[%s2 + $0x1d4] sm:$0xf]
      %v1046 = vld [vmem:[%s2 + $0x1d8] sm:$0xf]
      %v1047 = vld [vmem:[%s2 + $0x1dc] sm:$0xf]
      %v1048 = vld [vmem:[%s2 + $0x1e0] sm:$0xf]
      %v1049 = vld [vmem:[%s2 + $0x1e4] sm:$0xf]
      %v1050 = vld [vmem:[%s2 + $0x1e8] sm:$0xf]
      %v1051 = vld [vmem:[%s2 + $0x1ec] sm:$0xf]
      %v1052 = vld [vmem:[%s2 + $0x1f0] sm:$0xf]
      %v1053 = vld [vmem:[%s2 + $0x1f4] sm:$0xf]
      %v1054 = vld [vmem:[%s2 + $0x1f8] sm:$0xf]
      %v1055 = vld [vmem:[%s2 + $0x1fc] sm:$0xf]
      %v1072 = vunpack.c.l.b16 %v1040
      %v1073 = vunpack.c.l.b16 %v1041
      %v1074 = vunpack.c.l.b16 %v1042
      %v1075 = vunpack.c.l.b16 %v1043
      %v1076 = vunpack.c.l.b16 %v1044
      %v1077 = vunpack.c.l.b16 %v1045
      %v1078 = vunpack.c.l.b16 %v1046
      %v1079 = vunpack.c.l.b16 %v1047
      %v1080 = vunpack.c.l.b16 %v1048
      %v1081 = vunpack.c.l.b16 %v1049
      %v1082 = vunpack.c.l.b16 %v1050
      %v1083 = vunpack.c.l.b16 %v1051
      %v1084 = vunpack.c.l.b16 %v1052
      %v1085 = vunpack.c.l.b16 %v1053
      %v1086 = vunpack.c.l.b16 %v1054
      %v1087 = vunpack.c.l.b16 %v1055
      %v1088 = vpack.c.b16 %v1073, %v1072
      %v1089 = vpack.c.b16 %v1075, %v1074
      %v1090 = vpack.c.b16 %v1077, %v1076
      %v1091 = vpack.c.b16 %v1079, %v1078
      %v1092 = vpack.c.b16 %v1081, %v1080
      %v1093 = vpack.c.b16 %v1083, %v1082
      %v1094 = vpack.c.b16 %v1085, %v1084
      %v1095 = vpack.c.b16 %v1087, %v1086
      %1104 = vmatpush.bf16.msra.mxu0 %v1095
      %1105 = vmatpush.bf16.msra.mxu0 %v1094
      %1106 = vmatpush.bf16.msra.mxu0 %v1093
      %1107 = vmatpush.bf16.msra.mxu0 %v1092
      %1108 = vmatpush.bf16.msra.mxu0 %v1091
      %1109 = vmatpush.bf16.msra.mxu0 %v1090
      %1110 = vmatpush.bf16.msra.mxu0 %v1089
      %1111 = vmatpush.bf16.msra.mxu0 %v1088
      %1112 = vmatmul.bf16.gmra.mxu0 %v1037
      %v1113 = vpop.f32.mrf.mxu0
      %v1114 = vadd.f32 0.0, %v1113
      %v1115 = vpop.f32.mrf.mxu0
      %v1116 = vadd.f32 0.0, %v1115
      %1117 = vmatmul.bf16.gmra.mxu0 %v1038
      %v1118 = vpop.f32.mrf.mxu0
      %v1119 = vadd.f32 0.0, %v1118
      %v1120 = vpop.f32.mrf.mxu0
      %v1121 = vadd.f32 0.0, %v1120
      %1122 = vmatmul.bf16.gmra.mxu0 %v1039
      %v1123 = vpop.f32.mrf.mxu0
      %v1124 = vadd.f32 0.0, %v1123
      %v1125 = vpop.f32.mrf.mxu0
      %v1126 = vadd.f32 0.0, %v1125
      %1127 = vdwg.mxu0
      %v1128 = vadd.f32 %v1025, %v1114
      %v1129 = vadd.f32 %v1026, %v1116
      %v1130 = vadd.f32 %v1027, %v1119
      %v1131 = vadd.f32 %v1028, %v1121
      %v1132 = vadd.f32 %v1029, %v1124
      %v1133 = vadd.f32 %v1030, %v1126
      %v1134 = vld [vmem:[#allocation2 + $0xe] sm:$0xff]
      %v1135 = vld [vmem:[#allocation2 + $0x16] sm:$0xff]
      %v1136 = vld [vmem:[#allocation2 + $0x1e] sm:$0xff]
      %v1137 = vld [vmem:[#allocation2 + $0x26] sm:$0xff]
      %v1138 = vld [vmem:[#allocation2 + $0x2e] sm:$0xff]
      %v1139 = vld [vmem:[#allocation2 + $0x36] sm:$0xff]
      %v1140 = vpack.c.bf16 %v1135, %v1134
      %v1141 = vpack.c.bf16 %v1137, %v1136
      %v1142 = vpack.c.bf16 %v1139, %v1138
      %v1143 = vld [vmem:[%s2 + $0x200] sm:$0xf]
      %v1144 = vld [vmem:[%s2 + $0x204] sm:$0xf]
      %v1145 = vld [vmem:[%s2 + $0x208] sm:$0xf]
      %v1146 = vld [vmem:[%s2 + $0x20c] sm:$0xf]
      %v1147 = vld [vmem:[%s2 + $0x210] sm:$0xf]
      %v1148 = vld [vmem:[%s2 + $0x214] sm:$0xf]
      %v1149 = vld [vmem:[%s2 + $0x218] sm:$0xf]
      %v1150 = vld [vmem:[%s2 + $0x21c] sm:$0xf]
      %v1151 = vld [vmem:[%s2 + $0x220] sm:$0xf]
      %v1152 = vld [vmem:[%s2 + $0x224] sm:$0xf]
      %v1153 = vld [vmem:[%s2 + $0x228] sm:$0xf]
      %v1154 = vld [vmem:[%s2 + $0x22c] sm:$0xf]
      %v1155 = vld [vmem:[%s2 + $0x230] sm:$0xf]
      %v1156 = vld [vmem:[%s2 + $0x234] sm:$0xf]
      %v1157 = vld [vmem:[%s2 + $0x238] sm:$0xf]
      %v1158 = vld [vmem:[%s2 + $0x23c] sm:$0xf]
      %v1175 = vunpack.c.l.b16 %v1143
      %v1176 = vunpack.c.l.b16 %v1144
      %v1177 = vunpack.c.l.b16 %v1145
      %v1178 = vunpack.c.l.b16 %v1146
      %v1179 = vunpack.c.l.b16 %v1147
      %v1180 = vunpack.c.l.b16 %v1148
      %v1181 = vunpack.c.l.b16 %v1149
      %v1182 = vunpack.c.l.b16 %v1150
      %v1183 = vunpack.c.l.b16 %v1151
      %v1184 = vunpack.c.l.b16 %v1152
      %v1185 = vunpack.c.l.b16 %v1153
      %v1186 = vunpack.c.l.b16 %v1154
      %v1187 = vunpack.c.l.b16 %v1155
      %v1188 = vunpack.c.l.b16 %v1156
      %v1189 = vunpack.c.l.b16 %v1157
      %v1190 = vunpack.c.l.b16 %v1158
      %v1191 = vpack.c.b16 %v1176, %v1175
      %v1192 = vpack.c.b16 %v1178, %v1177
      %v1193 = vpack.c.b16 %v1180, %v1179
      %v1194 = vpack.c.b16 %v1182, %v1181
      %v1195 = vpack.c.b16 %v1184, %v1183
      %v1196 = vpack.c.b16 %v1186, %v1185
      %v1197 = vpack.c.b16 %v1188, %v1187
      %v1198 = vpack.c.b16 %v1190, %v1189
      %1207 = vmatpush.bf16.msra.mxu0 %v1198
      %1208 = vmatpush.bf16.msra.mxu0 %v1197
      %1209 = vmatpush.bf16.msra.mxu0 %v1196
      %1210 = vmatpush.bf16.msra.mxu0 %v1195
      %1211 = vmatpush.bf16.msra.mxu0 %v1194
      %1212 = vmatpush.bf16.msra.mxu0 %v1193
      %1213 = vmatpush.bf16.msra.mxu0 %v1192
      %1214 = vmatpush.bf16.msra.mxu0 %v1191
      %1215 = vmatmul.bf16.gmra.mxu0 %v1140
      %v1216 = vpop.f32.mrf.mxu0
      %v1217 = vadd.f32 0.0, %v1216
      %v1218 = vpop.f32.mrf.mxu0
      %v1219 = vadd.f32 0.0, %v1218
      %1220 = vmatmul.bf16.gmra.mxu0 %v1141
      %v1221 = vpop.f32.mrf.mxu0
      %v1222 = vadd.f32 0.0, %v1221
      %v1223 = vpop.f32.mrf.mxu0
      %v1224 = vadd.f32 0.0, %v1223
      %1225 = vmatmul.bf16.gmra.mxu0 %v1142
      %v1226 = vpop.f32.mrf.mxu0
      %v1227 = vadd.f32 0.0, %v1226
      %v1228 = vpop.f32.mrf.mxu0
      %v1229 = vadd.f32 0.0, %v1228
      %1230 = vdwg.mxu0
      %v1231 = vadd.f32 %v1128, %v1217
      %v1232 = vadd.f32 %v1129, %v1219
      %v1233 = vadd.f32 %v1130, %v1222
      %v1234 = vadd.f32 %v1131, %v1224
      %v1235 = vadd.f32 %v1132, %v1227
      %v1236 = vadd.f32 %v1133, %v1229
      %v1237 = vld [vmem:[%s3] sm:$0x1]
      %v1239 = vperm.slane %v1237, 0
      %v1241 = vadd.f32 %v1231, %v1239
      %v1242 = vadd.f32 %v1232, %v1239
      %v1243 = vadd.f32 %v1233, %v1239
      %v1244 = vadd.f32 %v1234, %v1239
      %v1245 = vadd.f32 %v1235, %v1239
      %v1246 = vadd.f32 %v1236, %v1239
      %v1247 = vmax.f32 %v1241, 0.0
      %v1248 = vmax.f32 %v1242, 0.0
      %v1249 = vmax.f32 %v1243, 0.0
      %v1250 = vmax.f32 %v1244, 0.0
      %v1251 = vmax.f32 %v1245, 0.0
      %v1252 = vmax.f32 %v1246, 0.0
      %v1253 = vld [vmem:[%s298] sm:$0xff]
      %v1254 = vld [vmem:[%s298 + $0x8] sm:$0xff]
      %v1255 = vld [vmem:[%s298 + $0x10] sm:$0xff]
      %v1256 = vld [vmem:[%s298 + $0x18] sm:$0xff]
      %v1257 = vld [vmem:[%s298 + $0x20] sm:$0xff]
      %v1258 = vld [vmem:[%s298 + $0x28] sm:$0xff]
      %v1259 = vadd.f32 %v1247, %v1253
      %v1260 = vadd.f32 %v1248, %v1254
      %v1261 = vadd.f32 %v1249, %v1255
      %v1262 = vadd.f32 %v1250, %v1256
      %v1263 = vadd.f32 %v1251, %v1257
      %v1264 = vadd.f32 %v1252, %v1258
      %v1265 = vmax.f32 %v1259, 0.0
      %v1266 = vmax.f32 %v1260, 0.0
      %v1267 = vmax.f32 %v1261, 0.0
      %v1268 = vmax.f32 %v1262, 0.0
      %v1269 = vmax.f32 %v1263, 0.0
      %v1270 = vmax.f32 %v1264, 0.0
      %1271 = vst [vmem:[%s304] sm:$0xff] %v1265
      %1272 = vst [vmem:[%s304 + $0x8] sm:$0xff] %v1266
      %1273 = vst [vmem:[%s304 + $0x10] sm:$0xff] %v1267
      %1274 = vst [vmem:[%s304 + $0x18] sm:$0xff] %v1268
      %1275 = vst [vmem:[%s304 + $0x20] sm:$0xff] %v1269
      %1276 = vst [vmem:[%s304 + $0x28] sm:$0xff] %v1270
      %s1277 = smul.u32 6, %s16
      %p1278 = scmp.lt.s32.totalorder %s1277, 11
      %s1279 = scalar_select %p1278, %s1277, 11
      %s1280 = smul.addr %s1279, 8
      %s1281 = scalar_lea.vmem %s5, %s1280
      // Predicated region
      $region41: #{_lambda_.23} parent=39 // pred_check
        %p1282 = pneg %p158
      $region42: #{_lambda_.23} parent=39 // pred_check_branch
        %1284 = sbr.rel (%p1282) target = $region44
      $region43: #{_lambda_.23} parent=39 // pred_region
        %s1285 = smul.u32 6, %s16
      $region44: #{_lambda_.23} parent=39 // pred_fallthru
        _
    $region40: #{_lambda_.23} parent=5 // pred_fallthru
      _
    %p1286 = scmp.le.s32.totalorder 2, %s11
    // Predicated region
    $region45: #{_lambda_.23} parent=5 // pred_check
      %p1287 = pneg %p1286
    $region46: #{_lambda_.23} parent=5 // pred_check_branch
      %1289 = sbr.rel (%p1287) target = $region48
    $region47: #{_lambda_.23} parent=5 // pred_region
      %s1290 = ssub.s32 %s11, 2
      // Predicated region
      $region49: #{_lambda_.23} parent=47 // pred_check
        %p1291 = pneg %p164
      $region50: #{_lambda_.23} parent=47 // pred_check_branch
        %1293 = sbr.rel (%p1291) target = $region52
      $region51: #{_lambda_.23} parent=47 // pred_region
        %s1294 = smul.u32 6, %s17
        %p1295 = scmp.lt.s32.totalorder %s1294, 11
        %s1296 = scalar_select %p1295, %s1294, 11
        %s1297 = smul.addr %s1296, 8
        %s1298 = scalar_lea.vmem %s5, %s1297
      $region52: #{_lambda_.23} parent=47 // pred_fallthru
        _
    $region48: #{_lambda_.23} parent=5 // pred_fallthru
      _
  $region6: #{_lambda_.23} parent=0 // loop_footer
    %s15 = sadd.s32 1, %s11
  $region7: #{_lambda_.23} parent=0 // loop_footer_branch
    %10 = sbr.rel target = $region3
  $region8: #{_lambda_.23} parent=0 // loop_exit
    _

// kernel: _lambda_.24
$region0: #{_lambda_.24}
  #allocation0 [shape = 'u32[]', space=smem, size = 0x4, offset = 0x4, fixed_abs, tag = 'smem constant byte address 0x4 - core index']
  #allocation1 [shape = 'u32[72,128]{1,0:T(1,128)}', space=vmem, size = 0x9000, scoped, tag = 'internal scratch']
  #allocation2 [shape = 'f32[64,128]{1,0:T(8,128)}', space=vmem, size = 0x8000, scoped, tag = 'scratch operand']
  %s0 = inlined_call_operand.vmem [shape: f32[112,128], index: 0, kind: input, shape index: {}, may-alias: {0,1}]
  %s1 = inlined_call_operand.vmem [shape: f32[112,128], index: 1, kind: input, shape index: {}, may-alias: {0,1}]
  %s2 = inlined_call_operand.vmem [shape: bf16[1152,128], index: 2, kind: input, shape index: {}]
  %s3 = inlined_call_operand.vmem [shape: f32[1,128], index: 3, kind: input, shape index: {}]
  %s4 = inlined_call_operand.vmem [shape: f32[96,128], index: 4, kind: output, shape index: {}]
  %s5 = sld [smem:[#allocation0]]
  $region49: #{_lambda_.24} parent=0
    _
  %s7 = ssub.s32 1, %s5
  %s8 = scalar_select 0, %s7, %s5
  loop: start=0, step=1, limit=4
  $region2: #{_lambda_.24} parent=0 // loop_pre_header
    _
  $region3: #{_lambda_.24} parent=0 // loop_header
    %s10 = sphi 0, %s14
    %p11 = scmp.ge.s32.totalorder %s10, 4
    %s20 = sphi 0, %s22
    %s23 = sphi 0, %s20
    %s24 = sphi 0, %s23
    %s40 = sphi 0, %s24
    %s50 = sphi 0, %s52
    %s53 = sphi 0, %s50
    %s54 = sphi 0, %s53
    %s70 = sphi 0, %s54
    %s74 = sphi 0, %s74
    %s76 = sphi 0, %s74
    %s77 = sphi 0, %s76
    %s91 = sphi 0, %s77
    %s95 = sphi 0, %s95
    %s97 = sphi 0, %s95
    %s98 = sphi 0, %s97
    %s112 = sphi 0, %s98
    %s118 = sphi 0, %s120
    %s121 = sphi 0, %s118
    %s122 = sphi 0, %s121
    %s138 = sphi 0, %s122
  $region4: #{_lambda_.24} parent=0 // loop_header_branch
    %13 = sbr.rel (%p11) target = $region8
  $region5: #{_lambda_.24} parent=0 // loop_body
    %s15 = ssub.s32 %s10, 1
    %s16 = ssub.s32 %s10, 2
    %s17 = sadd.s32 %s10, 1
    %s18 = ssub.s32 %s10, %s17
    %p19 = scmp.eq.s32.totalorder %s18, 0
    %s21 = sadd.s32 %s20, 1
    %s22 = scalar_select %p19, %s20, %s21
    %p25 = pneg %p19
    %p26 = scmp.eq.s32.totalorder %s10, 1
    %p27 = por %p25, %p26
    %p28 = scmp.ne.s32.totalorder %s20, %s23
    %p29 = scmp.eq.s32.totalorder %s10, 0
    %p30 = por %p28, %p29
    %p31 = scmp.ne.s32.totalorder %s20, %s23
    %p32 = scmp.eq.s32.totalorder %s15, 1
    %p33 = por %p31, %p32
    %p34 = scmp.ne.s32.totalorder %s23, %s24
    %p35 = scmp.eq.s32.totalorder %s15, 0
    %p36 = por %p34, %p35
    %p37 = scmp.ne.s32.totalorder %s23, %s24
    %p38 = scmp.eq.s32.totalorder %s16, 1
    %p39 = por %p37, %p38
    %p41 = scmp.ne.s32.totalorder %s24, %s40
    %p42 = scmp.eq.s32.totalorder %s16, 0
    %p43 = por %p41, %p42
    %s44 = sadd.s32 %s10, 1
    %s45 = smul.u32 %s44, 3
    %s46 = sadd.s32 %s17, 1
    %s47 = smul.u32 %s46, 3
    %s48 = ssub.s32 %s45, %s47
    %p49 = scmp.eq.s32.totalorder %s48, 0
    %s51 = sadd.s32 %s50, 1
    %s52 = scalar_select %p49, %s50, %s51
    %p55 = pneg %p49
    %p56 = scmp.eq.s32.totalorder %s10, 1
    %p57 = por %p55, %p56
    %p58 = scmp.ne.s32.totalorder %s50, %s53
    %p59 = scmp.eq.s32.totalorder %s10, 0
    %p60 = por %p58, %p59
    %p61 = scmp.ne.s32.totalorder %s50, %s53
    %p62 = scmp.eq.s32.totalorder %s15, 1
    %p63 = por %p61, %p62
    %p64 = scmp.ne.s32.totalorder %s53, %s54
    %p65 = scmp.eq.s32.totalorder %s15, 0
    %p66 = por %p64, %p65
    %p67 = scmp.ne.s32.totalorder %s53, %s54
    %p68 = scmp.eq.s32.totalorder %s16, 1
    %p69 = por %p67, %p68
    %p71 = scmp.ne.s32.totalorder %s54, %s70
    %p72 = scmp.eq.s32.totalorder %s16, 0
    %p73 = por %p71, %p72
    %s75 = sadd.s32 %s74, 1
    %p78 = scmp.eq.s32.totalorder %s10, 1
    %p79 = scmp.ne.s32.totalorder %s74, %s76
    %p80 = scmp.eq.s32.totalorder %s10, 0
    %p81 = por %p79, %p80
    %p82 = scmp.ne.s32.totalorder %s74, %s76
    %p83 = scmp.eq.s32.totalorder %s15, 1
    %p84 = por %p82, %p83
    %p85 = scmp.ne.s32.totalorder %s76, %s77
    %p86 = scmp.eq.s32.totalorder %s15, 0
    %p87 = por %p85, %p86
    %p88 = scmp.ne.s32.totalorder %s76, %s77
    %p89 = scmp.eq.s32.totalorder %s16, 1
    %p90 = por %p88, %p89
    %p92 = scmp.ne.s32.totalorder %s77, %s91
    %p93 = scmp.eq.s32.totalorder %s16, 0
    %p94 = por %p92, %p93
    %s96 = sadd.s32 %s95, 1
    %p99 = scmp.eq.s32.totalorder %s10, 1
    %p100 = scmp.ne.s32.totalorder %s95, %s97
    %p101 = scmp.eq.s32.totalorder %s10, 0
    %p102 = por %p100, %p101
    %p103 = scmp.ne.s32.totalorder %s95, %s97
    %p104 = scmp.eq.s32.totalorder %s15, 1
    %p105 = por %p103, %p104
    %p106 = scmp.ne.s32.totalorder %s97, %s98
    %p107 = scmp.eq.s32.totalorder %s15, 0
    %p108 = por %p106, %p107
    %p109 = scmp.ne.s32.totalorder %s97, %s98
    %p110 = scmp.eq.s32.totalorder %s16, 1
    %p111 = por %p109, %p110
    %p113 = scmp.ne.s32.totalorder %s98, %s112
    %p114 = scmp.eq.s32.totalorder %s16, 0
    %p115 = por %p113, %p114
    %s116 = ssub.s32 %s10, %s17
    %p117 = scmp.eq.s32.totalorder %s116, 0
    %s119 = sadd.s32 %s118, 1
    %s120 = scalar_select %p117, %s118, %s119
    %p123 = pneg %p117
    %p124 = scmp.eq.s32.totalorder %s10, 1
    %p125 = por %p123, %p124
    %p126 = scmp.ne.s32.totalorder %s118, %s121
    %p127 = scmp.eq.s32.totalorder %s10, 0
    %p128 = por %p126, %p127
    %p129 = scmp.ne.s32.totalorder %s118, %s121
    %p130 = scmp.eq.s32.totalorder %s15, 1
    %p131 = por %p129, %p130
    %p132 = scmp.ne.s32.totalorder %s121, %s122
    %p133 = scmp.eq.s32.totalorder %s15, 0
    %p134 = por %p132, %p133
    %p135 = scmp.ne.s32.totalorder %s121, %s122
    %p136 = scmp.eq.s32.totalorder %s16, 1
    %p137 = por %p135, %p136
    %p139 = scmp.ne.s32.totalorder %s122, %s138
    %p140 = scmp.eq.s32.totalorder %s16, 0
    %p141 = por %p139, %p140
    %p142 = scmp.le.s32.totalorder 1, %s10
    %p143 = scmp.lt.s32.totalorder %s10, 3
    %p144 = pnand %p142, %p143
    %p145 = pneg %p144
    // Predicated region
    $region9: #{_lambda_.24} parent=5 // pred_check
      _
    $region10: #{_lambda_.24} parent=5 // pred_check_branch
      %147 = sbr.rel (%p144) target = $region12
    $region11: #{_lambda_.24} parent=5 // pred_region
      %s148 = ssub.s32 %s10, 1
      // Predicated region
      $region13: #{_lambda_.24} parent=11 // pred_check
        %p149 = pneg %p87
      $region14: #{_lambda_.24} parent=11 // pred_check_branch
        %151 = sbr.rel (%p149) target = $region16
      $region15: #{_lambda_.24} parent=11 // pred_region
        _
      $region16: #{_lambda_.24} parent=11 // pred_fallthru
        _
      // Predicated region
      $region17: #{_lambda_.24} parent=11 // pred_check
        %p152 = pneg %p108
      $region18: #{_lambda_.24} parent=11 // pred_check_branch
        %154 = sbr.rel (%p152) target = $region20
      $region19: #{_lambda_.24} parent=11 // pred_region
        _
      $region20: #{_lambda_.24} parent=11 // pred_fallthru
        _
    $region12: #{_lambda_.24} parent=5 // pred_fallthru
      _
    %p155 = scmp.lt.s32.totalorder %s10, 2
    // Predicated region
    $region21: #{_lambda_.24} parent=5 // pred_check
      %p156 = pneg %p155
    $region22: #{_lambda_.24} parent=5 // pred_check_branch
      %158 = sbr.rel (%p156) target = $region24
    $region23: #{_lambda_.24} parent=5 // pred_region
      // Predicated region
      $region25: #{_lambda_.24} parent=23 // pred_check
        %p159 = pneg %p30
      $region26: #{_lambda_.24} parent=23 // pred_check_branch
        %161 = sbr.rel (%p159) target = $region28
      $region27: #{_lambda_.24} parent=23 // pred_region
        %s162 = smul.u32 6, %s10
        %s163 = ssub.s32 14, %s162
        %p164 = scmp.lt.s32.totalorder %s163, 6
        %s165 = scalar_select %p164, %s163, 6
        %s166 = smul.u32 8, %s165
        %p167 = scmp.lt.s32.totalorder %s162, 13
        %s168 = scalar_select %p167, %s162, 13
        %s169 = smul.addr %s168, 8
        %s170 = scalar_lea.vmem %s0, %s169
        %s171 = smul.u32 6, %s10
        %s172 = ssub.s32 14, %s171
        %p173 = scmp.lt.s32.totalorder %s172, 6
        %s174 = scalar_select %p173, %s172, 6
        %s175 = smul.u32 8, %s174
      $region28: #{_lambda_.24} parent=23 // pred_fallthru
        _
      // Predicated region
      $region29: #{_lambda_.24} parent=23 // pred_check
        %p176 = pneg %p60
      $region30: #{_lambda_.24} parent=23 // pred_check_branch
        %178 = sbr.rel (%p176) target = $region32
      $region31: #{_lambda_.24} parent=23 // pred_region
        %s179 = sadd.s32 %s10, 1
        %s180 = smul.u32 %s179, 3
        %s181 = smul.u32 2, %s180
        %p182 = scmp.lt.s32.totalorder %s181, 13
        %s183 = scalar_select %p182, %s181, 13
        %s184 = smul.addr %s183, 8
        %s185 = scalar_lea.vmem %s1, %s184
        %s186 = sadd.s32 %s10, 1
        %s187 = smul.u32 %s186, 3
        %s188 = smul.u32 2, %s187
      $region32: #{_lambda_.24} parent=23 // pred_fallthru
        _
    $region24: #{_lambda_.24} parent=5 // pred_fallthru
      _
    %p189 = scmp.le.s32.totalorder 1, %s10
    %p190 = scmp.lt.s32.totalorder %s10, 3
    %p191 = pnand %p189, %p190
    %p192 = pneg %p191
    // Predicated region
    $region33: #{_lambda_.24} parent=5 // pred_check
      _
    $region34: #{_lambda_.24} parent=5 // pred_check_branch
      %194 = sbr.rel (%p191) target = $region36
    $region35: #{_lambda_.24} parent=5 // pred_region
      %s195 = ssub.s32 %s10, 1
      %s196 = smul.u32 6, %s15
      %s197 = ssub.s32 14, %s196
      %p198 = scmp.lt.s32.totalorder %s197, 6
      %s199 = scalar_select %p198, %s197, 6
      %s200 = smul.u32 8, %s199
      %p201 = scmp.lt.s32.totalorder %s196, 13
      %s202 = scalar_select %p201, %s196, 13
      %s203 = smul.addr %s202, 8
      %s204 = scalar_lea.vmem %s0, %s203
      %p205 = pneg %p36
      %p206 = pneg %p33
      %s207 = sadd.s32 %s15, 1
      %s208 = smul.u32 %s207, 3
      %s209 = smul.u32 2, %s208
      %p210 = scmp.lt.s32.totalorder %s209, 13
      %s211 = scalar_select %p210, %s209, 13
      %s212 = smul.addr %s211, 8
      %s213 = scalar_lea.vmem %s1, %s212
      %p214 = pneg %p66
      %p215 = pneg %p63
      %p216 = pneg %p87
      %p217 = pneg %p84
      %p218 = pneg %p108
      %p219 = pneg %p105
      %p220 = pneg %p134
      %p221 = pneg %p131
      %s222 = smul.u32 6, %s15
      %p223 = scmp.lt.s32.totalorder %s222, 11
      %s224 = scalar_select %p223, %s222, 11
      %s225 = smul.addr %s224, 8
      %s226 = scalar_lea.vmem %s4, %s225
      %s227 = smul.u32 6, %s15
      %s228 = ssub.s32 14, %s227
      %p229 = scmp.lt.s32.totalorder %s228, 6
      %s230 = scalar_select %p229, %s228, 6
      %s231 = smul.u32 8, %s230
      %p232 = scmp.lt.s32.totalorder %s227, 13
      %s233 = scalar_select %p232, %s227, 13
      %s234 = smul.addr %s233, 8
      %s235 = scalar_lea.vmem %s0, %s234
      %s236 = smul.u32 6, %s15
      %s237 = ssub.s32 14, %s236
      %p238 = scmp.lt.s32.totalorder %s237, 6
      %s239 = scalar_select %p238, %s237, 6
      %s240 = smul.u32 8, %s239
      %s241 = sadd.s32 %s15, 1
      %s242 = smul.u32 %s241, 3
      %s243 = smul.u32 2, %s242
      %p244 = scmp.lt.s32.totalorder %s243, 13
      %s245 = scalar_select %p244, %s243, 13
      %s246 = smul.addr %s245, 8
      %s247 = scalar_lea.vmem %s1, %s246
      %s248 = sadd.s32 %s15, 1
      %s249 = smul.u32 %s248, 3
      %s250 = smul.u32 2, %s249
      %s251 = smul.u32 6, %s15
      %p252 = scmp.lt.s32.totalorder %s251, 11
      %s253 = scalar_select %p252, %s251, 11
      %s254 = smul.addr %s253, 8
      %s255 = scalar_lea.vmem %s4, %s254
      %s256 = smul.u32 6, %s15
      %v257 = vld [vmem:[%s235] sm:$0xff]
      %v258 = vld [vmem:[%s235 + $0x8] sm:$0xff]
      %v259 = vld [vmem:[%s235 + $0x10] sm:$0xff]
      %v260 = vld [vmem:[%s235 + $0x18] sm:$0xff]
      %v261 = vld [vmem:[%s235 + $0x20] sm:$0xff]
      %v262 = vld [vmem:[%s235 + $0x28] sm:$0xff]
      %263 = vst [vmem:[#allocation2] sm:$0xff] %v257
      %264 = vst [vmem:[#allocation2 + $0x8] sm:$0xff] %v258
      %265 = vst [vmem:[#allocation2 + $0x10] sm:$0xff] %v259
      %266 = vst [vmem:[#allocation2 + $0x18] sm:$0xff] %v260
      %267 = vst [vmem:[#allocation2 + $0x20] sm:$0xff] %v261
      %268 = vst [vmem:[#allocation2 + $0x28] sm:$0xff] %v262
      %v269 = vld [vmem:[%s247] sm:$0xff]
      %v270 = vld [vmem:[%s247 + $0x8] sm:$0xff]
      %271 = vst [vmem:[#allocation2 + $0x30] sm:$0xff] %v269
      %272 = vst [vmem:[#allocation2 + $0x38] sm:$0xff] %v270
      %v273 = vld [vmem:[#allocation2] sm:$0xff]
      %v274 = vld [vmem:[#allocation2 + $0x8] sm:$0xff]
      %v275 = vld [vmem:[#allocation2 + $0x10] sm:$0xff]
      %v276 = vld [vmem:[#allocation2 + $0x18] sm:$0xff]
      %v277 = vld [vmem:[#allocation2 + $0x20] sm:$0xff]
      %v278 = vld [vmem:[#allocation2 + $0x28] sm:$0xff]
      %v279 = vpack.c.bf16 %v274, %v273
      %v280 = vpack.c.bf16 %v276, %v275
      %v281 = vpack.c.bf16 %v278, %v277
      %v282 = vld [vmem:[%s2] sm:$0xf]
      %v283 = vld [vmem:[%s2 + $0x4] sm:$0xf]
      %v284 = vld [vmem:[%s2 + $0x8] sm:$0xf]
      %v285 = vld [vmem:[%s2 + $0xc] sm:$0xf]
      %v286 = vld [vmem:[%s2 + $0x10] sm:$0xf]
      %v287 = vld [vmem:[%s2 + $0x14] sm:$0xf]
      %v288 = vld [vmem:[%s2 + $0x18] sm:$0xf]
      %v289 = vld [vmem:[%s2 + $0x1c] sm:$0xf]
      %v290 = vld [vmem:[%s2 + $0x20] sm:$0xf]
      %v291 = vld [vmem:[%s2 + $0x24] sm:$0xf]
      %v292 = vld [vmem:[%s2 + $0x28] sm:$0xf]
      %v293 = vld [vmem:[%s2 + $0x2c] sm:$0xf]
      %v294 = vld [vmem:[%s2 + $0x30] sm:$0xf]
      %v295 = vld [vmem:[%s2 + $0x34] sm:$0xf]
      %v296 = vld [vmem:[%s2 + $0x38] sm:$0xf]
      %v297 = vld [vmem:[%s2 + $0x3c] sm:$0xf]
      %v298 = vld [vmem:[#allocation2 + $0x1] sm:$0xff]
      %v299 = vld [vmem:[#allocation2 + $0x9] sm:$0xff]
      %v300 = vld [vmem:[#allocation2 + $0x11] sm:$0xff]
      %v301 = vld [vmem:[#allocation2 + $0x19] sm:$0xff]
      %v302 = vld [vmem:[#allocation2 + $0x21] sm:$0xff]
      %v303 = vld [vmem:[#allocation2 + $0x29] sm:$0xff]
      %v304 = vpack.c.bf16 %v299, %v298
      %v305 = vpack.c.bf16 %v301, %v300
      %v306 = vpack.c.bf16 %v303, %v302
      %v307 = vld [vmem:[%s2 + $0x40] sm:$0xf]
      %v308 = vld [vmem:[%s2 + $0x44] sm:$0xf]
      %v309 = vld [vmem:[%s2 + $0x48] sm:$0xf]
      %v310 = vld [vmem:[%s2 + $0x4c] sm:$0xf]
      %v311 = vld [vmem:[%s2 + $0x50] sm:$0xf]
      %v312 = vld [vmem:[%s2 + $0x54] sm:$0xf]
      %v313 = vld [vmem:[%s2 + $0x58] sm:$0xf]
      %v314 = vld [vmem:[%s2 + $0x5c] sm:$0xf]
      %v315 = vld [vmem:[%s2 + $0x60] sm:$0xf]
      %v316 = vld [vmem:[%s2 + $0x64] sm:$0xf]
      %v317 = vld [vmem:[%s2 + $0x68] sm:$0xf]
      %v318 = vld [vmem:[%s2 + $0x6c] sm:$0xf]
      %v319 = vld [vmem:[%s2 + $0x70] sm:$0xf]
      %v320 = vld [vmem:[%s2 + $0x74] sm:$0xf]
      %v321 = vld [vmem:[%s2 + $0x78] sm:$0xf]
      %v322 = vld [vmem:[%s2 + $0x7c] sm:$0xf]
      %v339 = vunpack.c.l.b16 %v307
      %v340 = vunpack.c.l.b16 %v308
      %v341 = vunpack.c.l.b16 %v309
      %v342 = vunpack.c.l.b16 %v310
      %v343 = vunpack.c.l.b16 %v311
      %v344 = vunpack.c.l.b16 %v312
      %v345 = vunpack.c.l.b16 %v313
      %v346 = vunpack.c.l.b16 %v314
      %v347 = vunpack.c.l.b16 %v315
      %v348 = vunpack.c.l.b16 %v316
      %v349 = vunpack.c.l.b16 %v317
      %v350 = vunpack.c.l.b16 %v318
      %v351 = vunpack.c.l.b16 %v319
      %v352 = vunpack.c.l.b16 %v320
      %v353 = vunpack.c.l.b16 %v321
      %v354 = vunpack.c.l.b16 %v322
      %v355 = vpack.c.b16 %v340, %v339
      %v356 = vpack.c.b16 %v342, %v341
      %v357 = vpack.c.b16 %v344, %v343
      %v358 = vpack.c.b16 %v346, %v345
      %v359 = vpack.c.b16 %v348, %v347
      %v360 = vpack.c.b16 %v350, %v349
      %v361 = vpack.c.b16 %v352, %v351
      %v362 = vpack.c.b16 %v354, %v353
      %371 = vmatpush.bf16.msra.mxu0 %v362
      %372 = vmatpush.bf16.msra.mxu0 %v361
      %373 = vmatpush.bf16.msra.mxu0 %v360
      %374 = vmatpush.bf16.msra.mxu0 %v359
      %375 = vmatpush.bf16.msra.mxu0 %v358
      %376 = vmatpush.bf16.msra.mxu0 %v357
      %377 = vmatpush.bf16.msra.mxu0 %v356
      %378 = vmatpush.bf16.msra.mxu0 %v355
      %379 = vmatmul.bf16.gmra.mxu0 %v304
      %v380 = vpop.f32.mrf.mxu0
      %v381 = vadd.f32 0.0, %v380
      %v382 = vpop.f32.mrf.mxu0
      %v383 = vadd.f32 0.0, %v382
      %384 = vmatmul.bf16.gmra.mxu0 %v305
      %v385 = vpop.f32.mrf.mxu0
      %v386 = vadd.f32 0.0, %v385
      %v387 = vpop.f32.mrf.mxu0
      %v388 = vadd.f32 0.0, %v387
      %389 = vmatmul.bf16.gmra.mxu0 %v306
      %v390 = vpop.f32.mrf.mxu0
      %v391 = vadd.f32 0.0, %v390
      %v392 = vpop.f32.mrf.mxu0
      %v393 = vadd.f32 0.0, %v392
      %394 = vdwg.mxu0
      %v411 = vunpack.c.l.b16 %v282
      %v412 = vunpack.c.l.b16 %v283
      %v413 = vunpack.c.l.b16 %v284
      %v414 = vunpack.c.l.b16 %v285
      %v415 = vunpack.c.l.b16 %v286
      %v416 = vunpack.c.l.b16 %v287
      %v417 = vunpack.c.l.b16 %v288
      %v418 = vunpack.c.l.b16 %v289
      %v419 = vunpack.c.l.b16 %v290
      %v420 = vunpack.c.l.b16 %v291
      %v421 = vunpack.c.l.b16 %v292
      %v422 = vunpack.c.l.b16 %v293
      %v423 = vunpack.c.l.b16 %v294
      %v424 = vunpack.c.l.b16 %v295
      %v425 = vunpack.c.l.b16 %v296
      %v426 = vunpack.c.l.b16 %v297
      %v427 = vpack.c.b16 %v412, %v411
      %v428 = vpack.c.b16 %v414, %v413
      %v429 = vpack.c.b16 %v416, %v415
      %v430 = vpack.c.b16 %v418, %v417
      %v431 = vpack.c.b16 %v420, %v419
      %v432 = vpack.c.b16 %v422, %v421
      %v433 = vpack.c.b16 %v424, %v423
      %v434 = vpack.c.b16 %v426, %v425
      %443 = vmatpush.bf16.msra.mxu0 %v434
      %444 = vmatpush.bf16.msra.mxu0 %v433
      %445 = vmatpush.bf16.msra.mxu0 %v432
      %446 = vmatpush.bf16.msra.mxu0 %v431
      %447 = vmatpush.bf16.msra.mxu0 %v430
      %448 = vmatpush.bf16.msra.mxu0 %v429
      %449 = vmatpush.bf16.msra.mxu0 %v428
      %450 = vmatpush.bf16.msra.mxu0 %v427
      %451 = vmatmul.bf16.gmra.mxu0 %v279
      %v452 = vpop.f32.mrf.mxu0
      %v453 = vadd.f32 %v381, %v452
      %v454 = vpop.f32.mrf.mxu0
      %v455 = vadd.f32 %v383, %v454
      %456 = vmatmul.bf16.gmra.mxu0 %v280
      %v457 = vpop.f32.mrf.mxu0
      %v458 = vadd.f32 %v386, %v457
      %v459 = vpop.f32.mrf.mxu0
      %v460 = vadd.f32 %v388, %v459
      %461 = vmatmul.bf16.gmra.mxu0 %v281
      %v462 = vpop.f32.mrf.mxu0
      %v463 = vadd.f32 %v391, %v462
      %v464 = vpop.f32.mrf.mxu0
      %v465 = vadd.f32 %v393, %v464
      %466 = vdwg.mxu0
      %v467 = vld [vmem:[#allocation2 + $0x2] sm:$0xff]
      %v468 = vld [vmem:[#allocation2 + $0xa] sm:$0xff]
      %v469 = vld [vmem:[#allocation2 + $0x12] sm:$0xff]
      %v470 = vld [vmem:[#allocation2 + $0x1a] sm:$0xff]
      %v471 = vld [vmem:[#allocation2 + $0x22] sm:$0xff]
      %v472 = vld [vmem:[#allocation2 + $0x2a] sm:$0xff]
      %v473 = vpack.c.bf16 %v468, %v467
      %v474 = vpack.c.bf16 %v470, %v469
      %v475 = vpack.c.bf16 %v472, %v471
      %v476 = vld [vmem:[%s2 + $0x80] sm:$0xf]
      %v477 = vld [vmem:[%s2 + $0x84] sm:$0xf]
      %v478 = vld [vmem:[%s2 + $0x88] sm:$0xf]
      %v479 = vld [vmem:[%s2 + $0x8c] sm:$0xf]
      %v480 = vld [vmem:[%s2 + $0x90] sm:$0xf]
      %v481 = vld [vmem:[%s2 + $0x94] sm:$0xf]
      %v482 = vld [vmem:[%s2 + $0x98] sm:$0xf]
      %v483 = vld [vmem:[%s2 + $0x9c] sm:$0xf]
      %v484 = vld [vmem:[%s2 + $0xa0] sm:$0xf]
      %v485 = vld [vmem:[%s2 + $0xa4] sm:$0xf]
      %v486 = vld [vmem:[%s2 + $0xa8] sm:$0xf]
      %v487 = vld [vmem:[%s2 + $0xac] sm:$0xf]
      %v488 = vld [vmem:[%s2 + $0xb0] sm:$0xf]
      %v489 = vld [vmem:[%s2 + $0xb4] sm:$0xf]
      %v490 = vld [vmem:[%s2 + $0xb8] sm:$0xf]
      %v491 = vld [vmem:[%s2 + $0xbc] sm:$0xf]
      %v508 = vunpack.c.l.b16 %v476
      %v509 = vunpack.c.l.b16 %v477
      %v510 = vunpack.c.l.b16 %v478
      %v511 = vunpack.c.l.b16 %v479
      %v512 = vunpack.c.l.b16 %v480
      %v513 = vunpack.c.l.b16 %v481
      %v514 = vunpack.c.l.b16 %v482
      %v515 = vunpack.c.l.b16 %v483
      %v516 = vunpack.c.l.b16 %v484
      %v517 = vunpack.c.l.b16 %v485
      %v518 = vunpack.c.l.b16 %v486
      %v519 = vunpack.c.l.b16 %v487
      %v520 = vunpack.c.l.b16 %v488
      %v521 = vunpack.c.l.b16 %v489
      %v522 = vunpack.c.l.b16 %v490
      %v523 = vunpack.c.l.b16 %v491
      %v524 = vpack.c.b16 %v509, %v508
      %v525 = vpack.c.b16 %v511, %v510
      %v526 = vpack.c.b16 %v513, %v512
      %v527 = vpack.c.b16 %v515, %v514
      %v528 = vpack.c.b16 %v517, %v516
      %v529 = vpack.c.b16 %v519, %v518
      %v530 = vpack.c.b16 %v521, %v520
      %v531 = vpack.c.b16 %v523, %v522
      %540 = vmatpush.bf16.msra.mxu0 %v531
      %541 = vmatpush.bf16.msra.mxu0 %v530
      %542 = vmatpush.bf16.msra.mxu0 %v529
      %543 = vmatpush.bf16.msra.mxu0 %v528
      %544 = vmatpush.bf16.msra.mxu0 %v527
      %545 = vmatpush.bf16.msra.mxu0 %v526
      %546 = vmatpush.bf16.msra.mxu0 %v525
      %547 = vmatpush.bf16.msra.mxu0 %v524
      %548 = vmatmul.bf16.gmra.mxu0 %v473
      %v549 = vpop.f32.mrf.mxu0
      %v550 = vadd.f32 0.0, %v549
      %v551 = vpop.f32.mrf.mxu0
      %v552 = vadd.f32 0.0, %v551
      %553 = vmatmul.bf16.gmra.mxu0 %v474
      %v554 = vpop.f32.mrf.mxu0
      %v555 = vadd.f32 0.0, %v554
      %v556 = vpop.f32.mrf.mxu0
      %v557 = vadd.f32 0.0, %v556
      %558 = vmatmul.bf16.gmra.mxu0 %v475
      %v559 = vpop.f32.mrf.mxu0
      %v560 = vadd.f32 0.0, %v559
      %v561 = vpop.f32.mrf.mxu0
      %v562 = vadd.f32 0.0, %v561
      %563 = vdwg.mxu0
      %v564 = vadd.f32 %v453, %v550
      %v565 = vadd.f32 %v455, %v552
      %v566 = vadd.f32 %v458, %v555
      %v567 = vadd.f32 %v460, %v557
      %v568 = vadd.f32 %v463, %v560
      %v569 = vadd.f32 %v465, %v562
      %v570 = vld [vmem:[#allocation2 + $0x6] sm:$0xff]
      %v571 = vld [vmem:[#allocation2 + $0xe] sm:$0xff]
      %v572 = vld [vmem:[#allocation2 + $0x16] sm:$0xff]
      %v573 = vld [vmem:[#allocation2 + $0x1e] sm:$0xff]
      %v574 = vld [vmem:[#allocation2 + $0x26] sm:$0xff]
      %v575 = vld [vmem:[#allocation2 + $0x2e] sm:$0xff]
      %v576 = vpack.c.bf16 %v571, %v570
      %v577 = vpack.c.bf16 %v573, %v572
      %v578 = vpack.c.bf16 %v575, %v574
      %v579 = vld [vmem:[%s2 + $0xc0] sm:$0xf]
      %v580 = vld [vmem:[%s2 + $0xc4] sm:$0xf]
      %v581 = vld [vmem:[%s2 + $0xc8] sm:$0xf]
      %v582 = vld [vmem:[%s2 + $0xcc] sm:$0xf]
      %v583 = vld [vmem:[%s2 + $0xd0] sm:$0xf]
      %v584 = vld [vmem:[%s2 + $0xd4] sm:$0xf]
      %v585 = vld [vmem:[%s2 + $0xd8] sm:$0xf]
      %v586 = vld [vmem:[%s2 + $0xdc] sm:$0xf]
      %v587 = vld [vmem:[%s2 + $0xe0] sm:$0xf]
      %v588 = vld [vmem:[%s2 + $0xe4] sm:$0xf]
      %v589 = vld [vmem:[%s2 + $0xe8] sm:$0xf]
      %v590 = vld [vmem:[%s2 + $0xec] sm:$0xf]
      %v591 = vld [vmem:[%s2 + $0xf0] sm:$0xf]
      %v592 = vld [vmem:[%s2 + $0xf4] sm:$0xf]
      %v593 = vld [vmem:[%s2 + $0xf8] sm:$0xf]
      %v594 = vld [vmem:[%s2 + $0xfc] sm:$0xf]
      %v611 = vunpack.c.l.b16 %v579
      %v612 = vunpack.c.l.b16 %v580
      %v613 = vunpack.c.l.b16 %v581
      %v614 = vunpack.c.l.b16 %v582
      %v615 = vunpack.c.l.b16 %v583
      %v616 = vunpack.c.l.b16 %v584
      %v617 = vunpack.c.l.b16 %v585
      %v618 = vunpack.c.l.b16 %v586
      %v619 = vunpack.c.l.b16 %v587
      %v620 = vunpack.c.l.b16 %v588
      %v621 = vunpack.c.l.b16 %v589
      %v622 = vunpack.c.l.b16 %v590
      %v623 = vunpack.c.l.b16 %v591
      %v624 = vunpack.c.l.b16 %v592
      %v625 = vunpack.c.l.b16 %v593
      %v626 = vunpack.c.l.b16 %v594
      %v627 = vpack.c.b16 %v612, %v611
      %v628 = vpack.c.b16 %v614, %v613
      %v629 = vpack.c.b16 %v616, %v615
      %v630 = vpack.c.b16 %v618, %v617
      %v631 = vpack.c.b16 %v620, %v619
      %v632 = vpack.c.b16 %v622, %v621
      %v633 = vpack.c.b16 %v624, %v623
      %v634 = vpack.c.b16 %v626, %v625
      %643 = vmatpush.bf16.msra.mxu0 %v634
      %644 = vmatpush.bf16.msra.mxu0 %v633
      %645 = vmatpush.bf16.msra.mxu0 %v632
      %646 = vmatpush.bf16.msra.mxu0 %v631
      %647 = vmatpush.bf16.msra.mxu0 %v630
      %648 = vmatpush.bf16.msra.mxu0 %v629
      %649 = vmatpush.bf16.msra.mxu0 %v628
      %650 = vmatpush.bf16.msra.mxu0 %v627
      %651 = vmatmul.bf16.gmra.mxu0 %v576
      %v652 = vpop.f32.mrf.mxu0
      %v653 = vadd.f32 0.0, %v652
      %v654 = vpop.f32.mrf.mxu0
      %v655 = vadd.f32 0.0, %v654
      %656 = vmatmul.bf16.gmra.mxu0 %v577
      %v657 = vpop.f32.mrf.mxu0
      %v658 = vadd.f32 0.0, %v657
      %v659 = vpop.f32.mrf.mxu0
      %v660 = vadd.f32 0.0, %v659
      %661 = vmatmul.bf16.gmra.mxu0 %v578
      %v662 = vpop.f32.mrf.mxu0
      %v663 = vadd.f32 0.0, %v662
      %v664 = vpop.f32.mrf.mxu0
      %v665 = vadd.f32 0.0, %v664
      %666 = vdwg.mxu0
      %v667 = vadd.f32 %v564, %v653
      %v668 = vadd.f32 %v565, %v655
      %v669 = vadd.f32 %v566, %v658
      %v670 = vadd.f32 %v567, %v660
      %v671 = vadd.f32 %v568, %v663
      %v672 = vadd.f32 %v569, %v665
      %v673 = vld [vmem:[#allocation2 + $0x7] sm:$0xff]
      %v674 = vld [vmem:[#allocation2 + $0xf] sm:$0xff]
      %v675 = vld [vmem:[#allocation2 + $0x17] sm:$0xff]
      %v676 = vld [vmem:[#allocation2 + $0x1f] sm:$0xff]
      %v677 = vld [vmem:[#allocation2 + $0x27] sm:$0xff]
      %v678 = vld [vmem:[#allocation2 + $0x2f] sm:$0xff]
      %v679 = vpack.c.bf16 %v674, %v673
      %v680 = vpack.c.bf16 %v676, %v675
      %v681 = vpack.c.bf16 %v678, %v677
      %v682 = vld [vmem:[%s2 + $0x100] sm:$0xf]
      %v683 = vld [vmem:[%s2 + $0x104] sm:$0xf]
      %v684 = vld [vmem:[%s2 + $0x108] sm:$0xf]
      %v685 = vld [vmem:[%s2 + $0x10c] sm:$0xf]
      %v686 = vld [vmem:[%s2 + $0x110] sm:$0xf]
      %v687 = vld [vmem:[%s2 + $0x114] sm:$0xf]
      %v688 = vld [vmem:[%s2 + $0x118] sm:$0xf]
      %v689 = vld [vmem:[%s2 + $0x11c] sm:$0xf]
      %v690 = vld [vmem:[%s2 + $0x120] sm:$0xf]
      %v691 = vld [vmem:[%s2 + $0x124] sm:$0xf]
      %v692 = vld [vmem:[%s2 + $0x128] sm:$0xf]
      %v693 = vld [vmem:[%s2 + $0x12c] sm:$0xf]
      %v694 = vld [vmem:[%s2 + $0x130] sm:$0xf]
      %v695 = vld [vmem:[%s2 + $0x134] sm:$0xf]
      %v696 = vld [vmem:[%s2 + $0x138] sm:$0xf]
      %v697 = vld [vmem:[%s2 + $0x13c] sm:$0xf]
      %v714 = vunpack.c.l.b16 %v682
      %v715 = vunpack.c.l.b16 %v683
      %v716 = vunpack.c.l.b16 %v684
      %v717 = vunpack.c.l.b16 %v685
      %v718 = vunpack.c.l.b16 %v686
      %v719 = vunpack.c.l.b16 %v687
      %v720 = vunpack.c.l.b16 %v688
      %v721 = vunpack.c.l.b16 %v689
      %v722 = vunpack.c.l.b16 %v690
      %v723 = vunpack.c.l.b16 %v691
      %v724 = vunpack.c.l.b16 %v692
      %v725 = vunpack.c.l.b16 %v693
      %v726 = vunpack.c.l.b16 %v694
      %v727 = vunpack.c.l.b16 %v695
      %v728 = vunpack.c.l.b16 %v696
      %v729 = vunpack.c.l.b16 %v697
      %v730 = vpack.c.b16 %v715, %v714
      %v731 = vpack.c.b16 %v717, %v716
      %v732 = vpack.c.b16 %v719, %v718
      %v733 = vpack.c.b16 %v721, %v720
      %v734 = vpack.c.b16 %v723, %v722
      %v735 = vpack.c.b16 %v725, %v724
      %v736 = vpack.c.b16 %v727, %v726
      %v737 = vpack.c.b16 %v729, %v728
      %746 = vmatpush.bf16.msra.mxu0 %v737
      %747 = vmatpush.bf16.msra.mxu0 %v736
      %748 = vmatpush.bf16.msra.mxu0 %v735
      %749 = vmatpush.bf16.msra.mxu0 %v734
      %750 = vmatpush.bf16.msra.mxu0 %v733
      %751 = vmatpush.bf16.msra.mxu0 %v732
      %752 = vmatpush.bf16.msra.mxu0 %v731
      %753 = vmatpush.bf16.msra.mxu0 %v730
      %754 = vmatmul.bf16.gmra.mxu0 %v679
      %v755 = vpop.f32.mrf.mxu0
      %v756 = vadd.f32 0.0, %v755
      %v757 = vpop.f32.mrf.mxu0
      %v758 = vadd.f32 0.0, %v757
      %759 = vmatmul.bf16.gmra.mxu0 %v680
      %v760 = vpop.f32.mrf.mxu0
      %v761 = vadd.f32 0.0, %v760
      %v762 = vpop.f32.mrf.mxu0
      %v763 = vadd.f32 0.0, %v762
      %764 = vmatmul.bf16.gmra.mxu0 %v681
      %v765 = vpop.f32.mrf.mxu0
      %v766 = vadd.f32 0.0, %v765
      %v767 = vpop.f32.mrf.mxu0
      %v768 = vadd.f32 0.0, %v767
      %769 = vdwg.mxu0
      %v770 = vadd.f32 %v667, %v756
      %v771 = vadd.f32 %v668, %v758
      %v772 = vadd.f32 %v669, %v761
      %v773 = vadd.f32 %v670, %v763
      %v774 = vadd.f32 %v671, %v766
      %v775 = vadd.f32 %v672, %v768
      %v776 = vld [vmem:[#allocation2 + $0x8] sm:$0xff]
      %v777 = vld [vmem:[#allocation2 + $0x10] sm:$0xff]
      %v778 = vld [vmem:[#allocation2 + $0x18] sm:$0xff]
      %v779 = vld [vmem:[#allocation2 + $0x20] sm:$0xff]
      %v780 = vld [vmem:[#allocation2 + $0x28] sm:$0xff]
      %v781 = vld [vmem:[#allocation2 + $0x30] sm:$0xff]
      %v782 = vpack.c.bf16 %v777, %v776
      %v783 = vpack.c.bf16 %v779, %v778
      %v784 = vpack.c.bf16 %v781, %v780
      %v785 = vld [vmem:[%s2 + $0x140] sm:$0xf]
      %v786 = vld [vmem:[%s2 + $0x144] sm:$0xf]
      %v787 = vld [vmem:[%s2 + $0x148] sm:$0xf]
      %v788 = vld [vmem:[%s2 + $0x14c] sm:$0xf]
      %v789 = vld [vmem:[%s2 + $0x150] sm:$0xf]
      %v790 = vld [vmem:[%s2 + $0x154] sm:$0xf]
      %v791 = vld [vmem:[%s2 + $0x158] sm:$0xf]
      %v792 = vld [vmem:[%s2 + $0x15c] sm:$0xf]
      %v793 = vld [vmem:[%s2 + $0x160] sm:$0xf]
      %v794 = vld [vmem:[%s2 + $0x164] sm:$0xf]
      %v795 = vld [vmem:[%s2 + $0x168] sm:$0xf]
      %v796 = vld [vmem:[%s2 + $0x16c] sm:$0xf]
      %v797 = vld [vmem:[%s2 + $0x170] sm:$0xf]
      %v798 = vld [vmem:[%s2 + $0x174] sm:$0xf]
      %v799 = vld [vmem:[%s2 + $0x178] sm:$0xf]
      %v800 = vld [vmem:[%s2 + $0x17c] sm:$0xf]
      %v817 = vunpack.c.l.b16 %v785
      %v818 = vunpack.c.l.b16 %v786
      %v819 = vunpack.c.l.b16 %v787
      %v820 = vunpack.c.l.b16 %v788
      %v821 = vunpack.c.l.b16 %v789
      %v822 = vunpack.c.l.b16 %v790
      %v823 = vunpack.c.l.b16 %v791
      %v824 = vunpack.c.l.b16 %v792
      %v825 = vunpack.c.l.b16 %v793
      %v826 = vunpack.c.l.b16 %v794
      %v827 = vunpack.c.l.b16 %v795
      %v828 = vunpack.c.l.b16 %v796
      %v829 = vunpack.c.l.b16 %v797
      %v830 = vunpack.c.l.b16 %v798
      %v831 = vunpack.c.l.b16 %v799
      %v832 = vunpack.c.l.b16 %v800
      %v833 = vpack.c.b16 %v818, %v817
      %v834 = vpack.c.b16 %v820, %v819
      %v835 = vpack.c.b16 %v822, %v821
      %v836 = vpack.c.b16 %v824, %v823
      %v837 = vpack.c.b16 %v826, %v825
      %v838 = vpack.c.b16 %v828, %v827
      %v839 = vpack.c.b16 %v830, %v829
      %v840 = vpack.c.b16 %v832, %v831
      %849 = vmatpush.bf16.msra.mxu0 %v840
      %850 = vmatpush.bf16.msra.mxu0 %v839
      %851 = vmatpush.bf16.msra.mxu0 %v838
      %852 = vmatpush.bf16.msra.mxu0 %v837
      %853 = vmatpush.bf16.msra.mxu0 %v836
      %854 = vmatpush.bf16.msra.mxu0 %v835
      %855 = vmatpush.bf16.msra.mxu0 %v834
      %856 = vmatpush.bf16.msra.mxu0 %v833
      %857 = vmatmul.bf16.gmra.mxu0 %v782
      %v858 = vpop.f32.mrf.mxu0
      %v859 = vadd.f32 0.0, %v858
      %v860 = vpop.f32.mrf.mxu0
      %v861 = vadd.f32 0.0, %v860
      %862 = vmatmul.bf16.gmra.mxu0 %v783
      %v863 = vpop.f32.mrf.mxu0
      %v864 = vadd.f32 0.0, %v863
      %v865 = vpop.f32.mrf.mxu0
      %v866 = vadd.f32 0.0, %v865
      %867 = vmatmul.bf16.gmra.mxu0 %v784
      %v868 = vpop.f32.mrf.mxu0
      %v869 = vadd.f32 0.0, %v868
      %v870 = vpop.f32.mrf.mxu0
      %v871 = vadd.f32 0.0, %v870
      %872 = vdwg.mxu0
      %v873 = vadd.f32 %v770, %v859
      %v874 = vadd.f32 %v771, %v861
      %v875 = vadd.f32 %v772, %v864
      %v876 = vadd.f32 %v773, %v866
      %v877 = vadd.f32 %v774, %v869
      %v878 = vadd.f32 %v775, %v871
      %v879 = vld [vmem:[#allocation2 + $0xc] sm:$0xff]
      %v880 = vld [vmem:[#allocation2 + $0x14] sm:$0xff]
      %v881 = vld [vmem:[#allocation2 + $0x1c] sm:$0xff]
      %v882 = vld [vmem:[#allocation2 + $0x24] sm:$0xff]
      %v883 = vld [vmem:[#allocation2 + $0x2c] sm:$0xff]
      %v884 = vld [vmem:[#allocation2 + $0x34] sm:$0xff]
      %v885 = vpack.c.bf16 %v880, %v879
      %v886 = vpack.c.bf16 %v882, %v881
      %v887 = vpack.c.bf16 %v884, %v883
      %v888 = vld [vmem:[%s2 + $0x180] sm:$0xf]
      %v889 = vld [vmem:[%s2 + $0x184] sm:$0xf]
      %v890 = vld [vmem:[%s2 + $0x188] sm:$0xf]
      %v891 = vld [vmem:[%s2 + $0x18c] sm:$0xf]
      %v892 = vld [vmem:[%s2 + $0x190] sm:$0xf]
      %v893 = vld [vmem:[%s2 + $0x194] sm:$0xf]
      %v894 = vld [vmem:[%s2 + $0x198] sm:$0xf]
      %v895 = vld [vmem:[%s2 + $0x19c] sm:$0xf]
      %v896 = vld [vmem:[%s2 + $0x1a0] sm:$0xf]
      %v897 = vld [vmem:[%s2 + $0x1a4] sm:$0xf]
      %v898 = vld [vmem:[%s2 + $0x1a8] sm:$0xf]
      %v899 = vld [vmem:[%s2 + $0x1ac] sm:$0xf]
      %v900 = vld [vmem:[%s2 + $0x1b0] sm:$0xf]
      %v901 = vld [vmem:[%s2 + $0x1b4] sm:$0xf]
      %v902 = vld [vmem:[%s2 + $0x1b8] sm:$0xf]
      %v903 = vld [vmem:[%s2 + $0x1bc] sm:$0xf]
      %v920 = vunpack.c.l.b16 %v888
      %v921 = vunpack.c.l.b16 %v889
      %v922 = vunpack.c.l.b16 %v890
      %v923 = vunpack.c.l.b16 %v891
      %v924 = vunpack.c.l.b16 %v892
      %v925 = vunpack.c.l.b16 %v893
      %v926 = vunpack.c.l.b16 %v894
      %v927 = vunpack.c.l.b16 %v895
      %v928 = vunpack.c.l.b16 %v896
      %v929 = vunpack.c.l.b16 %v897
      %v930 = vunpack.c.l.b16 %v898
      %v931 = vunpack.c.l.b16 %v899
      %v932 = vunpack.c.l.b16 %v900
      %v933 = vunpack.c.l.b16 %v901
      %v934 = vunpack.c.l.b16 %v902
      %v935 = vunpack.c.l.b16 %v903
      %v936 = vpack.c.b16 %v921, %v920
      %v937 = vpack.c.b16 %v923, %v922
      %v938 = vpack.c.b16 %v925, %v924
      %v939 = vpack.c.b16 %v927, %v926
      %v940 = vpack.c.b16 %v929, %v928
      %v941 = vpack.c.b16 %v931, %v930
      %v942 = vpack.c.b16 %v933, %v932
      %v943 = vpack.c.b16 %v935, %v934
      %952 = vmatpush.bf16.msra.mxu0 %v943
      %953 = vmatpush.bf16.msra.mxu0 %v942
      %954 = vmatpush.bf16.msra.mxu0 %v941
      %955 = vmatpush.bf16.msra.mxu0 %v940
      %956 = vmatpush.bf16.msra.mxu0 %v939
      %957 = vmatpush.bf16.msra.mxu0 %v938
      %958 = vmatpush.bf16.msra.mxu0 %v937
      %959 = vmatpush.bf16.msra.mxu0 %v936
      %960 = vmatmul.bf16.gmra.mxu0 %v885
      %v961 = vpop.f32.mrf.mxu0
      %v962 = vadd.f32 0.0, %v961
      %v963 = vpop.f32.mrf.mxu0
      %v964 = vadd.f32 0.0, %v963
      %965 = vmatmul.bf16.gmra.mxu0 %v886
      %v966 = vpop.f32.mrf.mxu0
      %v967 = vadd.f32 0.0, %v966
      %v968 = vpop.f32.mrf.mxu0
      %v969 = vadd.f32 0.0, %v968
      %970 = vmatmul.bf16.gmra.mxu0 %v887
      %v971 = vpop.f32.mrf.mxu0
      %v972 = vadd.f32 0.0, %v971
      %v973 = vpop.f32.mrf.mxu0
      %v974 = vadd.f32 0.0, %v973
      %975 = vdwg.mxu0
      %v976 = vadd.f32 %v873, %v962
      %v977 = vadd.f32 %v874, %v964
      %v978 = vadd.f32 %v875, %v967
      %v979 = vadd.f32 %v876, %v969
      %v980 = vadd.f32 %v877, %v972
      %v981 = vadd.f32 %v878, %v974
      %v982 = vld [vmem:[#allocation2 + $0xd] sm:$0xff]
      %v983 = vld [vmem:[#allocation2 + $0x15] sm:$0xff]
      %v984 = vld [vmem:[#allocation2 + $0x1d] sm:$0xff]
      %v985 = vld [vmem:[#allocation2 + $0x25] sm:$0xff]
      %v986 = vld [vmem:[#allocation2 + $0x2d] sm:$0xff]
      %v987 = vld [vmem:[#allocation2 + $0x35] sm:$0xff]
      %v988 = vpack.c.bf16 %v983, %v982
      %v989 = vpack.c.bf16 %v985, %v984
      %v990 = vpack.c.bf16 %v987, %v986
      %v991 = vld [vmem:[%s2 + $0x1c0] sm:$0xf]
      %v992 = vld [vmem:[%s2 + $0x1c4] sm:$0xf]
      %v993 = vld [vmem:[%s2 + $0x1c8] sm:$0xf]
      %v994 = vld [vmem:[%s2 + $0x1cc] sm:$0xf]
      %v995 = vld [vmem:[%s2 + $0x1d0] sm:$0xf]
      %v996 = vld [vmem:[%s2 + $0x1d4] sm:$0xf]
      %v997 = vld [vmem:[%s2 + $0x1d8] sm:$0xf]
      %v998 = vld [vmem:[%s2 + $0x1dc] sm:$0xf]
      %v999 = vld [vmem:[%s2 + $0x1e0] sm:$0xf]
      %v1000 = vld [vmem:[%s2 + $0x1e4] sm:$0xf]
      %v1001 = vld [vmem:[%s2 + $0x1e8] sm:$0xf]
      %v1002 = vld [vmem:[%s2 + $0x1ec] sm:$0xf]
      %v1003 = vld [vmem:[%s2 + $0x1f0] sm:$0xf]
      %v1004 = vld [vmem:[%s2 + $0x1f4] sm:$0xf]
      %v1005 = vld [vmem:[%s2 + $0x1f8] sm:$0xf]
      %v1006 = vld [vmem:[%s2 + $0x1fc] sm:$0xf]
      %v1023 = vunpack.c.l.b16 %v991
      %v1024 = vunpack.c.l.b16 %v992
      %v1025 = vunpack.c.l.b16 %v993
      %v1026 = vunpack.c.l.b16 %v994
      %v1027 = vunpack.c.l.b16 %v995
      %v1028 = vunpack.c.l.b16 %v996
      %v1029 = vunpack.c.l.b16 %v997
      %v1030 = vunpack.c.l.b16 %v998
      %v1031 = vunpack.c.l.b16 %v999
      %v1032 = vunpack.c.l.b16 %v1000
      %v1033 = vunpack.c.l.b16 %v1001
      %v1034 = vunpack.c.l.b16 %v1002
      %v1035 = vunpack.c.l.b16 %v1003
      %v1036 = vunpack.c.l.b16 %v1004
      %v1037 = vunpack.c.l.b16 %v1005
      %v1038 = vunpack.c.l.b16 %v1006
      %v1039 = vpack.c.b16 %v1024, %v1023
      %v1040 = vpack.c.b16 %v1026, %v1025
      %v1041 = vpack.c.b16 %v1028, %v1027
      %v1042 = vpack.c.b16 %v1030, %v1029
      %v1043 = vpack.c.b16 %v1032, %v1031
      %v1044 = vpack.c.b16 %v1034, %v1033
      %v1045 = vpack.c.b16 %v1036, %v1035
      %v1046 = vpack.c.b16 %v1038, %v1037
      %1055 = vmatpush.bf16.msra.mxu0 %v1046
      %1056 = vmatpush.bf16.msra.mxu0 %v1045
      %1057 = vmatpush.bf16.msra.mxu0 %v1044
      %1058 = vmatpush.bf16.msra.mxu0 %v1043
      %1059 = vmatpush.bf16.msra.mxu0 %v1042
      %1060 = vmatpush.bf16.msra.mxu0 %v1041
      %1061 = vmatpush.bf16.msra.mxu0 %v1040
      %1062 = vmatpush.bf16.msra.mxu0 %v1039
      %1063 = vmatmul.bf16.gmra.mxu0 %v988
      %v1064 = vpop.f32.mrf.mxu0
      %v1065 = vadd.f32 0.0, %v1064
      %v1066 = vpop.f32.mrf.mxu0
      %v1067 = vadd.f32 0.0, %v1066
      %1068 = vmatmul.bf16.gmra.mxu0 %v989
      %v1069 = vpop.f32.mrf.mxu0
      %v1070 = vadd.f32 0.0, %v1069
      %v1071 = vpop.f32.mrf.mxu0
      %v1072 = vadd.f32 0.0, %v1071
      %1073 = vmatmul.bf16.gmra.mxu0 %v990
      %v1074 = vpop.f32.mrf.mxu0
      %v1075 = vadd.f32 0.0, %v1074
      %v1076 = vpop.f32.mrf.mxu0
      %v1077 = vadd.f32 0.0, %v1076
      %1078 = vdwg.mxu0
      %v1079 = vadd.f32 %v976, %v1065
      %v1080 = vadd.f32 %v977, %v1067
      %v1081 = vadd.f32 %v978, %v1070
      %v1082 = vadd.f32 %v979, %v1072
      %v1083 = vadd.f32 %v980, %v1075
      %v1084 = vadd.f32 %v981, %v1077
      %v1085 = vld [vmem:[#allocation2 + $0xe] sm:$0xff]
      %v1086 = vld [vmem:[#allocation2 + $0x16] sm:$0xff]
      %v1087 = vld [vmem:[#allocation2 + $0x1e] sm:$0xff]
      %v1088 = vld [vmem:[#allocation2 + $0x26] sm:$0xff]
      %v1089 = vld [vmem:[#allocation2 + $0x2e] sm:$0xff]
      %v1090 = vld [vmem:[#allocation2 + $0x36] sm:$0xff]
      %v1091 = vpack.c.bf16 %v1086, %v1085
      %v1092 = vpack.c.bf16 %v1088, %v1087
      %v1093 = vpack.c.bf16 %v1090, %v1089
      %v1094 = vld [vmem:[%s2 + $0x200] sm:$0xf]
      %v1095 = vld [vmem:[%s2 + $0x204] sm:$0xf]
      %v1096 = vld [vmem:[%s2 + $0x208] sm:$0xf]
      %v1097 = vld [vmem:[%s2 + $0x20c] sm:$0xf]
      %v1098 = vld [vmem:[%s2 + $0x210] sm:$0xf]
      %v1099 = vld [vmem:[%s2 + $0x214] sm:$0xf]
      %v1100 = vld [vmem:[%s2 + $0x218] sm:$0xf]
      %v1101 = vld [vmem:[%s2 + $0x21c] sm:$0xf]
      %v1102 = vld [vmem:[%s2 + $0x220] sm:$0xf]
      %v1103 = vld [vmem:[%s2 + $0x224] sm:$0xf]
      %v1104 = vld [vmem:[%s2 + $0x228] sm:$0xf]
      %v1105 = vld [vmem:[%s2 + $0x22c] sm:$0xf]
      %v1106 = vld [vmem:[%s2 + $0x230] sm:$0xf]
      %v1107 = vld [vmem:[%s2 + $0x234] sm:$0xf]
      %v1108 = vld [vmem:[%s2 + $0x238] sm:$0xf]
      %v1109 = vld [vmem:[%s2 + $0x23c] sm:$0xf]
      %v1126 = vunpack.c.l.b16 %v1094
      %v1127 = vunpack.c.l.b16 %v1095
      %v1128 = vunpack.c.l.b16 %v1096
      %v1129 = vunpack.c.l.b16 %v1097
      %v1130 = vunpack.c.l.b16 %v1098
      %v1131 = vunpack.c.l.b16 %v1099
      %v1132 = vunpack.c.l.b16 %v1100
      %v1133 = vunpack.c.l.b16 %v1101
      %v1134 = vunpack.c.l.b16 %v1102
      %v1135 = vunpack.c.l.b16 %v1103
      %v1136 = vunpack.c.l.b16 %v1104
      %v1137 = vunpack.c.l.b16 %v1105
      %v1138 = vunpack.c.l.b16 %v1106
      %v1139 = vunpack.c.l.b16 %v1107
      %v1140 = vunpack.c.l.b16 %v1108
      %v1141 = vunpack.c.l.b16 %v1109
      %v1142 = vpack.c.b16 %v1127, %v1126
      %v1143 = vpack.c.b16 %v1129, %v1128
      %v1144 = vpack.c.b16 %v1131, %v1130
      %v1145 = vpack.c.b16 %v1133, %v1132
      %v1146 = vpack.c.b16 %v1135, %v1134
      %v1147 = vpack.c.b16 %v1137, %v1136
      %v1148 = vpack.c.b16 %v1139, %v1138
      %v1149 = vpack.c.b16 %v1141, %v1140
      %1158 = vmatpush.bf16.msra.mxu0 %v1149
      %1159 = vmatpush.bf16.msra.mxu0 %v1148
      %1160 = vmatpush.bf16.msra.mxu0 %v1147
      %1161 = vmatpush.bf16.msra.mxu0 %v1146
      %1162 = vmatpush.bf16.msra.mxu0 %v1145
      %1163 = vmatpush.bf16.msra.mxu0 %v1144
      %1164 = vmatpush.bf16.msra.mxu0 %v1143
      %1165 = vmatpush.bf16.msra.mxu0 %v1142
      %1166 = vmatmul.bf16.gmra.mxu0 %v1091
      %v1167 = vpop.f32.mrf.mxu0
      %v1168 = vadd.f32 0.0, %v1167
      %v1169 = vpop.f32.mrf.mxu0
      %v1170 = vadd.f32 0.0, %v1169
      %1171 = vmatmul.bf16.gmra.mxu0 %v1092
      %v1172 = vpop.f32.mrf.mxu0
      %v1173 = vadd.f32 0.0, %v1172
      %v1174 = vpop.f32.mrf.mxu0
      %v1175 = vadd.f32 0.0, %v1174
      %1176 = vmatmul.bf16.gmra.mxu0 %v1093
      %v1177 = vpop.f32.mrf.mxu0
      %v1178 = vadd.f32 0.0, %v1177
      %v1179 = vpop.f32.mrf.mxu0
      %v1180 = vadd.f32 0.0, %v1179
      %1181 = vdwg.mxu0
      %v1182 = vadd.f32 %v1079, %v1168
      %v1183 = vadd.f32 %v1080, %v1170
      %v1184 = vadd.f32 %v1081, %v1173
      %v1185 = vadd.f32 %v1082, %v1175
      %v1186 = vadd.f32 %v1083, %v1178
      %v1187 = vadd.f32 %v1084, %v1180
      %v1188 = vld [vmem:[%s3] sm:$0x1]
      %v1190 = vperm.slane %v1188, 0
      %v1192 = vadd.f32 %v1182, %v1190
      %v1193 = vadd.f32 %v1183, %v1190
      %v1194 = vadd.f32 %v1184, %v1190
      %v1195 = vadd.f32 %v1185, %v1190
      %v1196 = vadd.f32 %v1186, %v1190
      %v1197 = vadd.f32 %v1187, %v1190
      %v1198 = vmax.f32 %v1192, 0.0
      %v1199 = vmax.f32 %v1193, 0.0
      %v1200 = vmax.f32 %v1194, 0.0
      %v1201 = vmax.f32 %v1195, 0.0
      %v1202 = vmax.f32 %v1196, 0.0
      %v1203 = vmax.f32 %v1197, 0.0
      %1204 = vst [vmem:[%s255] sm:$0xff] %v1198
      %1205 = vst [vmem:[%s255 + $0x8] sm:$0xff] %v1199
      %1206 = vst [vmem:[%s255 + $0x10] sm:$0xff] %v1200
      %1207 = vst [vmem:[%s255 + $0x18] sm:$0xff] %v1201
      %1208 = vst [vmem:[%s255 + $0x20] sm:$0xff] %v1202
      %1209 = vst [vmem:[%s255 + $0x28] sm:$0xff] %v1203
      %s1210 = smul.u32 6, %s15
      %p1211 = scmp.lt.s32.totalorder %s1210, 11
      %s1212 = scalar_select %p1211, %s1210, 11
      %s1213 = smul.addr %s1212, 8
      %s1214 = scalar_lea.vmem %s4, %s1213
      // Predicated region
      $region37: #{_lambda_.24} parent=35 // pred_check
        %p1215 = pneg %p131
      $region38: #{_lambda_.24} parent=35 // pred_check_branch
        %1217 = sbr.rel (%p1215) target = $region40
      $region39: #{_lambda_.24} parent=35 // pred_region
        %s1218 = smul.u32 6, %s15
      $region40: #{_lambda_.24} parent=35 // pred_fallthru
        _
    $region36: #{_lambda_.24} parent=5 // pred_fallthru
      _
    %p1219 = scmp.le.s32.totalorder 2, %s10
    // Predicated region
    $region41: #{_lambda_.24} parent=5 // pred_check
      %p1220 = pneg %p1219
    $region42: #{_lambda_.24} parent=5 // pred_check_branch
      %1222 = sbr.rel (%p1220) target = $region44
    $region43: #{_lambda_.24} parent=5 // pred_region
      %s1223 = ssub.s32 %s10, 2
      // Predicated region
      $region45: #{_lambda_.24} parent=43 // pred_check
        %p1224 = pneg %p137
      $region46: #{_lambda_.24} parent=43 // pred_check_branch
        %1226 = sbr.rel (%p1224) target = $region48
      $region47: #{_lambda_.24} parent=43 // pred_region
        %s1227 = smul.u32 6, %s16
        %p1228 = scmp.lt.s32.totalorder %s1227, 11
        %s1229 = scalar_select %p1228, %s1227, 11
        %s1230 = smul.addr %s1229, 8
        %s1231 = scalar_lea.vmem %s4, %s1230
      $region48: #{_lambda_.24} parent=43 // pred_fallthru
        _
    $region44: #{_lambda_.24} parent=5 // pred_fallthru
      _
  $region6: #{_lambda_.24} parent=0 // loop_footer
    %s14 = sadd.s32 1, %s10
  $region7: #{_lambda_.24} parent=0 // loop_footer_branch
    %9 = sbr.rel target = $region3
  $region8: #{_lambda_.24} parent=0 // loop_exit
    _

// kernel: _lambda_.27
$region0: #{_lambda_.27}
  #allocation0 [shape = 'u32[]', space=smem, size = 0x4, offset = 0x4, fixed_abs, tag = 'smem constant byte address 0x4 - core index']
  #allocation1 [shape = 'u32[72,128]{1,0:T(1,128)}', space=vmem, size = 0x9000, scoped, tag = 'internal scratch']
  %s0 = inlined_call_operand.vmem [shape: bf16[8,128], index: 0, kind: input, shape index: {}]
  %s1 = inlined_call_operand.vmem [shape: bf16[128,128], index: 1, kind: input, shape index: {}]
  %s2 = inlined_call_operand.vmem [shape: f32[1,128], index: 2, kind: input, shape index: {}]
  %s3 = inlined_call_operand.vmem [shape: f32[8,128], index: 3, kind: output, shape index: {}]
  %s4 = sld [smem:[#allocation0]]
  $region22: #{_lambda_.27} parent=0
    _
  %s6 = ssub.s32 1, %s4
  %s7 = scalar_select 0, %s6, %s4
  // Predicated region
  $region2: #{_lambda_.27} parent=0 // pred_check
    _
  $region3: #{_lambda_.27} parent=0 // pred_check_branch
    %9 = sbr.rel (0) target = $region5
  $region4: #{_lambda_.27} parent=0 // pred_region
    _
  $region5: #{_lambda_.27} parent=0 // pred_fallthru
    _
  // Predicated region
  $region6: #{_lambda_.27} parent=0 // pred_check
    _
  $region7: #{_lambda_.27} parent=0 // pred_check_branch
    %11 = sbr.rel (0) target = $region9
  $region8: #{_lambda_.27} parent=0 // pred_region
    _
  $region9: #{_lambda_.27} parent=0 // pred_fallthru
    _
  // Predicated region
  $region10: #{_lambda_.27} parent=0 // pred_check
    _
  $region11: #{_lambda_.27} parent=0 // pred_check_branch
    %13 = sbr.rel (0) target = $region13
  $region12: #{_lambda_.27} parent=0 // pred_region
    _
  $region13: #{_lambda_.27} parent=0 // pred_fallthru
    _
  %v14 = vld [vmem:[%s0] sm:$0xf]
  %v15 = vld [vmem:[%s1] sm:$0xf]
  %v16 = vld [vmem:[%s1 + $0x4] sm:$0xf]
  %v17 = vld [vmem:[%s1 + $0x8] sm:$0xf]
  %v18 = vld [vmem:[%s1 + $0xc] sm:$0xf]
  %v19 = vld [vmem:[%s1 + $0x10] sm:$0xf]
  %v20 = vld [vmem:[%s1 + $0x14] sm:$0xf]
  %v21 = vld [vmem:[%s1 + $0x18] sm:$0xf]
  %v22 = vld [vmem:[%s1 + $0x1c] sm:$0xf]
  %v23 = vld [vmem:[%s1 + $0x20] sm:$0xf]
  %v24 = vld [vmem:[%s1 + $0x24] sm:$0xf]
  %v25 = vld [vmem:[%s1 + $0x28] sm:$0xf]
  %v26 = vld [vmem:[%s1 + $0x2c] sm:$0xf]
  %v27 = vld [vmem:[%s1 + $0x30] sm:$0xf]
  %v28 = vld [vmem:[%s1 + $0x34] sm:$0xf]
  %v29 = vld [vmem:[%s1 + $0x38] sm:$0xf]
  %v30 = vld [vmem:[%s1 + $0x3c] sm:$0xf]
  %v31 = vld [vmem:[%s2] sm:$0x1]
  %v33 = vperm.slane %v31, 0
  %v51 = vunpack.c.l.b16 %v15
  %v52 = vunpack.c.l.b16 %v16
  %v53 = vunpack.c.l.b16 %v17
  %v54 = vunpack.c.l.b16 %v18
  %v55 = vunpack.c.l.b16 %v19
  %v56 = vunpack.c.l.b16 %v20
  %v57 = vunpack.c.l.b16 %v21
  %v58 = vunpack.c.l.b16 %v22
  %v59 = vunpack.c.l.b16 %v23
  %v60 = vunpack.c.l.b16 %v24
  %v61 = vunpack.c.l.b16 %v25
  %v62 = vunpack.c.l.b16 %v26
  %v63 = vunpack.c.l.b16 %v27
  %v64 = vunpack.c.l.b16 %v28
  %v65 = vunpack.c.l.b16 %v29
  %v66 = vunpack.c.l.b16 %v30
  %v67 = vpack.c.b16 %v52, %v51
  %v68 = vpack.c.b16 %v54, %v53
  %v69 = vpack.c.b16 %v56, %v55
  %v70 = vpack.c.b16 %v58, %v57
  %v71 = vpack.c.b16 %v60, %v59
  %v72 = vpack.c.b16 %v62, %v61
  %v73 = vpack.c.b16 %v64, %v63
  %v74 = vpack.c.b16 %v66, %v65
  %83 = vmatpush.bf16.msra.mxu0 %v74
  %84 = vmatpush.bf16.msra.mxu0 %v73
  %85 = vmatpush.bf16.msra.mxu0 %v72
  %86 = vmatpush.bf16.msra.mxu0 %v71
  %87 = vmatpush.bf16.msra.mxu0 %v70
  %88 = vmatpush.bf16.msra.mxu0 %v69
  %89 = vmatpush.bf16.msra.mxu0 %v68
  %90 = vmatpush.bf16.msra.mxu0 %v67
  %91 = vmatmul.bf16.gmra.mxu0 %v14
  %v92 = vpop.f32.mrf.mxu0
  %v93 = vadd.f32 %v33, %v92
  %v94 = vpop.f32.mrf.mxu0
  %95 = vdwg.mxu0
  %96 = vst [vmem:[%s3] sm:$0xff] %v93
  // Predicated region
  $region14: #{_lambda_.27} parent=0 // pred_check
    _
  $region15: #{_lambda_.27} parent=0 // pred_check_branch
    %98 = sbr.rel (0) target = $region17
  $region16: #{_lambda_.27} parent=0 // pred_region
    _
  $region17: #{_lambda_.27} parent=0 // pred_fallthru
    _
  // Predicated region
  $region18: #{_lambda_.27} parent=0 // pred_check
    _
  $region19: #{_lambda_.27} parent=0 // pred_check_branch
    %100 = sbr.rel (0) target = $region21
  $region20: #{_lambda_.27} parent=0 // pred_region
    _
  $region21: #{_lambda_.27} parent=0 // pred_fallthru
    _

// kernel: _lambda_.26
$region0: #{_lambda_.26}
  #allocation0 [shape = 'u32[]', space=smem, size = 0x4, offset = 0x4, fixed_abs, tag = 'smem constant byte address 0x4 - core index']
  #allocation1 [shape = 'u32[72,128]{1,0:T(1,128)}', space=vmem, size = 0x9000, scoped, tag = 'internal scratch']
  %s0 = inlined_call_operand.vmem [shape: bf16[8,1152], index: 0, kind: input, shape index: {}]
  %s1 = inlined_call_operand.vmem [shape: bf16[1152,128], index: 1, kind: input, shape index: {}]
  %s2 = inlined_call_operand.vmem [shape: f32[1,128], index: 2, kind: input, shape index: {}]
  %s3 = inlined_call_operand.vmem [shape: f32[8,128], index: 3, kind: output, shape index: {}]
  %s4 = sld [smem:[#allocation0]]
  $region22: #{_lambda_.26} parent=0
    _
  %s6 = ssub.s32 1, %s4
  %s7 = scalar_select 0, %s6, %s4
  // Predicated region
  $region2: #{_lambda_.26} parent=0 // pred_check
    _
  $region3: #{_lambda_.26} parent=0 // pred_check_branch
    %9 = sbr.rel (0) target = $region5
  $region4: #{_lambda_.26} parent=0 // pred_region
    _
  $region5: #{_lambda_.26} parent=0 // pred_fallthru
    _
  // Predicated region
  $region6: #{_lambda_.26} parent=0 // pred_check
    _
  $region7: #{_lambda_.26} parent=0 // pred_check_branch
    %11 = sbr.rel (0) target = $region9
  $region8: #{_lambda_.26} parent=0 // pred_region
    _
  $region9: #{_lambda_.26} parent=0 // pred_fallthru
    _
  // Predicated region
  $region10: #{_lambda_.26} parent=0 // pred_check
    _
  $region11: #{_lambda_.26} parent=0 // pred_check_branch
    %13 = sbr.rel (0) target = $region13
  $region12: #{_lambda_.26} parent=0 // pred_region
    _
  $region13: #{_lambda_.26} parent=0 // pred_fallthru
    _
  %v14 = vld [vmem:[%s0] sm:$0xff]
  %v15 = vld [vmem:[%s0 + $0x8] sm:$0xff]
  %v16 = vld [vmem:[%s0 + $0x10] sm:$0xff]
  %v17 = vld [vmem:[%s0 + $0x18] sm:$0xff]
  %v18 = vld [vmem:[%s0 + $0x20] sm:$0xf]
  %v19 = vld [vmem:[%s1] sm:$0xf]
  %v20 = vld [vmem:[%s1 + $0x4] sm:$0xf]
  %v21 = vld [vmem:[%s1 + $0x8] sm:$0xf]
  %v22 = vld [vmem:[%s1 + $0xc] sm:$0xf]
  %v23 = vld [vmem:[%s1 + $0x10] sm:$0xf]
  %v24 = vld [vmem:[%s1 + $0x14] sm:$0xf]
  %v25 = vld [vmem:[%s1 + $0x18] sm:$0xf]
  %v26 = vld [vmem:[%s1 + $0x1c] sm:$0xf]
  %v27 = vld [vmem:[%s1 + $0x20] sm:$0xf]
  %v28 = vld [vmem:[%s1 + $0x24] sm:$0xf]
  %v29 = vld [vmem:[%s1 + $0x28] sm:$0xf]
  %v30 = vld [vmem:[%s1 + $0x2c] sm:$0xf]
  %v31 = vld [vmem:[%s1 + $0x30] sm:$0xf]
  %v32 = vld [vmem:[%s1 + $0x34] sm:$0xf]
  %v33 = vld [vmem:[%s1 + $0x38] sm:$0xf]
  %v34 = vld [vmem:[%s1 + $0x3c] sm:$0xf]
  %v35 = vld [vmem:[%s1 + $0x40] sm:$0xf]
  %v36 = vld [vmem:[%s1 + $0x44] sm:$0xf]
  %v37 = vld [vmem:[%s1 + $0x48] sm:$0xf]
  %v38 = vld [vmem:[%s1 + $0x4c] sm:$0xf]
  %v39 = vld [vmem:[%s1 + $0x50] sm:$0xf]
  %v40 = vld [vmem:[%s1 + $0x54] sm:$0xf]
  %v41 = vld [vmem:[%s1 + $0x58] sm:$0xf]
  %v42 = vld [vmem:[%s1 + $0x5c] sm:$0xf]
  %v43 = vld [vmem:[%s1 + $0x60] sm:$0xf]
  %v44 = vld [vmem:[%s1 + $0x64] sm:$0xf]
  %v45 = vld [vmem:[%s1 + $0x68] sm:$0xf]
  %v46 = vld [vmem:[%s1 + $0x6c] sm:$0xf]
  %v47 = vld [vmem:[%s1 + $0x70] sm:$0xf]
  %v48 = vld [vmem:[%s1 + $0x74] sm:$0xf]
  %v49 = vld [vmem:[%s1 + $0x78] sm:$0xf]
  %v50 = vld [vmem:[%s1 + $0x7c] sm:$0xf]
  %v51 = vld [vmem:[%s1 + $0x80] sm:$0xf]
  %v52 = vld [vmem:[%s1 + $0x84] sm:$0xf]
  %v53 = vld [vmem:[%s1 + $0x88] sm:$0xf]
  %v54 = vld [vmem:[%s1 + $0x8c] sm:$0xf]
  %v55 = vld [vmem:[%s1 + $0x90] sm:$0xf]
  %v56 = vld [vmem:[%s1 + $0x94] sm:$0xf]
  %v57 = vld [vmem:[%s1 + $0x98] sm:$0xf]
  %v58 = vld [vmem:[%s1 + $0x9c] sm:$0xf]
  %v59 = vld [vmem:[%s1 + $0xa0] sm:$0xf]
  %v60 = vld [vmem:[%s1 + $0xa4] sm:$0xf]
  %v61 = vld [vmem:[%s1 + $0xa8] sm:$0xf]
  %v62 = vld [vmem:[%s1 + $0xac] sm:$0xf]
  %v63 = vld [vmem:[%s1 + $0xb0] sm:$0xf]
  %v64 = vld [vmem:[%s1 + $0xb4] sm:$0xf]
  %v65 = vld [vmem:[%s1 + $0xb8] sm:$0xf]
  %v66 = vld [vmem:[%s1 + $0xbc] sm:$0xf]
  %v67 = vld [vmem:[%s1 + $0xc0] sm:$0xf]
  %v68 = vld [vmem:[%s1 + $0xc4] sm:$0xf]
  %v69 = vld [vmem:[%s1 + $0xc8] sm:$0xf]
  %v70 = vld [vmem:[%s1 + $0xcc] sm:$0xf]
  %v71 = vld [vmem:[%s1 + $0xd0] sm:$0xf]
  %v72 = vld [vmem:[%s1 + $0xd4] sm:$0xf]
  %v73 = vld [vmem:[%s1 + $0xd8] sm:$0xf]
  %v74 = vld [vmem:[%s1 + $0xdc] sm:$0xf]
  %v75 = vld [vmem:[%s1 + $0xe0] sm:$0xf]
  %v76 = vld [vmem:[%s1 + $0xe4] sm:$0xf]
  %v77 = vld [vmem:[%s1 + $0xe8] sm:$0xf]
  %v78 = vld [vmem:[%s1 + $0xec] sm:$0xf]
  %v79 = vld [vmem:[%s1 + $0xf0] sm:$0xf]
  %v80 = vld [vmem:[%s1 + $0xf4] sm:$0xf]
  %v81 = vld [vmem:[%s1 + $0xf8] sm:$0xf]
  %v82 = vld [vmem:[%s1 + $0xfc] sm:$0xf]
  %v83 = vld [vmem:[%s1 + $0x100] sm:$0xf]
  %v84 = vld [vmem:[%s1 + $0x104] sm:$0xf]
  %v85 = vld [vmem:[%s1 + $0x108] sm:$0xf]
  %v86 = vld [vmem:[%s1 + $0x10c] sm:$0xf]
  %v87 = vld [vmem:[%s1 + $0x110] sm:$0xf]
  %v88 = vld [vmem:[%s1 + $0x114] sm:$0xf]
  %v89 = vld [vmem:[%s1 + $0x118] sm:$0xf]
  %v90 = vld [vmem:[%s1 + $0x11c] sm:$0xf]
  %v91 = vld [vmem:[%s1 + $0x120] sm:$0xf]
  %v92 = vld [vmem:[%s1 + $0x124] sm:$0xf]
  %v93 = vld [vmem:[%s1 + $0x128] sm:$0xf]
  %v94 = vld [vmem:[%s1 + $0x12c] sm:$0xf]
  %v95 = vld [vmem:[%s1 + $0x130] sm:$0xf]
  %v96 = vld [vmem:[%s1 + $0x134] sm:$0xf]
  %v97 = vld [vmem:[%s1 + $0x138] sm:$0xf]
  %v98 = vld [vmem:[%s1 + $0x13c] sm:$0xf]
  %v99 = vld [vmem:[%s1 + $0x140] sm:$0xf]
  %v100 = vld [vmem:[%s1 + $0x144] sm:$0xf]
  %v101 = vld [vmem:[%s1 + $0x148] sm:$0xf]
  %v102 = vld [vmem:[%s1 + $0x14c] sm:$0xf]
  %v103 = vld [vmem:[%s1 + $0x150] sm:$0xf]
  %v104 = vld [vmem:[%s1 + $0x154] sm:$0xf]
  %v105 = vld [vmem:[%s1 + $0x158] sm:$0xf]
  %v106 = vld [vmem:[%s1 + $0x15c] sm:$0xf]
  %v107 = vld [vmem:[%s1 + $0x160] sm:$0xf]
  %v108 = vld [vmem:[%s1 + $0x164] sm:$0xf]
  %v109 = vld [vmem:[%s1 + $0x168] sm:$0xf]
  %v110 = vld [vmem:[%s1 + $0x16c] sm:$0xf]
  %v111 = vld [vmem:[%s1 + $0x170] sm:$0xf]
  %v112 = vld [vmem:[%s1 + $0x174] sm:$0xf]
  %v113 = vld [vmem:[%s1 + $0x178] sm:$0xf]
  %v114 = vld [vmem:[%s1 + $0x17c] sm:$0xf]
  %v115 = vld [vmem:[%s1 + $0x180] sm:$0xf]
  %v116 = vld [vmem:[%s1 + $0x184] sm:$0xf]
  %v117 = vld [vmem:[%s1 + $0x188] sm:$0xf]
  %v118 = vld [vmem:[%s1 + $0x18c] sm:$0xf]
  %v119 = vld [vmem:[%s1 + $0x190] sm:$0xf]
  %v120 = vld [vmem:[%s1 + $0x194] sm:$0xf]
  %v121 = vld [vmem:[%s1 + $0x198] sm:$0xf]
  %v122 = vld [vmem:[%s1 + $0x19c] sm:$0xf]
  %v123 = vld [vmem:[%s1 + $0x1a0] sm:$0xf]
  %v124 = vld [vmem:[%s1 + $0x1a4] sm:$0xf]
  %v125 = vld [vmem:[%s1 + $0x1a8] sm:$0xf]
  %v126 = vld [vmem:[%s1 + $0x1ac] sm:$0xf]
  %v127 = vld [vmem:[%s1 + $0x1b0] sm:$0xf]
  %v128 = vld [vmem:[%s1 + $0x1b4] sm:$0xf]
  %v129 = vld [vmem:[%s1 + $0x1b8] sm:$0xf]
  %v130 = vld [vmem:[%s1 + $0x1bc] sm:$0xf]
  %v131 = vld [vmem:[%s1 + $0x1c0] sm:$0xf]
  %v132 = vld [vmem:[%s1 + $0x1c4] sm:$0xf]
  %v133 = vld [vmem:[%s1 + $0x1c8] sm:$0xf]
  %v134 = vld [vmem:[%s1 + $0x1cc] sm:$0xf]
  %v135 = vld [vmem:[%s1 + $0x1d0] sm:$0xf]
  %v136 = vld [vmem:[%s1 + $0x1d4] sm:$0xf]
  %v137 = vld [vmem:[%s1 + $0x1d8] sm:$0xf]
  %v138 = vld [vmem:[%s1 + $0x1dc] sm:$0xf]
  %v139 = vld [vmem:[%s1 + $0x1e0] sm:$0xf]
  %v140 = vld [vmem:[%s1 + $0x1e4] sm:$0xf]
  %v141 = vld [vmem:[%s1 + $0x1e8] sm:$0xf]
  %v142 = vld [vmem:[%s1 + $0x1ec] sm:$0xf]
  %v143 = vld [vmem:[%s1 + $0x1f0] sm:$0xf]
  %v144 = vld [vmem:[%s1 + $0x1f4] sm:$0xf]
  %v145 = vld [vmem:[%s1 + $0x1f8] sm:$0xf]
  %v146 = vld [vmem:[%s1 + $0x1fc] sm:$0xf]
  %v147 = vld [vmem:[%s1 + $0x200] sm:$0xf]
  %v148 = vld [vmem:[%s1 + $0x204] sm:$0xf]
  %v149 = vld [vmem:[%s1 + $0x208] sm:$0xf]
  %v150 = vld [vmem:[%s1 + $0x20c] sm:$0xf]
  %v151 = vld [vmem:[%s1 + $0x210] sm:$0xf]
  %v152 = vld [vmem:[%s1 + $0x214] sm:$0xf]
  %v153 = vld [vmem:[%s1 + $0x218] sm:$0xf]
  %v154 = vld [vmem:[%s1 + $0x21c] sm:$0xf]
  %v155 = vld [vmem:[%s1 + $0x220] sm:$0xf]
  %v156 = vld [vmem:[%s1 + $0x224] sm:$0xf]
  %v157 = vld [vmem:[%s1 + $0x228] sm:$0xf]
  %v158 = vld [vmem:[%s1 + $0x22c] sm:$0xf]
  %v159 = vld [vmem:[%s1 + $0x230] sm:$0xf]
  %v160 = vld [vmem:[%s1 + $0x234] sm:$0xf]
  %v161 = vld [vmem:[%s1 + $0x238] sm:$0xf]
  %v162 = vld [vmem:[%s1 + $0x23c] sm:$0xf]
  %v163 = vld [vmem:[%s2] sm:$0x1]
  %v165 = vperm.slane %v163, 0
  %v172 = vunpack.c.l.b16 %v14
  %v173 = vunpack.c.h.b16 %v14
  %v174 = vunpack.c.l.b16 %v15
  %v175 = vunpack.c.h.b16 %v15
  %v176 = vunpack.c.l.b16 %v16
  %v177 = vunpack.c.h.b16 %v16
  %v178 = vunpack.c.l.b16 %v17
  %v179 = vunpack.c.h.b16 %v17
  %v180 = vunpack.c.l.b16 %v18
  %v181 = vpack.c.b16 %v172, %v172
  %v182 = vpack.c.b16 %v173, %v173
  %v183 = vpack.c.b16 %v174, %v174
  %v184 = vpack.c.b16 %v175, %v175
  %v185 = vpack.c.b16 %v176, %v176
  %v186 = vpack.c.b16 %v177, %v177
  %v187 = vpack.c.b16 %v178, %v178
  %v188 = vpack.c.b16 %v179, %v179
  %v189 = vpack.c.b16 %v180, %v180
  %v343 = vunpack.c.l.b16 %v19
  %v344 = vunpack.c.l.b16 %v20
  %v345 = vunpack.c.l.b16 %v21
  %v346 = vunpack.c.l.b16 %v22
  %v347 = vunpack.c.l.b16 %v23
  %v348 = vunpack.c.l.b16 %v24
  %v349 = vunpack.c.l.b16 %v25
  %v350 = vunpack.c.l.b16 %v26
  %v351 = vunpack.c.l.b16 %v27
  %v352 = vunpack.c.l.b16 %v28
  %v353 = vunpack.c.l.b16 %v29
  %v354 = vunpack.c.l.b16 %v30
  %v355 = vunpack.c.l.b16 %v31
  %v356 = vunpack.c.l.b16 %v32
  %v357 = vunpack.c.l.b16 %v33
  %v358 = vunpack.c.l.b16 %v34
  %v359 = vunpack.c.l.b16 %v35
  %v360 = vunpack.c.l.b16 %v36
  %v361 = vunpack.c.l.b16 %v37
  %v362 = vunpack.c.l.b16 %v38
  %v363 = vunpack.c.l.b16 %v39
  %v364 = vunpack.c.l.b16 %v40
  %v365 = vunpack.c.l.b16 %v41
  %v366 = vunpack.c.l.b16 %v42
  %v367 = vunpack.c.l.b16 %v43
  %v368 = vunpack.c.l.b16 %v44
  %v369 = vunpack.c.l.b16 %v45
  %v370 = vunpack.c.l.b16 %v46
  %v371 = vunpack.c.l.b16 %v47
  %v372 = vunpack.c.l.b16 %v48
  %v373 = vunpack.c.l.b16 %v49
  %v374 = vunpack.c.l.b16 %v50
  %v375 = vunpack.c.l.b16 %v51
  %v376 = vunpack.c.l.b16 %v52
  %v377 = vunpack.c.l.b16 %v53
  %v378 = vunpack.c.l.b16 %v54
  %v379 = vunpack.c.l.b16 %v55
  %v380 = vunpack.c.l.b16 %v56
  %v381 = vunpack.c.l.b16 %v57
  %v382 = vunpack.c.l.b16 %v58
  %v383 = vunpack.c.l.b16 %v59
  %v384 = vunpack.c.l.b16 %v60
  %v385 = vunpack.c.l.b16 %v61
  %v386 = vunpack.c.l.b16 %v62
  %v387 = vunpack.c.l.b16 %v63
  %v388 = vunpack.c.l.b16 %v64
  %v389 = vunpack.c.l.b16 %v65
  %v390 = vunpack.c.l.b16 %v66
  %v391 = vunpack.c.l.b16 %v67
  %v392 = vunpack.c.l.b16 %v68
  %v393 = vunpack.c.l.b16 %v69
  %v394 = vunpack.c.l.b16 %v70
  %v395 = vunpack.c.l.b16 %v71
  %v396 = vunpack.c.l.b16 %v72
  %v397 = vunpack.c.l.b16 %v73
  %v398 = vunpack.c.l.b16 %v74
  %v399 = vunpack.c.l.b16 %v75
  %v400 = vunpack.c.l.b16 %v76
  %v401 = vunpack.c.l.b16 %v77
  %v402 = vunpack.c.l.b16 %v78
  %v403 = vunpack.c.l.b16 %v79
  %v404 = vunpack.c.l.b16 %v80
  %v405 = vunpack.c.l.b16 %v81
  %v406 = vunpack.c.l.b16 %v82
  %v407 = vunpack.c.l.b16 %v83
  %v408 = vunpack.c.l.b16 %v84
  %v409 = vunpack.c.l.b16 %v85
  %v410 = vunpack.c.l.b16 %v86
  %v411 = vunpack.c.l.b16 %v87
  %v412 = vunpack.c.l.b16 %v88
  %v413 = vunpack.c.l.b16 %v89
  %v414 = vunpack.c.l.b16 %v90
  %v415 = vunpack.c.l.b16 %v91
  %v416 = vunpack.c.l.b16 %v92
  %v417 = vunpack.c.l.b16 %v93
  %v418 = vunpack.c.l.b16 %v94
  %v419 = vunpack.c.l.b16 %v95
  %v420 = vunpack.c.l.b16 %v96
  %v421 = vunpack.c.l.b16 %v97
  %v422 = vunpack.c.l.b16 %v98
  %v423 = vunpack.c.l.b16 %v99
  %v424 = vunpack.c.l.b16 %v100
  %v425 = vunpack.c.l.b16 %v101
  %v426 = vunpack.c.l.b16 %v102
  %v427 = vunpack.c.l.b16 %v103
  %v428 = vunpack.c.l.b16 %v104
  %v429 = vunpack.c.l.b16 %v105
  %v430 = vunpack.c.l.b16 %v106
  %v431 = vunpack.c.l.b16 %v107
  %v432 = vunpack.c.l.b16 %v108
  %v433 = vunpack.c.l.b16 %v109
  %v434 = vunpack.c.l.b16 %v110
  %v435 = vunpack.c.l.b16 %v111
  %v436 = vunpack.c.l.b16 %v112
  %v437 = vunpack.c.l.b16 %v113
  %v438 = vunpack.c.l.b16 %v114
  %v439 = vunpack.c.l.b16 %v115
  %v440 = vunpack.c.l.b16 %v116
  %v441 = vunpack.c.l.b16 %v117
  %v442 = vunpack.c.l.b16 %v118
  %v443 = vunpack.c.l.b16 %v119
  %v444 = vunpack.c.l.b16 %v120
  %v445 = vunpack.c.l.b16 %v121
  %v446 = vunpack.c.l.b16 %v122
  %v447 = vunpack.c.l.b16 %v123
  %v448 = vunpack.c.l.b16 %v124
  %v449 = vunpack.c.l.b16 %v125
  %v450 = vunpack.c.l.b16 %v126
  %v451 = vunpack.c.l.b16 %v127
  %v452 = vunpack.c.l.b16 %v128
  %v453 = vunpack.c.l.b16 %v129
  %v454 = vunpack.c.l.b16 %v130
  %v455 = vunpack.c.l.b16 %v131
  %v456 = vunpack.c.l.b16 %v132
  %v457 = vunpack.c.l.b16 %v133
  %v458 = vunpack.c.l.b16 %v134
  %v459 = vunpack.c.l.b16 %v135
  %v460 = vunpack.c.l.b16 %v136
  %v461 = vunpack.c.l.b16 %v137
  %v462 = vunpack.c.l.b16 %v138
  %v463 = vunpack.c.l.b16 %v139
  %v464 = vunpack.c.l.b16 %v140
  %v465 = vunpack.c.l.b16 %v141
  %v466 = vunpack.c.l.b16 %v142
  %v467 = vunpack.c.l.b16 %v143
  %v468 = vunpack.c.l.b16 %v144
  %v469 = vunpack.c.l.b16 %v145
  %v470 = vunpack.c.l.b16 %v146
  %v471 = vunpack.c.l.b16 %v147
  %v472 = vunpack.c.l.b16 %v148
  %v473 = vunpack.c.l.b16 %v149
  %v474 = vunpack.c.l.b16 %v150
  %v475 = vunpack.c.l.b16 %v151
  %v476 = vunpack.c.l.b16 %v152
  %v477 = vunpack.c.l.b16 %v153
  %v478 = vunpack.c.l.b16 %v154
  %v479 = vunpack.c.l.b16 %v155
  %v480 = vunpack.c.l.b16 %v156
  %v481 = vunpack.c.l.b16 %v157
  %v482 = vunpack.c.l.b16 %v158
  %v483 = vunpack.c.l.b16 %v159
  %v484 = vunpack.c.l.b16 %v160
  %v485 = vunpack.c.l.b16 %v161
  %v486 = vunpack.c.l.b16 %v162
  %v487 = vpack.c.b16 %v344, %v343
  %v488 = vpack.c.b16 %v346, %v345
  %v489 = vpack.c.b16 %v348, %v347
  %v490 = vpack.c.b16 %v350, %v349
  %v491 = vpack.c.b16 %v352, %v351
  %v492 = vpack.c.b16 %v354, %v353
  %v493 = vpack.c.b16 %v356, %v355
  %v494 = vpack.c.b16 %v358, %v357
  %v495 = vpack.c.b16 %v360, %v359
  %v496 = vpack.c.b16 %v362, %v361
  %v497 = vpack.c.b16 %v364, %v363
  %v498 = vpack.c.b16 %v366, %v365
  %v499 = vpack.c.b16 %v368, %v367
  %v500 = vpack.c.b16 %v370, %v369
  %v501 = vpack.c.b16 %v372, %v371
  %v502 = vpack.c.b16 %v374, %v373
  %v503 = vpack.c.b16 %v376, %v375
  %v504 = vpack.c.b16 %v378, %v377
  %v505 = vpack.c.b16 %v380, %v379
  %v506 = vpack.c.b16 %v382, %v381
  %v507 = vpack.c.b16 %v384, %v383
  %v508 = vpack.c.b16 %v386, %v385
  %v509 = vpack.c.b16 %v388, %v387
  %v510 = vpack.c.b16 %v390, %v389
  %v511 = vpack.c.b16 %v392, %v391
  %v512 = vpack.c.b16 %v394, %v393
  %v513 = vpack.c.b16 %v396, %v395
  %v514 = vpack.c.b16 %v398, %v397
  %v515 = vpack.c.b16 %v400, %v399
  %v516 = vpack.c.b16 %v402, %v401
  %v517 = vpack.c.b16 %v404, %v403
  %v518 = vpack.c.b16 %v406, %v405
  %v519 = vpack.c.b16 %v408, %v407
  %v520 = vpack.c.b16 %v410, %v409
  %v521 = vpack.c.b16 %v412, %v411
  %v522 = vpack.c.b16 %v414, %v413
  %v523 = vpack.c.b16 %v416, %v415
  %v524 = vpack.c.b16 %v418, %v417
  %v525 = vpack.c.b16 %v420, %v419
  %v526 = vpack.c.b16 %v422, %v421
  %v527 = vpack.c.b16 %v424, %v423
  %v528 = vpack.c.b16 %v426, %v425
  %v529 = vpack.c.b16 %v428, %v427
  %v530 = vpack.c.b16 %v430, %v429
  %v531 = vpack.c.b16 %v432, %v431
  %v532 = vpack.c.b16 %v434, %v433
  %v533 = vpack.c.b16 %v436, %v435
  %v534 = vpack.c.b16 %v438, %v437
  %v535 = vpack.c.b16 %v440, %v439
  %v536 = vpack.c.b16 %v442, %v441
  %v537 = vpack.c.b16 %v444, %v443
  %v538 = vpack.c.b16 %v446, %v445
  %v539 = vpack.c.b16 %v448, %v447
  %v540 = vpack.c.b16 %v450, %v449
  %v541 = vpack.c.b16 %v452, %v451
  %v542 = vpack.c.b16 %v454, %v453
  %v543 = vpack.c.b16 %v456, %v455
  %v544 = vpack.c.b16 %v458, %v457
  %v545 = vpack.c.b16 %v460, %v459
  %v546 = vpack.c.b16 %v462, %v461
  %v547 = vpack.c.b16 %v464, %v463
  %v548 = vpack.c.b16 %v466, %v465
  %v549 = vpack.c.b16 %v468, %v467
  %v550 = vpack.c.b16 %v470, %v469
  %v551 = vpack.c.b16 %v472, %v471
  %v552 = vpack.c.b16 %v474, %v473
  %v553 = vpack.c.b16 %v476, %v475
  %v554 = vpack.c.b16 %v478, %v477
  %v555 = vpack.c.b16 %v480, %v479
  %v556 = vpack.c.b16 %v482, %v481
  %v557 = vpack.c.b16 %v484, %v483
  %v558 = vpack.c.b16 %v486, %v485
  %631 = vmatpush.bf16.msra.mxu0 %v494
  %632 = vmatpush.bf16.msra.mxu0 %v493
  %633 = vmatpush.bf16.msra.mxu0 %v492
  %634 = vmatpush.bf16.msra.mxu0 %v491
  %635 = vmatpush.bf16.msra.mxu0 %v490
  %636 = vmatpush.bf16.msra.mxu0 %v489
  %637 = vmatpush.bf16.msra.mxu0 %v488
  %638 = vmatpush.bf16.msra.mxu0 %v487
  %639 = vmatmul.bf16.gmra.mxu0 %v181
  %v640 = vpop.f32.mrf.mxu0
  %v641 = vadd.f32 %v165, %v640
  %v642 = vpop.f32.mrf.mxu0
  %643 = vdwg.mxu0
  %644 = vmatpush.bf16.msra.mxu0 %v502
  %645 = vmatpush.bf16.msra.mxu0 %v501
  %646 = vmatpush.bf16.msra.mxu0 %v500
  %647 = vmatpush.bf16.msra.mxu0 %v499
  %648 = vmatpush.bf16.msra.mxu0 %v498
  %649 = vmatpush.bf16.msra.mxu0 %v497
  %650 = vmatpush.bf16.msra.mxu0 %v496
  %651 = vmatpush.bf16.msra.mxu0 %v495
  %652 = vmatmul.bf16.gmra.mxu0 %v182
  %v653 = vpop.f32.mrf.mxu0
  %v654 = vadd.f32 %v641, %v653
  %v655 = vpop.f32.mrf.mxu0
  %656 = vdwg.mxu0
  %657 = vmatpush.bf16.msra.mxu0 %v510
  %658 = vmatpush.bf16.msra.mxu0 %v509
  %659 = vmatpush.bf16.msra.mxu0 %v508
  %660 = vmatpush.bf16.msra.mxu0 %v507
  %661 = vmatpush.bf16.msra.mxu0 %v506
  %662 = vmatpush.bf16.msra.mxu0 %v505
  %663 = vmatpush.bf16.msra.mxu0 %v504
  %664 = vmatpush.bf16.msra.mxu0 %v503
  %665 = vmatmul.bf16.gmra.mxu0 %v183
  %v666 = vpop.f32.mrf.mxu0
  %v667 = vadd.f32 %v654, %v666
  %v668 = vpop.f32.mrf.mxu0
  %669 = vdwg.mxu0
  %670 = vmatpush.bf16.msra.mxu0 %v518
  %671 = vmatpush.bf16.msra.mxu0 %v517
  %672 = vmatpush.bf16.msra.mxu0 %v516
  %673 = vmatpush.bf16.msra.mxu0 %v515
  %674 = vmatpush.bf16.msra.mxu0 %v514
  %675 = vmatpush.bf16.msra.mxu0 %v513
  %676 = vmatpush.bf16.msra.mxu0 %v512
  %677 = vmatpush.bf16.msra.mxu0 %v511
  %678 = vmatmul.bf16.gmra.mxu0 %v184
  %v679 = vpop.f32.mrf.mxu0
  %v680 = vadd.f32 %v667, %v679
  %v681 = vpop.f32.mrf.mxu0
  %682 = vdwg.mxu0
  %683 = vmatpush.bf16.msra.mxu0 %v526
  %684 = vmatpush.bf16.msra.mxu0 %v525
  %685 = vmatpush.bf16.msra.mxu0 %v524
  %686 = vmatpush.bf16.msra.mxu0 %v523
  %687 = vmatpush.bf16.msra.mxu0 %v522
  %688 = vmatpush.bf16.msra.mxu0 %v521
  %689 = vmatpush.bf16.msra.mxu0 %v520
  %690 = vmatpush.bf16.msra.mxu0 %v519
  %691 = vmatmul.bf16.gmra.mxu0 %v185
  %v692 = vpop.f32.mrf.mxu0
  %v693 = vadd.f32 %v680, %v692
  %v694 = vpop.f32.mrf.mxu0
  %695 = vdwg.mxu0
  %696 = vmatpush.bf16.msra.mxu0 %v534
  %697 = vmatpush.bf16.msra.mxu0 %v533
  %698 = vmatpush.bf16.msra.mxu0 %v532
  %699 = vmatpush.bf16.msra.mxu0 %v531
  %700 = vmatpush.bf16.msra.mxu0 %v530
  %701 = vmatpush.bf16.msra.mxu0 %v529
  %702 = vmatpush.bf16.msra.mxu0 %v528
  %703 = vmatpush.bf16.msra.mxu0 %v527
  %704 = vmatmul.bf16.gmra.mxu0 %v186
  %v705 = vpop.f32.mrf.mxu0
  %v706 = vadd.f32 %v693, %v705
  %v707 = vpop.f32.mrf.mxu0
  %708 = vdwg.mxu0
  %709 = vmatpush.bf16.msra.mxu0 %v542
  %710 = vmatpush.bf16.msra.mxu0 %v541
  %711 = vmatpush.bf16.msra.mxu0 %v540
  %712 = vmatpush.bf16.msra.mxu0 %v539
  %713 = vmatpush.bf16.msra.mxu0 %v538
  %714 = vmatpush.bf16.msra.mxu0 %v537
  %715 = vmatpush.bf16.msra.mxu0 %v536
  %716 = vmatpush.bf16.msra.mxu0 %v535
  %717 = vmatmul.bf16.gmra.mxu0 %v187
  %v718 = vpop.f32.mrf.mxu0
  %v719 = vadd.f32 %v706, %v718
  %v720 = vpop.f32.mrf.mxu0
  %721 = vdwg.mxu0
  %722 = vmatpush.bf16.msra.mxu0 %v550
  %723 = vmatpush.bf16.msra.mxu0 %v549
  %724 = vmatpush.bf16.msra.mxu0 %v548
  %725 = vmatpush.bf16.msra.mxu0 %v547
  %726 = vmatpush.bf16.msra.mxu0 %v546
  %727 = vmatpush.bf16.msra.mxu0 %v545
  %728 = vmatpush.bf16.msra.mxu0 %v544
  %729 = vmatpush.bf16.msra.mxu0 %v543
  %730 = vmatmul.bf16.gmra.mxu0 %v188
  %v731 = vpop.f32.mrf.mxu0
  %v732 = vadd.f32 %v719, %v731
  %v733 = vpop.f32.mrf.mxu0
  %734 = vdwg.mxu0
  %735 = vmatpush.bf16.msra.mxu0 %v558
  %736 = vmatpush.bf16.msra.mxu0 %v557
  %737 = vmatpush.bf16.msra.mxu0 %v556
  %738 = vmatpush.bf16.msra.mxu0 %v555
  %739 = vmatpush.bf16.msra.mxu0 %v554
  %740 = vmatpush.bf16.msra.mxu0 %v553
  %741 = vmatpush.bf16.msra.mxu0 %v552
  %742 = vmatpush.bf16.msra.mxu0 %v551
  %743 = vmatmul.bf16.gmra.mxu0 %v189
  %v744 = vpop.f32.mrf.mxu0
  %v745 = vadd.f32 %v732, %v744
  %v746 = vpop.f32.mrf.mxu0
  %747 = vdwg.mxu0
  %v748 = vmax.f32 %v745, 0.0
  %749 = vst [vmem:[%s3] sm:$0xff] %v748
  // Predicated region
  $region14: #{_lambda_.26} parent=0 // pred_check
    _
  $region15: #{_lambda_.26} parent=0 // pred_check_branch
    %751 = sbr.rel (0) target = $region17
  $region16: #{_lambda_.26} parent=0 // pred_region
    _
  $region17: #{_lambda_.26} parent=0 // pred_fallthru
    _
  // Predicated region
  $region18: #{_lambda_.26} parent=0 // pred_check
    _
  $region19: #{_lambda_.26} parent=0 // pred_check_branch
    %753 = sbr.rel (0) target = $region21
  $region20: #{_lambda_.26} parent=0 // pred_region
    _
  $region21: #{_lambda_.26} parent=0 // pred_fallthru
    _

// kernel: _lambda_.28
$region0: #{_lambda_.28}
  #allocation0 [shape = 'u32[]', space=smem, size = 0x4, offset = 0x4, fixed_abs, tag = 'smem constant byte address 0x4 - core index']
  #allocation1 [shape = 'u32[72,128]{1,0:T(1,128)}', space=vmem, size = 0x9000, scoped, tag = 'internal scratch']
  #allocation2 [shape = 'f32[32,128]{1,0:T(8,128)}', space=vmem, size = 0x4000, scoped, tag = 'scratch operand']
  %s0 = inlined_call_operand.vmem [shape: f32[48,128], index: 0, kind: input, shape index: {}, may-alias: {0,1}]
  %s1 = inlined_call_operand.vmem [shape: f32[48,128], index: 1, kind: input, shape index: {}, may-alias: {0,1}]
  %s2 = inlined_call_operand.vmem [shape: bf16[1152,128], index: 2, kind: input, shape index: {}]
  %s3 = inlined_call_operand.vmem [shape: f32[1,128], index: 3, kind: input, shape index: {}]
  %s4 = inlined_call_operand.vmem [shape: f32[32,128], index: 4, kind: input, shape index: {}]
  %s5 = inlined_call_operand.vmem [shape: f32[32,128], index: 5, kind: output, shape index: {}]
  %s6 = sld [smem:[#allocation0]]
  $region53: #{_lambda_.28} parent=0
    _
  %s8 = ssub.s32 1, %s6
  %s9 = scalar_select 0, %s8, %s6
  loop: start=0, step=1, limit=4
  $region2: #{_lambda_.28} parent=0 // loop_pre_header
    _
  $region3: #{_lambda_.28} parent=0 // loop_header
    %s11 = sphi 0, %s15
    %p12 = scmp.ge.s32.totalorder %s11, 4
    %s21 = sphi 0, %s23
    %s24 = sphi 0, %s21
    %s25 = sphi 0, %s24
    %s41 = sphi 0, %s25
    %s49 = sphi 0, %s51
    %s52 = sphi 0, %s49
    %s53 = sphi 0, %s52
    %s69 = sphi 0, %s53
    %s73 = sphi 0, %s73
    %s75 = sphi 0, %s73
    %s76 = sphi 0, %s75
    %s90 = sphi 0, %s76
    %s94 = sphi 0, %s94
    %s96 = sphi 0, %s94
    %s97 = sphi 0, %s96
    %s111 = sphi 0, %s97
    %s117 = sphi 0, %s119
    %s120 = sphi 0, %s117
    %s121 = sphi 0, %s120
    %s137 = sphi 0, %s121
    %s143 = sphi 0, %s145
    %s146 = sphi 0, %s143
    %s147 = sphi 0, %s146
    %s163 = sphi 0, %s147
  $region4: #{_lambda_.28} parent=0 // loop_header_branch
    %14 = sbr.rel (%p12) target = $region8
  $region5: #{_lambda_.28} parent=0 // loop_body
    %s16 = ssub.s32 %s11, 1
    %s17 = ssub.s32 %s11, 2
    %s18 = sadd.s32 %s11, 1
    %s19 = ssub.s32 %s11, %s18
    %p20 = scmp.eq.s32.totalorder %s19, 0
    %s22 = sadd.s32 %s21, 1
    %s23 = scalar_select %p20, %s21, %s22
    %p26 = pneg %p20
    %p27 = scmp.eq.s32.totalorder %s11, 1
    %p28 = por %p26, %p27
    %p29 = scmp.ne.s32.totalorder %s21, %s24
    %p30 = scmp.eq.s32.totalorder %s11, 0
    %p31 = por %p29, %p30
    %p32 = scmp.ne.s32.totalorder %s21, %s24
    %p33 = scmp.eq.s32.totalorder %s16, 1
    %p34 = por %p32, %p33
    %p35 = scmp.ne.s32.totalorder %s24, %s25
    %p36 = scmp.eq.s32.totalorder %s16, 0
    %p37 = por %p35, %p36
    %p38 = scmp.ne.s32.totalorder %s24, %s25
    %p39 = scmp.eq.s32.totalorder %s17, 1
    %p40 = por %p38, %p39
    %p42 = scmp.ne.s32.totalorder %s25, %s41
    %p43 = scmp.eq.s32.totalorder %s17, 0
    %p44 = por %p42, %p43
    %s45 = sadd.s32 %s11, 1
    %s46 = sadd.s32 %s18, 1
    %s47 = ssub.s32 %s45, %s46
    %p48 = scmp.eq.s32.totalorder %s47, 0
    %s50 = sadd.s32 %s49, 1
    %s51 = scalar_select %p48, %s49, %s50
    %p54 = pneg %p48
    %p55 = scmp.eq.s32.totalorder %s11, 1
    %p56 = por %p54, %p55
    %p57 = scmp.ne.s32.totalorder %s49, %s52
    %p58 = scmp.eq.s32.totalorder %s11, 0
    %p59 = por %p57, %p58
    %p60 = scmp.ne.s32.totalorder %s49, %s52
    %p61 = scmp.eq.s32.totalorder %s16, 1
    %p62 = por %p60, %p61
    %p63 = scmp.ne.s32.totalorder %s52, %s53
    %p64 = scmp.eq.s32.totalorder %s16, 0
    %p65 = por %p63, %p64
    %p66 = scmp.ne.s32.totalorder %s52, %s53
    %p67 = scmp.eq.s32.totalorder %s17, 1
    %p68 = por %p66, %p67
    %p70 = scmp.ne.s32.totalorder %s53, %s69
    %p71 = scmp.eq.s32.totalorder %s17, 0
    %p72 = por %p70, %p71
    %s74 = sadd.s32 %s73, 1
    %p77 = scmp.eq.s32.totalorder %s11, 1
    %p78 = scmp.ne.s32.totalorder %s73, %s75
    %p79 = scmp.eq.s32.totalorder %s11, 0
    %p80 = por %p78, %p79
    %p81 = scmp.ne.s32.totalorder %s73, %s75
    %p82 = scmp.eq.s32.totalorder %s16, 1
    %p83 = por %p81, %p82
    %p84 = scmp.ne.s32.totalorder %s75, %s76
    %p85 = scmp.eq.s32.totalorder %s16, 0
    %p86 = por %p84, %p85
    %p87 = scmp.ne.s32.totalorder %s75, %s76
    %p88 = scmp.eq.s32.totalorder %s17, 1
    %p89 = por %p87, %p88
    %p91 = scmp.ne.s32.totalorder %s76, %s90
    %p92 = scmp.eq.s32.totalorder %s17, 0
    %p93 = por %p91, %p92
    %s95 = sadd.s32 %s94, 1
    %p98 = scmp.eq.s32.totalorder %s11, 1
    %p99 = scmp.ne.s32.totalorder %s94, %s96
    %p100 = scmp.eq.s32.totalorder %s11, 0
    %p101 = por %p99, %p100
    %p102 = scmp.ne.s32.totalorder %s94, %s96
    %p103 = scmp.eq.s32.totalorder %s16, 1
    %p104 = por %p102, %p103
    %p105 = scmp.ne.s32.totalorder %s96, %s97
    %p106 = scmp.eq.s32.totalorder %s16, 0
    %p107 = por %p105, %p106
    %p108 = scmp.ne.s32.totalorder %s96, %s97
    %p109 = scmp.eq.s32.totalorder %s17, 1
    %p110 = por %p108, %p109
    %p112 = scmp.ne.s32.totalorder %s97, %s111
    %p113 = scmp.eq.s32.totalorder %s17, 0
    %p114 = por %p112, %p113
    %s115 = ssub.s32 %s11, %s18
    %p116 = scmp.eq.s32.totalorder %s115, 0
    %s118 = sadd.s32 %s117, 1
    %s119 = scalar_select %p116, %s117, %s118
    %p122 = pneg %p116
    %p123 = scmp.eq.s32.totalorder %s11, 1
    %p124 = por %p122, %p123
    %p125 = scmp.ne.s32.totalorder %s117, %s120
    %p126 = scmp.eq.s32.totalorder %s11, 0
    %p127 = por %p125, %p126
    %p128 = scmp.ne.s32.totalorder %s117, %s120
    %p129 = scmp.eq.s32.totalorder %s16, 1
    %p130 = por %p128, %p129
    %p131 = scmp.ne.s32.totalorder %s120, %s121
    %p132 = scmp.eq.s32.totalorder %s16, 0
    %p133 = por %p131, %p132
    %p134 = scmp.ne.s32.totalorder %s120, %s121
    %p135 = scmp.eq.s32.totalorder %s17, 1
    %p136 = por %p134, %p135
    %p138 = scmp.ne.s32.totalorder %s121, %s137
    %p139 = scmp.eq.s32.totalorder %s17, 0
    %p140 = por %p138, %p139
    %s141 = ssub.s32 %s11, %s18
    %p142 = scmp.eq.s32.totalorder %s141, 0
    %s144 = sadd.s32 %s143, 1
    %s145 = scalar_select %p142, %s143, %s144
    %p148 = pneg %p142
    %p149 = scmp.eq.s32.totalorder %s11, 1
    %p150 = por %p148, %p149
    %p151 = scmp.ne.s32.totalorder %s143, %s146
    %p152 = scmp.eq.s32.totalorder %s11, 0
    %p153 = por %p151, %p152
    %p154 = scmp.ne.s32.totalorder %s143, %s146
    %p155 = scmp.eq.s32.totalorder %s16, 1
    %p156 = por %p154, %p155
    %p157 = scmp.ne.s32.totalorder %s146, %s147
    %p158 = scmp.eq.s32.totalorder %s16, 0
    %p159 = por %p157, %p158
    %p160 = scmp.ne.s32.totalorder %s146, %s147
    %p161 = scmp.eq.s32.totalorder %s17, 1
    %p162 = por %p160, %p161
    %p164 = scmp.ne.s32.totalorder %s147, %s163
    %p165 = scmp.eq.s32.totalorder %s17, 0
    %p166 = por %p164, %p165
    %p167 = scmp.le.s32.totalorder 1, %s11
    %p168 = scmp.lt.s32.totalorder %s11, 3
    %p169 = pnand %p167, %p168
    %p170 = pneg %p169
    // Predicated region
    $region9: #{_lambda_.28} parent=5 // pred_check
      _
    $region10: #{_lambda_.28} parent=5 // pred_check_branch
      %172 = sbr.rel (%p169) target = $region12
    $region11: #{_lambda_.28} parent=5 // pred_region
      %s173 = ssub.s32 %s11, 1
      // Predicated region
      $region13: #{_lambda_.28} parent=11 // pred_check
        %p174 = pneg %p86
      $region14: #{_lambda_.28} parent=11 // pred_check_branch
        %176 = sbr.rel (%p174) target = $region16
      $region15: #{_lambda_.28} parent=11 // pred_region
        _
      $region16: #{_lambda_.28} parent=11 // pred_fallthru
        _
      // Predicated region
      $region17: #{_lambda_.28} parent=11 // pred_check
        %p177 = pneg %p107
      $region18: #{_lambda_.28} parent=11 // pred_check_branch
        %179 = sbr.rel (%p177) target = $region20
      $region19: #{_lambda_.28} parent=11 // pred_region
        _
      $region20: #{_lambda_.28} parent=11 // pred_fallthru
        _
    $region12: #{_lambda_.28} parent=5 // pred_fallthru
      _
    %p180 = scmp.lt.s32.totalorder %s11, 2
    // Predicated region
    $region21: #{_lambda_.28} parent=5 // pred_check
      %p181 = pneg %p180
    $region22: #{_lambda_.28} parent=5 // pred_check_branch
      %183 = sbr.rel (%p181) target = $region24
    $region23: #{_lambda_.28} parent=5 // pred_region
      // Predicated region
      $region25: #{_lambda_.28} parent=23 // pred_check
        %p184 = pneg %p31
      $region26: #{_lambda_.28} parent=23 // pred_check_branch
        %186 = sbr.rel (%p184) target = $region28
      $region27: #{_lambda_.28} parent=23 // pred_region
        %s187 = smul.u32 2, %s11
        %p188 = scmp.lt.s32.totalorder %s187, 5
        %s189 = scalar_select %p188, %s187, 5
        %s190 = smul.addr %s189, 8
        %s191 = scalar_lea.vmem %s0, %s190
        %s192 = smul.u32 2, %s11
      $region28: #{_lambda_.28} parent=23 // pred_fallthru
        _
      // Predicated region
      $region29: #{_lambda_.28} parent=23 // pred_check
        %p193 = pneg %p59
      $region30: #{_lambda_.28} parent=23 // pred_check_branch
        %195 = sbr.rel (%p193) target = $region32
      $region31: #{_lambda_.28} parent=23 // pred_region
        %s196 = sadd.s32 %s11, 1
        %s197 = smul.u32 2, %s196
        %p198 = scmp.lt.s32.totalorder %s197, 5
        %s199 = scalar_select %p198, %s197, 5
        %s200 = smul.addr %s199, 8
        %s201 = scalar_lea.vmem %s1, %s200
        %s202 = sadd.s32 %s11, 1
        %s203 = smul.u32 2, %s202
      $region32: #{_lambda_.28} parent=23 // pred_fallthru
        _
      // Predicated region
      $region33: #{_lambda_.28} parent=23 // pred_check
        %p204 = pneg %p127
      $region34: #{_lambda_.28} parent=23 // pred_check_branch
        %206 = sbr.rel (%p204) target = $region36
      $region35: #{_lambda_.28} parent=23 // pred_region
        %s207 = smul.u32 2, %s11
        %p208 = scmp.lt.s32.totalorder %s207, 3
        %s209 = scalar_select %p208, %s207, 3
        %s210 = smul.addr %s209, 8
        %s211 = scalar_lea.vmem %s4, %s210
        %s212 = smul.u32 2, %s11
      $region36: #{_lambda_.28} parent=23 // pred_fallthru
        _
    $region24: #{_lambda_.28} parent=5 // pred_fallthru
      _
    %p213 = scmp.le.s32.totalorder 1, %s11
    %p214 = scmp.lt.s32.totalorder %s11, 3
    %p215 = pnand %p213, %p214
    %p216 = pneg %p215
    // Predicated region
    $region37: #{_lambda_.28} parent=5 // pred_check
      _
    $region38: #{_lambda_.28} parent=5 // pred_check_branch
      %218 = sbr.rel (%p215) target = $region40
    $region39: #{_lambda_.28} parent=5 // pred_region
      %s219 = ssub.s32 %s11, 1
      %s220 = smul.u32 2, %s16
      %p221 = scmp.lt.s32.totalorder %s220, 5
      %s222 = scalar_select %p221, %s220, 5
      %s223 = smul.addr %s222, 8
      %s224 = scalar_lea.vmem %s0, %s223
      %p225 = pneg %p37
      %p226 = pneg %p34
      %s227 = sadd.s32 %s16, 1
      %s228 = smul.u32 2, %s227
      %p229 = scmp.lt.s32.totalorder %s228, 5
      %s230 = scalar_select %p229, %s228, 5
      %s231 = smul.addr %s230, 8
      %s232 = scalar_lea.vmem %s1, %s231
      %p233 = pneg %p65
      %p234 = pneg %p62
      %p235 = pneg %p86
      %p236 = pneg %p83
      %p237 = pneg %p107
      %p238 = pneg %p104
      %s239 = smul.u32 2, %s16
      %p240 = scmp.lt.s32.totalorder %s239, 3
      %s241 = scalar_select %p240, %s239, 3
      %s242 = smul.addr %s241, 8
      %s243 = scalar_lea.vmem %s4, %s242
      %p244 = pneg %p133
      %p245 = pneg %p130
      %p246 = pneg %p159
      %p247 = pneg %p156
      %s248 = smul.u32 2, %s16
      %p249 = scmp.lt.s32.totalorder %s248, 3
      %s250 = scalar_select %p249, %s248, 3
      %s251 = smul.addr %s250, 8
      %s252 = scalar_lea.vmem %s5, %s251
      %s253 = smul.u32 2, %s16
      %p254 = scmp.lt.s32.totalorder %s253, 5
      %s255 = scalar_select %p254, %s253, 5
      %s256 = smul.addr %s255, 8
      %s257 = scalar_lea.vmem %s0, %s256
      %s258 = smul.u32 2, %s16
      %s259 = sadd.s32 %s16, 1
      %s260 = smul.u32 2, %s259
      %p261 = scmp.lt.s32.totalorder %s260, 5
      %s262 = scalar_select %p261, %s260, 5
      %s263 = smul.addr %s262, 8
      %s264 = scalar_lea.vmem %s1, %s263
      %s265 = sadd.s32 %s16, 1
      %s266 = smul.u32 2, %s265
      %s267 = smul.u32 2, %s16
      %p268 = scmp.lt.s32.totalorder %s267, 3
      %s269 = scalar_select %p268, %s267, 3
      %s270 = smul.addr %s269, 8
      %s271 = scalar_lea.vmem %s4, %s270
      %s272 = smul.u32 2, %s16
      %s273 = smul.u32 2, %s16
      %p274 = scmp.lt.s32.totalorder %s273, 3
      %s275 = scalar_select %p274, %s273, 3
      %s276 = smul.addr %s275, 8
      %s277 = scalar_lea.vmem %s5, %s276
      %s278 = smul.u32 2, %s16
      %v279 = vld [vmem:[%s257] sm:$0xff]
      %v280 = vld [vmem:[%s257 + $0x8] sm:$0xff]
      %281 = vst [vmem:[#allocation2] sm:$0xff] %v279
      %282 = vst [vmem:[#allocation2 + $0x8] sm:$0xff] %v280
      %v283 = vld [vmem:[%s264] sm:$0xff]
      %v284 = vld [vmem:[%s264 + $0x8] sm:$0xff]
      %285 = vst [vmem:[#allocation2 + $0x10] sm:$0xff] %v283
      %286 = vst [vmem:[#allocation2 + $0x18] sm:$0xff] %v284
      %v287 = vld [vmem:[#allocation2] sm:$0xff]
      %v288 = vld [vmem:[#allocation2 + $0x8] sm:$0xff]
      %v289 = vpack.c.bf16 %v288, %v287
      %v290 = vld [vmem:[%s2] sm:$0xf]
      %v291 = vld [vmem:[%s2 + $0x4] sm:$0xf]
      %v292 = vld [vmem:[%s2 + $0x8] sm:$0xf]
      %v293 = vld [vmem:[%s2 + $0xc] sm:$0xf]
      %v294 = vld [vmem:[%s2 + $0x10] sm:$0xf]
      %v295 = vld [vmem:[%s2 + $0x14] sm:$0xf]
      %v296 = vld [vmem:[%s2 + $0x18] sm:$0xf]
      %v297 = vld [vmem:[%s2 + $0x1c] sm:$0xf]
      %v298 = vld [vmem:[%s2 + $0x20] sm:$0xf]
      %v299 = vld [vmem:[%s2 + $0x24] sm:$0xf]
      %v300 = vld [vmem:[%s2 + $0x28] sm:$0xf]
      %v301 = vld [vmem:[%s2 + $0x2c] sm:$0xf]
      %v302 = vld [vmem:[%s2 + $0x30] sm:$0xf]
      %v303 = vld [vmem:[%s2 + $0x34] sm:$0xf]
      %v304 = vld [vmem:[%s2 + $0x38] sm:$0xf]
      %v305 = vld [vmem:[%s2 + $0x3c] sm:$0xf]
      %v306 = vld [vmem:[#allocation2 + $0x1] sm:$0xff]
      %v307 = vld [vmem:[#allocation2 + $0x9] sm:$0xff]
      %v308 = vpack.c.bf16 %v307, %v306
      %v309 = vld [vmem:[%s2 + $0x40] sm:$0xf]
      %v310 = vld [vmem:[%s2 + $0x44] sm:$0xf]
      %v311 = vld [vmem:[%s2 + $0x48] sm:$0xf]
      %v312 = vld [vmem:[%s2 + $0x4c] sm:$0xf]
      %v313 = vld [vmem:[%s2 + $0x50] sm:$0xf]
      %v314 = vld [vmem:[%s2 + $0x54] sm:$0xf]
      %v315 = vld [vmem:[%s2 + $0x58] sm:$0xf]
      %v316 = vld [vmem:[%s2 + $0x5c] sm:$0xf]
      %v317 = vld [vmem:[%s2 + $0x60] sm:$0xf]
      %v318 = vld [vmem:[%s2 + $0x64] sm:$0xf]
      %v319 = vld [vmem:[%s2 + $0x68] sm:$0xf]
      %v320 = vld [vmem:[%s2 + $0x6c] sm:$0xf]
      %v321 = vld [vmem:[%s2 + $0x70] sm:$0xf]
      %v322 = vld [vmem:[%s2 + $0x74] sm:$0xf]
      %v323 = vld [vmem:[%s2 + $0x78] sm:$0xf]
      %v324 = vld [vmem:[%s2 + $0x7c] sm:$0xf]
      %v341 = vunpack.c.l.b16 %v309
      %v342 = vunpack.c.l.b16 %v310
      %v343 = vunpack.c.l.b16 %v311
      %v344 = vunpack.c.l.b16 %v312
      %v345 = vunpack.c.l.b16 %v313
      %v346 = vunpack.c.l.b16 %v314
      %v347 = vunpack.c.l.b16 %v315
      %v348 = vunpack.c.l.b16 %v316
      %v349 = vunpack.c.l.b16 %v317
      %v350 = vunpack.c.l.b16 %v318
      %v351 = vunpack.c.l.b16 %v319
      %v352 = vunpack.c.l.b16 %v320
      %v353 = vunpack.c.l.b16 %v321
      %v354 = vunpack.c.l.b16 %v322
      %v355 = vunpack.c.l.b16 %v323
      %v356 = vunpack.c.l.b16 %v324
      %v357 = vpack.c.b16 %v342, %v341
      %v358 = vpack.c.b16 %v344, %v343
      %v359 = vpack.c.b16 %v346, %v345
      %v360 = vpack.c.b16 %v348, %v347
      %v361 = vpack.c.b16 %v350, %v349
      %v362 = vpack.c.b16 %v352, %v351
      %v363 = vpack.c.b16 %v354, %v353
      %v364 = vpack.c.b16 %v356, %v355
      %373 = vmatpush.bf16.msra.mxu0 %v364
      %374 = vmatpush.bf16.msra.mxu0 %v363
      %375 = vmatpush.bf16.msra.mxu0 %v362
      %376 = vmatpush.bf16.msra.mxu0 %v361
      %377 = vmatpush.bf16.msra.mxu0 %v360
      %378 = vmatpush.bf16.msra.mxu0 %v359
      %379 = vmatpush.bf16.msra.mxu0 %v358
      %380 = vmatpush.bf16.msra.mxu0 %v357
      %381 = vmatmul.bf16.gmra.mxu0 %v308
      %v382 = vpop.f32.mrf.mxu0
      %v383 = vadd.f32 0.0, %v382
      %v384 = vpop.f32.mrf.mxu0
      %v385 = vadd.f32 0.0, %v384
      %386 = vdwg.mxu0
      %v403 = vunpack.c.l.b16 %v290
      %v404 = vunpack.c.l.b16 %v291
      %v405 = vunpack.c.l.b16 %v292
      %v406 = vunpack.c.l.b16 %v293
      %v407 = vunpack.c.l.b16 %v294
      %v408 = vunpack.c.l.b16 %v295
      %v409 = vunpack.c.l.b16 %v296
      %v410 = vunpack.c.l.b16 %v297
      %v411 = vunpack.c.l.b16 %v298
      %v412 = vunpack.c.l.b16 %v299
      %v413 = vunpack.c.l.b16 %v300
      %v414 = vunpack.c.l.b16 %v301
      %v415 = vunpack.c.l.b16 %v302
      %v416 = vunpack.c.l.b16 %v303
      %v417 = vunpack.c.l.b16 %v304
      %v418 = vunpack.c.l.b16 %v305
      %v419 = vpack.c.b16 %v404, %v403
      %v420 = vpack.c.b16 %v406, %v405
      %v421 = vpack.c.b16 %v408, %v407
      %v422 = vpack.c.b16 %v410, %v409
      %v423 = vpack.c.b16 %v412, %v411
      %v424 = vpack.c.b16 %v414, %v413
      %v425 = vpack.c.b16 %v416, %v415
      %v426 = vpack.c.b16 %v418, %v417
      %435 = vmatpush.bf16.msra.mxu0 %v426
      %436 = vmatpush.bf16.msra.mxu0 %v425
      %437 = vmatpush.bf16.msra.mxu0 %v424
      %438 = vmatpush.bf16.msra.mxu0 %v423
      %439 = vmatpush.bf16.msra.mxu0 %v422
      %440 = vmatpush.bf16.msra.mxu0 %v421
      %441 = vmatpush.bf16.msra.mxu0 %v420
      %442 = vmatpush.bf16.msra.mxu0 %v419
      %443 = vmatmul.bf16.gmra.mxu0 %v289
      %v444 = vpop.f32.mrf.mxu0
      %v445 = vadd.f32 %v383, %v444
      %v446 = vpop.f32.mrf.mxu0
      %v447 = vadd.f32 %v385, %v446
      %448 = vdwg.mxu0
      %v449 = vld [vmem:[#allocation2 + $0x2] sm:$0xff]
      %v450 = vld [vmem:[#allocation2 + $0xa] sm:$0xff]
      %v451 = vpack.c.bf16 %v450, %v449
      %v452 = vld [vmem:[%s2 + $0x80] sm:$0xf]
      %v453 = vld [vmem:[%s2 + $0x84] sm:$0xf]
      %v454 = vld [vmem:[%s2 + $0x88] sm:$0xf]
      %v455 = vld [vmem:[%s2 + $0x8c] sm:$0xf]
      %v456 = vld [vmem:[%s2 + $0x90] sm:$0xf]
      %v457 = vld [vmem:[%s2 + $0x94] sm:$0xf]
      %v458 = vld [vmem:[%s2 + $0x98] sm:$0xf]
      %v459 = vld [vmem:[%s2 + $0x9c] sm:$0xf]
      %v460 = vld [vmem:[%s2 + $0xa0] sm:$0xf]
      %v461 = vld [vmem:[%s2 + $0xa4] sm:$0xf]
      %v462 = vld [vmem:[%s2 + $0xa8] sm:$0xf]
      %v463 = vld [vmem:[%s2 + $0xac] sm:$0xf]
      %v464 = vld [vmem:[%s2 + $0xb0] sm:$0xf]
      %v465 = vld [vmem:[%s2 + $0xb4] sm:$0xf]
      %v466 = vld [vmem:[%s2 + $0xb8] sm:$0xf]
      %v467 = vld [vmem:[%s2 + $0xbc] sm:$0xf]
      %v484 = vunpack.c.l.b16 %v452
      %v485 = vunpack.c.l.b16 %v453
      %v486 = vunpack.c.l.b16 %v454
      %v487 = vunpack.c.l.b16 %v455
      %v488 = vunpack.c.l.b16 %v456
      %v489 = vunpack.c.l.b16 %v457
      %v490 = vunpack.c.l.b16 %v458
      %v491 = vunpack.c.l.b16 %v459
      %v492 = vunpack.c.l.b16 %v460
      %v493 = vunpack.c.l.b16 %v461
      %v494 = vunpack.c.l.b16 %v462
      %v495 = vunpack.c.l.b16 %v463
      %v496 = vunpack.c.l.b16 %v464
      %v497 = vunpack.c.l.b16 %v465
      %v498 = vunpack.c.l.b16 %v466
      %v499 = vunpack.c.l.b16 %v467
      %v500 = vpack.c.b16 %v485, %v484
      %v501 = vpack.c.b16 %v487, %v486
      %v502 = vpack.c.b16 %v489, %v488
      %v503 = vpack.c.b16 %v491, %v490
      %v504 = vpack.c.b16 %v493, %v492
      %v505 = vpack.c.b16 %v495, %v494
      %v506 = vpack.c.b16 %v497, %v496
      %v507 = vpack.c.b16 %v499, %v498
      %516 = vmatpush.bf16.msra.mxu0 %v507
      %517 = vmatpush.bf16.msra.mxu0 %v506
      %518 = vmatpush.bf16.msra.mxu0 %v505
      %519 = vmatpush.bf16.msra.mxu0 %v504
      %520 = vmatpush.bf16.msra.mxu0 %v503
      %521 = vmatpush.bf16.msra.mxu0 %v502
      %522 = vmatpush.bf16.msra.mxu0 %v501
      %523 = vmatpush.bf16.msra.mxu0 %v500
      %524 = vmatmul.bf16.gmra.mxu0 %v451
      %v525 = vpop.f32.mrf.mxu0
      %v526 = vadd.f32 0.0, %v525
      %v527 = vpop.f32.mrf.mxu0
      %v528 = vadd.f32 0.0, %v527
      %529 = vdwg.mxu0
      %v530 = vadd.f32 %v445, %v526
      %v531 = vadd.f32 %v447, %v528
      %v532 = vld [vmem:[#allocation2 + $0x4] sm:$0xff]
      %v533 = vld [vmem:[#allocation2 + $0xc] sm:$0xff]
      %v534 = vpack.c.bf16 %v533, %v532
      %v535 = vld [vmem:[%s2 + $0xc0] sm:$0xf]
      %v536 = vld [vmem:[%s2 + $0xc4] sm:$0xf]
      %v537 = vld [vmem:[%s2 + $0xc8] sm:$0xf]
      %v538 = vld [vmem:[%s2 + $0xcc] sm:$0xf]
      %v539 = vld [vmem:[%s2 + $0xd0] sm:$0xf]
      %v540 = vld [vmem:[%s2 + $0xd4] sm:$0xf]
      %v541 = vld [vmem:[%s2 + $0xd8] sm:$0xf]
      %v542 = vld [vmem:[%s2 + $0xdc] sm:$0xf]
      %v543 = vld [vmem:[%s2 + $0xe0] sm:$0xf]
      %v544 = vld [vmem:[%s2 + $0xe4] sm:$0xf]
      %v545 = vld [vmem:[%s2 + $0xe8] sm:$0xf]
      %v546 = vld [vmem:[%s2 + $0xec] sm:$0xf]
      %v547 = vld [vmem:[%s2 + $0xf0] sm:$0xf]
      %v548 = vld [vmem:[%s2 + $0xf4] sm:$0xf]
      %v549 = vld [vmem:[%s2 + $0xf8] sm:$0xf]
      %v550 = vld [vmem:[%s2 + $0xfc] sm:$0xf]
      %v567 = vunpack.c.l.b16 %v535
      %v568 = vunpack.c.l.b16 %v536
      %v569 = vunpack.c.l.b16 %v537
      %v570 = vunpack.c.l.b16 %v538
      %v571 = vunpack.c.l.b16 %v539
      %v572 = vunpack.c.l.b16 %v540
      %v573 = vunpack.c.l.b16 %v541
      %v574 = vunpack.c.l.b16 %v542
      %v575 = vunpack.c.l.b16 %v543
      %v576 = vunpack.c.l.b16 %v544
      %v577 = vunpack.c.l.b16 %v545
      %v578 = vunpack.c.l.b16 %v546
      %v579 = vunpack.c.l.b16 %v547
      %v580 = vunpack.c.l.b16 %v548
      %v581 = vunpack.c.l.b16 %v549
      %v582 = vunpack.c.l.b16 %v550
      %v583 = vpack.c.b16 %v568, %v567
      %v584 = vpack.c.b16 %v570, %v569
      %v585 = vpack.c.b16 %v572, %v571
      %v586 = vpack.c.b16 %v574, %v573
      %v587 = vpack.c.b16 %v576, %v575
      %v588 = vpack.c.b16 %v578, %v577
      %v589 = vpack.c.b16 %v580, %v579
      %v590 = vpack.c.b16 %v582, %v581
      %599 = vmatpush.bf16.msra.mxu0 %v590
      %600 = vmatpush.bf16.msra.mxu0 %v589
      %601 = vmatpush.bf16.msra.mxu0 %v588
      %602 = vmatpush.bf16.msra.mxu0 %v587
      %603 = vmatpush.bf16.msra.mxu0 %v586
      %604 = vmatpush.bf16.msra.mxu0 %v585
      %605 = vmatpush.bf16.msra.mxu0 %v584
      %606 = vmatpush.bf16.msra.mxu0 %v583
      %607 = vmatmul.bf16.gmra.mxu0 %v534
      %v608 = vpop.f32.mrf.mxu0
      %v609 = vadd.f32 0.0, %v608
      %v610 = vpop.f32.mrf.mxu0
      %v611 = vadd.f32 0.0, %v610
      %612 = vdwg.mxu0
      %v613 = vadd.f32 %v530, %v609
      %v614 = vadd.f32 %v531, %v611
      %v615 = vld [vmem:[#allocation2 + $0x5] sm:$0xff]
      %v616 = vld [vmem:[#allocation2 + $0xd] sm:$0xff]
      %v617 = vpack.c.bf16 %v616, %v615
      %v618 = vld [vmem:[%s2 + $0x100] sm:$0xf]
      %v619 = vld [vmem:[%s2 + $0x104] sm:$0xf]
      %v620 = vld [vmem:[%s2 + $0x108] sm:$0xf]
      %v621 = vld [vmem:[%s2 + $0x10c] sm:$0xf]
      %v622 = vld [vmem:[%s2 + $0x110] sm:$0xf]
      %v623 = vld [vmem:[%s2 + $0x114] sm:$0xf]
      %v624 = vld [vmem:[%s2 + $0x118] sm:$0xf]
      %v625 = vld [vmem:[%s2 + $0x11c] sm:$0xf]
      %v626 = vld [vmem:[%s2 + $0x120] sm:$0xf]
      %v627 = vld [vmem:[%s2 + $0x124] sm:$0xf]
      %v628 = vld [vmem:[%s2 + $0x128] sm:$0xf]
      %v629 = vld [vmem:[%s2 + $0x12c] sm:$0xf]
      %v630 = vld [vmem:[%s2 + $0x130] sm:$0xf]
      %v631 = vld [vmem:[%s2 + $0x134] sm:$0xf]
      %v632 = vld [vmem:[%s2 + $0x138] sm:$0xf]
      %v633 = vld [vmem:[%s2 + $0x13c] sm:$0xf]
      %v650 = vunpack.c.l.b16 %v618
      %v651 = vunpack.c.l.b16 %v619
      %v652 = vunpack.c.l.b16 %v620
      %v653 = vunpack.c.l.b16 %v621
      %v654 = vunpack.c.l.b16 %v622
      %v655 = vunpack.c.l.b16 %v623
      %v656 = vunpack.c.l.b16 %v624
      %v657 = vunpack.c.l.b16 %v625
      %v658 = vunpack.c.l.b16 %v626
      %v659 = vunpack.c.l.b16 %v627
      %v660 = vunpack.c.l.b16 %v628
      %v661 = vunpack.c.l.b16 %v629
      %v662 = vunpack.c.l.b16 %v630
      %v663 = vunpack.c.l.b16 %v631
      %v664 = vunpack.c.l.b16 %v632
      %v665 = vunpack.c.l.b16 %v633
      %v666 = vpack.c.b16 %v651, %v650
      %v667 = vpack.c.b16 %v653, %v652
      %v668 = vpack.c.b16 %v655, %v654
      %v669 = vpack.c.b16 %v657, %v656
      %v670 = vpack.c.b16 %v659, %v658
      %v671 = vpack.c.b16 %v661, %v660
      %v672 = vpack.c.b16 %v663, %v662
      %v673 = vpack.c.b16 %v665, %v664
      %682 = vmatpush.bf16.msra.mxu0 %v673
      %683 = vmatpush.bf16.msra.mxu0 %v672
      %684 = vmatpush.bf16.msra.mxu0 %v671
      %685 = vmatpush.bf16.msra.mxu0 %v670
      %686 = vmatpush.bf16.msra.mxu0 %v669
      %687 = vmatpush.bf16.msra.mxu0 %v668
      %688 = vmatpush.bf16.msra.mxu0 %v667
      %689 = vmatpush.bf16.msra.mxu0 %v666
      %690 = vmatmul.bf16.gmra.mxu0 %v617
      %v691 = vpop.f32.mrf.mxu0
      %v692 = vadd.f32 0.0, %v691
      %v693 = vpop.f32.mrf.mxu0
      %v694 = vadd.f32 0.0, %v693
      %695 = vdwg.mxu0
      %v696 = vadd.f32 %v613, %v692
      %v697 = vadd.f32 %v614, %v694
      %v698 = vld [vmem:[#allocation2 + $0x6] sm:$0xff]
      %v699 = vld [vmem:[#allocation2 + $0xe] sm:$0xff]
      %v700 = vpack.c.bf16 %v699, %v698
      %v701 = vld [vmem:[%s2 + $0x140] sm:$0xf]
      %v702 = vld [vmem:[%s2 + $0x144] sm:$0xf]
      %v703 = vld [vmem:[%s2 + $0x148] sm:$0xf]
      %v704 = vld [vmem:[%s2 + $0x14c] sm:$0xf]
      %v705 = vld [vmem:[%s2 + $0x150] sm:$0xf]
      %v706 = vld [vmem:[%s2 + $0x154] sm:$0xf]
      %v707 = vld [vmem:[%s2 + $0x158] sm:$0xf]
      %v708 = vld [vmem:[%s2 + $0x15c] sm:$0xf]
      %v709 = vld [vmem:[%s2 + $0x160] sm:$0xf]
      %v710 = vld [vmem:[%s2 + $0x164] sm:$0xf]
      %v711 = vld [vmem:[%s2 + $0x168] sm:$0xf]
      %v712 = vld [vmem:[%s2 + $0x16c] sm:$0xf]
      %v713 = vld [vmem:[%s2 + $0x170] sm:$0xf]
      %v714 = vld [vmem:[%s2 + $0x174] sm:$0xf]
      %v715 = vld [vmem:[%s2 + $0x178] sm:$0xf]
      %v716 = vld [vmem:[%s2 + $0x17c] sm:$0xf]
      %v733 = vunpack.c.l.b16 %v701
      %v734 = vunpack.c.l.b16 %v702
      %v735 = vunpack.c.l.b16 %v703
      %v736 = vunpack.c.l.b16 %v704
      %v737 = vunpack.c.l.b16 %v705
      %v738 = vunpack.c.l.b16 %v706
      %v739 = vunpack.c.l.b16 %v707
      %v740 = vunpack.c.l.b16 %v708
      %v741 = vunpack.c.l.b16 %v709
      %v742 = vunpack.c.l.b16 %v710
      %v743 = vunpack.c.l.b16 %v711
      %v744 = vunpack.c.l.b16 %v712
      %v745 = vunpack.c.l.b16 %v713
      %v746 = vunpack.c.l.b16 %v714
      %v747 = vunpack.c.l.b16 %v715
      %v748 = vunpack.c.l.b16 %v716
      %v749 = vpack.c.b16 %v734, %v733
      %v750 = vpack.c.b16 %v736, %v735
      %v751 = vpack.c.b16 %v738, %v737
      %v752 = vpack.c.b16 %v740, %v739
      %v753 = vpack.c.b16 %v742, %v741
      %v754 = vpack.c.b16 %v744, %v743
      %v755 = vpack.c.b16 %v746, %v745
      %v756 = vpack.c.b16 %v748, %v747
      %765 = vmatpush.bf16.msra.mxu0 %v756
      %766 = vmatpush.bf16.msra.mxu0 %v755
      %767 = vmatpush.bf16.msra.mxu0 %v754
      %768 = vmatpush.bf16.msra.mxu0 %v753
      %769 = vmatpush.bf16.msra.mxu0 %v752
      %770 = vmatpush.bf16.msra.mxu0 %v751
      %771 = vmatpush.bf16.msra.mxu0 %v750
      %772 = vmatpush.bf16.msra.mxu0 %v749
      %773 = vmatmul.bf16.gmra.mxu0 %v700
      %v774 = vpop.f32.mrf.mxu0
      %v775 = vadd.f32 0.0, %v774
      %v776 = vpop.f32.mrf.mxu0
      %v777 = vadd.f32 0.0, %v776
      %778 = vdwg.mxu0
      %v779 = vadd.f32 %v696, %v775
      %v780 = vadd.f32 %v697, %v777
      %v781 = vld [vmem:[#allocation2 + $0x8] sm:$0xff]
      %v782 = vld [vmem:[#allocation2 + $0x10] sm:$0xff]
      %v783 = vpack.c.bf16 %v782, %v781
      %v784 = vld [vmem:[%s2 + $0x180] sm:$0xf]
      %v785 = vld [vmem:[%s2 + $0x184] sm:$0xf]
      %v786 = vld [vmem:[%s2 + $0x188] sm:$0xf]
      %v787 = vld [vmem:[%s2 + $0x18c] sm:$0xf]
      %v788 = vld [vmem:[%s2 + $0x190] sm:$0xf]
      %v789 = vld [vmem:[%s2 + $0x194] sm:$0xf]
      %v790 = vld [vmem:[%s2 + $0x198] sm:$0xf]
      %v791 = vld [vmem:[%s2 + $0x19c] sm:$0xf]
      %v792 = vld [vmem:[%s2 + $0x1a0] sm:$0xf]
      %v793 = vld [vmem:[%s2 + $0x1a4] sm:$0xf]
      %v794 = vld [vmem:[%s2 + $0x1a8] sm:$0xf]
      %v795 = vld [vmem:[%s2 + $0x1ac] sm:$0xf]
      %v796 = vld [vmem:[%s2 + $0x1b0] sm:$0xf]
      %v797 = vld [vmem:[%s2 + $0x1b4] sm:$0xf]
      %v798 = vld [vmem:[%s2 + $0x1b8] sm:$0xf]
      %v799 = vld [vmem:[%s2 + $0x1bc] sm:$0xf]
      %v816 = vunpack.c.l.b16 %v784
      %v817 = vunpack.c.l.b16 %v785
      %v818 = vunpack.c.l.b16 %v786
      %v819 = vunpack.c.l.b16 %v787
      %v820 = vunpack.c.l.b16 %v788
      %v821 = vunpack.c.l.b16 %v789
      %v822 = vunpack.c.l.b16 %v790
      %v823 = vunpack.c.l.b16 %v791
      %v824 = vunpack.c.l.b16 %v792
      %v825 = vunpack.c.l.b16 %v793
      %v826 = vunpack.c.l.b16 %v794
      %v827 = vunpack.c.l.b16 %v795
      %v828 = vunpack.c.l.b16 %v796
      %v829 = vunpack.c.l.b16 %v797
      %v830 = vunpack.c.l.b16 %v798
      %v831 = vunpack.c.l.b16 %v799
      %v832 = vpack.c.b16 %v817, %v816
      %v833 = vpack.c.b16 %v819, %v818
      %v834 = vpack.c.b16 %v821, %v820
      %v835 = vpack.c.b16 %v823, %v822
      %v836 = vpack.c.b16 %v825, %v824
      %v837 = vpack.c.b16 %v827, %v826
      %v838 = vpack.c.b16 %v829, %v828
      %v839 = vpack.c.b16 %v831, %v830
      %848 = vmatpush.bf16.msra.mxu0 %v839
      %849 = vmatpush.bf16.msra.mxu0 %v838
      %850 = vmatpush.bf16.msra.mxu0 %v837
      %851 = vmatpush.bf16.msra.mxu0 %v836
      %852 = vmatpush.bf16.msra.mxu0 %v835
      %853 = vmatpush.bf16.msra.mxu0 %v834
      %854 = vmatpush.bf16.msra.mxu0 %v833
      %855 = vmatpush.bf16.msra.mxu0 %v832
      %856 = vmatmul.bf16.gmra.mxu0 %v783
      %v857 = vpop.f32.mrf.mxu0
      %v858 = vadd.f32 0.0, %v857
      %v859 = vpop.f32.mrf.mxu0
      %v860 = vadd.f32 0.0, %v859
      %861 = vdwg.mxu0
      %v862 = vadd.f32 %v779, %v858
      %v863 = vadd.f32 %v780, %v860
      %v864 = vld [vmem:[#allocation2 + $0x9] sm:$0xff]
      %v865 = vld [vmem:[#allocation2 + $0x11] sm:$0xff]
      %v866 = vpack.c.bf16 %v865, %v864
      %v867 = vld [vmem:[%s2 + $0x1c0] sm:$0xf]
      %v868 = vld [vmem:[%s2 + $0x1c4] sm:$0xf]
      %v869 = vld [vmem:[%s2 + $0x1c8] sm:$0xf]
      %v870 = vld [vmem:[%s2 + $0x1cc] sm:$0xf]
      %v871 = vld [vmem:[%s2 + $0x1d0] sm:$0xf]
      %v872 = vld [vmem:[%s2 + $0x1d4] sm:$0xf]
      %v873 = vld [vmem:[%s2 + $0x1d8] sm:$0xf]
      %v874 = vld [vmem:[%s2 + $0x1dc] sm:$0xf]
      %v875 = vld [vmem:[%s2 + $0x1e0] sm:$0xf]
      %v876 = vld [vmem:[%s2 + $0x1e4] sm:$0xf]
      %v877 = vld [vmem:[%s2 + $0x1e8] sm:$0xf]
      %v878 = vld [vmem:[%s2 + $0x1ec] sm:$0xf]
      %v879 = vld [vmem:[%s2 + $0x1f0] sm:$0xf]
      %v880 = vld [vmem:[%s2 + $0x1f4] sm:$0xf]
      %v881 = vld [vmem:[%s2 + $0x1f8] sm:$0xf]
      %v882 = vld [vmem:[%s2 + $0x1fc] sm:$0xf]
      %v899 = vunpack.c.l.b16 %v867
      %v900 = vunpack.c.l.b16 %v868
      %v901 = vunpack.c.l.b16 %v869
      %v902 = vunpack.c.l.b16 %v870
      %v903 = vunpack.c.l.b16 %v871
      %v904 = vunpack.c.l.b16 %v872
      %v905 = vunpack.c.l.b16 %v873
      %v906 = vunpack.c.l.b16 %v874
      %v907 = vunpack.c.l.b16 %v875
      %v908 = vunpack.c.l.b16 %v876
      %v909 = vunpack.c.l.b16 %v877
      %v910 = vunpack.c.l.b16 %v878
      %v911 = vunpack.c.l.b16 %v879
      %v912 = vunpack.c.l.b16 %v880
      %v913 = vunpack.c.l.b16 %v881
      %v914 = vunpack.c.l.b16 %v882
      %v915 = vpack.c.b16 %v900, %v899
      %v916 = vpack.c.b16 %v902, %v901
      %v917 = vpack.c.b16 %v904, %v903
      %v918 = vpack.c.b16 %v906, %v905
      %v919 = vpack.c.b16 %v908, %v907
      %v920 = vpack.c.b16 %v910, %v909
      %v921 = vpack.c.b16 %v912, %v911
      %v922 = vpack.c.b16 %v914, %v913
      %931 = vmatpush.bf16.msra.mxu0 %v922
      %932 = vmatpush.bf16.msra.mxu0 %v921
      %933 = vmatpush.bf16.msra.mxu0 %v920
      %934 = vmatpush.bf16.msra.mxu0 %v919
      %935 = vmatpush.bf16.msra.mxu0 %v918
      %936 = vmatpush.bf16.msra.mxu0 %v917
      %937 = vmatpush.bf16.msra.mxu0 %v916
      %938 = vmatpush.bf16.msra.mxu0 %v915
      %939 = vmatmul.bf16.gmra.mxu0 %v866
      %v940 = vpop.f32.mrf.mxu0
      %v941 = vadd.f32 0.0, %v940
      %v942 = vpop.f32.mrf.mxu0
      %v943 = vadd.f32 0.0, %v942
      %944 = vdwg.mxu0
      %v945 = vadd.f32 %v862, %v941
      %v946 = vadd.f32 %v863, %v943
      %v947 = vld [vmem:[#allocation2 + $0xa] sm:$0xff]
      %v948 = vld [vmem:[#allocation2 + $0x12] sm:$0xff]
      %v949 = vpack.c.bf16 %v948, %v947
      %v950 = vld [vmem:[%s2 + $0x200] sm:$0xf]
      %v951 = vld [vmem:[%s2 + $0x204] sm:$0xf]
      %v952 = vld [vmem:[%s2 + $0x208] sm:$0xf]
      %v953 = vld [vmem:[%s2 + $0x20c] sm:$0xf]
      %v954 = vld [vmem:[%s2 + $0x210] sm:$0xf]
      %v955 = vld [vmem:[%s2 + $0x214] sm:$0xf]
      %v956 = vld [vmem:[%s2 + $0x218] sm:$0xf]
      %v957 = vld [vmem:[%s2 + $0x21c] sm:$0xf]
      %v958 = vld [vmem:[%s2 + $0x220] sm:$0xf]
      %v959 = vld [vmem:[%s2 + $0x224] sm:$0xf]
      %v960 = vld [vmem:[%s2 + $0x228] sm:$0xf]
      %v961 = vld [vmem:[%s2 + $0x22c] sm:$0xf]
      %v962 = vld [vmem:[%s2 + $0x230] sm:$0xf]
      %v963 = vld [vmem:[%s2 + $0x234] sm:$0xf]
      %v964 = vld [vmem:[%s2 + $0x238] sm:$0xf]
      %v965 = vld [vmem:[%s2 + $0x23c] sm:$0xf]
      %v982 = vunpack.c.l.b16 %v950
      %v983 = vunpack.c.l.b16 %v951
      %v984 = vunpack.c.l.b16 %v952
      %v985 = vunpack.c.l.b16 %v953
      %v986 = vunpack.c.l.b16 %v954
      %v987 = vunpack.c.l.b16 %v955
      %v988 = vunpack.c.l.b16 %v956
      %v989 = vunpack.c.l.b16 %v957
      %v990 = vunpack.c.l.b16 %v958
      %v991 = vunpack.c.l.b16 %v959
      %v992 = vunpack.c.l.b16 %v960
      %v993 = vunpack.c.l.b16 %v961
      %v994 = vunpack.c.l.b16 %v962
      %v995 = vunpack.c.l.b16 %v963
      %v996 = vunpack.c.l.b16 %v964
      %v997 = vunpack.c.l.b16 %v965
      %v998 = vpack.c.b16 %v983, %v982
      %v999 = vpack.c.b16 %v985, %v984
      %v1000 = vpack.c.b16 %v987, %v986
      %v1001 = vpack.c.b16 %v989, %v988
      %v1002 = vpack.c.b16 %v991, %v990
      %v1003 = vpack.c.b16 %v993, %v992
      %v1004 = vpack.c.b16 %v995, %v994
      %v1005 = vpack.c.b16 %v997, %v996
      %1014 = vmatpush.bf16.msra.mxu0 %v1005
      %1015 = vmatpush.bf16.msra.mxu0 %v1004
      %1016 = vmatpush.bf16.msra.mxu0 %v1003
      %1017 = vmatpush.bf16.msra.mxu0 %v1002
      %1018 = vmatpush.bf16.msra.mxu0 %v1001
      %1019 = vmatpush.bf16.msra.mxu0 %v1000
      %1020 = vmatpush.bf16.msra.mxu0 %v999
      %1021 = vmatpush.bf16.msra.mxu0 %v998
      %1022 = vmatmul.bf16.gmra.mxu0 %v949
      %v1023 = vpop.f32.mrf.mxu0
      %v1024 = vadd.f32 0.0, %v1023
      %v1025 = vpop.f32.mrf.mxu0
      %v1026 = vadd.f32 0.0, %v1025
      %1027 = vdwg.mxu0
      %v1028 = vadd.f32 %v945, %v1024
      %v1029 = vadd.f32 %v946, %v1026
      %v1030 = vld [vmem:[%s3] sm:$0x1]
      %v1032 = vperm.slane %v1030, 0
      %v1034 = vadd.f32 %v1028, %v1032
      %v1035 = vadd.f32 %v1029, %v1032
      %v1036 = vmax.f32 %v1034, 0.0
      %v1037 = vmax.f32 %v1035, 0.0
      %v1038 = vld [vmem:[%s271] sm:$0xff]
      %v1039 = vld [vmem:[%s271 + $0x8] sm:$0xff]
      %v1040 = vadd.f32 %v1036, %v1038
      %v1041 = vadd.f32 %v1037, %v1039
      %v1042 = vmax.f32 %v1040, 0.0
      %v1043 = vmax.f32 %v1041, 0.0
      %1044 = vst [vmem:[%s277] sm:$0xff] %v1042
      %1045 = vst [vmem:[%s277 + $0x8] sm:$0xff] %v1043
      %s1046 = smul.u32 2, %s16
      %p1047 = scmp.lt.s32.totalorder %s1046, 3
      %s1048 = scalar_select %p1047, %s1046, 3
      %s1049 = smul.addr %s1048, 8
      %s1050 = scalar_lea.vmem %s5, %s1049
      // Predicated region
      $region41: #{_lambda_.28} parent=39 // pred_check
        %p1051 = pneg %p156
      $region42: #{_lambda_.28} parent=39 // pred_check_branch
        %1053 = sbr.rel (%p1051) target = $region44
      $region43: #{_lambda_.28} parent=39 // pred_region
        %s1054 = smul.u32 2, %s16
      $region44: #{_lambda_.28} parent=39 // pred_fallthru
        _
    $region40: #{_lambda_.28} parent=5 // pred_fallthru
      _
    %p1055 = scmp.le.s32.totalorder 2, %s11
    // Predicated region
    $region45: #{_lambda_.28} parent=5 // pred_check
      %p1056 = pneg %p1055
    $region46: #{_lambda_.28} parent=5 // pred_check_branch
      %1058 = sbr.rel (%p1056) target = $region48
    $region47: #{_lambda_.28} parent=5 // pred_region
      %s1059 = ssub.s32 %s11, 2
      // Predicated region
      $region49: #{_lambda_.28} parent=47 // pred_check
        %p1060 = pneg %p162
      $region50: #{_lambda_.28} parent=47 // pred_check_branch
        %1062 = sbr.rel (%p1060) target = $region52
      $region51: #{_lambda_.28} parent=47 // pred_region
        %s1063 = smul.u32 2, %s17
        %p1064 = scmp.lt.s32.totalorder %s1063, 3
        %s1065 = scalar_select %p1064, %s1063, 3
        %s1066 = smul.addr %s1065, 8
        %s1067 = scalar_lea.vmem %s5, %s1066
      $region52: #{_lambda_.28} parent=47 // pred_fallthru
        _
    $region48: #{_lambda_.28} parent=5 // pred_fallthru
      _
  $region6: #{_lambda_.28} parent=0 // loop_footer
    %s15 = sadd.s32 1, %s11
  $region7: #{_lambda_.28} parent=0 // loop_footer_branch
    %10 = sbr.rel target = $region3
  $region8: #{_lambda_.28} parent=0 // loop_exit
    _

// kernel: _lambda_.31
$region0: #{_lambda_.31}
  #allocation0 [shape = 'u32[]', space=smem, size = 0x4, offset = 0x4, fixed_abs, tag = 'smem constant byte address 0x4 - core index']
  #allocation1 [shape = 'u32[72,128]{1,0:T(1,128)}', space=vmem, size = 0x9000, scoped, tag = 'internal scratch']
  %s0 = inlined_call_operand.vmem [shape: bf16[8,128], index: 0, kind: input, shape index: {}]
  %s1 = inlined_call_operand.vmem [shape: bf16[128,256], index: 1, kind: input, shape index: {}]
  %s2 = inlined_call_operand.vmem [shape: f32[1,256], index: 2, kind: input, shape index: {}]
  %s3 = inlined_call_operand.vmem [shape: f32[8,256], index: 3, kind: output, shape index: {}]
  %s4 = sld [smem:[#allocation0]]
  $region22: #{_lambda_.31} parent=0
    _
  %s6 = ssub.s32 1, %s4
  %s7 = scalar_select 0, %s6, %s4
  // Predicated region
  $region2: #{_lambda_.31} parent=0 // pred_check
    _
  $region3: #{_lambda_.31} parent=0 // pred_check_branch
    %9 = sbr.rel (0) target = $region5
  $region4: #{_lambda_.31} parent=0 // pred_region
    _
  $region5: #{_lambda_.31} parent=0 // pred_fallthru
    _
  // Predicated region
  $region6: #{_lambda_.31} parent=0 // pred_check
    _
  $region7: #{_lambda_.31} parent=0 // pred_check_branch
    %11 = sbr.rel (0) target = $region9
  $region8: #{_lambda_.31} parent=0 // pred_region
    _
  $region9: #{_lambda_.31} parent=0 // pred_fallthru
    _
  // Predicated region
  $region10: #{_lambda_.31} parent=0 // pred_check
    _
  $region11: #{_lambda_.31} parent=0 // pred_check_branch
    %13 = sbr.rel (0) target = $region13
  $region12: #{_lambda_.31} parent=0 // pred_region
    _
  $region13: #{_lambda_.31} parent=0 // pred_fallthru
    _
  %v14 = vld [vmem:[%s0] sm:$0xf]
  %v15 = vld [vmem:[%s1] sm:$0xff]
  %v16 = vld [vmem:[%s1 + $0x8] sm:$0xff]
  %v17 = vld [vmem:[%s1 + $0x10] sm:$0xff]
  %v18 = vld [vmem:[%s1 + $0x18] sm:$0xff]
  %v19 = vld [vmem:[%s1 + $0x20] sm:$0xff]
  %v20 = vld [vmem:[%s1 + $0x28] sm:$0xff]
  %v21 = vld [vmem:[%s1 + $0x30] sm:$0xff]
  %v22 = vld [vmem:[%s1 + $0x38] sm:$0xff]
  %v23 = vld [vmem:[%s1 + $0x40] sm:$0xff]
  %v24 = vld [vmem:[%s1 + $0x48] sm:$0xff]
  %v25 = vld [vmem:[%s1 + $0x50] sm:$0xff]
  %v26 = vld [vmem:[%s1 + $0x58] sm:$0xff]
  %v27 = vld [vmem:[%s1 + $0x60] sm:$0xff]
  %v28 = vld [vmem:[%s1 + $0x68] sm:$0xff]
  %v29 = vld [vmem:[%s1 + $0x70] sm:$0xff]
  %v30 = vld [vmem:[%s1 + $0x78] sm:$0xff]
  %v31 = vld [vmem:[%s2] sm:$0x3]
  %v33 = vperm.slane %v31, 0
  %v34 = vperm.slane %v31, 1
  %v53 = vunpack.c.l.b16 %v15
  %v54 = vunpack.c.h.b16 %v15
  %v55 = vunpack.c.l.b16 %v16
  %v56 = vunpack.c.h.b16 %v16
  %v57 = vunpack.c.l.b16 %v17
  %v58 = vunpack.c.h.b16 %v17
  %v59 = vunpack.c.l.b16 %v18
  %v60 = vunpack.c.h.b16 %v18
  %v61 = vunpack.c.l.b16 %v19
  %v62 = vunpack.c.h.b16 %v19
  %v63 = vunpack.c.l.b16 %v20
  %v64 = vunpack.c.h.b16 %v20
  %v65 = vunpack.c.l.b16 %v21
  %v66 = vunpack.c.h.b16 %v21
  %v67 = vunpack.c.l.b16 %v22
  %v68 = vunpack.c.h.b16 %v22
  %v69 = vunpack.c.l.b16 %v23
  %v70 = vunpack.c.h.b16 %v23
  %v71 = vunpack.c.l.b16 %v24
  %v72 = vunpack.c.h.b16 %v24
  %v73 = vunpack.c.l.b16 %v25
  %v74 = vunpack.c.h.b16 %v25
  %v75 = vunpack.c.l.b16 %v26
  %v76 = vunpack.c.h.b16 %v26
  %v77 = vunpack.c.l.b16 %v27
  %v78 = vunpack.c.h.b16 %v27
  %v79 = vunpack.c.l.b16 %v28
  %v80 = vunpack.c.h.b16 %v28
  %v81 = vunpack.c.l.b16 %v29
  %v82 = vunpack.c.h.b16 %v29
  %v83 = vunpack.c.l.b16 %v30
  %v84 = vunpack.c.h.b16 %v30
  %v85 = vpack.c.b16 %v55, %v53
  %v86 = vpack.c.b16 %v56, %v54
  %v87 = vpack.c.b16 %v59, %v57
  %v88 = vpack.c.b16 %v60, %v58
  %v89 = vpack.c.b16 %v63, %v61
  %v90 = vpack.c.b16 %v64, %v62
  %v91 = vpack.c.b16 %v67, %v65
  %v92 = vpack.c.b16 %v68, %v66
  %v93 = vpack.c.b16 %v71, %v69
  %v94 = vpack.c.b16 %v72, %v70
  %v95 = vpack.c.b16 %v75, %v73
  %v96 = vpack.c.b16 %v76, %v74
  %v97 = vpack.c.b16 %v79, %v77
  %v98 = vpack.c.b16 %v80, %v78
  %v99 = vpack.c.b16 %v83, %v81
  %v100 = vpack.c.b16 %v84, %v82
  %117 = vmatpush.bf16.msra.mxu0 %v99
  %118 = vmatpush.bf16.msra.mxu0 %v97
  %119 = vmatpush.bf16.msra.mxu0 %v95
  %120 = vmatpush.bf16.msra.mxu0 %v93
  %121 = vmatpush.bf16.msra.mxu0 %v91
  %122 = vmatpush.bf16.msra.mxu0 %v89
  %123 = vmatpush.bf16.msra.mxu0 %v87
  %124 = vmatpush.bf16.msra.mxu0 %v85
  %125 = vmatmul.bf16.gmra.mxu0 %v14
  %v126 = vpop.f32.mrf.mxu0
  %v127 = vadd.f32 %v33, %v126
  %v128 = vpop.f32.mrf.mxu0
  %129 = vdwg.mxu0
  %130 = vmatpush.bf16.msra.mxu0 %v100
  %131 = vmatpush.bf16.msra.mxu0 %v98
  %132 = vmatpush.bf16.msra.mxu0 %v96
  %133 = vmatpush.bf16.msra.mxu0 %v94
  %134 = vmatpush.bf16.msra.mxu0 %v92
  %135 = vmatpush.bf16.msra.mxu0 %v90
  %136 = vmatpush.bf16.msra.mxu0 %v88
  %137 = vmatpush.bf16.msra.mxu0 %v86
  %138 = vmatmul.bf16.gmra.mxu0 %v14
  %v139 = vpop.f32.mrf.mxu0
  %v140 = vadd.f32 %v34, %v139
  %v141 = vpop.f32.mrf.mxu0
  %142 = vdwg.mxu0
  %143 = vst [vmem:[%s3] sm:$0xff] %v127
  %144 = vst [vmem:[%s3 + $0x8] sm:$0xff] %v140
  // Predicated region
  $region14: #{_lambda_.31} parent=0 // pred_check
    _
  $region15: #{_lambda_.31} parent=0 // pred_check_branch
    %146 = sbr.rel (0) target = $region17
  $region16: #{_lambda_.31} parent=0 // pred_region
    _
  $region17: #{_lambda_.31} parent=0 // pred_fallthru
    _
  // Predicated region
  $region18: #{_lambda_.31} parent=0 // pred_check
    _
  $region19: #{_lambda_.31} parent=0 // pred_check_branch
    %148 = sbr.rel (0) target = $region21
  $region20: #{_lambda_.31} parent=0 // pred_region
    _
  $region21: #{_lambda_.31} parent=0 // pred_fallthru
    _

// kernel: _lambda_.29
$region0: #{_lambda_.29}
  #allocation0 [shape = 'u32[]', space=smem, size = 0x4, offset = 0x4, fixed_abs, tag = 'smem constant byte address 0x4 - core index']
  #allocation1 [shape = 'u32[72,128]{1,0:T(1,128)}', space=vmem, size = 0x9000, scoped, tag = 'internal scratch']
  #allocation2 [shape = 'f32[32,128]{1,0:T(8,128)}', space=vmem, size = 0x4000, scoped, tag = 'scratch operand']
  %s0 = inlined_call_operand.vmem [shape: f32[48,128], index: 0, kind: input, shape index: {}, may-alias: {0,1}]
  %s1 = inlined_call_operand.vmem [shape: f32[48,128], index: 1, kind: input, shape index: {}, may-alias: {0,1}]
  %s2 = inlined_call_operand.vmem [shape: bf16[1152,128], index: 2, kind: input, shape index: {}]
  %s3 = inlined_call_operand.vmem [shape: f32[1,128], index: 3, kind: input, shape index: {}]
  %s4 = inlined_call_operand.vmem [shape: f32[32,128], index: 4, kind: output, shape index: {}]
  %s5 = sld [smem:[#allocation0]]
  $region49: #{_lambda_.29} parent=0
    _
  %s7 = ssub.s32 1, %s5
  %s8 = scalar_select 0, %s7, %s5
  loop: start=0, step=1, limit=4
  $region2: #{_lambda_.29} parent=0 // loop_pre_header
    _
  $region3: #{_lambda_.29} parent=0 // loop_header
    %s10 = sphi 0, %s14
    %p11 = scmp.ge.s32.totalorder %s10, 4
    %s20 = sphi 0, %s22
    %s23 = sphi 0, %s20
    %s24 = sphi 0, %s23
    %s40 = sphi 0, %s24
    %s48 = sphi 0, %s50
    %s51 = sphi 0, %s48
    %s52 = sphi 0, %s51
    %s68 = sphi 0, %s52
    %s72 = sphi 0, %s72
    %s74 = sphi 0, %s72
    %s75 = sphi 0, %s74
    %s89 = sphi 0, %s75
    %s93 = sphi 0, %s93
    %s95 = sphi 0, %s93
    %s96 = sphi 0, %s95
    %s110 = sphi 0, %s96
    %s116 = sphi 0, %s118
    %s119 = sphi 0, %s116
    %s120 = sphi 0, %s119
    %s136 = sphi 0, %s120
  $region4: #{_lambda_.29} parent=0 // loop_header_branch
    %13 = sbr.rel (%p11) target = $region8
  $region5: #{_lambda_.29} parent=0 // loop_body
    %s15 = ssub.s32 %s10, 1
    %s16 = ssub.s32 %s10, 2
    %s17 = sadd.s32 %s10, 1
    %s18 = ssub.s32 %s10, %s17
    %p19 = scmp.eq.s32.totalorder %s18, 0
    %s21 = sadd.s32 %s20, 1
    %s22 = scalar_select %p19, %s20, %s21
    %p25 = pneg %p19
    %p26 = scmp.eq.s32.totalorder %s10, 1
    %p27 = por %p25, %p26
    %p28 = scmp.ne.s32.totalorder %s20, %s23
    %p29 = scmp.eq.s32.totalorder %s10, 0
    %p30 = por %p28, %p29
    %p31 = scmp.ne.s32.totalorder %s20, %s23
    %p32 = scmp.eq.s32.totalorder %s15, 1
    %p33 = por %p31, %p32
    %p34 = scmp.ne.s32.totalorder %s23, %s24
    %p35 = scmp.eq.s32.totalorder %s15, 0
    %p36 = por %p34, %p35
    %p37 = scmp.ne.s32.totalorder %s23, %s24
    %p38 = scmp.eq.s32.totalorder %s16, 1
    %p39 = por %p37, %p38
    %p41 = scmp.ne.s32.totalorder %s24, %s40
    %p42 = scmp.eq.s32.totalorder %s16, 0
    %p43 = por %p41, %p42
    %s44 = sadd.s32 %s10, 1
    %s45 = sadd.s32 %s17, 1
    %s46 = ssub.s32 %s44, %s45
    %p47 = scmp.eq.s32.totalorder %s46, 0
    %s49 = sadd.s32 %s48, 1
    %s50 = scalar_select %p47, %s48, %s49
    %p53 = pneg %p47
    %p54 = scmp.eq.s32.totalorder %s10, 1
    %p55 = por %p53, %p54
    %p56 = scmp.ne.s32.totalorder %s48, %s51
    %p57 = scmp.eq.s32.totalorder %s10, 0
    %p58 = por %p56, %p57
    %p59 = scmp.ne.s32.totalorder %s48, %s51
    %p60 = scmp.eq.s32.totalorder %s15, 1
    %p61 = por %p59, %p60
    %p62 = scmp.ne.s32.totalorder %s51, %s52
    %p63 = scmp.eq.s32.totalorder %s15, 0
    %p64 = por %p62, %p63
    %p65 = scmp.ne.s32.totalorder %s51, %s52
    %p66 = scmp.eq.s32.totalorder %s16, 1
    %p67 = por %p65, %p66
    %p69 = scmp.ne.s32.totalorder %s52, %s68
    %p70 = scmp.eq.s32.totalorder %s16, 0
    %p71 = por %p69, %p70
    %s73 = sadd.s32 %s72, 1
    %p76 = scmp.eq.s32.totalorder %s10, 1
    %p77 = scmp.ne.s32.totalorder %s72, %s74
    %p78 = scmp.eq.s32.totalorder %s10, 0
    %p79 = por %p77, %p78
    %p80 = scmp.ne.s32.totalorder %s72, %s74
    %p81 = scmp.eq.s32.totalorder %s15, 1
    %p82 = por %p80, %p81
    %p83 = scmp.ne.s32.totalorder %s74, %s75
    %p84 = scmp.eq.s32.totalorder %s15, 0
    %p85 = por %p83, %p84
    %p86 = scmp.ne.s32.totalorder %s74, %s75
    %p87 = scmp.eq.s32.totalorder %s16, 1
    %p88 = por %p86, %p87
    %p90 = scmp.ne.s32.totalorder %s75, %s89
    %p91 = scmp.eq.s32.totalorder %s16, 0
    %p92 = por %p90, %p91
    %s94 = sadd.s32 %s93, 1
    %p97 = scmp.eq.s32.totalorder %s10, 1
    %p98 = scmp.ne.s32.totalorder %s93, %s95
    %p99 = scmp.eq.s32.totalorder %s10, 0
    %p100 = por %p98, %p99
    %p101 = scmp.ne.s32.totalorder %s93, %s95
    %p102 = scmp.eq.s32.totalorder %s15, 1
    %p103 = por %p101, %p102
    %p104 = scmp.ne.s32.totalorder %s95, %s96
    %p105 = scmp.eq.s32.totalorder %s15, 0
    %p106 = por %p104, %p105
    %p107 = scmp.ne.s32.totalorder %s95, %s96
    %p108 = scmp.eq.s32.totalorder %s16, 1
    %p109 = por %p107, %p108
    %p111 = scmp.ne.s32.totalorder %s96, %s110
    %p112 = scmp.eq.s32.totalorder %s16, 0
    %p113 = por %p111, %p112
    %s114 = ssub.s32 %s10, %s17
    %p115 = scmp.eq.s32.totalorder %s114, 0
    %s117 = sadd.s32 %s116, 1
    %s118 = scalar_select %p115, %s116, %s117
    %p121 = pneg %p115
    %p122 = scmp.eq.s32.totalorder %s10, 1
    %p123 = por %p121, %p122
    %p124 = scmp.ne.s32.totalorder %s116, %s119
    %p125 = scmp.eq.s32.totalorder %s10, 0
    %p126 = por %p124, %p125
    %p127 = scmp.ne.s32.totalorder %s116, %s119
    %p128 = scmp.eq.s32.totalorder %s15, 1
    %p129 = por %p127, %p128
    %p130 = scmp.ne.s32.totalorder %s119, %s120
    %p131 = scmp.eq.s32.totalorder %s15, 0
    %p132 = por %p130, %p131
    %p133 = scmp.ne.s32.totalorder %s119, %s120
    %p134 = scmp.eq.s32.totalorder %s16, 1
    %p135 = por %p133, %p134
    %p137 = scmp.ne.s32.totalorder %s120, %s136
    %p138 = scmp.eq.s32.totalorder %s16, 0
    %p139 = por %p137, %p138
    %p140 = scmp.le.s32.totalorder 1, %s10
    %p141 = scmp.lt.s32.totalorder %s10, 3
    %p142 = pnand %p140, %p141
    %p143 = pneg %p142
    // Predicated region
    $region9: #{_lambda_.29} parent=5 // pred_check
      _
    $region10: #{_lambda_.29} parent=5 // pred_check_branch
      %145 = sbr.rel (%p142) target = $region12
    $region11: #{_lambda_.29} parent=5 // pred_region
      %s146 = ssub.s32 %s10, 1
      // Predicated region
      $region13: #{_lambda_.29} parent=11 // pred_check
        %p147 = pneg %p85
      $region14: #{_lambda_.29} parent=11 // pred_check_branch
        %149 = sbr.rel (%p147) target = $region16
      $region15: #{_lambda_.29} parent=11 // pred_region
        _
      $region16: #{_lambda_.29} parent=11 // pred_fallthru
        _
      // Predicated region
      $region17: #{_lambda_.29} parent=11 // pred_check
        %p150 = pneg %p106
      $region18: #{_lambda_.29} parent=11 // pred_check_branch
        %152 = sbr.rel (%p150) target = $region20
      $region19: #{_lambda_.29} parent=11 // pred_region
        _
      $region20: #{_lambda_.29} parent=11 // pred_fallthru
        _
    $region12: #{_lambda_.29} parent=5 // pred_fallthru
      _
    %p153 = scmp.lt.s32.totalorder %s10, 2
    // Predicated region
    $region21: #{_lambda_.29} parent=5 // pred_check
      %p154 = pneg %p153
    $region22: #{_lambda_.29} parent=5 // pred_check_branch
      %156 = sbr.rel (%p154) target = $region24
    $region23: #{_lambda_.29} parent=5 // pred_region
      // Predicated region
      $region25: #{_lambda_.29} parent=23 // pred_check
        %p157 = pneg %p30
      $region26: #{_lambda_.29} parent=23 // pred_check_branch
        %159 = sbr.rel (%p157) target = $region28
      $region27: #{_lambda_.29} parent=23 // pred_region
        %s160 = smul.u32 2, %s10
        %p161 = scmp.lt.s32.totalorder %s160, 5
        %s162 = scalar_select %p161, %s160, 5
        %s163 = smul.addr %s162, 8
        %s164 = scalar_lea.vmem %s0, %s163
        %s165 = smul.u32 2, %s10
      $region28: #{_lambda_.29} parent=23 // pred_fallthru
        _
      // Predicated region
      $region29: #{_lambda_.29} parent=23 // pred_check
        %p166 = pneg %p58
      $region30: #{_lambda_.29} parent=23 // pred_check_branch
        %168 = sbr.rel (%p166) target = $region32
      $region31: #{_lambda_.29} parent=23 // pred_region
        %s169 = sadd.s32 %s10, 1
        %s170 = smul.u32 2, %s169
        %p171 = scmp.lt.s32.totalorder %s170, 5
        %s172 = scalar_select %p171, %s170, 5
        %s173 = smul.addr %s172, 8
        %s174 = scalar_lea.vmem %s1, %s173
        %s175 = sadd.s32 %s10, 1
        %s176 = smul.u32 2, %s175
      $region32: #{_lambda_.29} parent=23 // pred_fallthru
        _
    $region24: #{_lambda_.29} parent=5 // pred_fallthru
      _
    %p177 = scmp.le.s32.totalorder 1, %s10
    %p178 = scmp.lt.s32.totalorder %s10, 3
    %p179 = pnand %p177, %p178
    %p180 = pneg %p179
    // Predicated region
    $region33: #{_lambda_.29} parent=5 // pred_check
      _
    $region34: #{_lambda_.29} parent=5 // pred_check_branch
      %182 = sbr.rel (%p179) target = $region36
    $region35: #{_lambda_.29} parent=5 // pred_region
      %s183 = ssub.s32 %s10, 1
      %s184 = smul.u32 2, %s15
      %p185 = scmp.lt.s32.totalorder %s184, 5
      %s186 = scalar_select %p185, %s184, 5
      %s187 = smul.addr %s186, 8
      %s188 = scalar_lea.vmem %s0, %s187
      %p189 = pneg %p36
      %p190 = pneg %p33
      %s191 = sadd.s32 %s15, 1
      %s192 = smul.u32 2, %s191
      %p193 = scmp.lt.s32.totalorder %s192, 5
      %s194 = scalar_select %p193, %s192, 5
      %s195 = smul.addr %s194, 8
      %s196 = scalar_lea.vmem %s1, %s195
      %p197 = pneg %p64
      %p198 = pneg %p61
      %p199 = pneg %p85
      %p200 = pneg %p82
      %p201 = pneg %p106
      %p202 = pneg %p103
      %p203 = pneg %p132
      %p204 = pneg %p129
      %s205 = smul.u32 2, %s15
      %p206 = scmp.lt.s32.totalorder %s205, 3
      %s207 = scalar_select %p206, %s205, 3
      %s208 = smul.addr %s207, 8
      %s209 = scalar_lea.vmem %s4, %s208
      %s210 = smul.u32 2, %s15
      %p211 = scmp.lt.s32.totalorder %s210, 5
      %s212 = scalar_select %p211, %s210, 5
      %s213 = smul.addr %s212, 8
      %s214 = scalar_lea.vmem %s0, %s213
      %s215 = smul.u32 2, %s15
      %s216 = sadd.s32 %s15, 1
      %s217 = smul.u32 2, %s216
      %p218 = scmp.lt.s32.totalorder %s217, 5
      %s219 = scalar_select %p218, %s217, 5
      %s220 = smul.addr %s219, 8
      %s221 = scalar_lea.vmem %s1, %s220
      %s222 = sadd.s32 %s15, 1
      %s223 = smul.u32 2, %s222
      %s224 = smul.u32 2, %s15
      %p225 = scmp.lt.s32.totalorder %s224, 3
      %s226 = scalar_select %p225, %s224, 3
      %s227 = smul.addr %s226, 8
      %s228 = scalar_lea.vmem %s4, %s227
      %s229 = smul.u32 2, %s15
      %v230 = vld [vmem:[%s214] sm:$0xff]
      %v231 = vld [vmem:[%s214 + $0x8] sm:$0xff]
      %232 = vst [vmem:[#allocation2] sm:$0xff] %v230
      %233 = vst [vmem:[#allocation2 + $0x8] sm:$0xff] %v231
      %v234 = vld [vmem:[%s221] sm:$0xff]
      %v235 = vld [vmem:[%s221 + $0x8] sm:$0xff]
      %236 = vst [vmem:[#allocation2 + $0x10] sm:$0xff] %v234
      %237 = vst [vmem:[#allocation2 + $0x18] sm:$0xff] %v235
      %v238 = vld [vmem:[#allocation2] sm:$0xff]
      %v239 = vld [vmem:[#allocation2 + $0x8] sm:$0xff]
      %v240 = vpack.c.bf16 %v239, %v238
      %v241 = vld [vmem:[%s2] sm:$0xf]
      %v242 = vld [vmem:[%s2 + $0x4] sm:$0xf]
      %v243 = vld [vmem:[%s2 + $0x8] sm:$0xf]
      %v244 = vld [vmem:[%s2 + $0xc] sm:$0xf]
      %v245 = vld [vmem:[%s2 + $0x10] sm:$0xf]
      %v246 = vld [vmem:[%s2 + $0x14] sm:$0xf]
      %v247 = vld [vmem:[%s2 + $0x18] sm:$0xf]
      %v248 = vld [vmem:[%s2 + $0x1c] sm:$0xf]
      %v249 = vld [vmem:[%s2 + $0x20] sm:$0xf]
      %v250 = vld [vmem:[%s2 + $0x24] sm:$0xf]
      %v251 = vld [vmem:[%s2 + $0x28] sm:$0xf]
      %v252 = vld [vmem:[%s2 + $0x2c] sm:$0xf]
      %v253 = vld [vmem:[%s2 + $0x30] sm:$0xf]
      %v254 = vld [vmem:[%s2 + $0x34] sm:$0xf]
      %v255 = vld [vmem:[%s2 + $0x38] sm:$0xf]
      %v256 = vld [vmem:[%s2 + $0x3c] sm:$0xf]
      %v257 = vld [vmem:[#allocation2 + $0x1] sm:$0xff]
      %v258 = vld [vmem:[#allocation2 + $0x9] sm:$0xff]
      %v259 = vpack.c.bf16 %v258, %v257
      %v260 = vld [vmem:[%s2 + $0x40] sm:$0xf]
      %v261 = vld [vmem:[%s2 + $0x44] sm:$0xf]
      %v262 = vld [vmem:[%s2 + $0x48] sm:$0xf]
      %v263 = vld [vmem:[%s2 + $0x4c] sm:$0xf]
      %v264 = vld [vmem:[%s2 + $0x50] sm:$0xf]
      %v265 = vld [vmem:[%s2 + $0x54] sm:$0xf]
      %v266 = vld [vmem:[%s2 + $0x58] sm:$0xf]
      %v267 = vld [vmem:[%s2 + $0x5c] sm:$0xf]
      %v268 = vld [vmem:[%s2 + $0x60] sm:$0xf]
      %v269 = vld [vmem:[%s2 + $0x64] sm:$0xf]
      %v270 = vld [vmem:[%s2 + $0x68] sm:$0xf]
      %v271 = vld [vmem:[%s2 + $0x6c] sm:$0xf]
      %v272 = vld [vmem:[%s2 + $0x70] sm:$0xf]
      %v273 = vld [vmem:[%s2 + $0x74] sm:$0xf]
      %v274 = vld [vmem:[%s2 + $0x78] sm:$0xf]
      %v275 = vld [vmem:[%s2 + $0x7c] sm:$0xf]
      %v292 = vunpack.c.l.b16 %v260
      %v293 = vunpack.c.l.b16 %v261
      %v294 = vunpack.c.l.b16 %v262
      %v295 = vunpack.c.l.b16 %v263
      %v296 = vunpack.c.l.b16 %v264
      %v297 = vunpack.c.l.b16 %v265
      %v298 = vunpack.c.l.b16 %v266
      %v299 = vunpack.c.l.b16 %v267
      %v300 = vunpack.c.l.b16 %v268
      %v301 = vunpack.c.l.b16 %v269
      %v302 = vunpack.c.l.b16 %v270
      %v303 = vunpack.c.l.b16 %v271
      %v304 = vunpack.c.l.b16 %v272
      %v305 = vunpack.c.l.b16 %v273
      %v306 = vunpack.c.l.b16 %v274
      %v307 = vunpack.c.l.b16 %v275
      %v308 = vpack.c.b16 %v293, %v292
      %v309 = vpack.c.b16 %v295, %v294
      %v310 = vpack.c.b16 %v297, %v296
      %v311 = vpack.c.b16 %v299, %v298
      %v312 = vpack.c.b16 %v301, %v300
      %v313 = vpack.c.b16 %v303, %v302
      %v314 = vpack.c.b16 %v305, %v304
      %v315 = vpack.c.b16 %v307, %v306
      %324 = vmatpush.bf16.msra.mxu0 %v315
      %325 = vmatpush.bf16.msra.mxu0 %v314
      %326 = vmatpush.bf16.msra.mxu0 %v313
      %327 = vmatpush.bf16.msra.mxu0 %v312
      %328 = vmatpush.bf16.msra.mxu0 %v311
      %329 = vmatpush.bf16.msra.mxu0 %v310
      %330 = vmatpush.bf16.msra.mxu0 %v309
      %331 = vmatpush.bf16.msra.mxu0 %v308
      %332 = vmatmul.bf16.gmra.mxu0 %v259
      %v333 = vpop.f32.mrf.mxu0
      %v334 = vadd.f32 0.0, %v333
      %v335 = vpop.f32.mrf.mxu0
      %v336 = vadd.f32 0.0, %v335
      %337 = vdwg.mxu0
      %v354 = vunpack.c.l.b16 %v241
      %v355 = vunpack.c.l.b16 %v242
      %v356 = vunpack.c.l.b16 %v243
      %v357 = vunpack.c.l.b16 %v244
      %v358 = vunpack.c.l.b16 %v245
      %v359 = vunpack.c.l.b16 %v246
      %v360 = vunpack.c.l.b16 %v247
      %v361 = vunpack.c.l.b16 %v248
      %v362 = vunpack.c.l.b16 %v249
      %v363 = vunpack.c.l.b16 %v250
      %v364 = vunpack.c.l.b16 %v251
      %v365 = vunpack.c.l.b16 %v252
      %v366 = vunpack.c.l.b16 %v253
      %v367 = vunpack.c.l.b16 %v254
      %v368 = vunpack.c.l.b16 %v255
      %v369 = vunpack.c.l.b16 %v256
      %v370 = vpack.c.b16 %v355, %v354
      %v371 = vpack.c.b16 %v357, %v356
      %v372 = vpack.c.b16 %v359, %v358
      %v373 = vpack.c.b16 %v361, %v360
      %v374 = vpack.c.b16 %v363, %v362
      %v375 = vpack.c.b16 %v365, %v364
      %v376 = vpack.c.b16 %v367, %v366
      %v377 = vpack.c.b16 %v369, %v368
      %386 = vmatpush.bf16.msra.mxu0 %v377
      %387 = vmatpush.bf16.msra.mxu0 %v376
      %388 = vmatpush.bf16.msra.mxu0 %v375
      %389 = vmatpush.bf16.msra.mxu0 %v374
      %390 = vmatpush.bf16.msra.mxu0 %v373
      %391 = vmatpush.bf16.msra.mxu0 %v372
      %392 = vmatpush.bf16.msra.mxu0 %v371
      %393 = vmatpush.bf16.msra.mxu0 %v370
      %394 = vmatmul.bf16.gmra.mxu0 %v240
      %v395 = vpop.f32.mrf.mxu0
      %v396 = vadd.f32 %v334, %v395
      %v397 = vpop.f32.mrf.mxu0
      %v398 = vadd.f32 %v336, %v397
      %399 = vdwg.mxu0
      %v400 = vld [vmem:[#allocation2 + $0x2] sm:$0xff]
      %v401 = vld [vmem:[#allocation2 + $0xa] sm:$0xff]
      %v402 = vpack.c.bf16 %v401, %v400
      %v403 = vld [vmem:[%s2 + $0x80] sm:$0xf]
      %v404 = vld [vmem:[%s2 + $0x84] sm:$0xf]
      %v405 = vld [vmem:[%s2 + $0x88] sm:$0xf]
      %v406 = vld [vmem:[%s2 + $0x8c] sm:$0xf]
      %v407 = vld [vmem:[%s2 + $0x90] sm:$0xf]
      %v408 = vld [vmem:[%s2 + $0x94] sm:$0xf]
      %v409 = vld [vmem:[%s2 + $0x98] sm:$0xf]
      %v410 = vld [vmem:[%s2 + $0x9c] sm:$0xf]
      %v411 = vld [vmem:[%s2 + $0xa0] sm:$0xf]
      %v412 = vld [vmem:[%s2 + $0xa4] sm:$0xf]
      %v413 = vld [vmem:[%s2 + $0xa8] sm:$0xf]
      %v414 = vld [vmem:[%s2 + $0xac] sm:$0xf]
      %v415 = vld [vmem:[%s2 + $0xb0] sm:$0xf]
      %v416 = vld [vmem:[%s2 + $0xb4] sm:$0xf]
      %v417 = vld [vmem:[%s2 + $0xb8] sm:$0xf]
      %v418 = vld [vmem:[%s2 + $0xbc] sm:$0xf]
      %v435 = vunpack.c.l.b16 %v403
      %v436 = vunpack.c.l.b16 %v404
      %v437 = vunpack.c.l.b16 %v405
      %v438 = vunpack.c.l.b16 %v406
      %v439 = vunpack.c.l.b16 %v407
      %v440 = vunpack.c.l.b16 %v408
      %v441 = vunpack.c.l.b16 %v409
      %v442 = vunpack.c.l.b16 %v410
      %v443 = vunpack.c.l.b16 %v411
      %v444 = vunpack.c.l.b16 %v412
      %v445 = vunpack.c.l.b16 %v413
      %v446 = vunpack.c.l.b16 %v414
      %v447 = vunpack.c.l.b16 %v415
      %v448 = vunpack.c.l.b16 %v416
      %v449 = vunpack.c.l.b16 %v417
      %v450 = vunpack.c.l.b16 %v418
      %v451 = vpack.c.b16 %v436, %v435
      %v452 = vpack.c.b16 %v438, %v437
      %v453 = vpack.c.b16 %v440, %v439
      %v454 = vpack.c.b16 %v442, %v441
      %v455 = vpack.c.b16 %v444, %v443
      %v456 = vpack.c.b16 %v446, %v445
      %v457 = vpack.c.b16 %v448, %v447
      %v458 = vpack.c.b16 %v450, %v449
      %467 = vmatpush.bf16.msra.mxu0 %v458
      %468 = vmatpush.bf16.msra.mxu0 %v457
      %469 = vmatpush.bf16.msra.mxu0 %v456
      %470 = vmatpush.bf16.msra.mxu0 %v455
      %471 = vmatpush.bf16.msra.mxu0 %v454
      %472 = vmatpush.bf16.msra.mxu0 %v453
      %473 = vmatpush.bf16.msra.mxu0 %v452
      %474 = vmatpush.bf16.msra.mxu0 %v451
      %475 = vmatmul.bf16.gmra.mxu0 %v402
      %v476 = vpop.f32.mrf.mxu0
      %v477 = vadd.f32 0.0, %v476
      %v478 = vpop.f32.mrf.mxu0
      %v479 = vadd.f32 0.0, %v478
      %480 = vdwg.mxu0
      %v481 = vadd.f32 %v396, %v477
      %v482 = vadd.f32 %v398, %v479
      %v483 = vld [vmem:[#allocation2 + $0x4] sm:$0xff]
      %v484 = vld [vmem:[#allocation2 + $0xc] sm:$0xff]
      %v485 = vpack.c.bf16 %v484, %v483
      %v486 = vld [vmem:[%s2 + $0xc0] sm:$0xf]
      %v487 = vld [vmem:[%s2 + $0xc4] sm:$0xf]
      %v488 = vld [vmem:[%s2 + $0xc8] sm:$0xf]
      %v489 = vld [vmem:[%s2 + $0xcc] sm:$0xf]
      %v490 = vld [vmem:[%s2 + $0xd0] sm:$0xf]
      %v491 = vld [vmem:[%s2 + $0xd4] sm:$0xf]
      %v492 = vld [vmem:[%s2 + $0xd8] sm:$0xf]
      %v493 = vld [vmem:[%s2 + $0xdc] sm:$0xf]
      %v494 = vld [vmem:[%s2 + $0xe0] sm:$0xf]
      %v495 = vld [vmem:[%s2 + $0xe4] sm:$0xf]
      %v496 = vld [vmem:[%s2 + $0xe8] sm:$0xf]
      %v497 = vld [vmem:[%s2 + $0xec] sm:$0xf]
      %v498 = vld [vmem:[%s2 + $0xf0] sm:$0xf]
      %v499 = vld [vmem:[%s2 + $0xf4] sm:$0xf]
      %v500 = vld [vmem:[%s2 + $0xf8] sm:$0xf]
      %v501 = vld [vmem:[%s2 + $0xfc] sm:$0xf]
      %v518 = vunpack.c.l.b16 %v486
      %v519 = vunpack.c.l.b16 %v487
      %v520 = vunpack.c.l.b16 %v488
      %v521 = vunpack.c.l.b16 %v489
      %v522 = vunpack.c.l.b16 %v490
      %v523 = vunpack.c.l.b16 %v491
      %v524 = vunpack.c.l.b16 %v492
      %v525 = vunpack.c.l.b16 %v493
      %v526 = vunpack.c.l.b16 %v494
      %v527 = vunpack.c.l.b16 %v495
      %v528 = vunpack.c.l.b16 %v496
      %v529 = vunpack.c.l.b16 %v497
      %v530 = vunpack.c.l.b16 %v498
      %v531 = vunpack.c.l.b16 %v499
      %v532 = vunpack.c.l.b16 %v500
      %v533 = vunpack.c.l.b16 %v501
      %v534 = vpack.c.b16 %v519, %v518
      %v535 = vpack.c.b16 %v521, %v520
      %v536 = vpack.c.b16 %v523, %v522
      %v537 = vpack.c.b16 %v525, %v524
      %v538 = vpack.c.b16 %v527, %v526
      %v539 = vpack.c.b16 %v529, %v528
      %v540 = vpack.c.b16 %v531, %v530
      %v541 = vpack.c.b16 %v533, %v532
      %550 = vmatpush.bf16.msra.mxu0 %v541
      %551 = vmatpush.bf16.msra.mxu0 %v540
      %552 = vmatpush.bf16.msra.mxu0 %v539
      %553 = vmatpush.bf16.msra.mxu0 %v538
      %554 = vmatpush.bf16.msra.mxu0 %v537
      %555 = vmatpush.bf16.msra.mxu0 %v536
      %556 = vmatpush.bf16.msra.mxu0 %v535
      %557 = vmatpush.bf16.msra.mxu0 %v534
      %558 = vmatmul.bf16.gmra.mxu0 %v485
      %v559 = vpop.f32.mrf.mxu0
      %v560 = vadd.f32 0.0, %v559
      %v561 = vpop.f32.mrf.mxu0
      %v562 = vadd.f32 0.0, %v561
      %563 = vdwg.mxu0
      %v564 = vadd.f32 %v481, %v560
      %v565 = vadd.f32 %v482, %v562
      %v566 = vld [vmem:[#allocation2 + $0x5] sm:$0xff]
      %v567 = vld [vmem:[#allocation2 + $0xd] sm:$0xff]
      %v568 = vpack.c.bf16 %v567, %v566
      %v569 = vld [vmem:[%s2 + $0x100] sm:$0xf]
      %v570 = vld [vmem:[%s2 + $0x104] sm:$0xf]
      %v571 = vld [vmem:[%s2 + $0x108] sm:$0xf]
      %v572 = vld [vmem:[%s2 + $0x10c] sm:$0xf]
      %v573 = vld [vmem:[%s2 + $0x110] sm:$0xf]
      %v574 = vld [vmem:[%s2 + $0x114] sm:$0xf]
      %v575 = vld [vmem:[%s2 + $0x118] sm:$0xf]
      %v576 = vld [vmem:[%s2 + $0x11c] sm:$0xf]
      %v577 = vld [vmem:[%s2 + $0x120] sm:$0xf]
      %v578 = vld [vmem:[%s2 + $0x124] sm:$0xf]
      %v579 = vld [vmem:[%s2 + $0x128] sm:$0xf]
      %v580 = vld [vmem:[%s2 + $0x12c] sm:$0xf]
      %v581 = vld [vmem:[%s2 + $0x130] sm:$0xf]
      %v582 = vld [vmem:[%s2 + $0x134] sm:$0xf]
      %v583 = vld [vmem:[%s2 + $0x138] sm:$0xf]
      %v584 = vld [vmem:[%s2 + $0x13c] sm:$0xf]
      %v601 = vunpack.c.l.b16 %v569
      %v602 = vunpack.c.l.b16 %v570
      %v603 = vunpack.c.l.b16 %v571
      %v604 = vunpack.c.l.b16 %v572
      %v605 = vunpack.c.l.b16 %v573
      %v606 = vunpack.c.l.b16 %v574
      %v607 = vunpack.c.l.b16 %v575
      %v608 = vunpack.c.l.b16 %v576
      %v609 = vunpack.c.l.b16 %v577
      %v610 = vunpack.c.l.b16 %v578
      %v611 = vunpack.c.l.b16 %v579
      %v612 = vunpack.c.l.b16 %v580
      %v613 = vunpack.c.l.b16 %v581
      %v614 = vunpack.c.l.b16 %v582
      %v615 = vunpack.c.l.b16 %v583
      %v616 = vunpack.c.l.b16 %v584
      %v617 = vpack.c.b16 %v602, %v601
      %v618 = vpack.c.b16 %v604, %v603
      %v619 = vpack.c.b16 %v606, %v605
      %v620 = vpack.c.b16 %v608, %v607
      %v621 = vpack.c.b16 %v610, %v609
      %v622 = vpack.c.b16 %v612, %v611
      %v623 = vpack.c.b16 %v614, %v613
      %v624 = vpack.c.b16 %v616, %v615
      %633 = vmatpush.bf16.msra.mxu0 %v624
      %634 = vmatpush.bf16.msra.mxu0 %v623
      %635 = vmatpush.bf16.msra.mxu0 %v622
      %636 = vmatpush.bf16.msra.mxu0 %v621
      %637 = vmatpush.bf16.msra.mxu0 %v620
      %638 = vmatpush.bf16.msra.mxu0 %v619
      %639 = vmatpush.bf16.msra.mxu0 %v618
      %640 = vmatpush.bf16.msra.mxu0 %v617
      %641 = vmatmul.bf16.gmra.mxu0 %v568
      %v642 = vpop.f32.mrf.mxu0
      %v643 = vadd.f32 0.0, %v642
      %v644 = vpop.f32.mrf.mxu0
      %v645 = vadd.f32 0.0, %v644
      %646 = vdwg.mxu0
      %v647 = vadd.f32 %v564, %v643
      %v648 = vadd.f32 %v565, %v645
      %v649 = vld [vmem:[#allocation2 + $0x6] sm:$0xff]
      %v650 = vld [vmem:[#allocation2 + $0xe] sm:$0xff]
      %v651 = vpack.c.bf16 %v650, %v649
      %v652 = vld [vmem:[%s2 + $0x140] sm:$0xf]
      %v653 = vld [vmem:[%s2 + $0x144] sm:$0xf]
      %v654 = vld [vmem:[%s2 + $0x148] sm:$0xf]
      %v655 = vld [vmem:[%s2 + $0x14c] sm:$0xf]
      %v656 = vld [vmem:[%s2 + $0x150] sm:$0xf]
      %v657 = vld [vmem:[%s2 + $0x154] sm:$0xf]
      %v658 = vld [vmem:[%s2 + $0x158] sm:$0xf]
      %v659 = vld [vmem:[%s2 + $0x15c] sm:$0xf]
      %v660 = vld [vmem:[%s2 + $0x160] sm:$0xf]
      %v661 = vld [vmem:[%s2 + $0x164] sm:$0xf]
      %v662 = vld [vmem:[%s2 + $0x168] sm:$0xf]
      %v663 = vld [vmem:[%s2 + $0x16c] sm:$0xf]
      %v664 = vld [vmem:[%s2 + $0x170] sm:$0xf]
      %v665 = vld [vmem:[%s2 + $0x174] sm:$0xf]
      %v666 = vld [vmem:[%s2 + $0x178] sm:$0xf]
      %v667 = vld [vmem:[%s2 + $0x17c] sm:$0xf]
      %v684 = vunpack.c.l.b16 %v652
      %v685 = vunpack.c.l.b16 %v653
      %v686 = vunpack.c.l.b16 %v654
      %v687 = vunpack.c.l.b16 %v655
      %v688 = vunpack.c.l.b16 %v656
      %v689 = vunpack.c.l.b16 %v657
      %v690 = vunpack.c.l.b16 %v658
      %v691 = vunpack.c.l.b16 %v659
      %v692 = vunpack.c.l.b16 %v660
      %v693 = vunpack.c.l.b16 %v661
      %v694 = vunpack.c.l.b16 %v662
      %v695 = vunpack.c.l.b16 %v663
      %v696 = vunpack.c.l.b16 %v664
      %v697 = vunpack.c.l.b16 %v665
      %v698 = vunpack.c.l.b16 %v666
      %v699 = vunpack.c.l.b16 %v667
      %v700 = vpack.c.b16 %v685, %v684
      %v701 = vpack.c.b16 %v687, %v686
      %v702 = vpack.c.b16 %v689, %v688
      %v703 = vpack.c.b16 %v691, %v690
      %v704 = vpack.c.b16 %v693, %v692
      %v705 = vpack.c.b16 %v695, %v694
      %v706 = vpack.c.b16 %v697, %v696
      %v707 = vpack.c.b16 %v699, %v698
      %716 = vmatpush.bf16.msra.mxu0 %v707
      %717 = vmatpush.bf16.msra.mxu0 %v706
      %718 = vmatpush.bf16.msra.mxu0 %v705
      %719 = vmatpush.bf16.msra.mxu0 %v704
      %720 = vmatpush.bf16.msra.mxu0 %v703
      %721 = vmatpush.bf16.msra.mxu0 %v702
      %722 = vmatpush.bf16.msra.mxu0 %v701
      %723 = vmatpush.bf16.msra.mxu0 %v700
      %724 = vmatmul.bf16.gmra.mxu0 %v651
      %v725 = vpop.f32.mrf.mxu0
      %v726 = vadd.f32 0.0, %v725
      %v727 = vpop.f32.mrf.mxu0
      %v728 = vadd.f32 0.0, %v727
      %729 = vdwg.mxu0
      %v730 = vadd.f32 %v647, %v726
      %v731 = vadd.f32 %v648, %v728
      %v732 = vld [vmem:[#allocation2 + $0x8] sm:$0xff]
      %v733 = vld [vmem:[#allocation2 + $0x10] sm:$0xff]
      %v734 = vpack.c.bf16 %v733, %v732
      %v735 = vld [vmem:[%s2 + $0x180] sm:$0xf]
      %v736 = vld [vmem:[%s2 + $0x184] sm:$0xf]
      %v737 = vld [vmem:[%s2 + $0x188] sm:$0xf]
      %v738 = vld [vmem:[%s2 + $0x18c] sm:$0xf]
      %v739 = vld [vmem:[%s2 + $0x190] sm:$0xf]
      %v740 = vld [vmem:[%s2 + $0x194] sm:$0xf]
      %v741 = vld [vmem:[%s2 + $0x198] sm:$0xf]
      %v742 = vld [vmem:[%s2 + $0x19c] sm:$0xf]
      %v743 = vld [vmem:[%s2 + $0x1a0] sm:$0xf]
      %v744 = vld [vmem:[%s2 + $0x1a4] sm:$0xf]
      %v745 = vld [vmem:[%s2 + $0x1a8] sm:$0xf]
      %v746 = vld [vmem:[%s2 + $0x1ac] sm:$0xf]
      %v747 = vld [vmem:[%s2 + $0x1b0] sm:$0xf]
      %v748 = vld [vmem:[%s2 + $0x1b4] sm:$0xf]
      %v749 = vld [vmem:[%s2 + $0x1b8] sm:$0xf]
      %v750 = vld [vmem:[%s2 + $0x1bc] sm:$0xf]
      %v767 = vunpack.c.l.b16 %v735
      %v768 = vunpack.c.l.b16 %v736
      %v769 = vunpack.c.l.b16 %v737
      %v770 = vunpack.c.l.b16 %v738
      %v771 = vunpack.c.l.b16 %v739
      %v772 = vunpack.c.l.b16 %v740
      %v773 = vunpack.c.l.b16 %v741
      %v774 = vunpack.c.l.b16 %v742
      %v775 = vunpack.c.l.b16 %v743
      %v776 = vunpack.c.l.b16 %v744
      %v777 = vunpack.c.l.b16 %v745
      %v778 = vunpack.c.l.b16 %v746
      %v779 = vunpack.c.l.b16 %v747
      %v780 = vunpack.c.l.b16 %v748
      %v781 = vunpack.c.l.b16 %v749
      %v782 = vunpack.c.l.b16 %v750
      %v783 = vpack.c.b16 %v768, %v767
      %v784 = vpack.c.b16 %v770, %v769
      %v785 = vpack.c.b16 %v772, %v771
      %v786 = vpack.c.b16 %v774, %v773
      %v787 = vpack.c.b16 %v776, %v775
      %v788 = vpack.c.b16 %v778, %v777
      %v789 = vpack.c.b16 %v780, %v779
      %v790 = vpack.c.b16 %v782, %v781
      %799 = vmatpush.bf16.msra.mxu0 %v790
      %800 = vmatpush.bf16.msra.mxu0 %v789
      %801 = vmatpush.bf16.msra.mxu0 %v788
      %802 = vmatpush.bf16.msra.mxu0 %v787
      %803 = vmatpush.bf16.msra.mxu0 %v786
      %804 = vmatpush.bf16.msra.mxu0 %v785
      %805 = vmatpush.bf16.msra.mxu0 %v784
      %806 = vmatpush.bf16.msra.mxu0 %v783
      %807 = vmatmul.bf16.gmra.mxu0 %v734
      %v808 = vpop.f32.mrf.mxu0
      %v809 = vadd.f32 0.0, %v808
      %v810 = vpop.f32.mrf.mxu0
      %v811 = vadd.f32 0.0, %v810
      %812 = vdwg.mxu0
      %v813 = vadd.f32 %v730, %v809
      %v814 = vadd.f32 %v731, %v811
      %v815 = vld [vmem:[#allocation2 + $0x9] sm:$0xff]
      %v816 = vld [vmem:[#allocation2 + $0x11] sm:$0xff]
      %v817 = vpack.c.bf16 %v816, %v815
      %v818 = vld [vmem:[%s2 + $0x1c0] sm:$0xf]
      %v819 = vld [vmem:[%s2 + $0x1c4] sm:$0xf]
      %v820 = vld [vmem:[%s2 + $0x1c8] sm:$0xf]
      %v821 = vld [vmem:[%s2 + $0x1cc] sm:$0xf]
      %v822 = vld [vmem:[%s2 + $0x1d0] sm:$0xf]
      %v823 = vld [vmem:[%s2 + $0x1d4] sm:$0xf]
      %v824 = vld [vmem:[%s2 + $0x1d8] sm:$0xf]
      %v825 = vld [vmem:[%s2 + $0x1dc] sm:$0xf]
      %v826 = vld [vmem:[%s2 + $0x1e0] sm:$0xf]
      %v827 = vld [vmem:[%s2 + $0x1e4] sm:$0xf]
      %v828 = vld [vmem:[%s2 + $0x1e8] sm:$0xf]
      %v829 = vld [vmem:[%s2 + $0x1ec] sm:$0xf]
      %v830 = vld [vmem:[%s2 + $0x1f0] sm:$0xf]
      %v831 = vld [vmem:[%s2 + $0x1f4] sm:$0xf]
      %v832 = vld [vmem:[%s2 + $0x1f8] sm:$0xf]
      %v833 = vld [vmem:[%s2 + $0x1fc] sm:$0xf]
      %v850 = vunpack.c.l.b16 %v818
      %v851 = vunpack.c.l.b16 %v819
      %v852 = vunpack.c.l.b16 %v820
      %v853 = vunpack.c.l.b16 %v821
      %v854 = vunpack.c.l.b16 %v822
      %v855 = vunpack.c.l.b16 %v823
      %v856 = vunpack.c.l.b16 %v824
      %v857 = vunpack.c.l.b16 %v825
      %v858 = vunpack.c.l.b16 %v826
      %v859 = vunpack.c.l.b16 %v827
      %v860 = vunpack.c.l.b16 %v828
      %v861 = vunpack.c.l.b16 %v829
      %v862 = vunpack.c.l.b16 %v830
      %v863 = vunpack.c.l.b16 %v831
      %v864 = vunpack.c.l.b16 %v832
      %v865 = vunpack.c.l.b16 %v833
      %v866 = vpack.c.b16 %v851, %v850
      %v867 = vpack.c.b16 %v853, %v852
      %v868 = vpack.c.b16 %v855, %v854
      %v869 = vpack.c.b16 %v857, %v856
      %v870 = vpack.c.b16 %v859, %v858
      %v871 = vpack.c.b16 %v861, %v860
      %v872 = vpack.c.b16 %v863, %v862
      %v873 = vpack.c.b16 %v865, %v864
      %882 = vmatpush.bf16.msra.mxu0 %v873
      %883 = vmatpush.bf16.msra.mxu0 %v872
      %884 = vmatpush.bf16.msra.mxu0 %v871
      %885 = vmatpush.bf16.msra.mxu0 %v870
      %886 = vmatpush.bf16.msra.mxu0 %v869
      %887 = vmatpush.bf16.msra.mxu0 %v868
      %888 = vmatpush.bf16.msra.mxu0 %v867
      %889 = vmatpush.bf16.msra.mxu0 %v866
      %890 = vmatmul.bf16.gmra.mxu0 %v817
      %v891 = vpop.f32.mrf.mxu0
      %v892 = vadd.f32 0.0, %v891
      %v893 = vpop.f32.mrf.mxu0
      %v894 = vadd.f32 0.0, %v893
      %895 = vdwg.mxu0
      %v896 = vadd.f32 %v813, %v892
      %v897 = vadd.f32 %v814, %v894
      %v898 = vld [vmem:[#allocation2 + $0xa] sm:$0xff]
      %v899 = vld [vmem:[#allocation2 + $0x12] sm:$0xff]
      %v900 = vpack.c.bf16 %v899, %v898
      %v901 = vld [vmem:[%s2 + $0x200] sm:$0xf]
      %v902 = vld [vmem:[%s2 + $0x204] sm:$0xf]
      %v903 = vld [vmem:[%s2 + $0x208] sm:$0xf]
      %v904 = vld [vmem:[%s2 + $0x20c] sm:$0xf]
      %v905 = vld [vmem:[%s2 + $0x210] sm:$0xf]
      %v906 = vld [vmem:[%s2 + $0x214] sm:$0xf]
      %v907 = vld [vmem:[%s2 + $0x218] sm:$0xf]
      %v908 = vld [vmem:[%s2 + $0x21c] sm:$0xf]
      %v909 = vld [vmem:[%s2 + $0x220] sm:$0xf]
      %v910 = vld [vmem:[%s2 + $0x224] sm:$0xf]
      %v911 = vld [vmem:[%s2 + $0x228] sm:$0xf]
      %v912 = vld [vmem:[%s2 + $0x22c] sm:$0xf]
      %v913 = vld [vmem:[%s2 + $0x230] sm:$0xf]
      %v914 = vld [vmem:[%s2 + $0x234] sm:$0xf]
      %v915 = vld [vmem:[%s2 + $0x238] sm:$0xf]
      %v916 = vld [vmem:[%s2 + $0x23c] sm:$0xf]
      %v933 = vunpack.c.l.b16 %v901
      %v934 = vunpack.c.l.b16 %v902
      %v935 = vunpack.c.l.b16 %v903
      %v936 = vunpack.c.l.b16 %v904
      %v937 = vunpack.c.l.b16 %v905
      %v938 = vunpack.c.l.b16 %v906
      %v939 = vunpack.c.l.b16 %v907
      %v940 = vunpack.c.l.b16 %v908
      %v941 = vunpack.c.l.b16 %v909
      %v942 = vunpack.c.l.b16 %v910
      %v943 = vunpack.c.l.b16 %v911
      %v944 = vunpack.c.l.b16 %v912
      %v945 = vunpack.c.l.b16 %v913
      %v946 = vunpack.c.l.b16 %v914
      %v947 = vunpack.c.l.b16 %v915
      %v948 = vunpack.c.l.b16 %v916
      %v949 = vpack.c.b16 %v934, %v933
      %v950 = vpack.c.b16 %v936, %v935
      %v951 = vpack.c.b16 %v938, %v937
      %v952 = vpack.c.b16 %v940, %v939
      %v953 = vpack.c.b16 %v942, %v941
      %v954 = vpack.c.b16 %v944, %v943
      %v955 = vpack.c.b16 %v946, %v945
      %v956 = vpack.c.b16 %v948, %v947
      %965 = vmatpush.bf16.msra.mxu0 %v956
      %966 = vmatpush.bf16.msra.mxu0 %v955
      %967 = vmatpush.bf16.msra.mxu0 %v954
      %968 = vmatpush.bf16.msra.mxu0 %v953
      %969 = vmatpush.bf16.msra.mxu0 %v952
      %970 = vmatpush.bf16.msra.mxu0 %v951
      %971 = vmatpush.bf16.msra.mxu0 %v950
      %972 = vmatpush.bf16.msra.mxu0 %v949
      %973 = vmatmul.bf16.gmra.mxu0 %v900
      %v974 = vpop.f32.mrf.mxu0
      %v975 = vadd.f32 0.0, %v974
      %v976 = vpop.f32.mrf.mxu0
      %v977 = vadd.f32 0.0, %v976
      %978 = vdwg.mxu0
      %v979 = vadd.f32 %v896, %v975
      %v980 = vadd.f32 %v897, %v977
      %v981 = vld [vmem:[%s3] sm:$0x1]
      %v983 = vperm.slane %v981, 0
      %v985 = vadd.f32 %v979, %v983
      %v986 = vadd.f32 %v980, %v983
      %v987 = vmax.f32 %v985, 0.0
      %v988 = vmax.f32 %v986, 0.0
      %989 = vst [vmem:[%s228] sm:$0xff] %v987
      %990 = vst [vmem:[%s228 + $0x8] sm:$0xff] %v988
      %s991 = smul.u32 2, %s15
      %p992 = scmp.lt.s32.totalorder %s991, 3
      %s993 = scalar_select %p992, %s991, 3
      %s994 = smul.addr %s993, 8
      %s995 = scalar_lea.vmem %s4, %s994
      // Predicated region
      $region37: #{_lambda_.29} parent=35 // pred_check
        %p996 = pneg %p129
      $region38: #{_lambda_.29} parent=35 // pred_check_branch
        %998 = sbr.rel (%p996) target = $region40
      $region39: #{_lambda_.29} parent=35 // pred_region
        %s999 = smul.u32 2, %s15
      $region40: #{_lambda_.29} parent=35 // pred_fallthru
        _
    $region36: #{_lambda_.29} parent=5 // pred_fallthru
      _
    %p1000 = scmp.le.s32.totalorder 2, %s10
    // Predicated region
    $region41: #{_lambda_.29} parent=5 // pred_check
      %p1001 = pneg %p1000
    $region42: #{_lambda_.29} parent=5 // pred_check_branch
      %1003 = sbr.rel (%p1001) target = $region44
    $region43: #{_lambda_.29} parent=5 // pred_region
      %s1004 = ssub.s32 %s10, 2
      // Predicated region
      $region45: #{_lambda_.29} parent=43 // pred_check
        %p1005 = pneg %p135
      $region46: #{_lambda_.29} parent=43 // pred_check_branch
        %1007 = sbr.rel (%p1005) target = $region48
      $region47: #{_lambda_.29} parent=43 // pred_region
        %s1008 = smul.u32 2, %s16
        %p1009 = scmp.lt.s32.totalorder %s1008, 3
        %s1010 = scalar_select %p1009, %s1008, 3
        %s1011 = smul.addr %s1010, 8
        %s1012 = scalar_lea.vmem %s4, %s1011
      $region48: #{_lambda_.29} parent=43 // pred_fallthru
        _
    $region44: #{_lambda_.29} parent=5 // pred_fallthru
      _
  $region6: #{_lambda_.29} parent=0 // loop_footer
    %s14 = sadd.s32 1, %s10
  $region7: #{_lambda_.29} parent=0 // loop_footer_branch
    %9 = sbr.rel target = $region3
  $region8: #{_lambda_.29} parent=0 // loop_exit
    _

</llo_original>
